<compile_context>
chip_gen: v7x
topology: tpu7x:2x2x1
jax: 0.10.0
libtpu: 0.0.40
codegen_flags: <defaults>
</compile_context>

<pallas_src>
import functools
from math import sqrt

import numpy as np
import jax
import jax.numpy as jnp
from jax.experimental import pallas as pl
from jax.experimental.pallas import tpu as pltpu


_VMEM_BLOCK_BUDGET = 6 * 1024 * 1024   # soft per-operand block budget (bytes)


# ------------------------------ helpers -------------------------------------

def _num_parallel_chunks():
    """2 for dual-TensorCore chips (v7x-class), else 1 (v5e / v6e are 1 TC/chip)."""
    try:
        kind = jax.devices()[0].device_kind.lower()
    except Exception:
        return 1
    return 2 if "v7" in kind else 1


def _choose_steps(n_items, bytes_per_item, min_steps, row_multiple=1):
    """Smallest divisor of n_items giving >= min_steps grid steps whose block
    fits the soft VMEM budget.  Single step on 1-TC chips whenever it fits
    (per-step overhead ~0.35us and bigger MXU M-rows beat fake parallelism)."""
    for d in range(1, n_items + 1):
        if n_items % d:
            continue
        if d < min_steps:
            continue
        per = n_items // d
        if per * bytes_per_item > _VMEM_BLOCK_BUDGET:
            continue
        if d > 1 and row_multiple > 1 and per % row_multiple:
            continue
        return d
    return 1


# ----------------------------- Pallas kernels -------------------------------

def _linear_kernel(x_ref, w_ref, b_ref, o_ref):
    o_ref[...] = (jnp.dot(x_ref[...].astype(jnp.bfloat16), w_ref[...],
                          preferred_element_type=jnp.float32) + b_ref[0])


def pallas_linear(x2d, w_bf16, b, n_chunks):
    """Row-tiled matmul + bias (PatchMerge 3x3/s2 conv as im2col matmul)."""
    M, K = x2d.shape
    N = w_bf16.shape[1]
    steps = _choose_steps(M, K * 4, n_chunks, row_multiple=8)
    R = M // steps
    return pl.pallas_call(
        _linear_kernel,
        out_shape=jax.ShapeDtypeStruct((M, N), jnp.float32),
        grid=(steps,),
        in_specs=[pl.BlockSpec((R, K), lambda i: (i, 0)),
                  pl.BlockSpec((K, N), lambda i: (0, 0)),      # weight resident (bf16)
                  pl.BlockSpec((1, N), lambda i: (0, 0))],
        out_specs=pl.BlockSpec((R, N), lambda i: (i, 0)),
        compiler_params=pltpu.CompilerParams(dimension_semantics=("parallel",)),
    )(x2d, w_bf16, b.reshape(1, N))


def _swin_block_kernel(xw_ref, bias_ref, mask_ref,
                       g1_ref, b1_ref, wqkv_ref, bqkv_ref, wproj_ref, bproj_ref,
                       g2_ref, b2_ref, w1_ref, bm1_ref, w2_ref, bm2_ref,
                       gf_ref, bf_ref, o_ref,
                       *, num_heads, windows_per_image, eps, apply_final_norm):
    """One full Swin block on the windows of `nimg` images:
       LN1 + W-MSA + residual + LN2 + MLP + residual (+ optional stage-final LN).

    Demo sizes per grid step on 1-TC chips: G = B*nW = 8 windows, N = 16 tokens,
    C = 32 channels -> 128-row MXU matmuls for QKV / proj / fc1 / fc2."""
    xw = xw_ref[...]                                     # (G, N, C) raw (pre-norm) f32
    G, N, C = xw.shape
    nh = num_heads
    hd = C // nh
    nW = windows_per_image
    nimg = G // nW
    x2 = xw.reshape(G * N, C)

    def layernorm(z, g_ref, b_ref):
        mu = jnp.mean(z, axis=-1, keepdims=True)
        var = jnp.mean(jnp.square(z - mu), axis=-1, keepdims=True)
        return (z - mu) * jax.lax.rsqrt(var + eps) * g_ref[0] + b_ref[0]

    # ------------------------- attention branch -------------------------
    xn = layernorm(x2, g1_ref, b1_ref)
    # qk scale is pre-folded into the q columns of wqkv / bqkv at param prep.
    qkv = (jnp.dot(xn.astype(jnp.bfloat16), wqkv_ref[...],
                   preferred_element_type=jnp.float32) + bqkv_ref[0])
    qkv3 = qkv.reshape(G, N, 3 * C)

    # Head-batched q/k/v with batch index b = h*G + g (lane slices + leading-axis
    # concat: cheap sublane copies, on a lowering path proven in the prior version).
    def split_heads(col0):
        return jnp.concatenate(
            [qkv3[:, :, col0 + h * hd: col0 + (h + 1) * hd] for h in range(nh)],
            axis=0)                                      # (nh*G, N, hd)
    q = split_heads(0)
    k = split_heads(C)
    v = split_heads(2 * C)

    # ONE batched score matmul + ONE batched context matmul for all heads/windows.
    s = jnp.einsum('bqd,bkd->bqk', q.astype(jnp.bfloat16), k.astype(jnp.bfloat16),
                   preferred_element_type=jnp.float32)   # (nh*G, N, N)
    s = s.reshape(nh, G, N, N) + bias_ref[...][:, None, :, :]     # rel-pos bias
    if mask_ref.shape[0] == 1:                                    # non-shifted: zeros
        mk = jnp.broadcast_to(mask_ref[...], (G, N, N))
    else:                                                         # shifted: per-window
        mk = jnp.broadcast_to(mask_ref[...][None],
                              (nimg, nW, N, N)).reshape(G, N, N)
    s = (s + mk[None]).reshape(nh * G, N, N)
    s = s - jnp.max(s, axis=-1, keepdims=True)
    p = jnp.exp(s)
    p = p * pl.reciprocal(jnp.sum(p, axis=-1, keepdims=True), approx=True)

    ctx = jnp.einsum('bqk,bkd->bqd', p.astype(jnp.bfloat16), v.astype(jnp.bfloat16),
                     preferred_element_type=jnp.float32)  # (nh*G, N, hd)
    # head-major channel concat per token (== torch .transpose(1,2).reshape(..,C))
    ctx = jnp.concatenate([ctx[h * G:(h + 1) * G] for h in range(nh)], axis=-1)
    ctx = ctx.reshape(G * N, C)

    attn_out = (jnp.dot(ctx.astype(jnp.bfloat16), wproj_ref[...],
                        preferred_element_type=jnp.float32) + bproj_ref[0])
    h1 = x2 + attn_out                                   # residual 1 (fused)

    # --------------------------- MLP branch -----------------------------
    xn2 = layernorm(h1, g2_ref, b2_ref)
    hmid = (jnp.dot(xn2.astype(jnp.bfloat16), w1_ref[...],
                    preferred_element_type=jnp.float32) + bm1_ref[0])
    # exact (erf-based) GELU matching torch.nn.GELU default, kept in f32
    hmid = 0.5 * hmid * (1.0 + jax.lax.erf(hmid * np.float32(1.0 / np.sqrt(2.0))))
    mlp_out = (jnp.dot(hmid.astype(jnp.bfloat16), w2_ref[...],
                       preferred_element_type=jnp.float32) + bm2_ref[0])
    out = h1 + mlp_out                                   # residual 2 (fused)

    if apply_final_norm:                                 # stage-final LayerNorm fused
        out = layernorm(out, gf_ref, bf_ref)

    o_ref[...] = out.reshape(G, N, C)


def pallas_swin_block(xw, rel_bias, mask, bp, final_g, final_b, *,
                      num_heads, windows_per_image, n_chunks,
                      apply_final_norm, eps=1e-5):
    Bw, N, C = xw.shape
    nW = windows_per_image
    n_img = Bw // nW
    steps = _choose_steps(n_img, nW * N * C * 4, n_chunks)
    G = (n_img // steps) * nW
    hid = bp['fc1_w'].shape[1]
    const2 = lambda i: (0, 0)
    const3 = lambda i: (0, 0, 0)
    kern = functools.partial(_swin_block_kernel, num_heads=num_heads,
                             windows_per_image=nW, eps=eps,
                             apply_final_norm=apply_final_norm)
    return pl.pallas_call(
        kern,
        out_shape=jax.ShapeDtypeStruct((Bw, N, C), jnp.float32),
        grid=(steps,),
        in_specs=[pl.BlockSpec((G, N, C), lambda i: (i, 0, 0)),
                  pl.BlockSpec(rel_bias.shape, const3),   # (heads, N, N) resident
                  pl.BlockSpec(mask.shape, const3),       # (nW|1, N, N)  resident
                  pl.BlockSpec((1, C), const2),           # norm1 gamma
                  pl.BlockSpec((1, C), const2),           # norm1 beta
                  pl.BlockSpec((C, 3 * C), const2),       # qkv weight (bf16, scale folded)
                  pl.BlockSpec((1, 3 * C), const2),       # qkv bias
                  pl.BlockSpec((C, C), const2),           # proj weight (bf16)
                  pl.BlockSpec((1, C), const2),           # proj bias
                  pl.BlockSpec((1, C), const2),           # norm2 gamma
                  pl.BlockSpec((1, C), const2),           # norm2 beta
                  pl.BlockSpec((C, hid), const2),         # fc1 weight (bf16)
                  pl.BlockSpec((1, hid), const2),         # fc1 bias
                  pl.BlockSpec((hid, C), const2),         # fc2 weight (bf16)
                  pl.BlockSpec((1, C), const2),           # fc2 bias
                  pl.BlockSpec((1, C), const2),           # stage-final LN gamma
                  pl.BlockSpec((1, C), const2)],          # stage-final LN beta
        out_specs=pl.BlockSpec((G, N, C), lambda i: (i, 0, 0)),
        compiler_params=pltpu.CompilerParams(dimension_semantics=("parallel",)),
    )(xw, rel_bias, mask,
      bp['norm1_g'].reshape(1, C), bp['norm1_b'].reshape(1, C),
      bp['qkv_w'], bp['qkv_b'].reshape(1, 3 * C),
      bp['proj_w'], bp['proj_b'].reshape(1, C),
      bp['norm2_g'].reshape(1, C), bp['norm2_b'].reshape(1, C),
      bp['fc1_w'], bp['fc1_b'].reshape(1, hid),
      bp['fc2_w'], bp['fc2_b'].reshape(1, C),
      final_g.reshape(1, C), final_b.reshape(1, C))


# ------------------------------- JAX glue ------------------------------------

def window_partition_j(x, ws):
    B, H, W, C = x.shape
    x = x.reshape(B, H // ws, ws, W // ws, ws, C)
    return x.transpose(0, 1, 3, 2, 4, 5).reshape(-1, ws, ws, C)


def window_reverse_j(windows, ws, H, W):
    B = windows.shape[0] // (H * W // ws // ws)
    x = windows.reshape(B, H // ws, W // ws, ws, ws, -1)
    return x.transpose(0, 1, 3, 2, 4, 5).reshape(B, H, W, -1)


def create_attn_mask_np(H, W, ws, shift):
    Hp = int(np.ceil(H / ws)) * ws
    Wp = int(np.ceil(W / ws)) * ws
    img_mask = np.zeros((1, Hp, Wp, 1), np.float32)
    h_slices = (slice(0, -ws), slice(-ws, -shift), slice(-shift, None))
    w_slices = (slice(0, -ws), slice(-ws, -shift), slice(-shift, None))
    cnt = 0
    for h in h_slices:
        for w in w_slices:
            img_mask[:, h, w, :] = cnt
            cnt += 1
    mw = img_mask.reshape(1, Hp // ws, ws, Wp // ws, ws, 1)
    mw = mw.transpose(0, 1, 3, 2, 4, 5).reshape(-1, ws * ws)
    am = mw[:, None, :] - mw[:, :, None]
    am = np.where(am != 0, np.float32(-100.0), np.float32(0.0)).astype(np.float32)
    return am                                                    # (nW, N, N)


def patch_merge(x, conv_w_flat_bf16, conv_b, n_chunks):
    """PatchMerge: Conv2d(Cin, Cout, 3, stride=2, padding=1) as im2col + Pallas matmul."""
    B, L, Cin = x.shape
    H = W = int(round(sqrt(L)))
    x_nhwc = x.reshape(B, H, W, Cin)
    xp = jnp.pad(x_nhwc, ((0, 0), (1, 1), (1, 1), (0, 0)))
    Ho, Wo = H // 2, W // 2
    # TODO(synk): fold this 9-tap im2col gather into the Pallas matmul via an
    # overlapped index_map to avoid materializing the 9x-inflated HBM tensor.
    cols = jnp.concatenate(
        [xp[:, di:di + 2 * Ho:2, dj:dj + 2 * Wo:2, :]
         for di in range(3) for dj in range(3)], axis=-1)        # (B, Ho, Wo, 9*Cin)
    pm = cols.reshape(B * Ho * Wo, 9 * Cin)
    Cout = conv_w_flat_bf16.shape[1]
    y = pallas_linear(pm, conv_w_flat_bf16, conv_b, n_chunks)    # (B*Ho*Wo, Cout)
    return y.reshape(B, Ho * Wo, Cout)


def swin_block_forward(x, bp, H, W, ws, shift, num_heads, n_chunks,
                       apply_final_norm, final_g, final_b):
    B, L, C = x.shape
    xr = x.reshape(B, H, W, C)
    pad_r = (ws - W % ws) % ws
    pad_b = (ws - H % ws) % ws
    if pad_r or pad_b:
        # NOTE: the fused kernel layer-norms the zero padding (PyTorch pads the
        # already-normalized tensor); identical when no padding is needed (demo)
        # or norm1 beta == 0.  TODO(synk): pad the normalized tensor for parity.
        xr = jnp.pad(xr, ((0, 0), (0, pad_b), (0, pad_r), (0, 0)))
    Hp, Wp = H + pad_b, W + pad_r
    xs = jnp.roll(xr, shift=(-shift, -shift), axis=(1, 2)) if shift > 0 else xr

    N = ws * ws
    nW = (Hp // ws) * (Wp // ws)
    xw = window_partition_j(xs, ws).reshape(-1, N, C)            # (B*nW, N, C)

    # ONE fused pallas_call per block: LN1+attn+res + LN2+MLP+res (+ final LN).
    # Window partition / roll are token permutations, and all fused ops are
    # per-token (or within-window), so they commute with residuals / MLP / LN.
    ow = pallas_swin_block(xw, bp['rel_bias'], bp['mask'], bp, final_g, final_b,
                           num_heads=num_heads, windows_per_image=nW,
                           n_chunks=n_chunks, apply_final_norm=apply_final_norm)

    ow = ow.reshape(-1, ws, ws, C)
    xs = window_reverse_j(ow, ws, Hp, Wp)
    xr = jnp.roll(xs, shift=(shift, shift), axis=(1, 2)) if shift > 0 else xs
    if pad_r or pad_b:
        xr = xr[:, :H, :W, :]
    return xr.reshape(B, H * W, C)


def basic_encoder_layer_forward(x, params, cfg):
    n_chunks = _num_parallel_chunks()
    x = patch_merge(x, params['merge_w'], params['merge_b'], n_chunks)
    H, W = cfg['input_resolution']
    ws = cfg['window_size']
    # mirror SWinTransformerBlock.__init__ effective window / shift adjustment
    if min(H, W) <= ws:
        ws_eff, can_shift = min(H, W), False
    else:
        ws_eff, can_shift = ws, True
    depth = len(params['blocks'])
    for i, bp in enumerate(params['blocks']):
        shift = (ws // 2) if (can_shift and i % 2 == 1) else 0
        x = swin_block_forward(x, bp, H, W, ws_eff, shift, cfg['num_heads'],
                               n_chunks, apply_final_norm=(i == depth - 1),
                               final_g=params['norm_g'], final_b=params['norm_b'])
    # stage-final LayerNorm is fused into the last block's kernel (per-token op,
    # so it commutes with the window-reverse permutation).  Requires depth >= 1.
    x_trace = x                              # detach().clone(): identical values
    return x, x_trace


# ---------------------------- parameter init ---------------------------------

def init_params(key, dim, depth, num_heads, window_size, mlp_ratio, input_resolution):
    Cin = dim // 2
    hidden = round(dim * mlp_ratio)

    # effective window size / shift policy (same as the PyTorch module __init__)
    if min(input_resolution) <= window_size:
        ws_eff, can_shift = min(input_resolution), False
    else:
        ws_eff, can_shift = window_size, True
    N = ws_eff * ws_eff
    scale = (dim // num_heads) ** (-0.5)

    keys = list(jax.random.split(key, 2 + depth * 6))
    ki = iter(keys)

    def w(shape):
        return jax.random.normal(next(ki), shape, jnp.float32) * 0.02

    params = {}
    # PatchMerge conv weight in PyTorch layout (Cout, Cin, 3, 3) -> flat matmul layout
    conv_w = w((dim, Cin, 3, 3))
    params['merge_w'] = (jnp.transpose(conv_w, (2, 3, 1, 0))
                         .reshape(9 * Cin, dim).astype(jnp.bfloat16))
    params['merge_b'] = jnp.zeros((dim,), jnp.float32)
    params['norm_g'] = jnp.ones((dim,), jnp.float32)
    params['norm_b'] = jnp.zeros((dim,), jnp.float32)

    # relative position index (same construction as the PyTorch module)
    coords = np.stack(np.meshgrid(np.arange(ws_eff), np.arange(ws_eff), indexing='ij'))
    cf = coords.reshape(2, -1)
    rel = (cf[:, :, None] - cf[:, None, :]).transpose(1, 2, 0).astype(np.int64)
    rel[:, :, 0] += ws_eff - 1
    rel[:, :, 1] += ws_eff - 1
    rel[:, :, 0] *= 2 * ws_eff - 1
    rel_index = rel.sum(-1)                                      # (N, N)

    # fold the qk scale into the q columns of the QKV weight (param prep)
    qscale = jnp.concatenate([jnp.full((dim,), scale, jnp.float32),
                              jnp.ones((2 * dim,), jnp.float32)])

    blocks = []
    for i in range(depth):
        shift = (window_size // 2) if (can_shift and i % 2 == 1) else 0
        bp = {}
        bp['norm1_g'] = jnp.ones((dim,), jnp.float32)
        bp['norm1_b'] = jnp.zeros((dim,), jnp.float32)
        bp['norm2_g'] = jnp.ones((dim,), jnp.float32)
        bp['norm2_b'] = jnp.zeros((dim,), jnp.float32)
        # matmul weights stored bf16 (MXU-native); biases / norms stay f32
        bp['qkv_w'] = (w((dim, 3 * dim)) * qscale[None, :]).astype(jnp.bfloat16)
        bp['qkv_b'] = jnp.zeros((3 * dim,), jnp.float32)
        bp['proj_w'] = w((dim, dim)).astype(jnp.bfloat16)
        bp['proj_b'] = jnp.zeros((dim,), jnp.float32)
        table = jax.random.truncated_normal(
            next(ki), -2.0, 2.0,
            ((2 * ws_eff - 1) ** 2, num_heads), jnp.float32) * 0.02
        rb = table[rel_index.reshape(-1)].reshape(N, N, num_heads)
        bp['rel_bias'] = jnp.transpose(rb, (2, 0, 1))            # (heads, N, N)
        if shift > 0:
            bp['mask'] = jnp.asarray(create_attn_mask_np(
                input_resolution[0], input_resolution[1], ws_eff, shift))  # (nW, N, N)
        else:
            bp['mask'] = jnp.zeros((1, N, N), jnp.float32)       # no shift mask
        bp['fc1_w'] = w((dim, hidden)).astype(jnp.bfloat16)
        bp['fc1_b'] = jnp.zeros((hidden,), jnp.float32)
        bp['fc2_w'] = w((hidden, dim)).astype(jnp.bfloat16)
        bp['fc2_b'] = jnp.zeros((dim,), jnp.float32)
        blocks.append(bp)
    params['blocks'] = blocks
    return params


# --------------------------------- main ---------------------------------------

if __name__ == "__main__":
    dim = 32            # block channels (downsample input has dim // 2 = 16)
    depth = 2
    num_heads = 4
    window_size = 4
    mlp_ratio = 4.0
    B = 2
    H_in = W_in = 16                            # resolution BEFORE PatchMerge
    input_resolution = (H_in // 2, W_in // 2)   # resolution the Swin blocks see

    key = jax.random.PRNGKey(0)
    kx, kp = jax.random.split(key)
    x = jax.random.normal(kx, (B, H_in * W_in, dim // 2), jnp.float32)
    params = init_params(kp, dim, depth, num_heads, window_size, mlp_ratio,
                         input_resolution)

    cfg = dict(input_resolution=input_resolution,
               window_size=window_size,
               num_heads=num_heads)

    @jax.jit
    def forward(x, params):
        return basic_encoder_layer_forward(x, params, cfg)

    out, out_trace = forward(x, params)
    jax.block_until_ready(out)
    jax.block_until_ready(out_trace)
    assert out.shape == (B, input_resolution[0] * input_resolution[1], dim)
    assert out_trace.shape == out.shape
    assert bool(jnp.all(jnp.isfinite(out)))
    print("KERNEL_OK")
</pallas_src>

<mosaic_0001>
module attributes {stable_mosaic.version = 11 : i64} {
  func.func @_linear_kernel(%arg0: i32, %arg1: memref<128x144xf32, #tpu.memory_space<vmem>>, %arg2: memref<144x32xbf16, #tpu.memory_space<vmem>>, %arg3: memref<1x32xf32, #tpu.memory_space<vmem>>, %arg4: memref<128x32xf32, #tpu.memory_space<vmem>>) attributes {dimension_semantics = [#tpu.dimension_semantics<parallel>], iteration_bounds = array<i64: 1>, scalar_prefetch = 0 : i64, scratch_operands = 0 : i64, tpu.core_type = #tpu.core_type<tc>, window_params = [{transform_indices = @transform_0, window_bounds = array<i64: 128, 144>}, {pipeline_mode = #tpu.pipeline_mode<synchronous>, transform_indices = @transform_1, window_bounds = array<i64: 144, 32>}, {pipeline_mode = #tpu.pipeline_mode<synchronous>, transform_indices = @transform_2, window_bounds = array<i64: 1, 32>}, {transform_indices = @transform_3, window_bounds = array<i64: 128, 32>}]} {
    %c0 = arith.constant 0 : index
    %c0_0 = arith.constant 0 : index
    %0 = vector.load %arg1[%c0, %c0_0] : memref<128x144xf32, #tpu.memory_space<vmem>>, vector<128x144xf32>
    %1 = arith.truncf %0 : vector<128x144xf32> to vector<128x144xbf16>
    %c0_1 = arith.constant 0 : index
    %c0_2 = arith.constant 0 : index
    %2 = vector.load %arg2[%c0_1, %c0_2] : memref<144x32xbf16, #tpu.memory_space<vmem>>, vector<144x32xbf16>
    %cst = arith.constant dense<0.000000e+00> : vector<128x32xf32>
    %3 = tpu.matmul %1, %2, %cst {dimension_numbers = #tpu.dot_dimension_numbers<[1], [0], [0], [1], [0, 0, 1, 1], [], []>} : vector<128x144xbf16>, vector<144x32xbf16>, vector<128x32xf32> -> vector<128x32xf32>
    %c0_3 = arith.constant 0 : index
    %c0_4 = arith.constant 0 : index
    %4 = vector.load %arg3[%c0_3, %c0_4] : memref<1x32xf32, #tpu.memory_space<vmem>>, vector<1x32xf32>
    %5 = vector.shape_cast %4 : vector<1x32xf32> to vector<32xf32>
    %6 = vector.shape_cast %5 : vector<32xf32> to vector<1x32xf32>
    %7 = vector.broadcast %6 : vector<1x32xf32> to vector<128x32xf32>
    %8 = arith.addf %3, %7 : vector<128x32xf32>
    %c0_5 = arith.constant 0 : index
    %c0_6 = arith.constant 0 : index
    %9 = vector.load %arg4[%c0_5, %c0_6] : memref<128x32xf32, #tpu.memory_space<vmem>>, vector<128x32xf32>
    tpu.vector_store %arg4[%c0_5, %c0_6], %8 {strides = array<i32>} : memref<128x32xf32, #tpu.memory_space<vmem>>, vector<128x32xf32>,
    return
  }
  func.func @transform_0(%arg0: i32) -> (i32, i32) {
    %c0_i32 = arith.constant 0 : i32
    %c0_i32_0 = arith.constant 0 : i32
    return %arg0, %c0_i32 : i32, i32
  }
  func.func @transform_1(%arg0: i32) -> (i32, i32) {
    %c0_i32 = arith.constant 0 : i32
    %c0_i32_0 = arith.constant 0 : i32
    %c0_i32_1 = arith.constant 0 : i32
    return %c0_i32, %c0_i32_0 : i32, i32
  }
  func.func @transform_2(%arg0: i32) -> (i32, i32) {
    %c0_i32 = arith.constant 0 : i32
    %c0_i32_0 = arith.constant 0 : i32
    %c0_i32_1 = arith.constant 0 : i32
    return %c0_i32, %c0_i32_0 : i32, i32
  }
  func.func @transform_3(%arg0: i32) -> (i32, i32) {
    %c0_i32 = arith.constant 0 : i32
    %c0_i32_0 = arith.constant 0 : i32
    return %arg0, %c0_i32 : i32, i32
  }
}

module attributes {stable_mosaic.version = 11 : i64} {
  func.func @_swin_block_kernel(%arg0: i32, %arg1: memref<8x16x32xf32, #tpu.memory_space<vmem>>, %arg2: memref<4x16x16xf32, #tpu.memory_space<vmem>>, %arg3: memref<1x16x16xf32, #tpu.memory_space<vmem>>, %arg4: memref<1x32xf32, #tpu.memory_space<vmem>>, %arg5: memref<1x32xf32, #tpu.memory_space<vmem>>, %arg6: memref<32x96xbf16, #tpu.memory_space<vmem>>, %arg7: memref<1x96xf32, #tpu.memory_space<vmem>>, %arg8: memref<32x32xbf16, #tpu.memory_space<vmem>>, %arg9: memref<1x32xf32, #tpu.memory_space<vmem>>, %arg10: memref<1x32xf32, #tpu.memory_space<vmem>>, %arg11: memref<1x32xf32, #tpu.memory_space<vmem>>, %arg12: memref<32x128xbf16, #tpu.memory_space<vmem>>, %arg13: memref<1x128xf32, #tpu.memory_space<vmem>>, %arg14: memref<128x32xbf16, #tpu.memory_space<vmem>>, %arg15: memref<1x32xf32, #tpu.memory_space<vmem>>, %arg16: memref<1x32xf32, #tpu.memory_space<vmem>>, %arg17: memref<1x32xf32, #tpu.memory_space<vmem>>, %arg18: memref<8x16x32xf32, #tpu.memory_space<vmem>>) attributes {dimension_semantics = [#tpu.dimension_semantics<parallel>], iteration_bounds = array<i64: 1>, scalar_prefetch = 0 : i64, scratch_operands = 0 : i64, tpu.core_type = #tpu.core_type<tc>, window_params = [{transform_indices = @transform_0, window_bounds = array<i64: 8, 16, 32>}, {pipeline_mode = #tpu.pipeline_mode<synchronous>, transform_indices = @transform_1, window_bounds = array<i64: 4, 16, 16>}, {pipeline_mode = #tpu.pipeline_mode<synchronous>, transform_indices = @transform_2, window_bounds = array<i64: 1, 16, 16>}, {pipeline_mode = #tpu.pipeline_mode<synchronous>, transform_indices = @transform_3, window_bounds = array<i64: 1, 32>}, {pipeline_mode = #tpu.pipeline_mode<synchronous>, transform_indices = @transform_4, window_bounds = array<i64: 1, 32>}, {pipeline_mode = #tpu.pipeline_mode<synchronous>, transform_indices = @transform_5, window_bounds = array<i64: 32, 96>}, {pipeline_mode = #tpu.pipeline_mode<synchronous>, transform_indices = @transform_6, window_bounds = array<i64: 1, 96>}, {pipeline_mode = #tpu.pipeline_mode<synchronous>, transform_indices = @transform_7, window_bounds = array<i64: 32, 32>}, {pipeline_mode = #tpu.pipeline_mode<synchronous>, transform_indices = @transform_8, window_bounds = array<i64: 1, 32>}, {pipeline_mode = #tpu.pipeline_mode<synchronous>, transform_indices = @transform_9, window_bounds = array<i64: 1, 32>}, {pipeline_mode = #tpu.pipeline_mode<synchronous>, transform_indices = @transform_10, window_bounds = array<i64: 1, 32>}, {pipeline_mode = #tpu.pipeline_mode<synchronous>, transform_indices = @transform_11, window_bounds = array<i64: 32, 128>}, {pipeline_mode = #tpu.pipeline_mode<synchronous>, transform_indices = @transform_12, window_bounds = array<i64: 1, 128>}, {pipeline_mode = #tpu.pipeline_mode<synchronous>, transform_indices = @transform_13, window_bounds = array<i64: 128, 32>}, {pipeline_mode = #tpu.pipeline_mode<synchronous>, transform_indices = @transform_14, window_bounds = array<i64: 1, 32>}, {pipeline_mode = #tpu.pipeline_mode<synchronous>, transform_indices = @transform_15, window_bounds = array<i64: 1, 32>}, {pipeline_mode = #tpu.pipeline_mode<synchronous>, transform_indices = @transform_16, window_bounds = array<i64: 1, 32>}, {transform_indices = @transform_17, window_bounds = array<i64: 8, 16, 32>}]} {
    %c0 = arith.constant 0 : index
    %c0_0 = arith.constant 0 : index
    %c0_1 = arith.constant 0 : index
    %0 = vector.load %arg1[%c0, %c0_0, %c0_1] : memref<8x16x32xf32, #tpu.memory_space<vmem>>, vector<8x16x32xf32>
    %1 = vector.shape_cast %0 : vector<8x16x32xf32> to vector<128x32xf32>
    %cst = arith.constant dense<0.000000e+00> : vector<128xf32>
    %2 = vector.multi_reduction <add>, %1, %cst [1] : vector<128x32xf32> to vector<128xf32>
    %3 = vector.shape_cast %2 : vector<128xf32> to vector<128x1xf32>
    %cst_2 = arith.constant 3.200000e+01 : f32
    %4 = vector.broadcast %cst_2 : f32 to vector<128x1xf32>
    %5 = arith.divf %3, %4 : vector<128x1xf32>
    %6 = vector.broadcast %5 : vector<128x1xf32> to vector<128x32xf32>
    %7 = arith.subf %1, %6 : vector<128x32xf32>
    %8 = arith.mulf %7, %7 : vector<128x32xf32>
    %cst_3 = arith.constant dense<0.000000e+00> : vector<128xf32>
    %9 = vector.multi_reduction <add>, %8, %cst_3 [1] : vector<128x32xf32> to vector<128xf32>
    %10 = vector.shape_cast %9 : vector<128xf32> to vector<128x1xf32>
    %cst_4 = arith.constant 3.200000e+01 : f32
    %11 = vector.broadcast %cst_4 : f32 to vector<128x1xf32>
    %12 = arith.divf %10, %11 : vector<128x1xf32>
    %13 = vector.broadcast %5 : vector<128x1xf32> to vector<128x32xf32>
    %14 = arith.subf %1, %13 : vector<128x32xf32>
    %cst_5 = arith.constant 9.99999974E-6 : f32
    %15 = vector.broadcast %cst_5 : f32 to vector<128x1xf32>
    %16 = arith.addf %12, %15 : vector<128x1xf32>
    %17 = math.rsqrt %16 : vector<128x1xf32>
    %18 = vector.broadcast %17 : vector<128x1xf32> to vector<128x32xf32>
    %19 = arith.mulf %14, %18 : vector<128x32xf32>
    %c0_6 = arith.constant 0 : index
    %c0_7 = arith.constant 0 : index
    %20 = vector.load %arg4[%c0_6, %c0_7] : memref<1x32xf32, #tpu.memory_space<vmem>>, vector<1x32xf32>
    %21 = vector.shape_cast %20 : vector<1x32xf32> to vector<32xf32>
    %22 = vector.shape_cast %21 : vector<32xf32> to vector<1x32xf32>
    %23 = vector.broadcast %22 : vector<1x32xf32> to vector<128x32xf32>
    %24 = arith.mulf %19, %23 : vector<128x32xf32>
    %c0_8 = arith.constant 0 : index
    %c0_9 = arith.constant 0 : index
    %25 = vector.load %arg5[%c0_8, %c0_9] : memref<1x32xf32, #tpu.memory_space<vmem>>, vector<1x32xf32>
    %26 = vector.shape_cast %25 : vector<1x32xf32> to vector<32xf32>
    %27 = vector.shape_cast %26 : vector<32xf32> to vector<1x32xf32>
    %28 = vector.broadcast %27 : vector<1x32xf32> to vector<128x32xf32>
    %29 = arith.addf %24, %28 : vector<128x32xf32>
    %30 = arith.truncf %29 : vector<128x32xf32> to vector<128x32xbf16>
    %c0_10 = arith.constant 0 : index
    %c0_11 = arith.constant 0 : index
    %31 = vector.load %arg6[%c0_10, %c0_11] : memref<32x96xbf16, #tpu.memory_space<vmem>>, vector<32x96xbf16>
    %cst_12 = arith.constant dense<0.000000e+00> : vector<128x96xf32>
    %32 = tpu.matmul %30, %31, %cst_12 {dimension_numbers = #tpu.dot_dimension_numbers<[1], [0], [0], [1], [0, 0, 1, 1], [], []>} : vector<128x32xbf16>, vector<32x96xbf16>, vector<128x96xf32> -> vector<128x96xf32>
    %c0_13 = arith.constant 0 : index
    %c0_14 = arith.constant 0 : index
    %33 = vector.load %arg7[%c0_13, %c0_14] : memref<1x96xf32, #tpu.memory_space<vmem>>, vector<1x96xf32>
    %34 = vector.shape_cast %33 : vector<1x96xf32> to vector<96xf32>
    %35 = vector.shape_cast %34 : vector<96xf32> to vector<1x96xf32>
    %36 = vector.broadcast %35 : vector<1x96xf32> to vector<128x96xf32>
    %37 = arith.addf %32, %36 : vector<128x96xf32>
    %38 = vector.shape_cast %37 : vector<128x96xf32> to vector<8x16x96xf32>
    %39 = vector.extract_strided_slice %38 {offsets = [0, 0, 0], sizes = [8, 16, 8], strides = [1, 1, 1]} : vector<8x16x96xf32> to vector<8x16x8xf32>
    %40 = vector.extract_strided_slice %38 {offsets = [0, 0, 8], sizes = [8, 16, 8], strides = [1, 1, 1]} : vector<8x16x96xf32> to vector<8x16x8xf32>
    %41 = vector.extract_strided_slice %38 {offsets = [0, 0, 16], sizes = [8, 16, 8], strides = [1, 1, 1]} : vector<8x16x96xf32> to vector<8x16x8xf32>
    %42 = vector.extract_strided_slice %38 {offsets = [0, 0, 24], sizes = [8, 16, 8], strides = [1, 1, 1]} : vector<8x16x96xf32> to vector<8x16x8xf32>
    %43 = tpu.concatenate %39, %40, %41, %42 in 0 : vector<8x16x8xf32>, vector<8x16x8xf32>, vector<8x16x8xf32>, vector<8x16x8xf32> -> vector<32x16x8xf32>
    %44 = vector.extract_strided_slice %38 {offsets = [0, 0, 32], sizes = [8, 16, 8], strides = [1, 1, 1]} : vector<8x16x96xf32> to vector<8x16x8xf32>
    %45 = vector.extract_strided_slice %38 {offsets = [0, 0, 40], sizes = [8, 16, 8], strides = [1, 1, 1]} : vector<8x16x96xf32> to vector<8x16x8xf32>
    %46 = vector.extract_strided_slice %38 {offsets = [0, 0, 48], sizes = [8, 16, 8], strides = [1, 1, 1]} : vector<8x16x96xf32> to vector<8x16x8xf32>
    %47 = vector.extract_strided_slice %38 {offsets = [0, 0, 56], sizes = [8, 16, 8], strides = [1, 1, 1]} : vector<8x16x96xf32> to vector<8x16x8xf32>
    %48 = tpu.concatenate %44, %45, %46, %47 in 0 : vector<8x16x8xf32>, vector<8x16x8xf32>, vector<8x16x8xf32>, vector<8x16x8xf32> -> vector<32x16x8xf32>
    %49 = vector.extract_strided_slice %38 {offsets = [0, 0, 64], sizes = [8, 16, 8], strides = [1, 1, 1]} : vector<8x16x96xf32> to vector<8x16x8xf32>
    %50 = vector.extract_strided_slice %38 {offsets = [0, 0, 72], sizes = [8, 16, 8], strides = [1, 1, 1]} : vector<8x16x96xf32> to vector<8x16x8xf32>
    %51 = vector.extract_strided_slice %38 {offsets = [0, 0, 80], sizes = [8, 16, 8], strides = [1, 1, 1]} : vector<8x16x96xf32> to vector<8x16x8xf32>
    %52 = vector.extract_strided_slice %38 {offsets = [0, 0, 88], sizes = [8, 16, 8], strides = [1, 1, 1]} : vector<8x16x96xf32> to vector<8x16x8xf32>
    %53 = tpu.concatenate %49, %50, %51, %52 in 0 : vector<8x16x8xf32>, vector<8x16x8xf32>, vector<8x16x8xf32>, vector<8x16x8xf32> -> vector<32x16x8xf32>
    %54 = arith.truncf %43 : vector<32x16x8xf32> to vector<32x16x8xbf16>
    %55 = arith.truncf %48 : vector<32x16x8xf32> to vector<32x16x8xbf16>
    "tpu.trace_start"() <{level = 10 : i32, message = "bqd,bkd->bqk"}> : () -> ()
    %cst_15 = arith.constant dense<0.000000e+00> : vector<32x16x16xf32>
    %56 = tpu.matmul %54, %55, %cst_15 {dimension_numbers = #tpu.dot_dimension_numbers<[2], [2], [1], [1], [0, 0, 0, 1, 1, 1], [0], [0]>} : vector<32x16x8xbf16>, vector<32x16x8xbf16>, vector<32x16x16xf32> -> vector<32x16x16xf32>
    "tpu.trace_stop"() : () -> ()
    %57 = vector.shape_cast %56 : vector<32x16x16xf32> to vector<4x8x16x16xf32>
    %c0_16 = arith.constant 0 : index
    %c0_17 = arith.constant 0 : index
    %c0_18 = arith.constant 0 : index
    %58 = vector.load %arg2[%c0_16, %c0_17, %c0_18] : memref<4x16x16xf32, #tpu.memory_space<vmem>>, vector<4x16x16xf32>
    %59 = vector.shape_cast %58 : vector<4x16x16xf32> to vector<4x1x16x16xf32>
    %60 = vector.broadcast %59 : vector<4x1x16x16xf32> to vector<4x8x16x16xf32>
    %61 = arith.addf %57, %60 : vector<4x8x16x16xf32>
    %c0_19 = arith.constant 0 : index
    %c0_20 = arith.constant 0 : index
    %c0_21 = arith.constant 0 : index
    %62 = vector.load %arg3[%c0_19, %c0_20, %c0_21] : memref<1x16x16xf32, #tpu.memory_space<vmem>>, vector<1x16x16xf32>
    %63 = vector.shape_cast %62 : vector<1x16x16xf32> to vector<1x16x16xf32>
    %64 = vector.broadcast %63 : vector<1x16x16xf32> to vector<8x16x16xf32>
    %65 = vector.shape_cast %64 : vector<8x16x16xf32> to vector<1x8x16x16xf32>
    %66 = vector.broadcast %65 : vector<1x8x16x16xf32> to vector<4x8x16x16xf32>
    %67 = arith.addf %61, %66 : vector<4x8x16x16xf32>
    %68 = vector.shape_cast %67 : vector<4x8x16x16xf32> to vector<32x16x16xf32>
    %cst_22 = arith.constant dense<0xFF800000> : vector<32x16xf32>
    %69 = vector.multi_reduction <maximumf>, %68, %cst_22 [2] : vector<32x16x16xf32> to vector<32x16xf32>
    %70 = vector.shape_cast %69 : vector<32x16xf32> to vector<32x16x1xf32>
    %71 = vector.broadcast %70 : vector<32x16x1xf32> to vector<32x16x16xf32>
    %72 = arith.subf %68, %71 : vector<32x16x16xf32>
    %73 = math.exp %72 : vector<32x16x16xf32>
    %cst_23 = arith.constant dense<0.000000e+00> : vector<32x16xf32>
    %74 = vector.multi_reduction <add>, %73, %cst_23 [2] : vector<32x16x16xf32> to vector<32x16xf32>
    %75 = vector.shape_cast %74 : vector<32x16xf32> to vector<32x16x1xf32>
    %76 = tpu.reciprocal %75 {approx = true} : vector<32x16x1xf32> -> vector<32x16x1xf32>
    %77 = vector.broadcast %76 : vector<32x16x1xf32> to vector<32x16x16xf32>
    %78 = arith.mulf %73, %77 : vector<32x16x16xf32>
    %79 = arith.truncf %78 : vector<32x16x16xf32> to vector<32x16x16xbf16>
    %80 = arith.truncf %53 : vector<32x16x8xf32> to vector<32x16x8xbf16>
    "tpu.trace_start"() <{level = 10 : i32, message = "bqk,bkd->bqd"}> : () -> ()
    %cst_24 = arith.constant dense<0.000000e+00> : vector<32x16x8xf32>
    %81 = tpu.matmul %79, %80, %cst_24 {dimension_numbers = #tpu.dot_dimension_numbers<[2], [1], [1], [2], [0, 0, 0, 1, 1, 2], [0], [0]>} : vector<32x16x16xbf16>, vector<32x16x8xbf16>, vector<32x16x8xf32> -> vector<32x16x8xf32>
    "tpu.trace_stop"() : () -> ()
    %82 = vector.extract_strided_slice %81 {offsets = [0, 0, 0], sizes = [8, 16, 8], strides = [1, 1, 1]} : vector<32x16x8xf32> to vector<8x16x8xf32>
    %83 = vector.extract_strided_slice %81 {offsets = [8, 0, 0], sizes = [8, 16, 8], strides = [1, 1, 1]} : vector<32x16x8xf32> to vector<8x16x8xf32>
    %84 = vector.extract_strided_slice %81 {offsets = [16, 0, 0], sizes = [8, 16, 8], strides = [1, 1, 1]} : vector<32x16x8xf32> to vector<8x16x8xf32>
    %85 = vector.extract_strided_slice %81 {offsets = [24, 0, 0], sizes = [8, 16, 8], strides = [1, 1, 1]} : vector<32x16x8xf32> to vector<8x16x8xf32>
    %86 = tpu.concatenate %82, %83, %84, %85 in 2 : vector<8x16x8xf32>, vector<8x16x8xf32>, vector<8x16x8xf32>, vector<8x16x8xf32> -> vector<8x16x32xf32>
    %87 = vector.shape_cast %86 : vector<8x16x32xf32> to vector<128x32xf32>
    %88 = arith.truncf %87 : vector<128x32xf32> to vector<128x32xbf16>
    %c0_25 = arith.constant 0 : index
    %c0_26 = arith.constant 0 : index
    %89 = vector.load %arg8[%c0_25, %c0_26] : memref<32x32xbf16, #tpu.memory_space<vmem>>, vector<32x32xbf16>
    %cst_27 = arith.constant dense<0.000000e+00> : vector<128x32xf32>
    %90 = tpu.matmul %88, %89, %cst_27 {dimension_numbers = #tpu.dot_dimension_numbers<[1], [0], [0], [1], [0, 0, 1, 1], [], []>} : vector<128x32xbf16>, vector<32x32xbf16>, vector<128x32xf32> -> vector<128x32xf32>
    %c0_28 = arith.constant 0 : index
    %c0_29 = arith.constant 0 : index
    %91 = vector.load %arg9[%c0_28, %c0_29] : memref<1x32xf32, #tpu.memory_space<vmem>>, vector<1x32xf32>
    %92 = vector.shape_cast %91 : vector<1x32xf32> to vector<32xf32>
    %93 = vector.shape_cast %92 : vector<32xf32> to vector<1x32xf32>
    %94 = vector.broadcast %93 : vector<1x32xf32> to vector<128x32xf32>
    %95 = arith.addf %90, %94 : vector<128x32xf32>
    %96 = arith.addf %1, %95 : vector<128x32xf32>
    %cst_30 = arith.constant dense<0.000000e+00> : vector<128xf32>
    %97 = vector.multi_reduction <add>, %96, %cst_30 [1] : vector<128x32xf32> to vector<128xf32>
    %98 = vector.shape_cast %97 : vector<128xf32> to vector<128x1xf32>
    %cst_31 = arith.constant 3.200000e+01 : f32
    %99 = vector.broadcast %cst_31 : f32 to vector<128x1xf32>
    %100 = arith.divf %98, %99 : vector<128x1xf32>
    %101 = vector.broadcast %100 : vector<128x1xf32> to vector<128x32xf32>
    %102 = arith.subf %96, %101 : vector<128x32xf32>
    %103 = arith.mulf %102, %102 : vector<128x32xf32>
    %cst_32 = arith.constant dense<0.000000e+00> : vector<128xf32>
    %104 = vector.multi_reduction <add>, %103, %cst_32 [1] : vector<128x32xf32> to vector<128xf32>
    %105 = vector.shape_cast %104 : vector<128xf32> to vector<128x1xf32>
    %cst_33 = arith.constant 3.200000e+01 : f32
    %106 = vector.broadcast %cst_33 : f32 to vector<128x1xf32>
    %107 = arith.divf %105, %106 : vector<128x1xf32>
    %108 = vector.broadcast %100 : vector<128x1xf32> to vector<128x32xf32>
    %109 = arith.subf %96, %108 : vector<128x32xf32>
    %cst_34 = arith.constant 9.99999974E-6 : f32
    %110 = vector.broadcast %cst_34 : f32 to vector<128x1xf32>
    %111 = arith.addf %107, %110 : vector<128x1xf32>
    %112 = math.rsqrt %111 : vector<128x1xf32>
    %113 = vector.broadcast %112 : vector<128x1xf32> to vector<128x32xf32>
    %114 = arith.mulf %109, %113 : vector<128x32xf32>
    %c0_35 = arith.constant 0 : index
    %c0_36 = arith.constant 0 : index
    %115 = vector.load %arg10[%c0_35, %c0_36] : memref<1x32xf32, #tpu.memory_space<vmem>>, vector<1x32xf32>
    %116 = vector.shape_cast %115 : vector<1x32xf32> to vector<32xf32>
    %117 = vector.shape_cast %116 : vector<32xf32> to vector<1x32xf32>
    %118 = vector.broadcast %117 : vector<1x32xf32> to vector<128x32xf32>
    %119 = arith.mulf %114, %118 : vector<128x32xf32>
    %c0_37 = arith.constant 0 : index
    %c0_38 = arith.constant 0 : index
    %120 = vector.load %arg11[%c0_37, %c0_38] : memref<1x32xf32, #tpu.memory_space<vmem>>, vector<1x32xf32>
    %121 = vector.shape_cast %120 : vector<1x32xf32> to vector<32xf32>
    %122 = vector.shape_cast %121 : vector<32xf32> to vector<1x32xf32>
    %123 = vector.broadcast %122 : vector<1x32xf32> to vector<128x32xf32>
    %124 = arith.addf %119, %123 : vector<128x32xf32>
    %125 = arith.truncf %124 : vector<128x32xf32> to vector<128x32xbf16>
    %c0_39 = arith.constant 0 : index
    %c0_40 = arith.constant 0 : index
    %126 = vector.load %arg12[%c0_39, %c0_40] : memref<32x128xbf16, #tpu.memory_space<vmem>>, vector<32x128xbf16>
    %cst_41 = arith.constant dense<0.000000e+00> : vector<128x128xf32>
    %127 = tpu.matmul %125, %126, %cst_41 {dimension_numbers = #tpu.dot_dimension_numbers<[1], [0], [0], [1], [0, 0, 1, 1], [], []>} : vector<128x32xbf16>, vector<32x128xbf16>, vector<128x128xf32> -> vector<128x128xf32>
    %c0_42 = arith.constant 0 : index
    %c0_43 = arith.constant 0 : index
    %128 = vector.load %arg13[%c0_42, %c0_43] : memref<1x128xf32, #tpu.memory_space<vmem>>, vector<1x128xf32>
    %129 = vector.shape_cast %128 : vector<1x128xf32> to vector<128xf32>
    %130 = vector.shape_cast %129 : vector<128xf32> to vector<1x128xf32>
    %131 = vector.broadcast %130 : vector<1x128xf32> to vector<128x128xf32>
    %132 = arith.addf %127, %131 : vector<128x128xf32>
    %cst_44 = arith.constant 5.000000e-01 : f32
    %133 = vector.broadcast %cst_44 : f32 to vector<128x128xf32>
    %134 = arith.mulf %133, %132 : vector<128x128xf32>
    %cst_45 = arith.constant 0.707106769 : f32
    %135 = vector.broadcast %cst_45 : f32 to vector<128x128xf32>
    %136 = arith.mulf %132, %135 : vector<128x128xf32>
    %137 = math.erf %136 : vector<128x128xf32>
    %cst_46 = arith.constant 1.000000e+00 : f32
    %138 = vector.broadcast %cst_46 : f32 to vector<128x128xf32>
    %139 = arith.addf %138, %137 : vector<128x128xf32>
    %140 = arith.mulf %134, %139 : vector<128x128xf32>
    %141 = arith.truncf %140 : vector<128x128xf32> to vector<128x128xbf16>
    %c0_47 = arith.constant 0 : index
    %c0_48 = arith.constant 0 : index
    %142 = vector.load %arg14[%c0_47, %c0_48] : memref<128x32xbf16, #tpu.memory_space<vmem>>, vector<128x32xbf16>
    %cst_49 = arith.constant dense<0.000000e+00> : vector<128x32xf32>
    %143 = tpu.matmul %141, %142, %cst_49 {dimension_numbers = #tpu.dot_dimension_numbers<[1], [0], [0], [1], [0, 0, 1, 1], [], []>} : vector<128x128xbf16>, vector<128x32xbf16>, vector<128x32xf32> -> vector<128x32xf32>
    %c0_50 = arith.constant 0 : index
    %c0_51 = arith.constant 0 : index
    %144 = vector.load %arg15[%c0_50, %c0_51] : memref<1x32xf32, #tpu.memory_space<vmem>>, vector<1x32xf32>
    %145 = vector.shape_cast %144 : vector<1x32xf32> to vector<32xf32>
    %146 = vector.shape_cast %145 : vector<32xf32> to vector<1x32xf32>
    %147 = vector.broadcast %146 : vector<1x32xf32> to vector<128x32xf32>
    %148 = arith.addf %143, %147 : vector<128x32xf32>
    %149 = arith.addf %96, %148 : vector<128x32xf32>
    %150 = vector.shape_cast %149 : vector<128x32xf32> to vector<8x16x32xf32>
    %c0_52 = arith.constant 0 : index
    %c0_53 = arith.constant 0 : index
    %c0_54 = arith.constant 0 : index
    %151 = vector.load %arg18[%c0_52, %c0_53, %c0_54] : memref<8x16x32xf32, #tpu.memory_space<vmem>>, vector<8x16x32xf32>
    tpu.vector_store %arg18[%c0_52, %c0_53, %c0_54], %150 {strides = array<i32>} : memref<8x16x32xf32, #tpu.memory_space<vmem>>, vector<8x16x32xf32>,
    return
  }
  func.func @transform_0(%arg0: i32) -> (i32, i32, i32) {
    %c0_i32 = arith.constant 0 : i32
    %c0_i32_0 = arith.constant 0 : i32
    %c0_i32_1 = arith.constant 0 : i32
    return %arg0, %c0_i32, %c0_i32_0 : i32, i32, i32
  }
  func.func @transform_1(%arg0: i32) -> (i32, i32, i32) {
    %c0_i32 = arith.constant 0 : i32
    %c0_i32_0 = arith.constant 0 : i32
    %c0_i32_1 = arith.constant 0 : i32
    %c0_i32_2 = arith.constant 0 : i32
    return %c0_i32, %c0_i32_0, %c0_i32_1 : i32, i32, i32
  }
  func.func @transform_2(%arg0: i32) -> (i32, i32, i32) {
    %c0_i32 = arith.constant 0 : i32
    %c0_i32_0 = arith.constant 0 : i32
    %c0_i32_1 = arith.constant 0 : i32
    %c0_i32_2 = arith.constant 0 : i32
    return %c0_i32, %c0_i32_0, %c0_i32_1 : i32, i32, i32
  }
  func.func @transform_3(%arg0: i32) -> (i32, i32) {
    %c0_i32 = arith.constant 0 : i32
    %c0_i32_0 = arith.constant 0 : i32
    %c0_i32_1 = arith.constant 0 : i32
    return %c0_i32, %c0_i32_0 : i32, i32
  }
  func.func @transform_4(%arg0: i32) -> (i32, i32) {
    %c0_i32 = arith.constant 0 : i32
    %c0_i32_0 = arith.constant 0 : i32
    %c0_i32_1 = arith.constant 0 : i32
    return %c0_i32, %c0_i32_0 : i32, i32
  }
  func.func @transform_5(%arg0: i32) -> (i32, i32) {
    %c0_i32 = arith.constant 0 : i32
    %c0_i32_0 = arith.constant 0 : i32
    %c0_i32_1 = arith.constant 0 : i32
    return %c0_i32, %c0_i32_0 : i32, i32
  }
  func.func @transform_6(%arg0: i32) -> (i32, i32) {
    %c0_i32 = arith.constant 0 : i32
    %c0_i32_0 = arith.constant 0 : i32
    %c0_i32_1 = arith.constant 0 : i32
    return %c0_i32, %c0_i32_0 : i32, i32
  }
  func.func @transform_7(%arg0: i32) -> (i32, i32) {
    %c0_i32 = arith.constant 0 : i32
    %c0_i32_0 = arith.constant 0 : i32
    %c0_i32_1 = arith.constant 0 : i32
    return %c0_i32, %c0_i32_0 : i32, i32
  }
  func.func @transform_8(%arg0: i32) -> (i32, i32) {
    %c0_i32 = arith.constant 0 : i32
    %c0_i32_0 = arith.constant 0 : i32
    %c0_i32_1 = arith.constant 0 : i32
    return %c0_i32, %c0_i32_0 : i32, i32
  }
  func.func @transform_9(%arg0: i32) -> (i32, i32) {
    %c0_i32 = arith.constant 0 : i32
    %c0_i32_0 = arith.constant 0 : i32
    %c0_i32_1 = arith.constant 0 : i32
    return %c0_i32, %c0_i32_0 : i32, i32
  }
  func.func @transform_10(%arg0: i32) -> (i32, i32) {
    %c0_i32 = arith.constant 0 : i32
    %c0_i32_0 = arith.constant 0 : i32
    %c0_i32_1 = arith.constant 0 : i32
    return %c0_i32, %c0_i32_0 : i32, i32
  }
  func.func @transform_11(%arg0: i32) -> (i32, i32) {
    %c0_i32 = arith.constant 0 : i32
    %c0_i32_0 = arith.constant 0 : i32
    %c0_i32_1 = arith.constant 0 : i32
    return %c0_i32, %c0_i32_0 : i32, i32
  }
  func.func @transform_12(%arg0: i32) -> (i32, i32) {
    %c0_i32 = arith.constant 0 : i32
    %c0_i32_0 = arith.constant 0 : i32
    %c0_i32_1 = arith.constant 0 : i32
    return %c0_i32, %c0_i32_0 : i32, i32
  }
  func.func @transform_13(%arg0: i32) -> (i32, i32) {
    %c0_i32 = arith.constant 0 : i32
    %c0_i32_0 = arith.constant 0 : i32
    %c0_i32_1 = arith.constant 0 : i32
    return %c0_i32, %c0_i32_0 : i32, i32
  }
  func.func @transform_14(%arg0: i32) -> (i32, i32) {
    %c0_i32 = arith.constant 0 : i32
    %c0_i32_0 = arith.constant 0 : i32
    %c0_i32_1 = arith.constant 0 : i32
    return %c0_i32, %c0_i32_0 : i32, i32
  }
  func.func @transform_15(%arg0: i32) -> (i32, i32) {
    %c0_i32 = arith.constant 0 : i32
    %c0_i32_0 = arith.constant 0 : i32
    %c0_i32_1 = arith.constant 0 : i32
    return %c0_i32, %c0_i32_0 : i32, i32
  }
  func.func @transform_16(%arg0: i32) -> (i32, i32) {
    %c0_i32 = arith.constant 0 : i32
    %c0_i32_0 = arith.constant 0 : i32
    %c0_i32_1 = arith.constant 0 : i32
    return %c0_i32, %c0_i32_0 : i32, i32
  }
  func.func @transform_17(%arg0: i32) -> (i32, i32, i32) {
    %c0_i32 = arith.constant 0 : i32
    %c0_i32_0 = arith.constant 0 : i32
    %c0_i32_1 = arith.constant 0 : i32
    return %arg0, %c0_i32, %c0_i32_0 : i32, i32, i32
  }
}

module attributes {stable_mosaic.version = 11 : i64} {
  func.func @_swin_block_kernel(%arg0: i32, %arg1: memref<8x16x32xf32, #tpu.memory_space<vmem>>, %arg2: memref<4x16x16xf32, #tpu.memory_space<vmem>>, %arg3: memref<4x16x16xf32, #tpu.memory_space<vmem>>, %arg4: memref<1x32xf32, #tpu.memory_space<vmem>>, %arg5: memref<1x32xf32, #tpu.memory_space<vmem>>, %arg6: memref<32x96xbf16, #tpu.memory_space<vmem>>, %arg7: memref<1x96xf32, #tpu.memory_space<vmem>>, %arg8: memref<32x32xbf16, #tpu.memory_space<vmem>>, %arg9: memref<1x32xf32, #tpu.memory_space<vmem>>, %arg10: memref<1x32xf32, #tpu.memory_space<vmem>>, %arg11: memref<1x32xf32, #tpu.memory_space<vmem>>, %arg12: memref<32x128xbf16, #tpu.memory_space<vmem>>, %arg13: memref<1x128xf32, #tpu.memory_space<vmem>>, %arg14: memref<128x32xbf16, #tpu.memory_space<vmem>>, %arg15: memref<1x32xf32, #tpu.memory_space<vmem>>, %arg16: memref<1x32xf32, #tpu.memory_space<vmem>>, %arg17: memref<1x32xf32, #tpu.memory_space<vmem>>, %arg18: memref<8x16x32xf32, #tpu.memory_space<vmem>>) attributes {dimension_semantics = [#tpu.dimension_semantics<parallel>], iteration_bounds = array<i64: 1>, scalar_prefetch = 0 : i64, scratch_operands = 0 : i64, tpu.core_type = #tpu.core_type<tc>, window_params = [{transform_indices = @transform_0, window_bounds = array<i64: 8, 16, 32>}, {pipeline_mode = #tpu.pipeline_mode<synchronous>, transform_indices = @transform_1, window_bounds = array<i64: 4, 16, 16>}, {pipeline_mode = #tpu.pipeline_mode<synchronous>, transform_indices = @transform_2, window_bounds = array<i64: 4, 16, 16>}, {pipeline_mode = #tpu.pipeline_mode<synchronous>, transform_indices = @transform_3, window_bounds = array<i64: 1, 32>}, {pipeline_mode = #tpu.pipeline_mode<synchronous>, transform_indices = @transform_4, window_bounds = array<i64: 1, 32>}, {pipeline_mode = #tpu.pipeline_mode<synchronous>, transform_indices = @transform_5, window_bounds = array<i64: 32, 96>}, {pipeline_mode = #tpu.pipeline_mode<synchronous>, transform_indices = @transform_6, window_bounds = array<i64: 1, 96>}, {pipeline_mode = #tpu.pipeline_mode<synchronous>, transform_indices = @transform_7, window_bounds = array<i64: 32, 32>}, {pipeline_mode = #tpu.pipeline_mode<synchronous>, transform_indices = @transform_8, window_bounds = array<i64: 1, 32>}, {pipeline_mode = #tpu.pipeline_mode<synchronous>, transform_indices = @transform_9, window_bounds = array<i64: 1, 32>}, {pipeline_mode = #tpu.pipeline_mode<synchronous>, transform_indices = @transform_10, window_bounds = array<i64: 1, 32>}, {pipeline_mode = #tpu.pipeline_mode<synchronous>, transform_indices = @transform_11, window_bounds = array<i64: 32, 128>}, {pipeline_mode = #tpu.pipeline_mode<synchronous>, transform_indices = @transform_12, window_bounds = array<i64: 1, 128>}, {pipeline_mode = #tpu.pipeline_mode<synchronous>, transform_indices = @transform_13, window_bounds = array<i64: 128, 32>}, {pipeline_mode = #tpu.pipeline_mode<synchronous>, transform_indices = @transform_14, window_bounds = array<i64: 1, 32>}, {pipeline_mode = #tpu.pipeline_mode<synchronous>, transform_indices = @transform_15, window_bounds = array<i64: 1, 32>}, {pipeline_mode = #tpu.pipeline_mode<synchronous>, transform_indices = @transform_16, window_bounds = array<i64: 1, 32>}, {transform_indices = @transform_17, window_bounds = array<i64: 8, 16, 32>}]} {
    %c0 = arith.constant 0 : index
    %c0_0 = arith.constant 0 : index
    %c0_1 = arith.constant 0 : index
    %0 = vector.load %arg1[%c0, %c0_0, %c0_1] : memref<8x16x32xf32, #tpu.memory_space<vmem>>, vector<8x16x32xf32>
    %1 = vector.shape_cast %0 : vector<8x16x32xf32> to vector<128x32xf32>
    %cst = arith.constant dense<0.000000e+00> : vector<128xf32>
    %2 = vector.multi_reduction <add>, %1, %cst [1] : vector<128x32xf32> to vector<128xf32>
    %3 = vector.shape_cast %2 : vector<128xf32> to vector<128x1xf32>
    %cst_2 = arith.constant 3.200000e+01 : f32
    %4 = vector.broadcast %cst_2 : f32 to vector<128x1xf32>
    %5 = arith.divf %3, %4 : vector<128x1xf32>
    %6 = vector.broadcast %5 : vector<128x1xf32> to vector<128x32xf32>
    %7 = arith.subf %1, %6 : vector<128x32xf32>
    %8 = arith.mulf %7, %7 : vector<128x32xf32>
    %cst_3 = arith.constant dense<0.000000e+00> : vector<128xf32>
    %9 = vector.multi_reduction <add>, %8, %cst_3 [1] : vector<128x32xf32> to vector<128xf32>
    %10 = vector.shape_cast %9 : vector<128xf32> to vector<128x1xf32>
    %cst_4 = arith.constant 3.200000e+01 : f32
    %11 = vector.broadcast %cst_4 : f32 to vector<128x1xf32>
    %12 = arith.divf %10, %11 : vector<128x1xf32>
    %13 = vector.broadcast %5 : vector<128x1xf32> to vector<128x32xf32>
    %14 = arith.subf %1, %13 : vector<128x32xf32>
    %cst_5 = arith.constant 9.99999974E-6 : f32
    %15 = vector.broadcast %cst_5 : f32 to vector<128x1xf32>
    %16 = arith.addf %12, %15 : vector<128x1xf32>
    %17 = math.rsqrt %16 : vector<128x1xf32>
    %18 = vector.broadcast %17 : vector<128x1xf32> to vector<128x32xf32>
    %19 = arith.mulf %14, %18 : vector<128x32xf32>
    %c0_6 = arith.constant 0 : index
    %c0_7 = arith.constant 0 : index
    %20 = vector.load %arg4[%c0_6, %c0_7] : memref<1x32xf32, #tpu.memory_space<vmem>>, vector<1x32xf32>
    %21 = vector.shape_cast %20 : vector<1x32xf32> to vector<32xf32>
    %22 = vector.shape_cast %21 : vector<32xf32> to vector<1x32xf32>
    %23 = vector.broadcast %22 : vector<1x32xf32> to vector<128x32xf32>
    %24 = arith.mulf %19, %23 : vector<128x32xf32>
    %c0_8 = arith.constant 0 : index
    %c0_9 = arith.constant 0 : index
    %25 = vector.load %arg5[%c0_8, %c0_9] : memref<1x32xf32, #tpu.memory_space<vmem>>, vector<1x32xf32>
    %26 = vector.shape_cast %25 : vector<1x32xf32> to vector<32xf32>
    %27 = vector.shape_cast %26 : vector<32xf32> to vector<1x32xf32>
    %28 = vector.broadcast %27 : vector<1x32xf32> to vector<128x32xf32>
    %29 = arith.addf %24, %28 : vector<128x32xf32>
    %30 = arith.truncf %29 : vector<128x32xf32> to vector<128x32xbf16>
    %c0_10 = arith.constant 0 : index
    %c0_11 = arith.constant 0 : index
    %31 = vector.load %arg6[%c0_10, %c0_11] : memref<32x96xbf16, #tpu.memory_space<vmem>>, vector<32x96xbf16>
    %cst_12 = arith.constant dense<0.000000e+00> : vector<128x96xf32>
    %32 = tpu.matmul %30, %31, %cst_12 {dimension_numbers = #tpu.dot_dimension_numbers<[1], [0], [0], [1], [0, 0, 1, 1], [], []>} : vector<128x32xbf16>, vector<32x96xbf16>, vector<128x96xf32> -> vector<128x96xf32>
    %c0_13 = arith.constant 0 : index
    %c0_14 = arith.constant 0 : index
    %33 = vector.load %arg7[%c0_13, %c0_14] : memref<1x96xf32, #tpu.memory_space<vmem>>, vector<1x96xf32>
    %34 = vector.shape_cast %33 : vector<1x96xf32> to vector<96xf32>
    %35 = vector.shape_cast %34 : vector<96xf32> to vector<1x96xf32>
    %36 = vector.broadcast %35 : vector<1x96xf32> to vector<128x96xf32>
    %37 = arith.addf %32, %36 : vector<128x96xf32>
    %38 = vector.shape_cast %37 : vector<128x96xf32> to vector<8x16x96xf32>
    %39 = vector.extract_strided_slice %38 {offsets = [0, 0, 0], sizes = [8, 16, 8], strides = [1, 1, 1]} : vector<8x16x96xf32> to vector<8x16x8xf32>
    %40 = vector.extract_strided_slice %38 {offsets = [0, 0, 8], sizes = [8, 16, 8], strides = [1, 1, 1]} : vector<8x16x96xf32> to vector<8x16x8xf32>
    %41 = vector.extract_strided_slice %38 {offsets = [0, 0, 16], sizes = [8, 16, 8], strides = [1, 1, 1]} : vector<8x16x96xf32> to vector<8x16x8xf32>
    %42 = vector.extract_strided_slice %38 {offsets = [0, 0, 24], sizes = [8, 16, 8], strides = [1, 1, 1]} : vector<8x16x96xf32> to vector<8x16x8xf32>
    %43 = tpu.concatenate %39, %40, %41, %42 in 0 : vector<8x16x8xf32>, vector<8x16x8xf32>, vector<8x16x8xf32>, vector<8x16x8xf32> -> vector<32x16x8xf32>
    %44 = vector.extract_strided_slice %38 {offsets = [0, 0, 32], sizes = [8, 16, 8], strides = [1, 1, 1]} : vector<8x16x96xf32> to vector<8x16x8xf32>
    %45 = vector.extract_strided_slice %38 {offsets = [0, 0, 40], sizes = [8, 16, 8], strides = [1, 1, 1]} : vector<8x16x96xf32> to vector<8x16x8xf32>
    %46 = vector.extract_strided_slice %38 {offsets = [0, 0, 48], sizes = [8, 16, 8], strides = [1, 1, 1]} : vector<8x16x96xf32> to vector<8x16x8xf32>
    %47 = vector.extract_strided_slice %38 {offsets = [0, 0, 56], sizes = [8, 16, 8], strides = [1, 1, 1]} : vector<8x16x96xf32> to vector<8x16x8xf32>
    %48 = tpu.concatenate %44, %45, %46, %47 in 0 : vector<8x16x8xf32>, vector<8x16x8xf32>, vector<8x16x8xf32>, vector<8x16x8xf32> -> vector<32x16x8xf32>
    %49 = vector.extract_strided_slice %38 {offsets = [0, 0, 64], sizes = [8, 16, 8], strides = [1, 1, 1]} : vector<8x16x96xf32> to vector<8x16x8xf32>
    %50 = vector.extract_strided_slice %38 {offsets = [0, 0, 72], sizes = [8, 16, 8], strides = [1, 1, 1]} : vector<8x16x96xf32> to vector<8x16x8xf32>
    %51 = vector.extract_strided_slice %38 {offsets = [0, 0, 80], sizes = [8, 16, 8], strides = [1, 1, 1]} : vector<8x16x96xf32> to vector<8x16x8xf32>
    %52 = vector.extract_strided_slice %38 {offsets = [0, 0, 88], sizes = [8, 16, 8], strides = [1, 1, 1]} : vector<8x16x96xf32> to vector<8x16x8xf32>
    %53 = tpu.concatenate %49, %50, %51, %52 in 0 : vector<8x16x8xf32>, vector<8x16x8xf32>, vector<8x16x8xf32>, vector<8x16x8xf32> -> vector<32x16x8xf32>
    %54 = arith.truncf %43 : vector<32x16x8xf32> to vector<32x16x8xbf16>
    %55 = arith.truncf %48 : vector<32x16x8xf32> to vector<32x16x8xbf16>
    "tpu.trace_start"() <{level = 10 : i32, message = "bqd,bkd->bqk"}> : () -> ()
    %cst_15 = arith.constant dense<0.000000e+00> : vector<32x16x16xf32>
    %56 = tpu.matmul %54, %55, %cst_15 {dimension_numbers = #tpu.dot_dimension_numbers<[2], [2], [1], [1], [0, 0, 0, 1, 1, 1], [0], [0]>} : vector<32x16x8xbf16>, vector<32x16x8xbf16>, vector<32x16x16xf32> -> vector<32x16x16xf32>
    "tpu.trace_stop"() : () -> ()
    %57 = vector.shape_cast %56 : vector<32x16x16xf32> to vector<4x8x16x16xf32>
    %c0_16 = arith.constant 0 : index
    %c0_17 = arith.constant 0 : index
    %c0_18 = arith.constant 0 : index
    %58 = vector.load %arg2[%c0_16, %c0_17, %c0_18] : memref<4x16x16xf32, #tpu.memory_space<vmem>>, vector<4x16x16xf32>
    %59 = vector.shape_cast %58 : vector<4x16x16xf32> to vector<4x1x16x16xf32>
    %60 = vector.broadcast %59 : vector<4x1x16x16xf32> to vector<4x8x16x16xf32>
    %61 = arith.addf %57, %60 : vector<4x8x16x16xf32>
    %c0_19 = arith.constant 0 : index
    %c0_20 = arith.constant 0 : index
    %c0_21 = arith.constant 0 : index
    %62 = vector.load %arg3[%c0_19, %c0_20, %c0_21] : memref<4x16x16xf32, #tpu.memory_space<vmem>>, vector<4x16x16xf32>
    %63 = vector.shape_cast %62 : vector<4x16x16xf32> to vector<1x4x16x16xf32>
    %64 = vector.shape_cast %63 : vector<1x4x16x16xf32> to vector<1x4x16x16xf32>
    %65 = vector.broadcast %64 : vector<1x4x16x16xf32> to vector<2x4x16x16xf32>
    %66 = vector.shape_cast %65 : vector<2x4x16x16xf32> to vector<8x16x16xf32>
    %67 = vector.shape_cast %66 : vector<8x16x16xf32> to vector<1x8x16x16xf32>
    %68 = vector.broadcast %67 : vector<1x8x16x16xf32> to vector<4x8x16x16xf32>
    %69 = arith.addf %61, %68 : vector<4x8x16x16xf32>
    %70 = vector.shape_cast %69 : vector<4x8x16x16xf32> to vector<32x16x16xf32>
    %cst_22 = arith.constant dense<0xFF800000> : vector<32x16xf32>
    %71 = vector.multi_reduction <maximumf>, %70, %cst_22 [2] : vector<32x16x16xf32> to vector<32x16xf32>
    %72 = vector.shape_cast %71 : vector<32x16xf32> to vector<32x16x1xf32>
    %73 = vector.broadcast %72 : vector<32x16x1xf32> to vector<32x16x16xf32>
    %74 = arith.subf %70, %73 : vector<32x16x16xf32>
    %75 = math.exp %74 : vector<32x16x16xf32>
    %cst_23 = arith.constant dense<0.000000e+00> : vector<32x16xf32>
    %76 = vector.multi_reduction <add>, %75, %cst_23 [2] : vector<32x16x16xf32> to vector<32x16xf32>
    %77 = vector.shape_cast %76 : vector<32x16xf32> to vector<32x16x1xf32>
    %78 = tpu.reciprocal %77 {approx = true} : vector<32x16x1xf32> -> vector<32x16x1xf32>
    %79 = vector.broadcast %78 : vector<32x16x1xf32> to vector<32x16x16xf32>
    %80 = arith.mulf %75, %79 : vector<32x16x16xf32>
    %81 = arith.truncf %80 : vector<32x16x16xf32> to vector<32x16x16xbf16>
    %82 = arith.truncf %53 : vector<32x16x8xf32> to vector<32x16x8xbf16>
    "tpu.trace_start"() <{level = 10 : i32, message = "bqk,bkd->bqd"}> : () -> ()
    %cst_24 = arith.constant dense<0.000000e+00> : vector<32x16x8xf32>
    %83 = tpu.matmul %81, %82, %cst_24 {dimension_numbers = #tpu.dot_dimension_numbers<[2], [1], [1], [2], [0, 0, 0, 1, 1, 2], [0], [0]>} : vector<32x16x16xbf16>, vector<32x16x8xbf16>, vector<32x16x8xf32> -> vector<32x16x8xf32>
    "tpu.trace_stop"() : () -> ()
    %84 = vector.extract_strided_slice %83 {offsets = [0, 0, 0], sizes = [8, 16, 8], strides = [1, 1, 1]} : vector<32x16x8xf32> to vector<8x16x8xf32>
    %85 = vector.extract_strided_slice %83 {offsets = [8, 0, 0], sizes = [8, 16, 8], strides = [1, 1, 1]} : vector<32x16x8xf32> to vector<8x16x8xf32>
    %86 = vector.extract_strided_slice %83 {offsets = [16, 0, 0], sizes = [8, 16, 8], strides = [1, 1, 1]} : vector<32x16x8xf32> to vector<8x16x8xf32>
    %87 = vector.extract_strided_slice %83 {offsets = [24, 0, 0], sizes = [8, 16, 8], strides = [1, 1, 1]} : vector<32x16x8xf32> to vector<8x16x8xf32>
    %88 = tpu.concatenate %84, %85, %86, %87 in 2 : vector<8x16x8xf32>, vector<8x16x8xf32>, vector<8x16x8xf32>, vector<8x16x8xf32> -> vector<8x16x32xf32>
    %89 = vector.shape_cast %88 : vector<8x16x32xf32> to vector<128x32xf32>
    %90 = arith.truncf %89 : vector<128x32xf32> to vector<128x32xbf16>
    %c0_25 = arith.constant 0 : index
    %c0_26 = arith.constant 0 : index
    %91 = vector.load %arg8[%c0_25, %c0_26] : memref<32x32xbf16, #tpu.memory_space<vmem>>, vector<32x32xbf16>
    %cst_27 = arith.constant dense<0.000000e+00> : vector<128x32xf32>
    %92 = tpu.matmul %90, %91, %cst_27 {dimension_numbers = #tpu.dot_dimension_numbers<[1], [0], [0], [1], [0, 0, 1, 1], [], []>} : vector<128x32xbf16>, vector<32x32xbf16>, vector<128x32xf32> -> vector<128x32xf32>
    %c0_28 = arith.constant 0 : index
    %c0_29 = arith.constant 0 : index
    %93 = vector.load %arg9[%c0_28, %c0_29] : memref<1x32xf32, #tpu.memory_space<vmem>>, vector<1x32xf32>
    %94 = vector.shape_cast %93 : vector<1x32xf32> to vector<32xf32>
    %95 = vector.shape_cast %94 : vector<32xf32> to vector<1x32xf32>
    %96 = vector.broadcast %95 : vector<1x32xf32> to vector<128x32xf32>
    %97 = arith.addf %92, %96 : vector<128x32xf32>
    %98 = arith.addf %1, %97 : vector<128x32xf32>
    %cst_30 = arith.constant dense<0.000000e+00> : vector<128xf32>
    %99 = vector.multi_reduction <add>, %98, %cst_30 [1] : vector<128x32xf32> to vector<128xf32>
    %100 = vector.shape_cast %99 : vector<128xf32> to vector<128x1xf32>
    %cst_31 = arith.constant 3.200000e+01 : f32
    %101 = vector.broadcast %cst_31 : f32 to vector<128x1xf32>
    %102 = arith.divf %100, %101 : vector<128x1xf32>
    %103 = vector.broadcast %102 : vector<128x1xf32> to vector<128x32xf32>
    %104 = arith.subf %98, %103 : vector<128x32xf32>
    %105 = arith.mulf %104, %104 : vector<128x32xf32>
    %cst_32 = arith.constant dense<0.000000e+00> : vector<128xf32>
    %106 = vector.multi_reduction <add>, %105, %cst_32 [1] : vector<128x32xf32> to vector<128xf32>
    %107 = vector.shape_cast %106 : vector<128xf32> to vector<128x1xf32>
    %cst_33 = arith.constant 3.200000e+01 : f32
    %108 = vector.broadcast %cst_33 : f32 to vector<128x1xf32>
    %109 = arith.divf %107, %108 : vector<128x1xf32>
    %110 = vector.broadcast %102 : vector<128x1xf32> to vector<128x32xf32>
    %111 = arith.subf %98, %110 : vector<128x32xf32>
    %cst_34 = arith.constant 9.99999974E-6 : f32
    %112 = vector.broadcast %cst_34 : f32 to vector<128x1xf32>
    %113 = arith.addf %109, %112 : vector<128x1xf32>
    %114 = math.rsqrt %113 : vector<128x1xf32>
    %115 = vector.broadcast %114 : vector<128x1xf32> to vector<128x32xf32>
    %116 = arith.mulf %111, %115 : vector<128x32xf32>
    %c0_35 = arith.constant 0 : index
    %c0_36 = arith.constant 0 : index
    %117 = vector.load %arg10[%c0_35, %c0_36] : memref<1x32xf32, #tpu.memory_space<vmem>>, vector<1x32xf32>
    %118 = vector.shape_cast %117 : vector<1x32xf32> to vector<32xf32>
    %119 = vector.shape_cast %118 : vector<32xf32> to vector<1x32xf32>
    %120 = vector.broadcast %119 : vector<1x32xf32> to vector<128x32xf32>
    %121 = arith.mulf %116, %120 : vector<128x32xf32>
    %c0_37 = arith.constant 0 : index
    %c0_38 = arith.constant 0 : index
    %122 = vector.load %arg11[%c0_37, %c0_38] : memref<1x32xf32, #tpu.memory_space<vmem>>, vector<1x32xf32>
    %123 = vector.shape_cast %122 : vector<1x32xf32> to vector<32xf32>
    %124 = vector.shape_cast %123 : vector<32xf32> to vector<1x32xf32>
    %125 = vector.broadcast %124 : vector<1x32xf32> to vector<128x32xf32>
    %126 = arith.addf %121, %125 : vector<128x32xf32>
    %127 = arith.truncf %126 : vector<128x32xf32> to vector<128x32xbf16>
    %c0_39 = arith.constant 0 : index
    %c0_40 = arith.constant 0 : index
    %128 = vector.load %arg12[%c0_39, %c0_40] : memref<32x128xbf16, #tpu.memory_space<vmem>>, vector<32x128xbf16>
    %cst_41 = arith.constant dense<0.000000e+00> : vector<128x128xf32>
    %129 = tpu.matmul %127, %128, %cst_41 {dimension_numbers = #tpu.dot_dimension_numbers<[1], [0], [0], [1], [0, 0, 1, 1], [], []>} : vector<128x32xbf16>, vector<32x128xbf16>, vector<128x128xf32> -> vector<128x128xf32>
    %c0_42 = arith.constant 0 : index
    %c0_43 = arith.constant 0 : index
    %130 = vector.load %arg13[%c0_42, %c0_43] : memref<1x128xf32, #tpu.memory_space<vmem>>, vector<1x128xf32>
    %131 = vector.shape_cast %130 : vector<1x128xf32> to vector<128xf32>
    %132 = vector.shape_cast %131 : vector<128xf32> to vector<1x128xf32>
    %133 = vector.broadcast %132 : vector<1x128xf32> to vector<128x128xf32>
    %134 = arith.addf %129, %133 : vector<128x128xf32>
    %cst_44 = arith.constant 5.000000e-01 : f32
    %135 = vector.broadcast %cst_44 : f32 to vector<128x128xf32>
    %136 = arith.mulf %135, %134 : vector<128x128xf32>
    %cst_45 = arith.constant 0.707106769 : f32
    %137 = vector.broadcast %cst_45 : f32 to vector<128x128xf32>
    %138 = arith.mulf %134, %137 : vector<128x128xf32>
    %139 = math.erf %138 : vector<128x128xf32>
    %cst_46 = arith.constant 1.000000e+00 : f32
    %140 = vector.broadcast %cst_46 : f32 to vector<128x128xf32>
    %141 = arith.addf %140, %139 : vector<128x128xf32>
    %142 = arith.mulf %136, %141 : vector<128x128xf32>
    %143 = arith.truncf %142 : vector<128x128xf32> to vector<128x128xbf16>
    %c0_47 = arith.constant 0 : index
    %c0_48 = arith.constant 0 : index
    %144 = vector.load %arg14[%c0_47, %c0_48] : memref<128x32xbf16, #tpu.memory_space<vmem>>, vector<128x32xbf16>
    %cst_49 = arith.constant dense<0.000000e+00> : vector<128x32xf32>
    %145 = tpu.matmul %143, %144, %cst_49 {dimension_numbers = #tpu.dot_dimension_numbers<[1], [0], [0], [1], [0, 0, 1, 1], [], []>} : vector<128x128xbf16>, vector<128x32xbf16>, vector<128x32xf32> -> vector<128x32xf32>
    %c0_50 = arith.constant 0 : index
    %c0_51 = arith.constant 0 : index
    %146 = vector.load %arg15[%c0_50, %c0_51] : memref<1x32xf32, #tpu.memory_space<vmem>>, vector<1x32xf32>
    %147 = vector.shape_cast %146 : vector<1x32xf32> to vector<32xf32>
    %148 = vector.shape_cast %147 : vector<32xf32> to vector<1x32xf32>
    %149 = vector.broadcast %148 : vector<1x32xf32> to vector<128x32xf32>
    %150 = arith.addf %145, %149 : vector<128x32xf32>
    %151 = arith.addf %98, %150 : vector<128x32xf32>
    %cst_52 = arith.constant dense<0.000000e+00> : vector<128xf32>
    %152 = vector.multi_reduction <add>, %151, %cst_52 [1] : vector<128x32xf32> to vector<128xf32>
    %153 = vector.shape_cast %152 : vector<128xf32> to vector<128x1xf32>
    %cst_53 = arith.constant 3.200000e+01 : f32
    %154 = vector.broadcast %cst_53 : f32 to vector<128x1xf32>
    %155 = arith.divf %153, %154 : vector<128x1xf32>
    %156 = vector.broadcast %155 : vector<128x1xf32> to vector<128x32xf32>
    %157 = arith.subf %151, %156 : vector<128x32xf32>
    %158 = arith.mulf %157, %157 : vector<128x32xf32>
    %cst_54 = arith.constant dense<0.000000e+00> : vector<128xf32>
    %159 = vector.multi_reduction <add>, %158, %cst_54 [1] : vector<128x32xf32> to vector<128xf32>
    %160 = vector.shape_cast %159 : vector<128xf32> to vector<128x1xf32>
    %cst_55 = arith.constant 3.200000e+01 : f32
    %161 = vector.broadcast %cst_55 : f32 to vector<128x1xf32>
    %162 = arith.divf %160, %161 : vector<128x1xf32>
    %163 = vector.broadcast %155 : vector<128x1xf32> to vector<128x32xf32>
    %164 = arith.subf %151, %163 : vector<128x32xf32>
    %cst_56 = arith.constant 9.99999974E-6 : f32
    %165 = vector.broadcast %cst_56 : f32 to vector<128x1xf32>
    %166 = arith.addf %162, %165 : vector<128x1xf32>
    %167 = math.rsqrt %166 : vector<128x1xf32>
    %168 = vector.broadcast %167 : vector<128x1xf32> to vector<128x32xf32>
    %169 = arith.mulf %164, %168 : vector<128x32xf32>
    %c0_57 = arith.constant 0 : index
    %c0_58 = arith.constant 0 : index
    %170 = vector.load %arg16[%c0_57, %c0_58] : memref<1x32xf32, #tpu.memory_space<vmem>>, vector<1x32xf32>
    %171 = vector.shape_cast %170 : vector<1x32xf32> to vector<32xf32>
    %172 = vector.shape_cast %171 : vector<32xf32> to vector<1x32xf32>
    %173 = vector.broadcast %172 : vector<1x32xf32> to vector<128x32xf32>
    %174 = arith.mulf %169, %173 : vector<128x32xf32>
    %c0_59 = arith.constant 0 : index
    %c0_60 = arith.constant 0 : index
    %175 = vector.load %arg17[%c0_59, %c0_60] : memref<1x32xf32, #tpu.memory_space<vmem>>, vector<1x32xf32>
    %176 = vector.shape_cast %175 : vector<1x32xf32> to vector<32xf32>
    %177 = vector.shape_cast %176 : vector<32xf32> to vector<1x32xf32>
    %178 = vector.broadcast %177 : vector<1x32xf32> to vector<128x32xf32>
    %179 = arith.addf %174, %178 : vector<128x32xf32>
    %180 = vector.shape_cast %179 : vector<128x32xf32> to vector<8x16x32xf32>
    %c0_61 = arith.constant 0 : index
    %c0_62 = arith.constant 0 : index
    %c0_63 = arith.constant 0 : index
    %181 = vector.load %arg18[%c0_61, %c0_62, %c0_63] : memref<8x16x32xf32, #tpu.memory_space<vmem>>, vector<8x16x32xf32>
    tpu.vector_store %arg18[%c0_61, %c0_62, %c0_63], %180 {strides = array<i32>} : memref<8x16x32xf32, #tpu.memory_space<vmem>>, vector<8x16x32xf32>,
    return
  }
  func.func @transform_0(%arg0: i32) -> (i32, i32, i32) {
    %c0_i32 = arith.constant 0 : i32
    %c0_i32_0 = arith.constant 0 : i32
    %c0_i32_1 = arith.constant 0 : i32
    return %arg0, %c0_i32, %c0_i32_0 : i32, i32, i32
  }
  func.func @transform_1(%arg0: i32) -> (i32, i32, i32) {
    %c0_i32 = arith.constant 0 : i32
    %c0_i32_0 = arith.constant 0 : i32
    %c0_i32_1 = arith.constant 0 : i32
    %c0_i32_2 = arith.constant 0 : i32
    return %c0_i32, %c0_i32_0, %c0_i32_1 : i32, i32, i32
  }
  func.func @transform_2(%arg0: i32) -> (i32, i32, i32) {
    %c0_i32 = arith.constant 0 : i32
    %c0_i32_0 = arith.constant 0 : i32
    %c0_i32_1 = arith.constant 0 : i32
    %c0_i32_2 = arith.constant 0 : i32
    return %c0_i32, %c0_i32_0, %c0_i32_1 : i32, i32, i32
  }
  func.func @transform_3(%arg0: i32) -> (i32, i32) {
    %c0_i32 = arith.constant 0 : i32
    %c0_i32_0 = arith.constant 0 : i32
    %c0_i32_1 = arith.constant 0 : i32
    return %c0_i32, %c0_i32_0 : i32, i32
  }
  func.func @transform_4(%arg0: i32) -> (i32, i32) {
    %c0_i32 = arith.constant 0 : i32
    %c0_i32_0 = arith.constant 0 : i32
    %c0_i32_1 = arith.constant 0 : i32
    return %c0_i32, %c0_i32_0 : i32, i32
  }
  func.func @transform_5(%arg0: i32) -> (i32, i32) {
    %c0_i32 = arith.constant 0 : i32
    %c0_i32_0 = arith.constant 0 : i32
    %c0_i32_1 = arith.constant 0 : i32
    return %c0_i32, %c0_i32_0 : i32, i32
  }
  func.func @transform_6(%arg0: i32) -> (i32, i32) {
    %c0_i32 = arith.constant 0 : i32
    %c0_i32_0 = arith.constant 0 : i32
    %c0_i32_1 = arith.constant 0 : i32
    return %c0_i32, %c0_i32_0 : i32, i32
  }
  func.func @transform_7(%arg0: i32) -> (i32, i32) {
    %c0_i32 = arith.constant 0 : i32
    %c0_i32_0 = arith.constant 0 : i32
    %c0_i32_1 = arith.constant 0 : i32
    return %c0_i32, %c0_i32_0 : i32, i32
  }
  func.func @transform_8(%arg0: i32) -> (i32, i32) {
    %c0_i32 = arith.constant 0 : i32
    %c0_i32_0 = arith.constant 0 : i32
    %c0_i32_1 = arith.constant 0 : i32
    return %c0_i32, %c0_i32_0 : i32, i32
  }
  func.func @transform_9(%arg0: i32) -> (i32, i32) {
    %c0_i32 = arith.constant 0 : i32
    %c0_i32_0 = arith.constant 0 : i32
    %c0_i32_1 = arith.constant 0 : i32
    return %c0_i32, %c0_i32_0 : i32, i32
  }
  func.func @transform_10(%arg0: i32) -> (i32, i32) {
    %c0_i32 = arith.constant 0 : i32
    %c0_i32_0 = arith.constant 0 : i32
    %c0_i32_1 = arith.constant 0 : i32
    return %c0_i32, %c0_i32_0 : i32, i32
  }
  func.func @transform_11(%arg0: i32) -> (i32, i32) {
    %c0_i32 = arith.constant 0 : i32
    %c0_i32_0 = arith.constant 0 : i32
    %c0_i32_1 = arith.constant 0 : i32
    return %c0_i32, %c0_i32_0 : i32, i32
  }
  func.func @transform_12(%arg0: i32) -> (i32, i32) {
    %c0_i32 = arith.constant 0 : i32
    %c0_i32_0 = arith.constant 0 : i32
    %c0_i32_1 = arith.constant 0 : i32
    return %c0_i32, %c0_i32_0 : i32, i32
  }
  func.func @transform_13(%arg0: i32) -> (i32, i32) {
    %c0_i32 = arith.constant 0 : i32
    %c0_i32_0 = arith.constant 0 : i32
    %c0_i32_1 = arith.constant 0 : i32
    return %c0_i32, %c0_i32_0 : i32, i32
  }
  func.func @transform_14(%arg0: i32) -> (i32, i32) {
    %c0_i32 = arith.constant 0 : i32
    %c0_i32_0 = arith.constant 0 : i32
    %c0_i32_1 = arith.constant 0 : i32
    return %c0_i32, %c0_i32_0 : i32, i32
  }
  func.func @transform_15(%arg0: i32) -> (i32, i32) {
    %c0_i32 = arith.constant 0 : i32
    %c0_i32_0 = arith.constant 0 : i32
    %c0_i32_1 = arith.constant 0 : i32
    return %c0_i32, %c0_i32_0 : i32, i32
  }
  func.func @transform_16(%arg0: i32) -> (i32, i32) {
    %c0_i32 = arith.constant 0 : i32
    %c0_i32_0 = arith.constant 0 : i32
    %c0_i32_1 = arith.constant 0 : i32
    return %c0_i32, %c0_i32_0 : i32, i32
  }
  func.func @transform_17(%arg0: i32) -> (i32, i32, i32) {
    %c0_i32 = arith.constant 0 : i32
    %c0_i32_0 = arith.constant 0 : i32
    %c0_i32_1 = arith.constant 0 : i32
    return %arg0, %c0_i32, %c0_i32_0 : i32, i32, i32
  }
}

</mosaic_0001>

<llo_original>
// kernel: forward.3
$region0: #{forward.3}
  #allocation0 [shape = 'u32[]', space=smem, size = 0x4, offset = 0x4, fixed_abs, tag = 'smem constant byte address 0x4 - core index']
  #allocation1 [shape = 'u32[144,128]{1,0:T(1,128)}', space=vmem, size = 0x12000, scoped, tag = 'internal scratch']
  %s0 = inlined_call_operand.vmem [shape: f32[128,144], index: 0, kind: input, shape index: {}]
  %s1 = inlined_call_operand.vmem [shape: bf16[144,32], index: 1, kind: input, shape index: {}]
  %s2 = inlined_call_operand.vmem [shape: f32[1,32], index: 2, kind: input, shape index: {}]
  %s3 = inlined_call_operand.vmem [shape: f32[128,32], index: 3, kind: output, shape index: {}]
  %s4 = sld [smem:[#allocation0]]
  $region22: #{forward.3} parent=0
    _
  %s6 = ssub.s32 1, %s4
  %s7 = scalar_select 0, %s6, %s4
  // Predicated region
  $region2: #{forward.3} parent=0 // pred_check
    _
  $region3: #{forward.3} parent=0 // pred_check_branch
    %9 = sbr.rel (0) target = $region5
  $region4: #{forward.3} parent=0 // pred_region
    _
  $region5: #{forward.3} parent=0 // pred_fallthru
    _
  // Predicated region
  $region6: #{forward.3} parent=0 // pred_check
    _
  $region7: #{forward.3} parent=0 // pred_check_branch
    %11 = sbr.rel (0) target = $region9
  $region8: #{forward.3} parent=0 // pred_region
    _
  $region9: #{forward.3} parent=0 // pred_fallthru
    _
  // Predicated region
  $region10: #{forward.3} parent=0 // pred_check
    _
  $region11: #{forward.3} parent=0 // pred_check_branch
    %13 = sbr.rel (0) target = $region13
  $region12: #{forward.3} parent=0 // pred_region
    _
  $region13: #{forward.3} parent=0 // pred_fallthru
    _
  %v15 = vld [vmem:[%s0] sm:$0xff]
  %v16 = vld [vmem:[%s0 + $0x8] sm:$0xff]
  %v17 = vld [vmem:[%s0 + $0x10] sm:$0xff]
  %v18 = vld [vmem:[%s0 + $0x18] sm:$0xff]
  %v19 = vld [vmem:[%s0 + $0x20] sm:$0xff]
  %v20 = vld [vmem:[%s0 + $0x28] sm:$0xff]
  %v21 = vld [vmem:[%s0 + $0x30] sm:$0xff]
  %v22 = vld [vmem:[%s0 + $0x38] sm:$0xff]
  %v23 = vld [vmem:[%s0 + $0x40] sm:$0xff]
  %v24 = vld [vmem:[%s0 + $0x48] sm:$0xff]
  %v25 = vld [vmem:[%s0 + $0x50] sm:$0xff]
  %v26 = vld [vmem:[%s0 + $0x58] sm:$0xff]
  %v27 = vld [vmem:[%s0 + $0x60] sm:$0xff]
  %v28 = vld [vmem:[%s0 + $0x68] sm:$0xff]
  %v29 = vld [vmem:[%s0 + $0x70] sm:$0xff]
  %v30 = vld [vmem:[%s0 + $0x78] sm:$0xff]
  %v31 = vld [vmem:[%s0 + $0x80] sm:$0xff]
  %v32 = vld [vmem:[%s0 + $0x88] sm:$0xff]
  %v33 = vld [vmem:[%s0 + $0x90] sm:$0xff]
  %v34 = vld [vmem:[%s0 + $0x98] sm:$0xff]
  %v35 = vld [vmem:[%s0 + $0xa0] sm:$0xff]
  %v36 = vld [vmem:[%s0 + $0xa8] sm:$0xff]
  %v37 = vld [vmem:[%s0 + $0xb0] sm:$0xff]
  %v38 = vld [vmem:[%s0 + $0xb8] sm:$0xff]
  %v39 = vld [vmem:[%s0 + $0xc0] sm:$0xff]
  %v40 = vld [vmem:[%s0 + $0xc8] sm:$0xff]
  %v41 = vld [vmem:[%s0 + $0xd0] sm:$0xff]
  %v42 = vld [vmem:[%s0 + $0xd8] sm:$0xff]
  %v43 = vld [vmem:[%s0 + $0xe0] sm:$0xff]
  %v44 = vld [vmem:[%s0 + $0xe8] sm:$0xff]
  %v45 = vld [vmem:[%s0 + $0xf0] sm:$0xff]
  %v46 = vld [vmem:[%s0 + $0xf8] sm:$0xff]
  %v47 = vpack.c.bf16 %v17, %v15
  %v48 = vpack.c.bf16 %v18, %v16
  %v49 = vpack.c.bf16 %v21, %v19
  %v50 = vpack.c.bf16 %v22, %v20
  %v51 = vpack.c.bf16 %v25, %v23
  %v52 = vpack.c.bf16 %v26, %v24
  %v53 = vpack.c.bf16 %v29, %v27
  %v54 = vpack.c.bf16 %v30, %v28
  %v55 = vpack.c.bf16 %v33, %v31
  %v56 = vpack.c.bf16 %v34, %v32
  %v57 = vpack.c.bf16 %v37, %v35
  %v58 = vpack.c.bf16 %v38, %v36
  %v59 = vpack.c.bf16 %v41, %v39
  %v60 = vpack.c.bf16 %v42, %v40
  %v61 = vpack.c.bf16 %v45, %v43
  %v62 = vpack.c.bf16 %v46, %v44
  %v63 = vld [vmem:[%s1] sm:$0xf]
  %v64 = vld [vmem:[%s1 + $0x4] sm:$0xf]
  %v65 = vld [vmem:[%s1 + $0x8] sm:$0xf]
  %v66 = vld [vmem:[%s1 + $0xc] sm:$0xf]
  %v67 = vld [vmem:[%s1 + $0x10] sm:$0xf]
  %v68 = vld [vmem:[%s1 + $0x14] sm:$0xf]
  %v69 = vld [vmem:[%s1 + $0x18] sm:$0xf]
  %v70 = vld [vmem:[%s1 + $0x1c] sm:$0xf]
  %v71 = vld [vmem:[%s1 + $0x20] sm:$0xf]
  %v72 = vld [vmem:[%s1 + $0x24] sm:$0xf]
  %v73 = vld [vmem:[%s1 + $0x28] sm:$0xf]
  %v74 = vld [vmem:[%s1 + $0x2c] sm:$0xf]
  %v75 = vld [vmem:[%s1 + $0x30] sm:$0xf]
  %v76 = vld [vmem:[%s1 + $0x34] sm:$0xf]
  %v77 = vld [vmem:[%s1 + $0x38] sm:$0xf]
  %v78 = vld [vmem:[%s1 + $0x3c] sm:$0xf]
  %v79 = vld [vmem:[%s1 + $0x40] sm:$0xf]
  %v80 = vld [vmem:[%s1 + $0x44] sm:$0xf]
  %v81 = vld [vmem:[%s2] sm:$0x1]
  %v83 = vlaneseq
  %v84 = vshrl.u32 %v83, 7
  %v85 = vsub.s32 0, %v84
  %v86 = vrot.slane %v81, %v85
  %v106 = vunpack.c.l.b16 %v63
  %v107 = vunpack.c.l.b16 %v64
  %v108 = vunpack.c.l.b16 %v65
  %v109 = vunpack.c.l.b16 %v66
  %v110 = vunpack.c.l.b16 %v67
  %v111 = vunpack.c.l.b16 %v68
  %v112 = vunpack.c.l.b16 %v69
  %v113 = vunpack.c.l.b16 %v70
  %v114 = vunpack.c.l.b16 %v71
  %v115 = vunpack.c.l.b16 %v72
  %v116 = vunpack.c.l.b16 %v73
  %v117 = vunpack.c.l.b16 %v74
  %v118 = vunpack.c.l.b16 %v75
  %v119 = vunpack.c.l.b16 %v76
  %v120 = vunpack.c.l.b16 %v77
  %v121 = vunpack.c.l.b16 %v78
  %v122 = vunpack.c.l.b16 %v79
  %v123 = vunpack.c.l.b16 %v80
  %v124 = vpack.c.b16 %v107, %v106
  %v125 = vpack.c.b16 %v109, %v108
  %v126 = vpack.c.b16 %v111, %v110
  %v127 = vpack.c.b16 %v113, %v112
  %v128 = vpack.c.b16 %v115, %v114
  %v129 = vpack.c.b16 %v117, %v116
  %v130 = vpack.c.b16 %v119, %v118
  %v131 = vpack.c.b16 %v121, %v120
  %v132 = vpack.c.b16 %v123, %v122
  %vm142 = vcmask 130048
  %v144 = vsel %vm142, %v48, 0
  %v147 = vsel %vm142, %v50, 0
  %v150 = vsel %vm142, %v52, 0
  %v153 = vsel %vm142, %v54, 0
  %v156 = vsel %vm142, %v56, 0
  %v159 = vsel %vm142, %v58, 0
  %v162 = vsel %vm142, %v60, 0
  %v165 = vsel %vm142, %v62, 0
  %167 = vmatprep.subr.bf16.mxu0 0
  %168 = vmatpush1.bf16.msra.mxu0 %v124
  %169 = vmatprep.subr.bf16.mxu0 0
  %170 = vmatpush1.bf16.msra.mxu0 %v125
  %171 = vmatprep.subr.bf16.mxu0 0
  %172 = vmatpush1.bf16.msra.mxu0 %v126
  %173 = vmatprep.subr.bf16.mxu0 0
  %174 = vmatpush1.bf16.msra.mxu0 %v127
  %175 = vmatprep.subr.bf16.mxu0 0
  %176 = vmatpush1.bf16.msra.mxu0 %v128
  %177 = vmatprep.subr.bf16.mxu0 0
  %178 = vmatpush1.bf16.msra.mxu0 %v129
  %179 = vmatprep.subr.bf16.mxu0 0
  %180 = vmatpush1.bf16.msra.mxu0 %v130
  %181 = vmatprep.subr.bf16.mxu0 0
  %182 = vmatpush1.bf16.msra.mxu0 %v131
  %183 = vmatprep.subr.bf16.mxu0 0
  %184 = vmatpush1.bf16.msra.mxu0 %v132
  %185 = vmatprep.subr.bf16.mxu0 0
  %186 = vmatpush1.bf16.msra.mxu0 0
  %187 = vmatprep.subr.bf16.mxu0 0
  %188 = vmatpush1.bf16.msra.mxu0 0
  %189 = vmatprep.subr.bf16.mxu0 0
  %190 = vmatpush1.bf16.msra.mxu0 0
  %191 = vmatprep.subr.bf16.mxu0 0
  %192 = vmatpush1.bf16.msra.mxu0 0
  %193 = vmatprep.subr.bf16.mxu0 0
  %194 = vmatpush1.bf16.msra.mxu0 0
  %195 = vmatprep.subr.bf16.mxu0 0
  %196 = vmatpush1.bf16.msra.mxu0 0
  %197 = vmatprep.subr.bf16.mxu0 0
  %198 = vmatpush1.bf16.msra.mxu0 0
  %199 = vmatprep.mubr.bf16.mxu0 %v144
  %200 = vmatmul.mubr.bf16.gmra.mrb[0].mxu0 %v47
  %v201 = vpop.f32.mrb[0].mxu0
  %v202 = vadd.f32 %v86, %v201
  %v203 = vpop.f32.mrb[0].mxu0
  %v204 = vpop.f32.mrb[0].mxu0
  %v205 = vadd.f32 %v86, %v204
  %v206 = vpop.f32.mrb[0].mxu0
  %207 = vmatprep.mubr.bf16.mxu0 %v147
  %208 = vmatmul.mubr.bf16.gmra.mrb[0].mxu0 %v49
  %v209 = vpop.f32.mrb[0].mxu0
  %v210 = vadd.f32 %v86, %v209
  %v211 = vpop.f32.mrb[0].mxu0
  %v212 = vpop.f32.mrb[0].mxu0
  %v213 = vadd.f32 %v86, %v212
  %v214 = vpop.f32.mrb[0].mxu0
  %215 = vmatprep.mubr.bf16.mxu0 %v150
  %216 = vmatmul.mubr.bf16.gmra.mrb[0].mxu0 %v51
  %v217 = vpop.f32.mrb[0].mxu0
  %v218 = vadd.f32 %v86, %v217
  %v219 = vpop.f32.mrb[0].mxu0
  %v220 = vpop.f32.mrb[0].mxu0
  %v221 = vadd.f32 %v86, %v220
  %v222 = vpop.f32.mrb[0].mxu0
  %223 = vmatprep.mubr.bf16.mxu0 %v153
  %224 = vmatmul.mubr.bf16.gmra.mrb[0].mxu0 %v53
  %v225 = vpop.f32.mrb[0].mxu0
  %v226 = vadd.f32 %v86, %v225
  %v227 = vpop.f32.mrb[0].mxu0
  %v228 = vpop.f32.mrb[0].mxu0
  %v229 = vadd.f32 %v86, %v228
  %v230 = vpop.f32.mrb[0].mxu0
  %231 = vmatprep.mubr.bf16.mxu0 %v156
  %232 = vmatmul.mubr.bf16.gmra.mrb[0].mxu0 %v55
  %v233 = vpop.f32.mrb[0].mxu0
  %v234 = vadd.f32 %v86, %v233
  %v235 = vpop.f32.mrb[0].mxu0
  %v236 = vpop.f32.mrb[0].mxu0
  %v237 = vadd.f32 %v86, %v236
  %v238 = vpop.f32.mrb[0].mxu0
  %239 = vmatprep.mubr.bf16.mxu0 %v159
  %240 = vmatmul.mubr.bf16.gmra.mrb[0].mxu0 %v57
  %v241 = vpop.f32.mrb[0].mxu0
  %v242 = vadd.f32 %v86, %v241
  %v243 = vpop.f32.mrb[0].mxu0
  %v244 = vpop.f32.mrb[0].mxu0
  %v245 = vadd.f32 %v86, %v244
  %v246 = vpop.f32.mrb[0].mxu0
  %247 = vmatprep.mubr.bf16.mxu0 %v162
  %248 = vmatmul.mubr.bf16.gmra.mrb[0].mxu0 %v59
  %v249 = vpop.f32.mrb[0].mxu0
  %v250 = vadd.f32 %v86, %v249
  %v251 = vpop.f32.mrb[0].mxu0
  %v252 = vpop.f32.mrb[0].mxu0
  %v253 = vadd.f32 %v86, %v252
  %v254 = vpop.f32.mrb[0].mxu0
  %255 = vmatprep.mubr.bf16.mxu0 %v165
  %256 = vmatmul.mubr.bf16.gmra.mrb[0].mxu0 %v61
  %v257 = vpop.f32.mrb[0].mxu0
  %v258 = vadd.f32 %v86, %v257
  %v259 = vpop.f32.mrb[0].mxu0
  %v260 = vpop.f32.mrb[0].mxu0
  %v261 = vadd.f32 %v86, %v260
  %v262 = vpop.f32.mrb[0].mxu0
  %263 = vdwg.mxu0
  %vm264 = vcmask 261120
  %265 = vst.msk [vmem:[%s3] sm:$0xff] %vm264, %v202
  %266 = vst.msk [vmem:[%s3 + $0x8] sm:$0xff] %vm264, %v205
  %267 = vst.msk [vmem:[%s3 + $0x10] sm:$0xff] %vm264, %v210
  %268 = vst.msk [vmem:[%s3 + $0x18] sm:$0xff] %vm264, %v213
  %269 = vst.msk [vmem:[%s3 + $0x20] sm:$0xff] %vm264, %v218
  %270 = vst.msk [vmem:[%s3 + $0x28] sm:$0xff] %vm264, %v221
  %271 = vst.msk [vmem:[%s3 + $0x30] sm:$0xff] %vm264, %v226
  %272 = vst.msk [vmem:[%s3 + $0x38] sm:$0xff] %vm264, %v229
  %273 = vst.msk [vmem:[%s3 + $0x40] sm:$0xff] %vm264, %v234
  %274 = vst.msk [vmem:[%s3 + $0x48] sm:$0xff] %vm264, %v237
  %275 = vst.msk [vmem:[%s3 + $0x50] sm:$0xff] %vm264, %v242
  %276 = vst.msk [vmem:[%s3 + $0x58] sm:$0xff] %vm264, %v245
  %277 = vst.msk [vmem:[%s3 + $0x60] sm:$0xff] %vm264, %v250
  %278 = vst.msk [vmem:[%s3 + $0x68] sm:$0xff] %vm264, %v253
  %279 = vst.msk [vmem:[%s3 + $0x70] sm:$0xff] %vm264, %v258
  %280 = vst.msk [vmem:[%s3 + $0x78] sm:$0xff] %vm264, %v261
  // Predicated region
  $region14: #{forward.3} parent=0 // pred_check
    _
  $region15: #{forward.3} parent=0 // pred_check_branch
    %282 = sbr.rel (0) target = $region17
  $region16: #{forward.3} parent=0 // pred_region
    _
  $region17: #{forward.3} parent=0 // pred_fallthru
    _
  // Predicated region
  $region18: #{forward.3} parent=0 // pred_check
    _
  $region19: #{forward.3} parent=0 // pred_check_branch
    %284 = sbr.rel (0) target = $region21
  $region20: #{forward.3} parent=0 // pred_region
    _
  $region21: #{forward.3} parent=0 // pred_fallthru
    _

// kernel: forward.4
$region0: #{forward.4}
  #allocation0 [shape = 'u32[]', space=smem, size = 0x4, offset = 0x4, fixed_abs, tag = 'smem constant byte address 0x4 - core index']
  #allocation1 [shape = 'u32[144,128]{1,0:T(1,128)}', space=vmem, size = 0x12000, scoped, tag = 'internal scratch']
  %s0 = inlined_call_operand.vmem [shape: f32[8,16,32], index: 0, kind: input, shape index: {}]
  %s1 = inlined_call_operand.vmem [shape: f32[4,16,16], index: 1, kind: input, shape index: {}]
  %s2 = inlined_call_operand.vmem [shape: f32[1,16,16], index: 2, kind: input, shape index: {}]
  %s3 = inlined_call_operand.vmem [shape: f32[1,32], index: 3, kind: input, shape index: {}]
  %s4 = inlined_call_operand.vmem [shape: f32[1,32], index: 4, kind: input, shape index: {}]
  %s5 = inlined_call_operand.vmem [shape: bf16[32,96], index: 5, kind: input, shape index: {}]
  %s6 = inlined_call_operand.vmem [shape: f32[1,96], index: 6, kind: input, shape index: {}]
  %s7 = inlined_call_operand.vmem [shape: bf16[32,32], index: 7, kind: input, shape index: {}]
  %s8 = inlined_call_operand.vmem [shape: f32[1,32], index: 8, kind: input, shape index: {}]
  %s9 = inlined_call_operand.vmem [shape: f32[1,32], index: 9, kind: input, shape index: {}]
  %s10 = inlined_call_operand.vmem [shape: f32[1,32], index: 10, kind: input, shape index: {}]
  %s11 = inlined_call_operand.vmem [shape: bf16[32,128], index: 11, kind: input, shape index: {}]
  %s12 = inlined_call_operand.vmem [shape: f32[1,128], index: 12, kind: input, shape index: {}]
  %s13 = inlined_call_operand.vmem [shape: bf16[128,32], index: 13, kind: input, shape index: {}]
  %s14 = inlined_call_operand.vmem [shape: f32[1,32], index: 14, kind: input, shape index: {}]
  %s15 = inlined_call_operand.vmem [shape: f32[1,32], index: 15, kind: input, shape index: {}]
  %s16 = inlined_call_operand.vmem [shape: f32[1,32], index: 16, kind: input, shape index: {}]
  %s17 = inlined_call_operand.vmem [shape: f32[8,16,32], index: 17, kind: output, shape index: {}]
  %s18 = sld [smem:[#allocation0]]
  $region78: #{forward.4} parent=0
    _
  %s20 = ssub.s32 1, %s18
  %s21 = scalar_select 0, %s20, %s18
  // Predicated region
  $region2: #{forward.4} parent=0 // pred_check
    _
  $region3: #{forward.4} parent=0 // pred_check_branch
    %23 = sbr.rel (0) target = $region5
  $region4: #{forward.4} parent=0 // pred_region
    _
  $region5: #{forward.4} parent=0 // pred_fallthru
    _
  // Predicated region
  $region6: #{forward.4} parent=0 // pred_check
    _
  $region7: #{forward.4} parent=0 // pred_check_branch
    %25 = sbr.rel (0) target = $region9
  $region8: #{forward.4} parent=0 // pred_region
    _
  $region9: #{forward.4} parent=0 // pred_fallthru
    _
  // Predicated region
  $region10: #{forward.4} parent=0 // pred_check
    _
  $region11: #{forward.4} parent=0 // pred_check_branch
    %27 = sbr.rel (0) target = $region13
  $region12: #{forward.4} parent=0 // pred_region
    _
  $region13: #{forward.4} parent=0 // pred_fallthru
    _
  // Predicated region
  $region14: #{forward.4} parent=0 // pred_check
    _
  $region15: #{forward.4} parent=0 // pred_check_branch
    %29 = sbr.rel (0) target = $region17
  $region16: #{forward.4} parent=0 // pred_region
    _
  $region17: #{forward.4} parent=0 // pred_fallthru
    _
  // Predicated region
  $region18: #{forward.4} parent=0 // pred_check
    _
  $region19: #{forward.4} parent=0 // pred_check_branch
    %31 = sbr.rel (0) target = $region21
  $region20: #{forward.4} parent=0 // pred_region
    _
  $region21: #{forward.4} parent=0 // pred_fallthru
    _
  // Predicated region
  $region22: #{forward.4} parent=0 // pred_check
    _
  $region23: #{forward.4} parent=0 // pred_check_branch
    %33 = sbr.rel (0) target = $region25
  $region24: #{forward.4} parent=0 // pred_region
    _
  $region25: #{forward.4} parent=0 // pred_fallthru
    _
  // Predicated region
  $region26: #{forward.4} parent=0 // pred_check
    _
  $region27: #{forward.4} parent=0 // pred_check_branch
    %35 = sbr.rel (0) target = $region29
  $region28: #{forward.4} parent=0 // pred_region
    _
  $region29: #{forward.4} parent=0 // pred_fallthru
    _
  // Predicated region
  $region30: #{forward.4} parent=0 // pred_check
    _
  $region31: #{forward.4} parent=0 // pred_check_branch
    %37 = sbr.rel (0) target = $region33
  $region32: #{forward.4} parent=0 // pred_region
    _
  $region33: #{forward.4} parent=0 // pred_fallthru
    _
  // Predicated region
  $region34: #{forward.4} parent=0 // pred_check
    _
  $region35: #{forward.4} parent=0 // pred_check_branch
    %39 = sbr.rel (0) target = $region37
  $region36: #{forward.4} parent=0 // pred_region
    _
  $region37: #{forward.4} parent=0 // pred_fallthru
    _
  // Predicated region
  $region38: #{forward.4} parent=0 // pred_check
    _
  $region39: #{forward.4} parent=0 // pred_check_branch
    %41 = sbr.rel (0) target = $region41
  $region40: #{forward.4} parent=0 // pred_region
    _
  $region41: #{forward.4} parent=0 // pred_fallthru
    _
  // Predicated region
  $region42: #{forward.4} parent=0 // pred_check
    _
  $region43: #{forward.4} parent=0 // pred_check_branch
    %43 = sbr.rel (0) target = $region45
  $region44: #{forward.4} parent=0 // pred_region
    _
  $region45: #{forward.4} parent=0 // pred_fallthru
    _
  // Predicated region
  $region46: #{forward.4} parent=0 // pred_check
    _
  $region47: #{forward.4} parent=0 // pred_check_branch
    %45 = sbr.rel (0) target = $region49
  $region48: #{forward.4} parent=0 // pred_region
    _
  $region49: #{forward.4} parent=0 // pred_fallthru
    _
  // Predicated region
  $region50: #{forward.4} parent=0 // pred_check
    _
  $region51: #{forward.4} parent=0 // pred_check_branch
    %47 = sbr.rel (0) target = $region53
  $region52: #{forward.4} parent=0 // pred_region
    _
  $region53: #{forward.4} parent=0 // pred_fallthru
    _
  // Predicated region
  $region54: #{forward.4} parent=0 // pred_check
    _
  $region55: #{forward.4} parent=0 // pred_check_branch
    %49 = sbr.rel (0) target = $region57
  $region56: #{forward.4} parent=0 // pred_region
    _
  $region57: #{forward.4} parent=0 // pred_fallthru
    _
  // Predicated region
  $region58: #{forward.4} parent=0 // pred_check
    _
  $region59: #{forward.4} parent=0 // pred_check_branch
    %51 = sbr.rel (0) target = $region61
  $region60: #{forward.4} parent=0 // pred_region
    _
  $region61: #{forward.4} parent=0 // pred_fallthru
    _
  // Predicated region
  $region62: #{forward.4} parent=0 // pred_check
    _
  $region63: #{forward.4} parent=0 // pred_check_branch
    %53 = sbr.rel (0) target = $region65
  $region64: #{forward.4} parent=0 // pred_region
    _
  $region65: #{forward.4} parent=0 // pred_fallthru
    _
  // Predicated region
  $region66: #{forward.4} parent=0 // pred_check
    _
  $region67: #{forward.4} parent=0 // pred_check_branch
    %55 = sbr.rel (0) target = $region69
  $region68: #{forward.4} parent=0 // pred_region
    _
  $region69: #{forward.4} parent=0 // pred_fallthru
    _
  %v57 = vld [vmem:[%s0] sm:$0xff]
  %v58 = vld [vmem:[%s0 + $0x8] sm:$0xff]
  %v59 = vld [vmem:[%s0 + $0x10] sm:$0xff]
  %v60 = vld [vmem:[%s0 + $0x18] sm:$0xff]
  %v61 = vld [vmem:[%s0 + $0x20] sm:$0xff]
  %v62 = vld [vmem:[%s0 + $0x28] sm:$0xff]
  %v63 = vld [vmem:[%s0 + $0x30] sm:$0xff]
  %v64 = vld [vmem:[%s0 + $0x38] sm:$0xff]
  %v65 = vld [vmem:[%s0 + $0x40] sm:$0xff]
  %v66 = vld [vmem:[%s0 + $0x48] sm:$0xff]
  %v67 = vld [vmem:[%s0 + $0x50] sm:$0xff]
  %v68 = vld [vmem:[%s0 + $0x58] sm:$0xff]
  %v69 = vld [vmem:[%s0 + $0x60] sm:$0xff]
  %v70 = vld [vmem:[%s0 + $0x68] sm:$0xff]
  %v71 = vld [vmem:[%s0 + $0x70] sm:$0xff]
  %v72 = vld [vmem:[%s0 + $0x78] sm:$0xff]
  %vm73 = vcmask 261120
  %v74 = vsel %vm73, %v57, 0.0
  %75 = vadd.xlane.f32.xlu0 %v74
  %v76 = vpop.xlane.xlu0 %75
  %v77 = vsel %vm73, %v58, 0.0
  %78 = vadd.xlane.f32.xlu0 %v77
  %v79 = vpop.xlane.xlu0 %78
  %v80 = vsel %vm73, %v59, 0.0
  %81 = vadd.xlane.f32.xlu0 %v80
  %v82 = vpop.xlane.xlu0 %81
  %v83 = vsel %vm73, %v60, 0.0
  %84 = vadd.xlane.f32.xlu0 %v83
  %v85 = vpop.xlane.xlu0 %84
  %v86 = vsel %vm73, %v61, 0.0
  %87 = vadd.xlane.f32.xlu0 %v86
  %v88 = vpop.xlane.xlu0 %87
  %v89 = vsel %vm73, %v62, 0.0
  %90 = vadd.xlane.f32.xlu0 %v89
  %v91 = vpop.xlane.xlu0 %90
  %v92 = vsel %vm73, %v63, 0.0
  %93 = vadd.xlane.f32.xlu0 %v92
  %v94 = vpop.xlane.xlu0 %93
  %v95 = vsel %vm73, %v64, 0.0
  %96 = vadd.xlane.f32.xlu0 %v95
  %v97 = vpop.xlane.xlu0 %96
  %v98 = vsel %vm73, %v65, 0.0
  %99 = vadd.xlane.f32.xlu0 %v98
  %v100 = vpop.xlane.xlu0 %99
  %v101 = vsel %vm73, %v66, 0.0
  %102 = vadd.xlane.f32.xlu0 %v101
  %v103 = vpop.xlane.xlu0 %102
  %v104 = vsel %vm73, %v67, 0.0
  %105 = vadd.xlane.f32.xlu0 %v104
  %v106 = vpop.xlane.xlu0 %105
  %v107 = vsel %vm73, %v68, 0.0
  %108 = vadd.xlane.f32.xlu0 %v107
  %v109 = vpop.xlane.xlu0 %108
  %v110 = vsel %vm73, %v69, 0.0
  %111 = vadd.xlane.f32.xlu0 %v110
  %v112 = vpop.xlane.xlu0 %111
  %v113 = vsel %vm73, %v70, 0.0
  %114 = vadd.xlane.f32.xlu0 %v113
  %v115 = vpop.xlane.xlu0 %114
  %v116 = vsel %vm73, %v71, 0.0
  %117 = vadd.xlane.f32.xlu0 %v116
  %v118 = vpop.xlane.xlu0 %117
  %v119 = vsel %vm73, %v72, 0.0
  %120 = vadd.xlane.f32.xlu0 %v119
  %v121 = vpop.xlane.xlu0 %120
  %v122 = vrcp.pop 32.0
  %v123 = vmul.f32 %v76, %v122
  %v124 = vmul.f32 %v79, %v122
  %v125 = vmul.f32 %v82, %v122
  %v126 = vmul.f32 %v85, %v122
  %v127 = vmul.f32 %v88, %v122
  %v128 = vmul.f32 %v91, %v122
  %v129 = vmul.f32 %v94, %v122
  %v130 = vmul.f32 %v97, %v122
  %v131 = vmul.f32 %v100, %v122
  %v132 = vmul.f32 %v103, %v122
  %v133 = vmul.f32 %v106, %v122
  %v134 = vmul.f32 %v109, %v122
  %v135 = vmul.f32 %v112, %v122
  %v136 = vmul.f32 %v115, %v122
  %v137 = vmul.f32 %v118, %v122
  %v138 = vmul.f32 %v121, %v122
  %v139 = vsub.f32 %v57, %v123
  %v140 = vsub.f32 %v58, %v124
  %v141 = vsub.f32 %v59, %v125
  %v142 = vsub.f32 %v60, %v126
  %v143 = vsub.f32 %v61, %v127
  %v144 = vsub.f32 %v62, %v128
  %v145 = vsub.f32 %v63, %v129
  %v146 = vsub.f32 %v64, %v130
  %v147 = vsub.f32 %v65, %v131
  %v148 = vsub.f32 %v66, %v132
  %v149 = vsub.f32 %v67, %v133
  %v150 = vsub.f32 %v68, %v134
  %v151 = vsub.f32 %v69, %v135
  %v152 = vsub.f32 %v70, %v136
  %v153 = vsub.f32 %v71, %v137
  %v154 = vsub.f32 %v72, %v138
  %v155 = vmul.f32 %v139, %v139
  %v156 = vmul.f32 %v140, %v140
  %v157 = vmul.f32 %v141, %v141
  %v158 = vmul.f32 %v142, %v142
  %v159 = vmul.f32 %v143, %v143
  %v160 = vmul.f32 %v144, %v144
  %v161 = vmul.f32 %v145, %v145
  %v162 = vmul.f32 %v146, %v146
  %v163 = vmul.f32 %v147, %v147
  %v164 = vmul.f32 %v148, %v148
  %v165 = vmul.f32 %v149, %v149
  %v166 = vmul.f32 %v150, %v150
  %v167 = vmul.f32 %v151, %v151
  %v168 = vmul.f32 %v152, %v152
  %v169 = vmul.f32 %v153, %v153
  %v170 = vmul.f32 %v154, %v154
  %v171 = vsel %vm73, %v155, 0.0
  %172 = vadd.xlane.f32.xlu0 %v171
  %v173 = vpop.xlane.xlu0 %172
  %v174 = vsel %vm73, %v156, 0.0
  %175 = vadd.xlane.f32.xlu0 %v174
  %v176 = vpop.xlane.xlu0 %175
  %v177 = vsel %vm73, %v157, 0.0
  %178 = vadd.xlane.f32.xlu0 %v177
  %v179 = vpop.xlane.xlu0 %178
  %v180 = vsel %vm73, %v158, 0.0
  %181 = vadd.xlane.f32.xlu0 %v180
  %v182 = vpop.xlane.xlu0 %181
  %v183 = vsel %vm73, %v159, 0.0
  %184 = vadd.xlane.f32.xlu0 %v183
  %v185 = vpop.xlane.xlu0 %184
  %v186 = vsel %vm73, %v160, 0.0
  %187 = vadd.xlane.f32.xlu0 %v186
  %v188 = vpop.xlane.xlu0 %187
  %v189 = vsel %vm73, %v161, 0.0
  %190 = vadd.xlane.f32.xlu0 %v189
  %v191 = vpop.xlane.xlu0 %190
  %v192 = vsel %vm73, %v162, 0.0
  %193 = vadd.xlane.f32.xlu0 %v192
  %v194 = vpop.xlane.xlu0 %193
  %v195 = vsel %vm73, %v163, 0.0
  %196 = vadd.xlane.f32.xlu0 %v195
  %v197 = vpop.xlane.xlu0 %196
  %v198 = vsel %vm73, %v164, 0.0
  %199 = vadd.xlane.f32.xlu0 %v198
  %v200 = vpop.xlane.xlu0 %199
  %v201 = vsel %vm73, %v165, 0.0
  %202 = vadd.xlane.f32.xlu0 %v201
  %v203 = vpop.xlane.xlu0 %202
  %v204 = vsel %vm73, %v166, 0.0
  %205 = vadd.xlane.f32.xlu0 %v204
  %v206 = vpop.xlane.xlu0 %205
  %v207 = vsel %vm73, %v167, 0.0
  %208 = vadd.xlane.f32.xlu0 %v207
  %v209 = vpop.xlane.xlu0 %208
  %v210 = vsel %vm73, %v168, 0.0
  %211 = vadd.xlane.f32.xlu0 %v210
  %v212 = vpop.xlane.xlu0 %211
  %v213 = vsel %vm73, %v169, 0.0
  %214 = vadd.xlane.f32.xlu0 %v213
  %v215 = vpop.xlane.xlu0 %214
  %v216 = vsel %vm73, %v170, 0.0
  %217 = vadd.xlane.f32.xlu0 %v216
  %v218 = vpop.xlane.xlu0 %217
  %v219 = vmul.f32 %v173, %v122
  %v220 = vmul.f32 %v176, %v122
  %v221 = vmul.f32 %v179, %v122
  %v222 = vmul.f32 %v182, %v122
  %v223 = vmul.f32 %v185, %v122
  %v224 = vmul.f32 %v188, %v122
  %v225 = vmul.f32 %v191, %v122
  %v226 = vmul.f32 %v194, %v122
  %v227 = vmul.f32 %v197, %v122
  %v228 = vmul.f32 %v200, %v122
  %v229 = vmul.f32 %v203, %v122
  %v230 = vmul.f32 %v206, %v122
  %v231 = vmul.f32 %v209, %v122
  %v232 = vmul.f32 %v212, %v122
  %v233 = vmul.f32 %v215, %v122
  %v234 = vmul.f32 %v218, %v122
  %v235 = vadd.f32 %v219, 1e-05
  %v236 = vadd.f32 %v220, 1e-05
  %v237 = vadd.f32 %v221, 1e-05
  %v238 = vadd.f32 %v222, 1e-05
  %v239 = vadd.f32 %v223, 1e-05
  %v240 = vadd.f32 %v224, 1e-05
  %v241 = vadd.f32 %v225, 1e-05
  %v242 = vadd.f32 %v226, 1e-05
  %v243 = vadd.f32 %v227, 1e-05
  %v244 = vadd.f32 %v228, 1e-05
  %v245 = vadd.f32 %v229, 1e-05
  %v246 = vadd.f32 %v230, 1e-05
  %v247 = vadd.f32 %v231, 1e-05
  %v248 = vadd.f32 %v232, 1e-05
  %v249 = vadd.f32 %v233, 1e-05
  %v250 = vadd.f32 %v234, 1e-05
  %v251 = vrsqrt.pop %v235
  %v252 = vrsqrt.pop %v236
  %v253 = vrsqrt.pop %v237
  %v254 = vrsqrt.pop %v238
  %v255 = vrsqrt.pop %v239
  %v256 = vrsqrt.pop %v240
  %v257 = vrsqrt.pop %v241
  %v258 = vrsqrt.pop %v242
  %v259 = vrsqrt.pop %v243
  %v260 = vrsqrt.pop %v244
  %v261 = vrsqrt.pop %v245
  %v262 = vrsqrt.pop %v246
  %v263 = vrsqrt.pop %v247
  %v264 = vrsqrt.pop %v248
  %v265 = vrsqrt.pop %v249
  %v266 = vrsqrt.pop %v250
  %v267 = vmul.f32 %v139, %v251
  %v268 = vmul.f32 %v140, %v252
  %v269 = vmul.f32 %v141, %v253
  %v270 = vmul.f32 %v142, %v254
  %v271 = vmul.f32 %v143, %v255
  %v272 = vmul.f32 %v144, %v256
  %v273 = vmul.f32 %v145, %v257
  %v274 = vmul.f32 %v146, %v258
  %v275 = vmul.f32 %v147, %v259
  %v276 = vmul.f32 %v148, %v260
  %v277 = vmul.f32 %v149, %v261
  %v278 = vmul.f32 %v150, %v262
  %v279 = vmul.f32 %v151, %v263
  %v280 = vmul.f32 %v152, %v264
  %v281 = vmul.f32 %v153, %v265
  %v282 = vmul.f32 %v154, %v266
  %v283 = vld [vmem:[%s3] sm:$0x1]
  %v285 = vlaneseq
  %v286 = vshrl.u32 %v285, 7
  %v287 = vsub.s32 0, %v286
  %v288 = vrot.slane %v283, %v287
  %v290 = vmul.f32 %v267, %v288
  %v291 = vmul.f32 %v268, %v288
  %v292 = vmul.f32 %v269, %v288
  %v293 = vmul.f32 %v270, %v288
  %v294 = vmul.f32 %v271, %v288
  %v295 = vmul.f32 %v272, %v288
  %v296 = vmul.f32 %v273, %v288
  %v297 = vmul.f32 %v274, %v288
  %v298 = vmul.f32 %v275, %v288
  %v299 = vmul.f32 %v276, %v288
  %v300 = vmul.f32 %v277, %v288
  %v301 = vmul.f32 %v278, %v288
  %v302 = vmul.f32 %v279, %v288
  %v303 = vmul.f32 %v280, %v288
  %v304 = vmul.f32 %v281, %v288
  %v305 = vmul.f32 %v282, %v288
  %v306 = vld [vmem:[%s4] sm:$0x1]
  %v308 = vlaneseq
  %v309 = vshrl.u32 %v308, 7
  %v310 = vsub.s32 0, %v309
  %v311 = vrot.slane %v306, %v310
  %v313 = vadd.f32 %v290, %v311
  %v314 = vadd.f32 %v291, %v311
  %v315 = vadd.f32 %v292, %v311
  %v316 = vadd.f32 %v293, %v311
  %v317 = vadd.f32 %v294, %v311
  %v318 = vadd.f32 %v295, %v311
  %v319 = vadd.f32 %v296, %v311
  %v320 = vadd.f32 %v297, %v311
  %v321 = vadd.f32 %v298, %v311
  %v322 = vadd.f32 %v299, %v311
  %v323 = vadd.f32 %v300, %v311
  %v324 = vadd.f32 %v301, %v311
  %v325 = vadd.f32 %v302, %v311
  %v326 = vadd.f32 %v303, %v311
  %v327 = vadd.f32 %v304, %v311
  %v328 = vadd.f32 %v305, %v311
  %v329 = vpack.c.bf16 %v314, %v313
  %v330 = vpack.c.bf16 %v316, %v315
  %v331 = vpack.c.bf16 %v318, %v317
  %v332 = vpack.c.bf16 %v320, %v319
  %v333 = vpack.c.bf16 %v322, %v321
  %v334 = vpack.c.bf16 %v324, %v323
  %v335 = vpack.c.bf16 %v326, %v325
  %v336 = vpack.c.bf16 %v328, %v327
  %v337 = vld [vmem:[%s5] sm:$0xf]
  %v338 = vld [vmem:[%s5 + $0x4] sm:$0xf]
  %v339 = vld [vmem:[%s5 + $0x8] sm:$0xf]
  %v340 = vld [vmem:[%s5 + $0xc] sm:$0xf]
  %v341 = vld [vmem:[%s6] sm:$0x1]
  %v343 = vlaneseq
  %v344 = vshrl.u32 %v343, 7
  %v345 = vsub.s32 0, %v344
  %v346 = vrot.slane %v341, %v345
  %v352 = vunpack.c.l.b16 %v337
  %v353 = vunpack.c.l.b16 %v338
  %v354 = vunpack.c.l.b16 %v339
  %v355 = vunpack.c.l.b16 %v340
  %v356 = vpack.c.b16 %v353, %v352
  %v357 = vpack.c.b16 %v355, %v354
  %v361 = vsel %vm73, %v329, 0
  %v364 = vsel %vm73, %v330, 0
  %v367 = vsel %vm73, %v331, 0
  %v370 = vsel %vm73, %v332, 0
  %v373 = vsel %vm73, %v333, 0
  %v376 = vsel %vm73, %v334, 0
  %v379 = vsel %vm73, %v335, 0
  %v382 = vsel %vm73, %v336, 0
  %384 = vmatprep.subr.bf16.mxu0 0
  %385 = vmatpush1.bf16.msra.mxu0 %v356
  %386 = vmatprep.subr.bf16.mxu0 0
  %387 = vmatpush1.bf16.msra.mxu0 %v357
  %388 = vmatprep.subr.bf16.mxu0 0
  %389 = vmatpush1.bf16.msra.mxu0 0
  %390 = vmatprep.subr.bf16.mxu0 0
  %391 = vmatpush1.bf16.msra.mxu0 0
  %392 = vmatprep.subr.bf16.mxu0 0
  %393 = vmatpush1.bf16.msra.mxu0 0
  %394 = vmatprep.subr.bf16.mxu0 0
  %395 = vmatpush1.bf16.msra.mxu0 0
  %396 = vmatprep.subr.bf16.mxu0 0
  %397 = vmatpush1.bf16.msra.mxu0 0
  %398 = vmatprep.subr.bf16.mxu0 0
  %399 = vmatpush1.bf16.msra.mxu0 0
  %400 = vmatprep.subr.bf16.mxu0 0
  %401 = vmatpush1.bf16.msra.mxu0 0
  %402 = vmatprep.subr.bf16.mxu0 0
  %403 = vmatpush1.bf16.msra.mxu0 0
  %404 = vmatprep.subr.bf16.mxu0 0
  %405 = vmatpush1.bf16.msra.mxu0 0
  %406 = vmatprep.subr.bf16.mxu0 0
  %407 = vmatpush1.bf16.msra.mxu0 0
  %408 = vmatprep.subr.bf16.mxu0 0
  %409 = vmatpush1.bf16.msra.mxu0 0
  %410 = vmatprep.subr.bf16.mxu0 0
  %411 = vmatpush1.bf16.msra.mxu0 0
  %412 = vmatprep.subr.bf16.mxu0 0
  %413 = vmatpush1.bf16.msra.mxu0 0
  %414 = vmatprep.subr.bf16.mxu0 0
  %415 = vmatpush1.bf16.msra.mxu0 0
  %416 = vmatprep.mubr.bf16.mxu0 0
  %417 = vmatmul.mubr.bf16.gmra.mrb[0].mxu0 %v361
  %v418 = vpop.f32.mrb[0].mxu0
  %v419 = vadd.f32 %v346, %v418
  %v420 = vpop.f32.mrb[0].mxu0
  %v421 = vpop.f32.mrb[0].mxu0
  %v422 = vadd.f32 %v346, %v421
  %v423 = vpop.f32.mrb[0].mxu0
  %424 = vmatprep.mubr.bf16.mxu0 0
  %425 = vmatmul.mubr.bf16.gmra.mrb[0].mxu0 %v364
  %v426 = vpop.f32.mrb[0].mxu0
  %v427 = vadd.f32 %v346, %v426
  %v428 = vpop.f32.mrb[0].mxu0
  %v429 = vpop.f32.mrb[0].mxu0
  %v430 = vadd.f32 %v346, %v429
  %v431 = vpop.f32.mrb[0].mxu0
  %432 = vmatprep.mubr.bf16.mxu0 0
  %433 = vmatmul.mubr.bf16.gmra.mrb[0].mxu0 %v367
  %v434 = vpop.f32.mrb[0].mxu0
  %v435 = vadd.f32 %v346, %v434
  %v436 = vpop.f32.mrb[0].mxu0
  %v437 = vpop.f32.mrb[0].mxu0
  %v438 = vadd.f32 %v346, %v437
  %v439 = vpop.f32.mrb[0].mxu0
  %440 = vmatprep.mubr.bf16.mxu0 0
  %441 = vmatmul.mubr.bf16.gmra.mrb[0].mxu0 %v370
  %v442 = vpop.f32.mrb[0].mxu0
  %v443 = vadd.f32 %v346, %v442
  %v444 = vpop.f32.mrb[0].mxu0
  %v445 = vpop.f32.mrb[0].mxu0
  %v446 = vadd.f32 %v346, %v445
  %v447 = vpop.f32.mrb[0].mxu0
  %448 = vmatprep.mubr.bf16.mxu0 0
  %449 = vmatmul.mubr.bf16.gmra.mrb[0].mxu0 %v373
  %v450 = vpop.f32.mrb[0].mxu0
  %v451 = vadd.f32 %v346, %v450
  %v452 = vpop.f32.mrb[0].mxu0
  %v453 = vpop.f32.mrb[0].mxu0
  %v454 = vadd.f32 %v346, %v453
  %v455 = vpop.f32.mrb[0].mxu0
  %456 = vmatprep.mubr.bf16.mxu0 0
  %457 = vmatmul.mubr.bf16.gmra.mrb[0].mxu0 %v376
  %v458 = vpop.f32.mrb[0].mxu0
  %v459 = vadd.f32 %v346, %v458
  %v460 = vpop.f32.mrb[0].mxu0
  %v461 = vpop.f32.mrb[0].mxu0
  %v462 = vadd.f32 %v346, %v461
  %v463 = vpop.f32.mrb[0].mxu0
  %464 = vmatprep.mubr.bf16.mxu0 0
  %465 = vmatmul.mubr.bf16.gmra.mrb[0].mxu0 %v379
  %v466 = vpop.f32.mrb[0].mxu0
  %v467 = vadd.f32 %v346, %v466
  %v468 = vpop.f32.mrb[0].mxu0
  %v469 = vpop.f32.mrb[0].mxu0
  %v470 = vadd.f32 %v346, %v469
  %v471 = vpop.f32.mrb[0].mxu0
  %472 = vmatprep.mubr.bf16.mxu0 0
  %473 = vmatmul.mubr.bf16.gmra.mrb[0].mxu0 %v382
  %v474 = vpop.f32.mrb[0].mxu0
  %v475 = vadd.f32 %v346, %v474
  %v476 = vpop.f32.mrb[0].mxu0
  %v477 = vpop.f32.mrb[0].mxu0
  %v478 = vadd.f32 %v346, %v477
  %v479 = vpop.f32.mrb[0].mxu0
  %480 = vdwg.mxu0
  %497 = vrot.lane.b32.xlu0 %v419, 120
  %v498 = vpop.permute.xlu0 %497
  %499 = vrot.lane.b32.xlu0 %v422, 120
  %v500 = vpop.permute.xlu0 %499
  %501 = vrot.lane.b32.xlu0 %v427, 120
  %v502 = vpop.permute.xlu0 %501
  %503 = vrot.lane.b32.xlu0 %v430, 120
  %v504 = vpop.permute.xlu0 %503
  %505 = vrot.lane.b32.xlu0 %v435, 120
  %v506 = vpop.permute.xlu0 %505
  %507 = vrot.lane.b32.xlu0 %v438, 120
  %v508 = vpop.permute.xlu0 %507
  %509 = vrot.lane.b32.xlu0 %v443, 120
  %v510 = vpop.permute.xlu0 %509
  %511 = vrot.lane.b32.xlu0 %v446, 120
  %v512 = vpop.permute.xlu0 %511
  %513 = vrot.lane.b32.xlu0 %v451, 120
  %v514 = vpop.permute.xlu0 %513
  %515 = vrot.lane.b32.xlu0 %v454, 120
  %v516 = vpop.permute.xlu0 %515
  %517 = vrot.lane.b32.xlu0 %v459, 120
  %v518 = vpop.permute.xlu0 %517
  %519 = vrot.lane.b32.xlu0 %v462, 120
  %v520 = vpop.permute.xlu0 %519
  %521 = vrot.lane.b32.xlu0 %v467, 120
  %v522 = vpop.permute.xlu0 %521
  %523 = vrot.lane.b32.xlu0 %v470, 120
  %v524 = vpop.permute.xlu0 %523
  %525 = vrot.lane.b32.xlu0 %v475, 120
  %v526 = vpop.permute.xlu0 %525
  %527 = vrot.lane.b32.xlu0 %v478, 120
  %v528 = vpop.permute.xlu0 %527
  %545 = vrot.lane.b32.xlu0 %v419, 112
  %v546 = vpop.permute.xlu0 %545
  %547 = vrot.lane.b32.xlu0 %v422, 112
  %v548 = vpop.permute.xlu0 %547
  %549 = vrot.lane.b32.xlu0 %v427, 112
  %v550 = vpop.permute.xlu0 %549
  %551 = vrot.lane.b32.xlu0 %v430, 112
  %v552 = vpop.permute.xlu0 %551
  %553 = vrot.lane.b32.xlu0 %v435, 112
  %v554 = vpop.permute.xlu0 %553
  %555 = vrot.lane.b32.xlu0 %v438, 112
  %v556 = vpop.permute.xlu0 %555
  %557 = vrot.lane.b32.xlu0 %v443, 112
  %v558 = vpop.permute.xlu0 %557
  %559 = vrot.lane.b32.xlu0 %v446, 112
  %v560 = vpop.permute.xlu0 %559
  %561 = vrot.lane.b32.xlu0 %v451, 112
  %v562 = vpop.permute.xlu0 %561
  %563 = vrot.lane.b32.xlu0 %v454, 112
  %v564 = vpop.permute.xlu0 %563
  %565 = vrot.lane.b32.xlu0 %v459, 112
  %v566 = vpop.permute.xlu0 %565
  %567 = vrot.lane.b32.xlu0 %v462, 112
  %v568 = vpop.permute.xlu0 %567
  %569 = vrot.lane.b32.xlu0 %v467, 112
  %v570 = vpop.permute.xlu0 %569
  %571 = vrot.lane.b32.xlu0 %v470, 112
  %v572 = vpop.permute.xlu0 %571
  %573 = vrot.lane.b32.xlu0 %v475, 112
  %v574 = vpop.permute.xlu0 %573
  %575 = vrot.lane.b32.xlu0 %v478, 112
  %v576 = vpop.permute.xlu0 %575
  %593 = vrot.lane.b32.xlu0 %v419, 104
  %v594 = vpop.permute.xlu0 %593
  %595 = vrot.lane.b32.xlu0 %v422, 104
  %v596 = vpop.permute.xlu0 %595
  %597 = vrot.lane.b32.xlu0 %v427, 104
  %v598 = vpop.permute.xlu0 %597
  %599 = vrot.lane.b32.xlu0 %v430, 104
  %v600 = vpop.permute.xlu0 %599
  %601 = vrot.lane.b32.xlu0 %v435, 104
  %v602 = vpop.permute.xlu0 %601
  %603 = vrot.lane.b32.xlu0 %v438, 104
  %v604 = vpop.permute.xlu0 %603
  %605 = vrot.lane.b32.xlu0 %v443, 104
  %v606 = vpop.permute.xlu0 %605
  %607 = vrot.lane.b32.xlu0 %v446, 104
  %v608 = vpop.permute.xlu0 %607
  %609 = vrot.lane.b32.xlu0 %v451, 104
  %v610 = vpop.permute.xlu0 %609
  %611 = vrot.lane.b32.xlu0 %v454, 104
  %v612 = vpop.permute.xlu0 %611
  %613 = vrot.lane.b32.xlu0 %v459, 104
  %v614 = vpop.permute.xlu0 %613
  %615 = vrot.lane.b32.xlu0 %v462, 104
  %v616 = vpop.permute.xlu0 %615
  %617 = vrot.lane.b32.xlu0 %v467, 104
  %v618 = vpop.permute.xlu0 %617
  %619 = vrot.lane.b32.xlu0 %v470, 104
  %v620 = vpop.permute.xlu0 %619
  %621 = vrot.lane.b32.xlu0 %v475, 104
  %v622 = vpop.permute.xlu0 %621
  %623 = vrot.lane.b32.xlu0 %v478, 104
  %v624 = vpop.permute.xlu0 %623
  %v641 = vpack.c.bf16 %v422, %v419
  %v642 = vpack.c.bf16 %v430, %v427
  %v643 = vpack.c.bf16 %v438, %v435
  %v644 = vpack.c.bf16 %v446, %v443
  %v645 = vpack.c.bf16 %v454, %v451
  %v646 = vpack.c.bf16 %v462, %v459
  %v647 = vpack.c.bf16 %v470, %v467
  %v648 = vpack.c.bf16 %v478, %v475
  %v649 = vpack.c.bf16 %v500, %v498
  %v650 = vpack.c.bf16 %v504, %v502
  %v651 = vpack.c.bf16 %v508, %v506
  %v652 = vpack.c.bf16 %v512, %v510
  %v653 = vpack.c.bf16 %v516, %v514
  %v654 = vpack.c.bf16 %v520, %v518
  %v655 = vpack.c.bf16 %v524, %v522
  %v656 = vpack.c.bf16 %v528, %v526
  %v657 = vpack.c.bf16 %v548, %v546
  %v658 = vpack.c.bf16 %v552, %v550
  %v659 = vpack.c.bf16 %v556, %v554
  %v660 = vpack.c.bf16 %v560, %v558
  %v661 = vpack.c.bf16 %v564, %v562
  %v662 = vpack.c.bf16 %v568, %v566
  %v663 = vpack.c.bf16 %v572, %v570
  %v664 = vpack.c.bf16 %v576, %v574
  %v665 = vpack.c.bf16 %v596, %v594
  %v666 = vpack.c.bf16 %v600, %v598
  %v667 = vpack.c.bf16 %v604, %v602
  %v668 = vpack.c.bf16 %v608, %v606
  %v669 = vpack.c.bf16 %v612, %v610
  %v670 = vpack.c.bf16 %v616, %v614
  %v671 = vpack.c.bf16 %v620, %v618
  %v672 = vpack.c.bf16 %v624, %v622
  %674 = vrot.lane.b32.xlu0 %v641, 96
  %v675 = vpop.permute.xlu0 %674
  %vm676 = vcmask 64512
  %v678 = vsel %vm676, %v641, 0
  %v681 = vsel %vm676, %v675, 0
  %683 = vmatprep.subr.bf16.mxu0 0
  %684 = vmatpush1.bf16.xpose.msra.mxu0 %v681
  %685 = vmatprep.subr.bf16.mxu0 0
  %686 = vmatpush1.bf16.xpose.msra.mxu0 0
  %687 = vmatprep.subr.bf16.mxu0 0
  %688 = vmatpush1.bf16.xpose.msra.mxu0 0
  %689 = vmatprep.subr.bf16.mxu0 0
  %690 = vmatpush1.bf16.xpose.msra.mxu0 0
  %691 = vmatprep.subr.bf16.mxu0 0
  %692 = vmatpush1.bf16.xpose.msra.mxu0 0
  %693 = vmatprep.subr.bf16.mxu0 0
  %694 = vmatpush1.bf16.xpose.msra.mxu0 0
  %695 = vmatprep.subr.bf16.mxu0 0
  %696 = vmatpush1.bf16.xpose.msra.mxu0 0
  %697 = vmatprep.subr.bf16.mxu0 0
  %698 = vmatpush1.bf16.xpose.msra.mxu0 0
  %699 = vmatprep.subr.bf16.mxu0 0
  %700 = vmatpush1.bf16.xpose.msra.mxu0 0
  %701 = vmatprep.subr.bf16.mxu0 0
  %702 = vmatpush1.bf16.xpose.msra.mxu0 0
  %703 = vmatprep.subr.bf16.mxu0 0
  %704 = vmatpush1.bf16.xpose.msra.mxu0 0
  %705 = vmatprep.subr.bf16.mxu0 0
  %706 = vmatpush1.bf16.xpose.msra.mxu0 0
  %707 = vmatprep.subr.bf16.mxu0 0
  %708 = vmatpush1.bf16.xpose.msra.mxu0 0
  %709 = vmatprep.subr.bf16.mxu0 0
  %710 = vmatpush1.bf16.xpose.msra.mxu0 0
  %711 = vmatprep.subr.bf16.mxu0 0
  %712 = vmatpush1.bf16.xpose.msra.mxu0 0
  %713 = vmatprep.subr.bf16.mxu0 0
  %714 = vmatpush1.bf16.xpose.msra.mxu0 0
  %715 = vmatprep.mubr.bf16.mxu0 0
  %716 = vmatmul.mubr.bf16.gmra.mrb[0].mxu0 %v678
  %v717 = vpop.f32.mrb[0].mxu0
  %v718 = vadd.f32 0.0, %v717
  %v719 = vpop.f32.mrb[0].mxu0
  %v720 = vpop.f32.mrb[0].mxu0
  %v721 = vadd.f32 0.0, %v720
  %v722 = vpop.f32.mrb[0].mxu0
  %723 = vdwg.mxu0
  %725 = vrot.lane.b32.xlu0 %v642, 96
  %v726 = vpop.permute.xlu0 %725
  %v728 = vsel %vm676, %v642, 0
  %v731 = vsel %vm676, %v726, 0
  %733 = vmatprep.subr.bf16.mxu0 0
  %734 = vmatpush1.bf16.xpose.msra.mxu0 %v731
  %735 = vmatprep.subr.bf16.mxu0 0
  %736 = vmatpush1.bf16.xpose.msra.mxu0 0
  %737 = vmatprep.subr.bf16.mxu0 0
  %738 = vmatpush1.bf16.xpose.msra.mxu0 0
  %739 = vmatprep.subr.bf16.mxu0 0
  %740 = vmatpush1.bf16.xpose.msra.mxu0 0
  %741 = vmatprep.subr.bf16.mxu0 0
  %742 = vmatpush1.bf16.xpose.msra.mxu0 0
  %743 = vmatprep.subr.bf16.mxu0 0
  %744 = vmatpush1.bf16.xpose.msra.mxu0 0
  %745 = vmatprep.subr.bf16.mxu0 0
  %746 = vmatpush1.bf16.xpose.msra.mxu0 0
  %747 = vmatprep.subr.bf16.mxu0 0
  %748 = vmatpush1.bf16.xpose.msra.mxu0 0
  %749 = vmatprep.subr.bf16.mxu0 0
  %750 = vmatpush1.bf16.xpose.msra.mxu0 0
  %751 = vmatprep.subr.bf16.mxu0 0
  %752 = vmatpush1.bf16.xpose.msra.mxu0 0
  %753 = vmatprep.subr.bf16.mxu0 0
  %754 = vmatpush1.bf16.xpose.msra.mxu0 0
  %755 = vmatprep.subr.bf16.mxu0 0
  %756 = vmatpush1.bf16.xpose.msra.mxu0 0
  %757 = vmatprep.subr.bf16.mxu0 0
  %758 = vmatpush1.bf16.xpose.msra.mxu0 0
  %759 = vmatprep.subr.bf16.mxu0 0
  %760 = vmatpush1.bf16.xpose.msra.mxu0 0
  %761 = vmatprep.subr.bf16.mxu0 0
  %762 = vmatpush1.bf16.xpose.msra.mxu0 0
  %763 = vmatprep.subr.bf16.mxu0 0
  %764 = vmatpush1.bf16.xpose.msra.mxu0 0
  %765 = vmatprep.mubr.bf16.mxu0 0
  %766 = vmatmul.mubr.bf16.gmra.mrb[0].mxu0 %v728
  %v767 = vpop.f32.mrb[0].mxu0
  %v768 = vadd.f32 0.0, %v767
  %v769 = vpop.f32.mrb[0].mxu0
  %v770 = vpop.f32.mrb[0].mxu0
  %v771 = vadd.f32 0.0, %v770
  %v772 = vpop.f32.mrb[0].mxu0
  %773 = vdwg.mxu0
  %775 = vrot.lane.b32.xlu0 %v643, 96
  %v776 = vpop.permute.xlu0 %775
  %v778 = vsel %vm676, %v643, 0
  %v781 = vsel %vm676, %v776, 0
  %783 = vmatprep.subr.bf16.mxu0 0
  %784 = vmatpush1.bf16.xpose.msra.mxu0 %v781
  %785 = vmatprep.subr.bf16.mxu0 0
  %786 = vmatpush1.bf16.xpose.msra.mxu0 0
  %787 = vmatprep.subr.bf16.mxu0 0
  %788 = vmatpush1.bf16.xpose.msra.mxu0 0
  %789 = vmatprep.subr.bf16.mxu0 0
  %790 = vmatpush1.bf16.xpose.msra.mxu0 0
  %791 = vmatprep.subr.bf16.mxu0 0
  %792 = vmatpush1.bf16.xpose.msra.mxu0 0
  %793 = vmatprep.subr.bf16.mxu0 0
  %794 = vmatpush1.bf16.xpose.msra.mxu0 0
  %795 = vmatprep.subr.bf16.mxu0 0
  %796 = vmatpush1.bf16.xpose.msra.mxu0 0
  %797 = vmatprep.subr.bf16.mxu0 0
  %798 = vmatpush1.bf16.xpose.msra.mxu0 0
  %799 = vmatprep.subr.bf16.mxu0 0
  %800 = vmatpush1.bf16.xpose.msra.mxu0 0
  %801 = vmatprep.subr.bf16.mxu0 0
  %802 = vmatpush1.bf16.xpose.msra.mxu0 0
  %803 = vmatprep.subr.bf16.mxu0 0
  %804 = vmatpush1.bf16.xpose.msra.mxu0 0
  %805 = vmatprep.subr.bf16.mxu0 0
  %806 = vmatpush1.bf16.xpose.msra.mxu0 0
  %807 = vmatprep.subr.bf16.mxu0 0
  %808 = vmatpush1.bf16.xpose.msra.mxu0 0
  %809 = vmatprep.subr.bf16.mxu0 0
  %810 = vmatpush1.bf16.xpose.msra.mxu0 0
  %811 = vmatprep.subr.bf16.mxu0 0
  %812 = vmatpush1.bf16.xpose.msra.mxu0 0
  %813 = vmatprep.subr.bf16.mxu0 0
  %814 = vmatpush1.bf16.xpose.msra.mxu0 0
  %815 = vmatprep.mubr.bf16.mxu0 0
  %816 = vmatmul.mubr.bf16.gmra.mrb[0].mxu0 %v778
  %v817 = vpop.f32.mrb[0].mxu0
  %v818 = vadd.f32 0.0, %v817
  %v819 = vpop.f32.mrb[0].mxu0
  %v820 = vpop.f32.mrb[0].mxu0
  %v821 = vadd.f32 0.0, %v820
  %v822 = vpop.f32.mrb[0].mxu0
  %823 = vdwg.mxu0
  %825 = vrot.lane.b32.xlu0 %v644, 96
  %v826 = vpop.permute.xlu0 %825
  %v828 = vsel %vm676, %v644, 0
  %v831 = vsel %vm676, %v826, 0
  %833 = vmatprep.subr.bf16.mxu0 0
  %834 = vmatpush1.bf16.xpose.msra.mxu0 %v831
  %835 = vmatprep.subr.bf16.mxu0 0
  %836 = vmatpush1.bf16.xpose.msra.mxu0 0
  %837 = vmatprep.subr.bf16.mxu0 0
  %838 = vmatpush1.bf16.xpose.msra.mxu0 0
  %839 = vmatprep.subr.bf16.mxu0 0
  %840 = vmatpush1.bf16.xpose.msra.mxu0 0
  %841 = vmatprep.subr.bf16.mxu0 0
  %842 = vmatpush1.bf16.xpose.msra.mxu0 0
  %843 = vmatprep.subr.bf16.mxu0 0
  %844 = vmatpush1.bf16.xpose.msra.mxu0 0
  %845 = vmatprep.subr.bf16.mxu0 0
  %846 = vmatpush1.bf16.xpose.msra.mxu0 0
  %847 = vmatprep.subr.bf16.mxu0 0
  %848 = vmatpush1.bf16.xpose.msra.mxu0 0
  %849 = vmatprep.subr.bf16.mxu0 0
  %850 = vmatpush1.bf16.xpose.msra.mxu0 0
  %851 = vmatprep.subr.bf16.mxu0 0
  %852 = vmatpush1.bf16.xpose.msra.mxu0 0
  %853 = vmatprep.subr.bf16.mxu0 0
  %854 = vmatpush1.bf16.xpose.msra.mxu0 0
  %855 = vmatprep.subr.bf16.mxu0 0
  %856 = vmatpush1.bf16.xpose.msra.mxu0 0
  %857 = vmatprep.subr.bf16.mxu0 0
  %858 = vmatpush1.bf16.xpose.msra.mxu0 0
  %859 = vmatprep.subr.bf16.mxu0 0
  %860 = vmatpush1.bf16.xpose.msra.mxu0 0
  %861 = vmatprep.subr.bf16.mxu0 0
  %862 = vmatpush1.bf16.xpose.msra.mxu0 0
  %863 = vmatprep.subr.bf16.mxu0 0
  %864 = vmatpush1.bf16.xpose.msra.mxu0 0
  %865 = vmatprep.mubr.bf16.mxu0 0
  %866 = vmatmul.mubr.bf16.gmra.mrb[0].mxu0 %v828
  %v867 = vpop.f32.mrb[0].mxu0
  %v868 = vadd.f32 0.0, %v867
  %v869 = vpop.f32.mrb[0].mxu0
  %v870 = vpop.f32.mrb[0].mxu0
  %v871 = vadd.f32 0.0, %v870
  %v872 = vpop.f32.mrb[0].mxu0
  %873 = vdwg.mxu0
  %875 = vrot.lane.b32.xlu0 %v645, 96
  %v876 = vpop.permute.xlu0 %875
  %v878 = vsel %vm676, %v645, 0
  %v881 = vsel %vm676, %v876, 0
  %883 = vmatprep.subr.bf16.mxu0 0
  %884 = vmatpush1.bf16.xpose.msra.mxu0 %v881
  %885 = vmatprep.subr.bf16.mxu0 0
  %886 = vmatpush1.bf16.xpose.msra.mxu0 0
  %887 = vmatprep.subr.bf16.mxu0 0
  %888 = vmatpush1.bf16.xpose.msra.mxu0 0
  %889 = vmatprep.subr.bf16.mxu0 0
  %890 = vmatpush1.bf16.xpose.msra.mxu0 0
  %891 = vmatprep.subr.bf16.mxu0 0
  %892 = vmatpush1.bf16.xpose.msra.mxu0 0
  %893 = vmatprep.subr.bf16.mxu0 0
  %894 = vmatpush1.bf16.xpose.msra.mxu0 0
  %895 = vmatprep.subr.bf16.mxu0 0
  %896 = vmatpush1.bf16.xpose.msra.mxu0 0
  %897 = vmatprep.subr.bf16.mxu0 0
  %898 = vmatpush1.bf16.xpose.msra.mxu0 0
  %899 = vmatprep.subr.bf16.mxu0 0
  %900 = vmatpush1.bf16.xpose.msra.mxu0 0
  %901 = vmatprep.subr.bf16.mxu0 0
  %902 = vmatpush1.bf16.xpose.msra.mxu0 0
  %903 = vmatprep.subr.bf16.mxu0 0
  %904 = vmatpush1.bf16.xpose.msra.mxu0 0
  %905 = vmatprep.subr.bf16.mxu0 0
  %906 = vmatpush1.bf16.xpose.msra.mxu0 0
  %907 = vmatprep.subr.bf16.mxu0 0
  %908 = vmatpush1.bf16.xpose.msra.mxu0 0
  %909 = vmatprep.subr.bf16.mxu0 0
  %910 = vmatpush1.bf16.xpose.msra.mxu0 0
  %911 = vmatprep.subr.bf16.mxu0 0
  %912 = vmatpush1.bf16.xpose.msra.mxu0 0
  %913 = vmatprep.subr.bf16.mxu0 0
  %914 = vmatpush1.bf16.xpose.msra.mxu0 0
  %915 = vmatprep.mubr.bf16.mxu0 0
  %916 = vmatmul.mubr.bf16.gmra.mrb[0].mxu0 %v878
  %v917 = vpop.f32.mrb[0].mxu0
  %v918 = vadd.f32 0.0, %v917
  %v919 = vpop.f32.mrb[0].mxu0
  %v920 = vpop.f32.mrb[0].mxu0
  %v921 = vadd.f32 0.0, %v920
  %v922 = vpop.f32.mrb[0].mxu0
  %923 = vdwg.mxu0
  %925 = vrot.lane.b32.xlu0 %v646, 96
  %v926 = vpop.permute.xlu0 %925
  %v928 = vsel %vm676, %v646, 0
  %v931 = vsel %vm676, %v926, 0
  %933 = vmatprep.subr.bf16.mxu0 0
  %934 = vmatpush1.bf16.xpose.msra.mxu0 %v931
  %935 = vmatprep.subr.bf16.mxu0 0
  %936 = vmatpush1.bf16.xpose.msra.mxu0 0
  %937 = vmatprep.subr.bf16.mxu0 0
  %938 = vmatpush1.bf16.xpose.msra.mxu0 0
  %939 = vmatprep.subr.bf16.mxu0 0
  %940 = vmatpush1.bf16.xpose.msra.mxu0 0
  %941 = vmatprep.subr.bf16.mxu0 0
  %942 = vmatpush1.bf16.xpose.msra.mxu0 0
  %943 = vmatprep.subr.bf16.mxu0 0
  %944 = vmatpush1.bf16.xpose.msra.mxu0 0
  %945 = vmatprep.subr.bf16.mxu0 0
  %946 = vmatpush1.bf16.xpose.msra.mxu0 0
  %947 = vmatprep.subr.bf16.mxu0 0
  %948 = vmatpush1.bf16.xpose.msra.mxu0 0
  %949 = vmatprep.subr.bf16.mxu0 0
  %950 = vmatpush1.bf16.xpose.msra.mxu0 0
  %951 = vmatprep.subr.bf16.mxu0 0
  %952 = vmatpush1.bf16.xpose.msra.mxu0 0
  %953 = vmatprep.subr.bf16.mxu0 0
  %954 = vmatpush1.bf16.xpose.msra.mxu0 0
  %955 = vmatprep.subr.bf16.mxu0 0
  %956 = vmatpush1.bf16.xpose.msra.mxu0 0
  %957 = vmatprep.subr.bf16.mxu0 0
  %958 = vmatpush1.bf16.xpose.msra.mxu0 0
  %959 = vmatprep.subr.bf16.mxu0 0
  %960 = vmatpush1.bf16.xpose.msra.mxu0 0
  %961 = vmatprep.subr.bf16.mxu0 0
  %962 = vmatpush1.bf16.xpose.msra.mxu0 0
  %963 = vmatprep.subr.bf16.mxu0 0
  %964 = vmatpush1.bf16.xpose.msra.mxu0 0
  %965 = vmatprep.mubr.bf16.mxu0 0
  %966 = vmatmul.mubr.bf16.gmra.mrb[0].mxu0 %v928
  %v967 = vpop.f32.mrb[0].mxu0
  %v968 = vadd.f32 0.0, %v967
  %v969 = vpop.f32.mrb[0].mxu0
  %v970 = vpop.f32.mrb[0].mxu0
  %v971 = vadd.f32 0.0, %v970
  %v972 = vpop.f32.mrb[0].mxu0
  %973 = vdwg.mxu0
  %975 = vrot.lane.b32.xlu0 %v647, 96
  %v976 = vpop.permute.xlu0 %975
  %v978 = vsel %vm676, %v647, 0
  %v981 = vsel %vm676, %v976, 0
  %983 = vmatprep.subr.bf16.mxu0 0
  %984 = vmatpush1.bf16.xpose.msra.mxu0 %v981
  %985 = vmatprep.subr.bf16.mxu0 0
  %986 = vmatpush1.bf16.xpose.msra.mxu0 0
  %987 = vmatprep.subr.bf16.mxu0 0
  %988 = vmatpush1.bf16.xpose.msra.mxu0 0
  %989 = vmatprep.subr.bf16.mxu0 0
  %990 = vmatpush1.bf16.xpose.msra.mxu0 0
  %991 = vmatprep.subr.bf16.mxu0 0
  %992 = vmatpush1.bf16.xpose.msra.mxu0 0
  %993 = vmatprep.subr.bf16.mxu0 0
  %994 = vmatpush1.bf16.xpose.msra.mxu0 0
  %995 = vmatprep.subr.bf16.mxu0 0
  %996 = vmatpush1.bf16.xpose.msra.mxu0 0
  %997 = vmatprep.subr.bf16.mxu0 0
  %998 = vmatpush1.bf16.xpose.msra.mxu0 0
  %999 = vmatprep.subr.bf16.mxu0 0
  %1000 = vmatpush1.bf16.xpose.msra.mxu0 0
  %1001 = vmatprep.subr.bf16.mxu0 0
  %1002 = vmatpush1.bf16.xpose.msra.mxu0 0
  %1003 = vmatprep.subr.bf16.mxu0 0
  %1004 = vmatpush1.bf16.xpose.msra.mxu0 0
  %1005 = vmatprep.subr.bf16.mxu0 0
  %1006 = vmatpush1.bf16.xpose.msra.mxu0 0
  %1007 = vmatprep.subr.bf16.mxu0 0
  %1008 = vmatpush1.bf16.xpose.msra.mxu0 0
  %1009 = vmatprep.subr.bf16.mxu0 0
  %1010 = vmatpush1.bf16.xpose.msra.mxu0 0
  %1011 = vmatprep.subr.bf16.mxu0 0
  %1012 = vmatpush1.bf16.xpose.msra.mxu0 0
  %1013 = vmatprep.subr.bf16.mxu0 0
  %1014 = vmatpush1.bf16.xpose.msra.mxu0 0
  %1015 = vmatprep.mubr.bf16.mxu0 0
  %1016 = vmatmul.mubr.bf16.gmra.mrb[0].mxu0 %v978
  %v1017 = vpop.f32.mrb[0].mxu0
  %v1018 = vadd.f32 0.0, %v1017
  %v1019 = vpop.f32.mrb[0].mxu0
  %v1020 = vpop.f32.mrb[0].mxu0
  %v1021 = vadd.f32 0.0, %v1020
  %v1022 = vpop.f32.mrb[0].mxu0
  %1023 = vdwg.mxu0
  %1025 = vrot.lane.b32.xlu0 %v648, 96
  %v1026 = vpop.permute.xlu0 %1025
  %v1028 = vsel %vm676, %v648, 0
  %v1031 = vsel %vm676, %v1026, 0
  %1033 = vmatprep.subr.bf16.mxu0 0
  %1034 = vmatpush1.bf16.xpose.msra.mxu0 %v1031
  %1035 = vmatprep.subr.bf16.mxu0 0
  %1036 = vmatpush1.bf16.xpose.msra.mxu0 0
  %1037 = vmatprep.subr.bf16.mxu0 0
  %1038 = vmatpush1.bf16.xpose.msra.mxu0 0
  %1039 = vmatprep.subr.bf16.mxu0 0
  %1040 = vmatpush1.bf16.xpose.msra.mxu0 0
  %1041 = vmatprep.subr.bf16.mxu0 0
  %1042 = vmatpush1.bf16.xpose.msra.mxu0 0
  %1043 = vmatprep.subr.bf16.mxu0 0
  %1044 = vmatpush1.bf16.xpose.msra.mxu0 0
  %1045 = vmatprep.subr.bf16.mxu0 0
  %1046 = vmatpush1.bf16.xpose.msra.mxu0 0
  %1047 = vmatprep.subr.bf16.mxu0 0
  %1048 = vmatpush1.bf16.xpose.msra.mxu0 0
  %1049 = vmatprep.subr.bf16.mxu0 0
  %1050 = vmatpush1.bf16.xpose.msra.mxu0 0
  %1051 = vmatprep.subr.bf16.mxu0 0
  %1052 = vmatpush1.bf16.xpose.msra.mxu0 0
  %1053 = vmatprep.subr.bf16.mxu0 0
  %1054 = vmatpush1.bf16.xpose.msra.mxu0 0
  %1055 = vmatprep.subr.bf16.mxu0 0
  %1056 = vmatpush1.bf16.xpose.msra.mxu0 0
  %1057 = vmatprep.subr.bf16.mxu0 0
  %1058 = vmatpush1.bf16.xpose.msra.mxu0 0
  %1059 = vmatprep.subr.bf16.mxu0 0
  %1060 = vmatpush1.bf16.xpose.msra.mxu0 0
  %1061 = vmatprep.subr.bf16.mxu0 0
  %1062 = vmatpush1.bf16.xpose.msra.mxu0 0
  %1063 = vmatprep.subr.bf16.mxu0 0
  %1064 = vmatpush1.bf16.xpose.msra.mxu0 0
  %1065 = vmatprep.mubr.bf16.mxu0 0
  %1066 = vmatmul.mubr.bf16.gmra.mrb[0].mxu0 %v1028
  %v1067 = vpop.f32.mrb[0].mxu0
  %v1068 = vadd.f32 0.0, %v1067
  %v1069 = vpop.f32.mrb[0].mxu0
  %v1070 = vpop.f32.mrb[0].mxu0
  %v1071 = vadd.f32 0.0, %v1070
  %v1072 = vpop.f32.mrb[0].mxu0
  %1073 = vdwg.mxu0
  %1075 = vrot.lane.b32.xlu0 %v649, 96
  %v1076 = vpop.permute.xlu0 %1075
  %v1078 = vsel %vm676, %v649, 0
  %v1081 = vsel %vm676, %v1076, 0
  %1083 = vmatprep.subr.bf16.mxu0 0
  %1084 = vmatpush1.bf16.xpose.msra.mxu0 %v1081
  %1085 = vmatprep.subr.bf16.mxu0 0
  %1086 = vmatpush1.bf16.xpose.msra.mxu0 0
  %1087 = vmatprep.subr.bf16.mxu0 0
  %1088 = vmatpush1.bf16.xpose.msra.mxu0 0
  %1089 = vmatprep.subr.bf16.mxu0 0
  %1090 = vmatpush1.bf16.xpose.msra.mxu0 0
  %1091 = vmatprep.subr.bf16.mxu0 0
  %1092 = vmatpush1.bf16.xpose.msra.mxu0 0
  %1093 = vmatprep.subr.bf16.mxu0 0
  %1094 = vmatpush1.bf16.xpose.msra.mxu0 0
  %1095 = vmatprep.subr.bf16.mxu0 0
  %1096 = vmatpush1.bf16.xpose.msra.mxu0 0
  %1097 = vmatprep.subr.bf16.mxu0 0
  %1098 = vmatpush1.bf16.xpose.msra.mxu0 0
  %1099 = vmatprep.subr.bf16.mxu0 0
  %1100 = vmatpush1.bf16.xpose.msra.mxu0 0
  %1101 = vmatprep.subr.bf16.mxu0 0
  %1102 = vmatpush1.bf16.xpose.msra.mxu0 0
  %1103 = vmatprep.subr.bf16.mxu0 0
  %1104 = vmatpush1.bf16.xpose.msra.mxu0 0
  %1105 = vmatprep.subr.bf16.mxu0 0
  %1106 = vmatpush1.bf16.xpose.msra.mxu0 0
  %1107 = vmatprep.subr.bf16.mxu0 0
  %1108 = vmatpush1.bf16.xpose.msra.mxu0 0
  %1109 = vmatprep.subr.bf16.mxu0 0
  %1110 = vmatpush1.bf16.xpose.msra.mxu0 0
  %1111 = vmatprep.subr.bf16.mxu0 0
  %1112 = vmatpush1.bf16.xpose.msra.mxu0 0
  %1113 = vmatprep.subr.bf16.mxu0 0
  %1114 = vmatpush1.bf16.xpose.msra.mxu0 0
  %1115 = vmatprep.mubr.bf16.mxu0 0
  %1116 = vmatmul.mubr.bf16.gmra.mrb[0].mxu0 %v1078
  %v1117 = vpop.f32.mrb[0].mxu0
  %v1118 = vadd.f32 0.0, %v1117
  %v1119 = vpop.f32.mrb[0].mxu0
  %v1120 = vpop.f32.mrb[0].mxu0
  %v1121 = vadd.f32 0.0, %v1120
  %v1122 = vpop.f32.mrb[0].mxu0
  %1123 = vdwg.mxu0
  %1125 = vrot.lane.b32.xlu0 %v650, 96
  %v1126 = vpop.permute.xlu0 %1125
  %v1128 = vsel %vm676, %v650, 0
  %v1131 = vsel %vm676, %v1126, 0
  %1133 = vmatprep.subr.bf16.mxu0 0
  %1134 = vmatpush1.bf16.xpose.msra.mxu0 %v1131
  %1135 = vmatprep.subr.bf16.mxu0 0
  %1136 = vmatpush1.bf16.xpose.msra.mxu0 0
  %1137 = vmatprep.subr.bf16.mxu0 0
  %1138 = vmatpush1.bf16.xpose.msra.mxu0 0
  %1139 = vmatprep.subr.bf16.mxu0 0
  %1140 = vmatpush1.bf16.xpose.msra.mxu0 0
  %1141 = vmatprep.subr.bf16.mxu0 0
  %1142 = vmatpush1.bf16.xpose.msra.mxu0 0
  %1143 = vmatprep.subr.bf16.mxu0 0
  %1144 = vmatpush1.bf16.xpose.msra.mxu0 0
  %1145 = vmatprep.subr.bf16.mxu0 0
  %1146 = vmatpush1.bf16.xpose.msra.mxu0 0
  %1147 = vmatprep.subr.bf16.mxu0 0
  %1148 = vmatpush1.bf16.xpose.msra.mxu0 0
  %1149 = vmatprep.subr.bf16.mxu0 0
  %1150 = vmatpush1.bf16.xpose.msra.mxu0 0
  %1151 = vmatprep.subr.bf16.mxu0 0
  %1152 = vmatpush1.bf16.xpose.msra.mxu0 0
  %1153 = vmatprep.subr.bf16.mxu0 0
  %1154 = vmatpush1.bf16.xpose.msra.mxu0 0
  %1155 = vmatprep.subr.bf16.mxu0 0
  %1156 = vmatpush1.bf16.xpose.msra.mxu0 0
  %1157 = vmatprep.subr.bf16.mxu0 0
  %1158 = vmatpush1.bf16.xpose.msra.mxu0 0
  %1159 = vmatprep.subr.bf16.mxu0 0
  %1160 = vmatpush1.bf16.xpose.msra.mxu0 0
  %1161 = vmatprep.subr.bf16.mxu0 0
  %1162 = vmatpush1.bf16.xpose.msra.mxu0 0
  %1163 = vmatprep.subr.bf16.mxu0 0
  %1164 = vmatpush1.bf16.xpose.msra.mxu0 0
  %1165 = vmatprep.mubr.bf16.mxu0 0
  %1166 = vmatmul.mubr.bf16.gmra.mrb[0].mxu0 %v1128
  %v1167 = vpop.f32.mrb[0].mxu0
  %v1168 = vadd.f32 0.0, %v1167
  %v1169 = vpop.f32.mrb[0].mxu0
  %v1170 = vpop.f32.mrb[0].mxu0
  %v1171 = vadd.f32 0.0, %v1170
  %v1172 = vpop.f32.mrb[0].mxu0
  %1173 = vdwg.mxu0
  %1175 = vrot.lane.b32.xlu0 %v651, 96
  %v1176 = vpop.permute.xlu0 %1175
  %v1178 = vsel %vm676, %v651, 0
  %v1181 = vsel %vm676, %v1176, 0
  %1183 = vmatprep.subr.bf16.mxu0 0
  %1184 = vmatpush1.bf16.xpose.msra.mxu0 %v1181
  %1185 = vmatprep.subr.bf16.mxu0 0
  %1186 = vmatpush1.bf16.xpose.msra.mxu0 0
  %1187 = vmatprep.subr.bf16.mxu0 0
  %1188 = vmatpush1.bf16.xpose.msra.mxu0 0
  %1189 = vmatprep.subr.bf16.mxu0 0
  %1190 = vmatpush1.bf16.xpose.msra.mxu0 0
  %1191 = vmatprep.subr.bf16.mxu0 0
  %1192 = vmatpush1.bf16.xpose.msra.mxu0 0
  %1193 = vmatprep.subr.bf16.mxu0 0
  %1194 = vmatpush1.bf16.xpose.msra.mxu0 0
  %1195 = vmatprep.subr.bf16.mxu0 0
  %1196 = vmatpush1.bf16.xpose.msra.mxu0 0
  %1197 = vmatprep.subr.bf16.mxu0 0
  %1198 = vmatpush1.bf16.xpose.msra.mxu0 0
  %1199 = vmatprep.subr.bf16.mxu0 0
  %1200 = vmatpush1.bf16.xpose.msra.mxu0 0
  %1201 = vmatprep.subr.bf16.mxu0 0
  %1202 = vmatpush1.bf16.xpose.msra.mxu0 0
  %1203 = vmatprep.subr.bf16.mxu0 0
  %1204 = vmatpush1.bf16.xpose.msra.mxu0 0
  %1205 = vmatprep.subr.bf16.mxu0 0
  %1206 = vmatpush1.bf16.xpose.msra.mxu0 0
  %1207 = vmatprep.subr.bf16.mxu0 0
  %1208 = vmatpush1.bf16.xpose.msra.mxu0 0
  %1209 = vmatprep.subr.bf16.mxu0 0
  %1210 = vmatpush1.bf16.xpose.msra.mxu0 0
  %1211 = vmatprep.subr.bf16.mxu0 0
  %1212 = vmatpush1.bf16.xpose.msra.mxu0 0
  %1213 = vmatprep.subr.bf16.mxu0 0
  %1214 = vmatpush1.bf16.xpose.msra.mxu0 0
  %1215 = vmatprep.mubr.bf16.mxu0 0
  %1216 = vmatmul.mubr.bf16.gmra.mrb[0].mxu0 %v1178
  %v1217 = vpop.f32.mrb[0].mxu0
  %v1218 = vadd.f32 0.0, %v1217
  %v1219 = vpop.f32.mrb[0].mxu0
  %v1220 = vpop.f32.mrb[0].mxu0
  %v1221 = vadd.f32 0.0, %v1220
  %v1222 = vpop.f32.mrb[0].mxu0
  %1223 = vdwg.mxu0
  %1225 = vrot.lane.b32.xlu0 %v652, 96
  %v1226 = vpop.permute.xlu0 %1225
  %v1228 = vsel %vm676, %v652, 0
  %v1231 = vsel %vm676, %v1226, 0
  %1233 = vmatprep.subr.bf16.mxu0 0
  %1234 = vmatpush1.bf16.xpose.msra.mxu0 %v1231
  %1235 = vmatprep.subr.bf16.mxu0 0
  %1236 = vmatpush1.bf16.xpose.msra.mxu0 0
  %1237 = vmatprep.subr.bf16.mxu0 0
  %1238 = vmatpush1.bf16.xpose.msra.mxu0 0
  %1239 = vmatprep.subr.bf16.mxu0 0
  %1240 = vmatpush1.bf16.xpose.msra.mxu0 0
  %1241 = vmatprep.subr.bf16.mxu0 0
  %1242 = vmatpush1.bf16.xpose.msra.mxu0 0
  %1243 = vmatprep.subr.bf16.mxu0 0
  %1244 = vmatpush1.bf16.xpose.msra.mxu0 0
  %1245 = vmatprep.subr.bf16.mxu0 0
  %1246 = vmatpush1.bf16.xpose.msra.mxu0 0
  %1247 = vmatprep.subr.bf16.mxu0 0
  %1248 = vmatpush1.bf16.xpose.msra.mxu0 0
  %1249 = vmatprep.subr.bf16.mxu0 0
  %1250 = vmatpush1.bf16.xpose.msra.mxu0 0
  %1251 = vmatprep.subr.bf16.mxu0 0
  %1252 = vmatpush1.bf16.xpose.msra.mxu0 0
  %1253 = vmatprep.subr.bf16.mxu0 0
  %1254 = vmatpush1.bf16.xpose.msra.mxu0 0
  %1255 = vmatprep.subr.bf16.mxu0 0
  %1256 = vmatpush1.bf16.xpose.msra.mxu0 0
  %1257 = vmatprep.subr.bf16.mxu0 0
  %1258 = vmatpush1.bf16.xpose.msra.mxu0 0
  %1259 = vmatprep.subr.bf16.mxu0 0
  %1260 = vmatpush1.bf16.xpose.msra.mxu0 0
  %1261 = vmatprep.subr.bf16.mxu0 0
  %1262 = vmatpush1.bf16.xpose.msra.mxu0 0
  %1263 = vmatprep.subr.bf16.mxu0 0
  %1264 = vmatpush1.bf16.xpose.msra.mxu0 0
  %1265 = vmatprep.mubr.bf16.mxu0 0
  %1266 = vmatmul.mubr.bf16.gmra.mrb[0].mxu0 %v1228
  %v1267 = vpop.f32.mrb[0].mxu0
  %v1268 = vadd.f32 0.0, %v1267
  %v1269 = vpop.f32.mrb[0].mxu0
  %v1270 = vpop.f32.mrb[0].mxu0
  %v1271 = vadd.f32 0.0, %v1270
  %v1272 = vpop.f32.mrb[0].mxu0
  %1273 = vdwg.mxu0
  %1275 = vrot.lane.b32.xlu0 %v653, 96
  %v1276 = vpop.permute.xlu0 %1275
  %v1278 = vsel %vm676, %v653, 0
  %v1281 = vsel %vm676, %v1276, 0
  %1283 = vmatprep.subr.bf16.mxu0 0
  %1284 = vmatpush1.bf16.xpose.msra.mxu0 %v1281
  %1285 = vmatprep.subr.bf16.mxu0 0
  %1286 = vmatpush1.bf16.xpose.msra.mxu0 0
  %1287 = vmatprep.subr.bf16.mxu0 0
  %1288 = vmatpush1.bf16.xpose.msra.mxu0 0
  %1289 = vmatprep.subr.bf16.mxu0 0
  %1290 = vmatpush1.bf16.xpose.msra.mxu0 0
  %1291 = vmatprep.subr.bf16.mxu0 0
  %1292 = vmatpush1.bf16.xpose.msra.mxu0 0
  %1293 = vmatprep.subr.bf16.mxu0 0
  %1294 = vmatpush1.bf16.xpose.msra.mxu0 0
  %1295 = vmatprep.subr.bf16.mxu0 0
  %1296 = vmatpush1.bf16.xpose.msra.mxu0 0
  %1297 = vmatprep.subr.bf16.mxu0 0
  %1298 = vmatpush1.bf16.xpose.msra.mxu0 0
  %1299 = vmatprep.subr.bf16.mxu0 0
  %1300 = vmatpush1.bf16.xpose.msra.mxu0 0
  %1301 = vmatprep.subr.bf16.mxu0 0
  %1302 = vmatpush1.bf16.xpose.msra.mxu0 0
  %1303 = vmatprep.subr.bf16.mxu0 0
  %1304 = vmatpush1.bf16.xpose.msra.mxu0 0
  %1305 = vmatprep.subr.bf16.mxu0 0
  %1306 = vmatpush1.bf16.xpose.msra.mxu0 0
  %1307 = vmatprep.subr.bf16.mxu0 0
  %1308 = vmatpush1.bf16.xpose.msra.mxu0 0
  %1309 = vmatprep.subr.bf16.mxu0 0
  %1310 = vmatpush1.bf16.xpose.msra.mxu0 0
  %1311 = vmatprep.subr.bf16.mxu0 0
  %1312 = vmatpush1.bf16.xpose.msra.mxu0 0
  %1313 = vmatprep.subr.bf16.mxu0 0
  %1314 = vmatpush1.bf16.xpose.msra.mxu0 0
  %1315 = vmatprep.mubr.bf16.mxu0 0
  %1316 = vmatmul.mubr.bf16.gmra.mrb[0].mxu0 %v1278
  %v1317 = vpop.f32.mrb[0].mxu0
  %v1318 = vadd.f32 0.0, %v1317
  %v1319 = vpop.f32.mrb[0].mxu0
  %v1320 = vpop.f32.mrb[0].mxu0
  %v1321 = vadd.f32 0.0, %v1320
  %v1322 = vpop.f32.mrb[0].mxu0
  %1323 = vdwg.mxu0
  %1325 = vrot.lane.b32.xlu0 %v654, 96
  %v1326 = vpop.permute.xlu0 %1325
  %v1328 = vsel %vm676, %v654, 0
  %v1331 = vsel %vm676, %v1326, 0
  %1333 = vmatprep.subr.bf16.mxu0 0
  %1334 = vmatpush1.bf16.xpose.msra.mxu0 %v1331
  %1335 = vmatprep.subr.bf16.mxu0 0
  %1336 = vmatpush1.bf16.xpose.msra.mxu0 0
  %1337 = vmatprep.subr.bf16.mxu0 0
  %1338 = vmatpush1.bf16.xpose.msra.mxu0 0
  %1339 = vmatprep.subr.bf16.mxu0 0
  %1340 = vmatpush1.bf16.xpose.msra.mxu0 0
  %1341 = vmatprep.subr.bf16.mxu0 0
  %1342 = vmatpush1.bf16.xpose.msra.mxu0 0
  %1343 = vmatprep.subr.bf16.mxu0 0
  %1344 = vmatpush1.bf16.xpose.msra.mxu0 0
  %1345 = vmatprep.subr.bf16.mxu0 0
  %1346 = vmatpush1.bf16.xpose.msra.mxu0 0
  %1347 = vmatprep.subr.bf16.mxu0 0
  %1348 = vmatpush1.bf16.xpose.msra.mxu0 0
  %1349 = vmatprep.subr.bf16.mxu0 0
  %1350 = vmatpush1.bf16.xpose.msra.mxu0 0
  %1351 = vmatprep.subr.bf16.mxu0 0
  %1352 = vmatpush1.bf16.xpose.msra.mxu0 0
  %1353 = vmatprep.subr.bf16.mxu0 0
  %1354 = vmatpush1.bf16.xpose.msra.mxu0 0
  %1355 = vmatprep.subr.bf16.mxu0 0
  %1356 = vmatpush1.bf16.xpose.msra.mxu0 0
  %1357 = vmatprep.subr.bf16.mxu0 0
  %1358 = vmatpush1.bf16.xpose.msra.mxu0 0
  %1359 = vmatprep.subr.bf16.mxu0 0
  %1360 = vmatpush1.bf16.xpose.msra.mxu0 0
  %1361 = vmatprep.subr.bf16.mxu0 0
  %1362 = vmatpush1.bf16.xpose.msra.mxu0 0
  %1363 = vmatprep.subr.bf16.mxu0 0
  %1364 = vmatpush1.bf16.xpose.msra.mxu0 0
  %1365 = vmatprep.mubr.bf16.mxu0 0
  %1366 = vmatmul.mubr.bf16.gmra.mrb[0].mxu0 %v1328
  %v1367 = vpop.f32.mrb[0].mxu0
  %v1368 = vadd.f32 0.0, %v1367
  %v1369 = vpop.f32.mrb[0].mxu0
  %v1370 = vpop.f32.mrb[0].mxu0
  %v1371 = vadd.f32 0.0, %v1370
  %v1372 = vpop.f32.mrb[0].mxu0
  %1373 = vdwg.mxu0
  %1375 = vrot.lane.b32.xlu0 %v655, 96
  %v1376 = vpop.permute.xlu0 %1375
  %v1378 = vsel %vm676, %v655, 0
  %v1381 = vsel %vm676, %v1376, 0
  %1383 = vmatprep.subr.bf16.mxu0 0
  %1384 = vmatpush1.bf16.xpose.msra.mxu0 %v1381
  %1385 = vmatprep.subr.bf16.mxu0 0
  %1386 = vmatpush1.bf16.xpose.msra.mxu0 0
  %1387 = vmatprep.subr.bf16.mxu0 0
  %1388 = vmatpush1.bf16.xpose.msra.mxu0 0
  %1389 = vmatprep.subr.bf16.mxu0 0
  %1390 = vmatpush1.bf16.xpose.msra.mxu0 0
  %1391 = vmatprep.subr.bf16.mxu0 0
  %1392 = vmatpush1.bf16.xpose.msra.mxu0 0
  %1393 = vmatprep.subr.bf16.mxu0 0
  %1394 = vmatpush1.bf16.xpose.msra.mxu0 0
  %1395 = vmatprep.subr.bf16.mxu0 0
  %1396 = vmatpush1.bf16.xpose.msra.mxu0 0
  %1397 = vmatprep.subr.bf16.mxu0 0
  %1398 = vmatpush1.bf16.xpose.msra.mxu0 0
  %1399 = vmatprep.subr.bf16.mxu0 0
  %1400 = vmatpush1.bf16.xpose.msra.mxu0 0
  %1401 = vmatprep.subr.bf16.mxu0 0
  %1402 = vmatpush1.bf16.xpose.msra.mxu0 0
  %1403 = vmatprep.subr.bf16.mxu0 0
  %1404 = vmatpush1.bf16.xpose.msra.mxu0 0
  %1405 = vmatprep.subr.bf16.mxu0 0
  %1406 = vmatpush1.bf16.xpose.msra.mxu0 0
  %1407 = vmatprep.subr.bf16.mxu0 0
  %1408 = vmatpush1.bf16.xpose.msra.mxu0 0
  %1409 = vmatprep.subr.bf16.mxu0 0
  %1410 = vmatpush1.bf16.xpose.msra.mxu0 0
  %1411 = vmatprep.subr.bf16.mxu0 0
  %1412 = vmatpush1.bf16.xpose.msra.mxu0 0
  %1413 = vmatprep.subr.bf16.mxu0 0
  %1414 = vmatpush1.bf16.xpose.msra.mxu0 0
  %1415 = vmatprep.mubr.bf16.mxu0 0
  %1416 = vmatmul.mubr.bf16.gmra.mrb[0].mxu0 %v1378
  %v1417 = vpop.f32.mrb[0].mxu0
  %v1418 = vadd.f32 0.0, %v1417
  %v1419 = vpop.f32.mrb[0].mxu0
  %v1420 = vpop.f32.mrb[0].mxu0
  %v1421 = vadd.f32 0.0, %v1420
  %v1422 = vpop.f32.mrb[0].mxu0
  %1423 = vdwg.mxu0
  %1425 = vrot.lane.b32.xlu0 %v656, 96
  %v1426 = vpop.permute.xlu0 %1425
  %v1428 = vsel %vm676, %v656, 0
  %v1431 = vsel %vm676, %v1426, 0
  %1433 = vmatprep.subr.bf16.mxu0 0
  %1434 = vmatpush1.bf16.xpose.msra.mxu0 %v1431
  %1435 = vmatprep.subr.bf16.mxu0 0
  %1436 = vmatpush1.bf16.xpose.msra.mxu0 0
  %1437 = vmatprep.subr.bf16.mxu0 0
  %1438 = vmatpush1.bf16.xpose.msra.mxu0 0
  %1439 = vmatprep.subr.bf16.mxu0 0
  %1440 = vmatpush1.bf16.xpose.msra.mxu0 0
  %1441 = vmatprep.subr.bf16.mxu0 0
  %1442 = vmatpush1.bf16.xpose.msra.mxu0 0
  %1443 = vmatprep.subr.bf16.mxu0 0
  %1444 = vmatpush1.bf16.xpose.msra.mxu0 0
  %1445 = vmatprep.subr.bf16.mxu0 0
  %1446 = vmatpush1.bf16.xpose.msra.mxu0 0
  %1447 = vmatprep.subr.bf16.mxu0 0
  %1448 = vmatpush1.bf16.xpose.msra.mxu0 0
  %1449 = vmatprep.subr.bf16.mxu0 0
  %1450 = vmatpush1.bf16.xpose.msra.mxu0 0
  %1451 = vmatprep.subr.bf16.mxu0 0
  %1452 = vmatpush1.bf16.xpose.msra.mxu0 0
  %1453 = vmatprep.subr.bf16.mxu0 0
  %1454 = vmatpush1.bf16.xpose.msra.mxu0 0
  %1455 = vmatprep.subr.bf16.mxu0 0
  %1456 = vmatpush1.bf16.xpose.msra.mxu0 0
  %1457 = vmatprep.subr.bf16.mxu0 0
  %1458 = vmatpush1.bf16.xpose.msra.mxu0 0
  %1459 = vmatprep.subr.bf16.mxu0 0
  %1460 = vmatpush1.bf16.xpose.msra.mxu0 0
  %1461 = vmatprep.subr.bf16.mxu0 0
  %1462 = vmatpush1.bf16.xpose.msra.mxu0 0
  %1463 = vmatprep.subr.bf16.mxu0 0
  %1464 = vmatpush1.bf16.xpose.msra.mxu0 0
  %1465 = vmatprep.mubr.bf16.mxu0 0
  %1466 = vmatmul.mubr.bf16.gmra.mrb[0].mxu0 %v1428
  %v1467 = vpop.f32.mrb[0].mxu0
  %v1468 = vadd.f32 0.0, %v1467
  %v1469 = vpop.f32.mrb[0].mxu0
  %v1470 = vpop.f32.mrb[0].mxu0
  %v1471 = vadd.f32 0.0, %v1470
  %v1472 = vpop.f32.mrb[0].mxu0
  %1473 = vdwg.mxu0
  %1475 = vrot.lane.b32.xlu0 %v657, 96
  %v1476 = vpop.permute.xlu0 %1475
  %v1478 = vsel %vm676, %v657, 0
  %v1481 = vsel %vm676, %v1476, 0
  %1483 = vmatprep.subr.bf16.mxu0 0
  %1484 = vmatpush1.bf16.xpose.msra.mxu0 %v1481
  %1485 = vmatprep.subr.bf16.mxu0 0
  %1486 = vmatpush1.bf16.xpose.msra.mxu0 0
  %1487 = vmatprep.subr.bf16.mxu0 0
  %1488 = vmatpush1.bf16.xpose.msra.mxu0 0
  %1489 = vmatprep.subr.bf16.mxu0 0
  %1490 = vmatpush1.bf16.xpose.msra.mxu0 0
  %1491 = vmatprep.subr.bf16.mxu0 0
  %1492 = vmatpush1.bf16.xpose.msra.mxu0 0
  %1493 = vmatprep.subr.bf16.mxu0 0
  %1494 = vmatpush1.bf16.xpose.msra.mxu0 0
  %1495 = vmatprep.subr.bf16.mxu0 0
  %1496 = vmatpush1.bf16.xpose.msra.mxu0 0
  %1497 = vmatprep.subr.bf16.mxu0 0
  %1498 = vmatpush1.bf16.xpose.msra.mxu0 0
  %1499 = vmatprep.subr.bf16.mxu0 0
  %1500 = vmatpush1.bf16.xpose.msra.mxu0 0
  %1501 = vmatprep.subr.bf16.mxu0 0
  %1502 = vmatpush1.bf16.xpose.msra.mxu0 0
  %1503 = vmatprep.subr.bf16.mxu0 0
  %1504 = vmatpush1.bf16.xpose.msra.mxu0 0
  %1505 = vmatprep.subr.bf16.mxu0 0
  %1506 = vmatpush1.bf16.xpose.msra.mxu0 0
  %1507 = vmatprep.subr.bf16.mxu0 0
  %1508 = vmatpush1.bf16.xpose.msra.mxu0 0
  %1509 = vmatprep.subr.bf16.mxu0 0
  %1510 = vmatpush1.bf16.xpose.msra.mxu0 0
  %1511 = vmatprep.subr.bf16.mxu0 0
  %1512 = vmatpush1.bf16.xpose.msra.mxu0 0
  %1513 = vmatprep.subr.bf16.mxu0 0
  %1514 = vmatpush1.bf16.xpose.msra.mxu0 0
  %1515 = vmatprep.mubr.bf16.mxu0 0
  %1516 = vmatmul.mubr.bf16.gmra.mrb[0].mxu0 %v1478
  %v1517 = vpop.f32.mrb[0].mxu0
  %v1518 = vadd.f32 0.0, %v1517
  %v1519 = vpop.f32.mrb[0].mxu0
  %v1520 = vpop.f32.mrb[0].mxu0
  %v1521 = vadd.f32 0.0, %v1520
  %v1522 = vpop.f32.mrb[0].mxu0
  %1523 = vdwg.mxu0
  %1525 = vrot.lane.b32.xlu0 %v658, 96
  %v1526 = vpop.permute.xlu0 %1525
  %v1528 = vsel %vm676, %v658, 0
  %v1531 = vsel %vm676, %v1526, 0
  %1533 = vmatprep.subr.bf16.mxu0 0
  %1534 = vmatpush1.bf16.xpose.msra.mxu0 %v1531
  %1535 = vmatprep.subr.bf16.mxu0 0
  %1536 = vmatpush1.bf16.xpose.msra.mxu0 0
  %1537 = vmatprep.subr.bf16.mxu0 0
  %1538 = vmatpush1.bf16.xpose.msra.mxu0 0
  %1539 = vmatprep.subr.bf16.mxu0 0
  %1540 = vmatpush1.bf16.xpose.msra.mxu0 0
  %1541 = vmatprep.subr.bf16.mxu0 0
  %1542 = vmatpush1.bf16.xpose.msra.mxu0 0
  %1543 = vmatprep.subr.bf16.mxu0 0
  %1544 = vmatpush1.bf16.xpose.msra.mxu0 0
  %1545 = vmatprep.subr.bf16.mxu0 0
  %1546 = vmatpush1.bf16.xpose.msra.mxu0 0
  %1547 = vmatprep.subr.bf16.mxu0 0
  %1548 = vmatpush1.bf16.xpose.msra.mxu0 0
  %1549 = vmatprep.subr.bf16.mxu0 0
  %1550 = vmatpush1.bf16.xpose.msra.mxu0 0
  %1551 = vmatprep.subr.bf16.mxu0 0
  %1552 = vmatpush1.bf16.xpose.msra.mxu0 0
  %1553 = vmatprep.subr.bf16.mxu0 0
  %1554 = vmatpush1.bf16.xpose.msra.mxu0 0
  %1555 = vmatprep.subr.bf16.mxu0 0
  %1556 = vmatpush1.bf16.xpose.msra.mxu0 0
  %1557 = vmatprep.subr.bf16.mxu0 0
  %1558 = vmatpush1.bf16.xpose.msra.mxu0 0
  %1559 = vmatprep.subr.bf16.mxu0 0
  %1560 = vmatpush1.bf16.xpose.msra.mxu0 0
  %1561 = vmatprep.subr.bf16.mxu0 0
  %1562 = vmatpush1.bf16.xpose.msra.mxu0 0
  %1563 = vmatprep.subr.bf16.mxu0 0
  %1564 = vmatpush1.bf16.xpose.msra.mxu0 0
  %1565 = vmatprep.mubr.bf16.mxu0 0
  %1566 = vmatmul.mubr.bf16.gmra.mrb[0].mxu0 %v1528
  %v1567 = vpop.f32.mrb[0].mxu0
  %v1568 = vadd.f32 0.0, %v1567
  %v1569 = vpop.f32.mrb[0].mxu0
  %v1570 = vpop.f32.mrb[0].mxu0
  %v1571 = vadd.f32 0.0, %v1570
  %v1572 = vpop.f32.mrb[0].mxu0
  %1573 = vdwg.mxu0
  %1575 = vrot.lane.b32.xlu0 %v659, 96
  %v1576 = vpop.permute.xlu0 %1575
  %v1578 = vsel %vm676, %v659, 0
  %v1581 = vsel %vm676, %v1576, 0
  %1583 = vmatprep.subr.bf16.mxu0 0
  %1584 = vmatpush1.bf16.xpose.msra.mxu0 %v1581
  %1585 = vmatprep.subr.bf16.mxu0 0
  %1586 = vmatpush1.bf16.xpose.msra.mxu0 0
  %1587 = vmatprep.subr.bf16.mxu0 0
  %1588 = vmatpush1.bf16.xpose.msra.mxu0 0
  %1589 = vmatprep.subr.bf16.mxu0 0
  %1590 = vmatpush1.bf16.xpose.msra.mxu0 0
  %1591 = vmatprep.subr.bf16.mxu0 0
  %1592 = vmatpush1.bf16.xpose.msra.mxu0 0
  %1593 = vmatprep.subr.bf16.mxu0 0
  %1594 = vmatpush1.bf16.xpose.msra.mxu0 0
  %1595 = vmatprep.subr.bf16.mxu0 0
  %1596 = vmatpush1.bf16.xpose.msra.mxu0 0
  %1597 = vmatprep.subr.bf16.mxu0 0
  %1598 = vmatpush1.bf16.xpose.msra.mxu0 0
  %1599 = vmatprep.subr.bf16.mxu0 0
  %1600 = vmatpush1.bf16.xpose.msra.mxu0 0
  %1601 = vmatprep.subr.bf16.mxu0 0
  %1602 = vmatpush1.bf16.xpose.msra.mxu0 0
  %1603 = vmatprep.subr.bf16.mxu0 0
  %1604 = vmatpush1.bf16.xpose.msra.mxu0 0
  %1605 = vmatprep.subr.bf16.mxu0 0
  %1606 = vmatpush1.bf16.xpose.msra.mxu0 0
  %1607 = vmatprep.subr.bf16.mxu0 0
  %1608 = vmatpush1.bf16.xpose.msra.mxu0 0
  %1609 = vmatprep.subr.bf16.mxu0 0
  %1610 = vmatpush1.bf16.xpose.msra.mxu0 0
  %1611 = vmatprep.subr.bf16.mxu0 0
  %1612 = vmatpush1.bf16.xpose.msra.mxu0 0
  %1613 = vmatprep.subr.bf16.mxu0 0
  %1614 = vmatpush1.bf16.xpose.msra.mxu0 0
  %1615 = vmatprep.mubr.bf16.mxu0 0
  %1616 = vmatmul.mubr.bf16.gmra.mrb[0].mxu0 %v1578
  %v1617 = vpop.f32.mrb[0].mxu0
  %v1618 = vadd.f32 0.0, %v1617
  %v1619 = vpop.f32.mrb[0].mxu0
  %v1620 = vpop.f32.mrb[0].mxu0
  %v1621 = vadd.f32 0.0, %v1620
  %v1622 = vpop.f32.mrb[0].mxu0
  %1623 = vdwg.mxu0
  %1625 = vrot.lane.b32.xlu0 %v660, 96
  %v1626 = vpop.permute.xlu0 %1625
  %v1628 = vsel %vm676, %v660, 0
  %v1631 = vsel %vm676, %v1626, 0
  %1633 = vmatprep.subr.bf16.mxu0 0
  %1634 = vmatpush1.bf16.xpose.msra.mxu0 %v1631
  %1635 = vmatprep.subr.bf16.mxu0 0
  %1636 = vmatpush1.bf16.xpose.msra.mxu0 0
  %1637 = vmatprep.subr.bf16.mxu0 0
  %1638 = vmatpush1.bf16.xpose.msra.mxu0 0
  %1639 = vmatprep.subr.bf16.mxu0 0
  %1640 = vmatpush1.bf16.xpose.msra.mxu0 0
  %1641 = vmatprep.subr.bf16.mxu0 0
  %1642 = vmatpush1.bf16.xpose.msra.mxu0 0
  %1643 = vmatprep.subr.bf16.mxu0 0
  %1644 = vmatpush1.bf16.xpose.msra.mxu0 0
  %1645 = vmatprep.subr.bf16.mxu0 0
  %1646 = vmatpush1.bf16.xpose.msra.mxu0 0
  %1647 = vmatprep.subr.bf16.mxu0 0
  %1648 = vmatpush1.bf16.xpose.msra.mxu0 0
  %1649 = vmatprep.subr.bf16.mxu0 0
  %1650 = vmatpush1.bf16.xpose.msra.mxu0 0
  %1651 = vmatprep.subr.bf16.mxu0 0
  %1652 = vmatpush1.bf16.xpose.msra.mxu0 0
  %1653 = vmatprep.subr.bf16.mxu0 0
  %1654 = vmatpush1.bf16.xpose.msra.mxu0 0
  %1655 = vmatprep.subr.bf16.mxu0 0
  %1656 = vmatpush1.bf16.xpose.msra.mxu0 0
  %1657 = vmatprep.subr.bf16.mxu0 0
  %1658 = vmatpush1.bf16.xpose.msra.mxu0 0
  %1659 = vmatprep.subr.bf16.mxu0 0
  %1660 = vmatpush1.bf16.xpose.msra.mxu0 0
  %1661 = vmatprep.subr.bf16.mxu0 0
  %1662 = vmatpush1.bf16.xpose.msra.mxu0 0
  %1663 = vmatprep.subr.bf16.mxu0 0
  %1664 = vmatpush1.bf16.xpose.msra.mxu0 0
  %1665 = vmatprep.mubr.bf16.mxu0 0
  %1666 = vmatmul.mubr.bf16.gmra.mrb[0].mxu0 %v1628
  %v1667 = vpop.f32.mrb[0].mxu0
  %v1668 = vadd.f32 0.0, %v1667
  %v1669 = vpop.f32.mrb[0].mxu0
  %v1670 = vpop.f32.mrb[0].mxu0
  %v1671 = vadd.f32 0.0, %v1670
  %v1672 = vpop.f32.mrb[0].mxu0
  %1673 = vdwg.mxu0
  %1675 = vrot.lane.b32.xlu0 %v661, 96
  %v1676 = vpop.permute.xlu0 %1675
  %v1678 = vsel %vm676, %v661, 0
  %v1681 = vsel %vm676, %v1676, 0
  %1683 = vmatprep.subr.bf16.mxu0 0
  %1684 = vmatpush1.bf16.xpose.msra.mxu0 %v1681
  %1685 = vmatprep.subr.bf16.mxu0 0
  %1686 = vmatpush1.bf16.xpose.msra.mxu0 0
  %1687 = vmatprep.subr.bf16.mxu0 0
  %1688 = vmatpush1.bf16.xpose.msra.mxu0 0
  %1689 = vmatprep.subr.bf16.mxu0 0
  %1690 = vmatpush1.bf16.xpose.msra.mxu0 0
  %1691 = vmatprep.subr.bf16.mxu0 0
  %1692 = vmatpush1.bf16.xpose.msra.mxu0 0
  %1693 = vmatprep.subr.bf16.mxu0 0
  %1694 = vmatpush1.bf16.xpose.msra.mxu0 0
  %1695 = vmatprep.subr.bf16.mxu0 0
  %1696 = vmatpush1.bf16.xpose.msra.mxu0 0
  %1697 = vmatprep.subr.bf16.mxu0 0
  %1698 = vmatpush1.bf16.xpose.msra.mxu0 0
  %1699 = vmatprep.subr.bf16.mxu0 0
  %1700 = vmatpush1.bf16.xpose.msra.mxu0 0
  %1701 = vmatprep.subr.bf16.mxu0 0
  %1702 = vmatpush1.bf16.xpose.msra.mxu0 0
  %1703 = vmatprep.subr.bf16.mxu0 0
  %1704 = vmatpush1.bf16.xpose.msra.mxu0 0
  %1705 = vmatprep.subr.bf16.mxu0 0
  %1706 = vmatpush1.bf16.xpose.msra.mxu0 0
  %1707 = vmatprep.subr.bf16.mxu0 0
  %1708 = vmatpush1.bf16.xpose.msra.mxu0 0
  %1709 = vmatprep.subr.bf16.mxu0 0
  %1710 = vmatpush1.bf16.xpose.msra.mxu0 0
  %1711 = vmatprep.subr.bf16.mxu0 0
  %1712 = vmatpush1.bf16.xpose.msra.mxu0 0
  %1713 = vmatprep.subr.bf16.mxu0 0
  %1714 = vmatpush1.bf16.xpose.msra.mxu0 0
  %1715 = vmatprep.mubr.bf16.mxu0 0
  %1716 = vmatmul.mubr.bf16.gmra.mrb[0].mxu0 %v1678
  %v1717 = vpop.f32.mrb[0].mxu0
  %v1718 = vadd.f32 0.0, %v1717
  %v1719 = vpop.f32.mrb[0].mxu0
  %v1720 = vpop.f32.mrb[0].mxu0
  %v1721 = vadd.f32 0.0, %v1720
  %v1722 = vpop.f32.mrb[0].mxu0
  %1723 = vdwg.mxu0
  %1725 = vrot.lane.b32.xlu0 %v662, 96
  %v1726 = vpop.permute.xlu0 %1725
  %v1728 = vsel %vm676, %v662, 0
  %v1731 = vsel %vm676, %v1726, 0
  %1733 = vmatprep.subr.bf16.mxu0 0
  %1734 = vmatpush1.bf16.xpose.msra.mxu0 %v1731
  %1735 = vmatprep.subr.bf16.mxu0 0
  %1736 = vmatpush1.bf16.xpose.msra.mxu0 0
  %1737 = vmatprep.subr.bf16.mxu0 0
  %1738 = vmatpush1.bf16.xpose.msra.mxu0 0
  %1739 = vmatprep.subr.bf16.mxu0 0
  %1740 = vmatpush1.bf16.xpose.msra.mxu0 0
  %1741 = vmatprep.subr.bf16.mxu0 0
  %1742 = vmatpush1.bf16.xpose.msra.mxu0 0
  %1743 = vmatprep.subr.bf16.mxu0 0
  %1744 = vmatpush1.bf16.xpose.msra.mxu0 0
  %1745 = vmatprep.subr.bf16.mxu0 0
  %1746 = vmatpush1.bf16.xpose.msra.mxu0 0
  %1747 = vmatprep.subr.bf16.mxu0 0
  %1748 = vmatpush1.bf16.xpose.msra.mxu0 0
  %1749 = vmatprep.subr.bf16.mxu0 0
  %1750 = vmatpush1.bf16.xpose.msra.mxu0 0
  %1751 = vmatprep.subr.bf16.mxu0 0
  %1752 = vmatpush1.bf16.xpose.msra.mxu0 0
  %1753 = vmatprep.subr.bf16.mxu0 0
  %1754 = vmatpush1.bf16.xpose.msra.mxu0 0
  %1755 = vmatprep.subr.bf16.mxu0 0
  %1756 = vmatpush1.bf16.xpose.msra.mxu0 0
  %1757 = vmatprep.subr.bf16.mxu0 0
  %1758 = vmatpush1.bf16.xpose.msra.mxu0 0
  %1759 = vmatprep.subr.bf16.mxu0 0
  %1760 = vmatpush1.bf16.xpose.msra.mxu0 0
  %1761 = vmatprep.subr.bf16.mxu0 0
  %1762 = vmatpush1.bf16.xpose.msra.mxu0 0
  %1763 = vmatprep.subr.bf16.mxu0 0
  %1764 = vmatpush1.bf16.xpose.msra.mxu0 0
  %1765 = vmatprep.mubr.bf16.mxu0 0
  %1766 = vmatmul.mubr.bf16.gmra.mrb[0].mxu0 %v1728
  %v1767 = vpop.f32.mrb[0].mxu0
  %v1768 = vadd.f32 0.0, %v1767
  %v1769 = vpop.f32.mrb[0].mxu0
  %v1770 = vpop.f32.mrb[0].mxu0
  %v1771 = vadd.f32 0.0, %v1770
  %v1772 = vpop.f32.mrb[0].mxu0
  %1773 = vdwg.mxu0
  %1775 = vrot.lane.b32.xlu0 %v663, 96
  %v1776 = vpop.permute.xlu0 %1775
  %v1778 = vsel %vm676, %v663, 0
  %v1781 = vsel %vm676, %v1776, 0
  %1783 = vmatprep.subr.bf16.mxu0 0
  %1784 = vmatpush1.bf16.xpose.msra.mxu0 %v1781
  %1785 = vmatprep.subr.bf16.mxu0 0
  %1786 = vmatpush1.bf16.xpose.msra.mxu0 0
  %1787 = vmatprep.subr.bf16.mxu0 0
  %1788 = vmatpush1.bf16.xpose.msra.mxu0 0
  %1789 = vmatprep.subr.bf16.mxu0 0
  %1790 = vmatpush1.bf16.xpose.msra.mxu0 0
  %1791 = vmatprep.subr.bf16.mxu0 0
  %1792 = vmatpush1.bf16.xpose.msra.mxu0 0
  %1793 = vmatprep.subr.bf16.mxu0 0
  %1794 = vmatpush1.bf16.xpose.msra.mxu0 0
  %1795 = vmatprep.subr.bf16.mxu0 0
  %1796 = vmatpush1.bf16.xpose.msra.mxu0 0
  %1797 = vmatprep.subr.bf16.mxu0 0
  %1798 = vmatpush1.bf16.xpose.msra.mxu0 0
  %1799 = vmatprep.subr.bf16.mxu0 0
  %1800 = vmatpush1.bf16.xpose.msra.mxu0 0
  %1801 = vmatprep.subr.bf16.mxu0 0
  %1802 = vmatpush1.bf16.xpose.msra.mxu0 0
  %1803 = vmatprep.subr.bf16.mxu0 0
  %1804 = vmatpush1.bf16.xpose.msra.mxu0 0
  %1805 = vmatprep.subr.bf16.mxu0 0
  %1806 = vmatpush1.bf16.xpose.msra.mxu0 0
  %1807 = vmatprep.subr.bf16.mxu0 0
  %1808 = vmatpush1.bf16.xpose.msra.mxu0 0
  %1809 = vmatprep.subr.bf16.mxu0 0
  %1810 = vmatpush1.bf16.xpose.msra.mxu0 0
  %1811 = vmatprep.subr.bf16.mxu0 0
  %1812 = vmatpush1.bf16.xpose.msra.mxu0 0
  %1813 = vmatprep.subr.bf16.mxu0 0
  %1814 = vmatpush1.bf16.xpose.msra.mxu0 0
  %1815 = vmatprep.mubr.bf16.mxu0 0
  %1816 = vmatmul.mubr.bf16.gmra.mrb[0].mxu0 %v1778
  %v1817 = vpop.f32.mrb[0].mxu0
  %v1818 = vadd.f32 0.0, %v1817
  %v1819 = vpop.f32.mrb[0].mxu0
  %v1820 = vpop.f32.mrb[0].mxu0
  %v1821 = vadd.f32 0.0, %v1820
  %v1822 = vpop.f32.mrb[0].mxu0
  %1823 = vdwg.mxu0
  %1825 = vrot.lane.b32.xlu0 %v664, 96
  %v1826 = vpop.permute.xlu0 %1825
  %v1828 = vsel %vm676, %v664, 0
  %v1831 = vsel %vm676, %v1826, 0
  %1833 = vmatprep.subr.bf16.mxu0 0
  %1834 = vmatpush1.bf16.xpose.msra.mxu0 %v1831
  %1835 = vmatprep.subr.bf16.mxu0 0
  %1836 = vmatpush1.bf16.xpose.msra.mxu0 0
  %1837 = vmatprep.subr.bf16.mxu0 0
  %1838 = vmatpush1.bf16.xpose.msra.mxu0 0
  %1839 = vmatprep.subr.bf16.mxu0 0
  %1840 = vmatpush1.bf16.xpose.msra.mxu0 0
  %1841 = vmatprep.subr.bf16.mxu0 0
  %1842 = vmatpush1.bf16.xpose.msra.mxu0 0
  %1843 = vmatprep.subr.bf16.mxu0 0
  %1844 = vmatpush1.bf16.xpose.msra.mxu0 0
  %1845 = vmatprep.subr.bf16.mxu0 0
  %1846 = vmatpush1.bf16.xpose.msra.mxu0 0
  %1847 = vmatprep.subr.bf16.mxu0 0
  %1848 = vmatpush1.bf16.xpose.msra.mxu0 0
  %1849 = vmatprep.subr.bf16.mxu0 0
  %1850 = vmatpush1.bf16.xpose.msra.mxu0 0
  %1851 = vmatprep.subr.bf16.mxu0 0
  %1852 = vmatpush1.bf16.xpose.msra.mxu0 0
  %1853 = vmatprep.subr.bf16.mxu0 0
  %1854 = vmatpush1.bf16.xpose.msra.mxu0 0
  %1855 = vmatprep.subr.bf16.mxu0 0
  %1856 = vmatpush1.bf16.xpose.msra.mxu0 0
  %1857 = vmatprep.subr.bf16.mxu0 0
  %1858 = vmatpush1.bf16.xpose.msra.mxu0 0
  %1859 = vmatprep.subr.bf16.mxu0 0
  %1860 = vmatpush1.bf16.xpose.msra.mxu0 0
  %1861 = vmatprep.subr.bf16.mxu0 0
  %1862 = vmatpush1.bf16.xpose.msra.mxu0 0
  %1863 = vmatprep.subr.bf16.mxu0 0
  %1864 = vmatpush1.bf16.xpose.msra.mxu0 0
  %1865 = vmatprep.mubr.bf16.mxu0 0
  %1866 = vmatmul.mubr.bf16.gmra.mrb[0].mxu0 %v1828
  %v1867 = vpop.f32.mrb[0].mxu0
  %v1868 = vadd.f32 0.0, %v1867
  %v1869 = vpop.f32.mrb[0].mxu0
  %v1870 = vpop.f32.mrb[0].mxu0
  %v1871 = vadd.f32 0.0, %v1870
  %v1872 = vpop.f32.mrb[0].mxu0
  %1873 = vdwg.mxu0
  %1875 = vrot.lane.b32.xlu0 %v665, 96
  %v1876 = vpop.permute.xlu0 %1875
  %v1878 = vsel %vm676, %v665, 0
  %v1881 = vsel %vm676, %v1876, 0
  %1883 = vmatprep.subr.bf16.mxu0 0
  %1884 = vmatpush1.bf16.xpose.msra.mxu0 %v1881
  %1885 = vmatprep.subr.bf16.mxu0 0
  %1886 = vmatpush1.bf16.xpose.msra.mxu0 0
  %1887 = vmatprep.subr.bf16.mxu0 0
  %1888 = vmatpush1.bf16.xpose.msra.mxu0 0
  %1889 = vmatprep.subr.bf16.mxu0 0
  %1890 = vmatpush1.bf16.xpose.msra.mxu0 0
  %1891 = vmatprep.subr.bf16.mxu0 0
  %1892 = vmatpush1.bf16.xpose.msra.mxu0 0
  %1893 = vmatprep.subr.bf16.mxu0 0
  %1894 = vmatpush1.bf16.xpose.msra.mxu0 0
  %1895 = vmatprep.subr.bf16.mxu0 0
  %1896 = vmatpush1.bf16.xpose.msra.mxu0 0
  %1897 = vmatprep.subr.bf16.mxu0 0
  %1898 = vmatpush1.bf16.xpose.msra.mxu0 0
  %1899 = vmatprep.subr.bf16.mxu0 0
  %1900 = vmatpush1.bf16.xpose.msra.mxu0 0
  %1901 = vmatprep.subr.bf16.mxu0 0
  %1902 = vmatpush1.bf16.xpose.msra.mxu0 0
  %1903 = vmatprep.subr.bf16.mxu0 0
  %1904 = vmatpush1.bf16.xpose.msra.mxu0 0
  %1905 = vmatprep.subr.bf16.mxu0 0
  %1906 = vmatpush1.bf16.xpose.msra.mxu0 0
  %1907 = vmatprep.subr.bf16.mxu0 0
  %1908 = vmatpush1.bf16.xpose.msra.mxu0 0
  %1909 = vmatprep.subr.bf16.mxu0 0
  %1910 = vmatpush1.bf16.xpose.msra.mxu0 0
  %1911 = vmatprep.subr.bf16.mxu0 0
  %1912 = vmatpush1.bf16.xpose.msra.mxu0 0
  %1913 = vmatprep.subr.bf16.mxu0 0
  %1914 = vmatpush1.bf16.xpose.msra.mxu0 0
  %1915 = vmatprep.mubr.bf16.mxu0 0
  %1916 = vmatmul.mubr.bf16.gmra.mrb[0].mxu0 %v1878
  %v1917 = vpop.f32.mrb[0].mxu0
  %v1918 = vadd.f32 0.0, %v1917
  %v1919 = vpop.f32.mrb[0].mxu0
  %v1920 = vpop.f32.mrb[0].mxu0
  %v1921 = vadd.f32 0.0, %v1920
  %v1922 = vpop.f32.mrb[0].mxu0
  %1923 = vdwg.mxu0
  %1925 = vrot.lane.b32.xlu0 %v666, 96
  %v1926 = vpop.permute.xlu0 %1925
  %v1928 = vsel %vm676, %v666, 0
  %v1931 = vsel %vm676, %v1926, 0
  %1933 = vmatprep.subr.bf16.mxu0 0
  %1934 = vmatpush1.bf16.xpose.msra.mxu0 %v1931
  %1935 = vmatprep.subr.bf16.mxu0 0
  %1936 = vmatpush1.bf16.xpose.msra.mxu0 0
  %1937 = vmatprep.subr.bf16.mxu0 0
  %1938 = vmatpush1.bf16.xpose.msra.mxu0 0
  %1939 = vmatprep.subr.bf16.mxu0 0
  %1940 = vmatpush1.bf16.xpose.msra.mxu0 0
  %1941 = vmatprep.subr.bf16.mxu0 0
  %1942 = vmatpush1.bf16.xpose.msra.mxu0 0
  %1943 = vmatprep.subr.bf16.mxu0 0
  %1944 = vmatpush1.bf16.xpose.msra.mxu0 0
  %1945 = vmatprep.subr.bf16.mxu0 0
  %1946 = vmatpush1.bf16.xpose.msra.mxu0 0
  %1947 = vmatprep.subr.bf16.mxu0 0
  %1948 = vmatpush1.bf16.xpose.msra.mxu0 0
  %1949 = vmatprep.subr.bf16.mxu0 0
  %1950 = vmatpush1.bf16.xpose.msra.mxu0 0
  %1951 = vmatprep.subr.bf16.mxu0 0
  %1952 = vmatpush1.bf16.xpose.msra.mxu0 0
  %1953 = vmatprep.subr.bf16.mxu0 0
  %1954 = vmatpush1.bf16.xpose.msra.mxu0 0
  %1955 = vmatprep.subr.bf16.mxu0 0
  %1956 = vmatpush1.bf16.xpose.msra.mxu0 0
  %1957 = vmatprep.subr.bf16.mxu0 0
  %1958 = vmatpush1.bf16.xpose.msra.mxu0 0
  %1959 = vmatprep.subr.bf16.mxu0 0
  %1960 = vmatpush1.bf16.xpose.msra.mxu0 0
  %1961 = vmatprep.subr.bf16.mxu0 0
  %1962 = vmatpush1.bf16.xpose.msra.mxu0 0
  %1963 = vmatprep.subr.bf16.mxu0 0
  %1964 = vmatpush1.bf16.xpose.msra.mxu0 0
  %1965 = vmatprep.mubr.bf16.mxu0 0
  %1966 = vmatmul.mubr.bf16.gmra.mrb[0].mxu0 %v1928
  %v1967 = vpop.f32.mrb[0].mxu0
  %v1968 = vadd.f32 0.0, %v1967
  %v1969 = vpop.f32.mrb[0].mxu0
  %v1970 = vpop.f32.mrb[0].mxu0
  %v1971 = vadd.f32 0.0, %v1970
  %v1972 = vpop.f32.mrb[0].mxu0
  %1973 = vdwg.mxu0
  %1975 = vrot.lane.b32.xlu0 %v667, 96
  %v1976 = vpop.permute.xlu0 %1975
  %v1978 = vsel %vm676, %v667, 0
  %v1981 = vsel %vm676, %v1976, 0
  %1983 = vmatprep.subr.bf16.mxu0 0
  %1984 = vmatpush1.bf16.xpose.msra.mxu0 %v1981
  %1985 = vmatprep.subr.bf16.mxu0 0
  %1986 = vmatpush1.bf16.xpose.msra.mxu0 0
  %1987 = vmatprep.subr.bf16.mxu0 0
  %1988 = vmatpush1.bf16.xpose.msra.mxu0 0
  %1989 = vmatprep.subr.bf16.mxu0 0
  %1990 = vmatpush1.bf16.xpose.msra.mxu0 0
  %1991 = vmatprep.subr.bf16.mxu0 0
  %1992 = vmatpush1.bf16.xpose.msra.mxu0 0
  %1993 = vmatprep.subr.bf16.mxu0 0
  %1994 = vmatpush1.bf16.xpose.msra.mxu0 0
  %1995 = vmatprep.subr.bf16.mxu0 0
  %1996 = vmatpush1.bf16.xpose.msra.mxu0 0
  %1997 = vmatprep.subr.bf16.mxu0 0
  %1998 = vmatpush1.bf16.xpose.msra.mxu0 0
  %1999 = vmatprep.subr.bf16.mxu0 0
  %2000 = vmatpush1.bf16.xpose.msra.mxu0 0
  %2001 = vmatprep.subr.bf16.mxu0 0
  %2002 = vmatpush1.bf16.xpose.msra.mxu0 0
  %2003 = vmatprep.subr.bf16.mxu0 0
  %2004 = vmatpush1.bf16.xpose.msra.mxu0 0
  %2005 = vmatprep.subr.bf16.mxu0 0
  %2006 = vmatpush1.bf16.xpose.msra.mxu0 0
  %2007 = vmatprep.subr.bf16.mxu0 0
  %2008 = vmatpush1.bf16.xpose.msra.mxu0 0
  %2009 = vmatprep.subr.bf16.mxu0 0
  %2010 = vmatpush1.bf16.xpose.msra.mxu0 0
  %2011 = vmatprep.subr.bf16.mxu0 0
  %2012 = vmatpush1.bf16.xpose.msra.mxu0 0
  %2013 = vmatprep.subr.bf16.mxu0 0
  %2014 = vmatpush1.bf16.xpose.msra.mxu0 0
  %2015 = vmatprep.mubr.bf16.mxu0 0
  %2016 = vmatmul.mubr.bf16.gmra.mrb[0].mxu0 %v1978
  %v2017 = vpop.f32.mrb[0].mxu0
  %v2018 = vadd.f32 0.0, %v2017
  %v2019 = vpop.f32.mrb[0].mxu0
  %v2020 = vpop.f32.mrb[0].mxu0
  %v2021 = vadd.f32 0.0, %v2020
  %v2022 = vpop.f32.mrb[0].mxu0
  %2023 = vdwg.mxu0
  %2025 = vrot.lane.b32.xlu0 %v668, 96
  %v2026 = vpop.permute.xlu0 %2025
  %v2028 = vsel %vm676, %v668, 0
  %v2031 = vsel %vm676, %v2026, 0
  %2033 = vmatprep.subr.bf16.mxu0 0
  %2034 = vmatpush1.bf16.xpose.msra.mxu0 %v2031
  %2035 = vmatprep.subr.bf16.mxu0 0
  %2036 = vmatpush1.bf16.xpose.msra.mxu0 0
  %2037 = vmatprep.subr.bf16.mxu0 0
  %2038 = vmatpush1.bf16.xpose.msra.mxu0 0
  %2039 = vmatprep.subr.bf16.mxu0 0
  %2040 = vmatpush1.bf16.xpose.msra.mxu0 0
  %2041 = vmatprep.subr.bf16.mxu0 0
  %2042 = vmatpush1.bf16.xpose.msra.mxu0 0
  %2043 = vmatprep.subr.bf16.mxu0 0
  %2044 = vmatpush1.bf16.xpose.msra.mxu0 0
  %2045 = vmatprep.subr.bf16.mxu0 0
  %2046 = vmatpush1.bf16.xpose.msra.mxu0 0
  %2047 = vmatprep.subr.bf16.mxu0 0
  %2048 = vmatpush1.bf16.xpose.msra.mxu0 0
  %2049 = vmatprep.subr.bf16.mxu0 0
  %2050 = vmatpush1.bf16.xpose.msra.mxu0 0
  %2051 = vmatprep.subr.bf16.mxu0 0
  %2052 = vmatpush1.bf16.xpose.msra.mxu0 0
  %2053 = vmatprep.subr.bf16.mxu0 0
  %2054 = vmatpush1.bf16.xpose.msra.mxu0 0
  %2055 = vmatprep.subr.bf16.mxu0 0
  %2056 = vmatpush1.bf16.xpose.msra.mxu0 0
  %2057 = vmatprep.subr.bf16.mxu0 0
  %2058 = vmatpush1.bf16.xpose.msra.mxu0 0
  %2059 = vmatprep.subr.bf16.mxu0 0
  %2060 = vmatpush1.bf16.xpose.msra.mxu0 0
  %2061 = vmatprep.subr.bf16.mxu0 0
  %2062 = vmatpush1.bf16.xpose.msra.mxu0 0
  %2063 = vmatprep.subr.bf16.mxu0 0
  %2064 = vmatpush1.bf16.xpose.msra.mxu0 0
  %2065 = vmatprep.mubr.bf16.mxu0 0
  %2066 = vmatmul.mubr.bf16.gmra.mrb[0].mxu0 %v2028
  %v2067 = vpop.f32.mrb[0].mxu0
  %v2068 = vadd.f32 0.0, %v2067
  %v2069 = vpop.f32.mrb[0].mxu0
  %v2070 = vpop.f32.mrb[0].mxu0
  %v2071 = vadd.f32 0.0, %v2070
  %v2072 = vpop.f32.mrb[0].mxu0
  %2073 = vdwg.mxu0
  %2075 = vrot.lane.b32.xlu0 %v669, 96
  %v2076 = vpop.permute.xlu0 %2075
  %v2078 = vsel %vm676, %v669, 0
  %v2081 = vsel %vm676, %v2076, 0
  %2083 = vmatprep.subr.bf16.mxu0 0
  %2084 = vmatpush1.bf16.xpose.msra.mxu0 %v2081
  %2085 = vmatprep.subr.bf16.mxu0 0
  %2086 = vmatpush1.bf16.xpose.msra.mxu0 0
  %2087 = vmatprep.subr.bf16.mxu0 0
  %2088 = vmatpush1.bf16.xpose.msra.mxu0 0
  %2089 = vmatprep.subr.bf16.mxu0 0
  %2090 = vmatpush1.bf16.xpose.msra.mxu0 0
  %2091 = vmatprep.subr.bf16.mxu0 0
  %2092 = vmatpush1.bf16.xpose.msra.mxu0 0
  %2093 = vmatprep.subr.bf16.mxu0 0
  %2094 = vmatpush1.bf16.xpose.msra.mxu0 0
  %2095 = vmatprep.subr.bf16.mxu0 0
  %2096 = vmatpush1.bf16.xpose.msra.mxu0 0
  %2097 = vmatprep.subr.bf16.mxu0 0
  %2098 = vmatpush1.bf16.xpose.msra.mxu0 0
  %2099 = vmatprep.subr.bf16.mxu0 0
  %2100 = vmatpush1.bf16.xpose.msra.mxu0 0
  %2101 = vmatprep.subr.bf16.mxu0 0
  %2102 = vmatpush1.bf16.xpose.msra.mxu0 0
  %2103 = vmatprep.subr.bf16.mxu0 0
  %2104 = vmatpush1.bf16.xpose.msra.mxu0 0
  %2105 = vmatprep.subr.bf16.mxu0 0
  %2106 = vmatpush1.bf16.xpose.msra.mxu0 0
  %2107 = vmatprep.subr.bf16.mxu0 0
  %2108 = vmatpush1.bf16.xpose.msra.mxu0 0
  %2109 = vmatprep.subr.bf16.mxu0 0
  %2110 = vmatpush1.bf16.xpose.msra.mxu0 0
  %2111 = vmatprep.subr.bf16.mxu0 0
  %2112 = vmatpush1.bf16.xpose.msra.mxu0 0
  %2113 = vmatprep.subr.bf16.mxu0 0
  %2114 = vmatpush1.bf16.xpose.msra.mxu0 0
  %2115 = vmatprep.mubr.bf16.mxu0 0
  %2116 = vmatmul.mubr.bf16.gmra.mrb[0].mxu0 %v2078
  %v2117 = vpop.f32.mrb[0].mxu0
  %v2118 = vadd.f32 0.0, %v2117
  %v2119 = vpop.f32.mrb[0].mxu0
  %v2120 = vpop.f32.mrb[0].mxu0
  %v2121 = vadd.f32 0.0, %v2120
  %v2122 = vpop.f32.mrb[0].mxu0
  %2123 = vdwg.mxu0
  %2125 = vrot.lane.b32.xlu0 %v670, 96
  %v2126 = vpop.permute.xlu0 %2125
  %v2128 = vsel %vm676, %v670, 0
  %v2131 = vsel %vm676, %v2126, 0
  %2133 = vmatprep.subr.bf16.mxu0 0
  %2134 = vmatpush1.bf16.xpose.msra.mxu0 %v2131
  %2135 = vmatprep.subr.bf16.mxu0 0
  %2136 = vmatpush1.bf16.xpose.msra.mxu0 0
  %2137 = vmatprep.subr.bf16.mxu0 0
  %2138 = vmatpush1.bf16.xpose.msra.mxu0 0
  %2139 = vmatprep.subr.bf16.mxu0 0
  %2140 = vmatpush1.bf16.xpose.msra.mxu0 0
  %2141 = vmatprep.subr.bf16.mxu0 0
  %2142 = vmatpush1.bf16.xpose.msra.mxu0 0
  %2143 = vmatprep.subr.bf16.mxu0 0
  %2144 = vmatpush1.bf16.xpose.msra.mxu0 0
  %2145 = vmatprep.subr.bf16.mxu0 0
  %2146 = vmatpush1.bf16.xpose.msra.mxu0 0
  %2147 = vmatprep.subr.bf16.mxu0 0
  %2148 = vmatpush1.bf16.xpose.msra.mxu0 0
  %2149 = vmatprep.subr.bf16.mxu0 0
  %2150 = vmatpush1.bf16.xpose.msra.mxu0 0
  %2151 = vmatprep.subr.bf16.mxu0 0
  %2152 = vmatpush1.bf16.xpose.msra.mxu0 0
  %2153 = vmatprep.subr.bf16.mxu0 0
  %2154 = vmatpush1.bf16.xpose.msra.mxu0 0
  %2155 = vmatprep.subr.bf16.mxu0 0
  %2156 = vmatpush1.bf16.xpose.msra.mxu0 0
  %2157 = vmatprep.subr.bf16.mxu0 0
  %2158 = vmatpush1.bf16.xpose.msra.mxu0 0
  %2159 = vmatprep.subr.bf16.mxu0 0
  %2160 = vmatpush1.bf16.xpose.msra.mxu0 0
  %2161 = vmatprep.subr.bf16.mxu0 0
  %2162 = vmatpush1.bf16.xpose.msra.mxu0 0
  %2163 = vmatprep.subr.bf16.mxu0 0
  %2164 = vmatpush1.bf16.xpose.msra.mxu0 0
  %2165 = vmatprep.mubr.bf16.mxu0 0
  %2166 = vmatmul.mubr.bf16.gmra.mrb[0].mxu0 %v2128
  %v2167 = vpop.f32.mrb[0].mxu0
  %v2168 = vadd.f32 0.0, %v2167
  %v2169 = vpop.f32.mrb[0].mxu0
  %v2170 = vpop.f32.mrb[0].mxu0
  %v2171 = vadd.f32 0.0, %v2170
  %v2172 = vpop.f32.mrb[0].mxu0
  %2173 = vdwg.mxu0
  %2175 = vrot.lane.b32.xlu0 %v671, 96
  %v2176 = vpop.permute.xlu0 %2175
  %v2178 = vsel %vm676, %v671, 0
  %v2181 = vsel %vm676, %v2176, 0
  %2183 = vmatprep.subr.bf16.mxu0 0
  %2184 = vmatpush1.bf16.xpose.msra.mxu0 %v2181
  %2185 = vmatprep.subr.bf16.mxu0 0
  %2186 = vmatpush1.bf16.xpose.msra.mxu0 0
  %2187 = vmatprep.subr.bf16.mxu0 0
  %2188 = vmatpush1.bf16.xpose.msra.mxu0 0
  %2189 = vmatprep.subr.bf16.mxu0 0
  %2190 = vmatpush1.bf16.xpose.msra.mxu0 0
  %2191 = vmatprep.subr.bf16.mxu0 0
  %2192 = vmatpush1.bf16.xpose.msra.mxu0 0
  %2193 = vmatprep.subr.bf16.mxu0 0
  %2194 = vmatpush1.bf16.xpose.msra.mxu0 0
  %2195 = vmatprep.subr.bf16.mxu0 0
  %2196 = vmatpush1.bf16.xpose.msra.mxu0 0
  %2197 = vmatprep.subr.bf16.mxu0 0
  %2198 = vmatpush1.bf16.xpose.msra.mxu0 0
  %2199 = vmatprep.subr.bf16.mxu0 0
  %2200 = vmatpush1.bf16.xpose.msra.mxu0 0
  %2201 = vmatprep.subr.bf16.mxu0 0
  %2202 = vmatpush1.bf16.xpose.msra.mxu0 0
  %2203 = vmatprep.subr.bf16.mxu0 0
  %2204 = vmatpush1.bf16.xpose.msra.mxu0 0
  %2205 = vmatprep.subr.bf16.mxu0 0
  %2206 = vmatpush1.bf16.xpose.msra.mxu0 0
  %2207 = vmatprep.subr.bf16.mxu0 0
  %2208 = vmatpush1.bf16.xpose.msra.mxu0 0
  %2209 = vmatprep.subr.bf16.mxu0 0
  %2210 = vmatpush1.bf16.xpose.msra.mxu0 0
  %2211 = vmatprep.subr.bf16.mxu0 0
  %2212 = vmatpush1.bf16.xpose.msra.mxu0 0
  %2213 = vmatprep.subr.bf16.mxu0 0
  %2214 = vmatpush1.bf16.xpose.msra.mxu0 0
  %2215 = vmatprep.mubr.bf16.mxu0 0
  %2216 = vmatmul.mubr.bf16.gmra.mrb[0].mxu0 %v2178
  %v2217 = vpop.f32.mrb[0].mxu0
  %v2218 = vadd.f32 0.0, %v2217
  %v2219 = vpop.f32.mrb[0].mxu0
  %v2220 = vpop.f32.mrb[0].mxu0
  %v2221 = vadd.f32 0.0, %v2220
  %v2222 = vpop.f32.mrb[0].mxu0
  %2223 = vdwg.mxu0
  %2225 = vrot.lane.b32.xlu0 %v672, 96
  %v2226 = vpop.permute.xlu0 %2225
  %v2228 = vsel %vm676, %v672, 0
  %v2231 = vsel %vm676, %v2226, 0
  %2233 = vmatprep.subr.bf16.mxu0 0
  %2234 = vmatpush1.bf16.xpose.msra.mxu0 %v2231
  %2235 = vmatprep.subr.bf16.mxu0 0
  %2236 = vmatpush1.bf16.xpose.msra.mxu0 0
  %2237 = vmatprep.subr.bf16.mxu0 0
  %2238 = vmatpush1.bf16.xpose.msra.mxu0 0
  %2239 = vmatprep.subr.bf16.mxu0 0
  %2240 = vmatpush1.bf16.xpose.msra.mxu0 0
  %2241 = vmatprep.subr.bf16.mxu0 0
  %2242 = vmatpush1.bf16.xpose.msra.mxu0 0
  %2243 = vmatprep.subr.bf16.mxu0 0
  %2244 = vmatpush1.bf16.xpose.msra.mxu0 0
  %2245 = vmatprep.subr.bf16.mxu0 0
  %2246 = vmatpush1.bf16.xpose.msra.mxu0 0
  %2247 = vmatprep.subr.bf16.mxu0 0
  %2248 = vmatpush1.bf16.xpose.msra.mxu0 0
  %2249 = vmatprep.subr.bf16.mxu0 0
  %2250 = vmatpush1.bf16.xpose.msra.mxu0 0
  %2251 = vmatprep.subr.bf16.mxu0 0
  %2252 = vmatpush1.bf16.xpose.msra.mxu0 0
  %2253 = vmatprep.subr.bf16.mxu0 0
  %2254 = vmatpush1.bf16.xpose.msra.mxu0 0
  %2255 = vmatprep.subr.bf16.mxu0 0
  %2256 = vmatpush1.bf16.xpose.msra.mxu0 0
  %2257 = vmatprep.subr.bf16.mxu0 0
  %2258 = vmatpush1.bf16.xpose.msra.mxu0 0
  %2259 = vmatprep.subr.bf16.mxu0 0
  %2260 = vmatpush1.bf16.xpose.msra.mxu0 0
  %2261 = vmatprep.subr.bf16.mxu0 0
  %2262 = vmatpush1.bf16.xpose.msra.mxu0 0
  %2263 = vmatprep.subr.bf16.mxu0 0
  %2264 = vmatpush1.bf16.xpose.msra.mxu0 0
  %2265 = vmatprep.mubr.bf16.mxu0 0
  %2266 = vmatmul.mubr.bf16.gmra.mrb[0].mxu0 %v2228
  %v2267 = vpop.f32.mrb[0].mxu0
  %v2268 = vadd.f32 0.0, %v2267
  %v2269 = vpop.f32.mrb[0].mxu0
  %v2270 = vpop.f32.mrb[0].mxu0
  %v2271 = vadd.f32 0.0, %v2270
  %v2272 = vpop.f32.mrb[0].mxu0
  %2273 = vdwg.mxu0
  %v2274 = vld [vmem:[%s1] sm:$0xff]
  %v2275 = vld [vmem:[%s1 + $0x8] sm:$0xff]
  %v2276 = vld [vmem:[%s1 + $0x10] sm:$0xff]
  %v2277 = vld [vmem:[%s1 + $0x18] sm:$0xff]
  %v2278 = vld [vmem:[%s1 + $0x20] sm:$0xff]
  %v2279 = vld [vmem:[%s1 + $0x28] sm:$0xff]
  %v2280 = vld [vmem:[%s1 + $0x30] sm:$0xff]
  %v2281 = vld [vmem:[%s1 + $0x38] sm:$0xff]
  %v2282 = vadd.f32 %v718, %v2274
  %v2283 = vadd.f32 %v721, %v2275
  %v2284 = vadd.f32 %v768, %v2274
  %v2285 = vadd.f32 %v771, %v2275
  %v2286 = vadd.f32 %v818, %v2274
  %v2287 = vadd.f32 %v821, %v2275
  %v2288 = vadd.f32 %v868, %v2274
  %v2289 = vadd.f32 %v871, %v2275
  %v2290 = vadd.f32 %v918, %v2274
  %v2291 = vadd.f32 %v921, %v2275
  %v2292 = vadd.f32 %v968, %v2274
  %v2293 = vadd.f32 %v971, %v2275
  %v2294 = vadd.f32 %v1018, %v2274
  %v2295 = vadd.f32 %v1021, %v2275
  %v2296 = vadd.f32 %v1068, %v2274
  %v2297 = vadd.f32 %v1071, %v2275
  %v2298 = vadd.f32 %v1118, %v2276
  %v2299 = vadd.f32 %v1121, %v2277
  %v2300 = vadd.f32 %v1168, %v2276
  %v2301 = vadd.f32 %v1171, %v2277
  %v2302 = vadd.f32 %v1218, %v2276
  %v2303 = vadd.f32 %v1221, %v2277
  %v2304 = vadd.f32 %v1268, %v2276
  %v2305 = vadd.f32 %v1271, %v2277
  %v2306 = vadd.f32 %v1318, %v2276
  %v2307 = vadd.f32 %v1321, %v2277
  %v2308 = vadd.f32 %v1368, %v2276
  %v2309 = vadd.f32 %v1371, %v2277
  %v2310 = vadd.f32 %v1418, %v2276
  %v2311 = vadd.f32 %v1421, %v2277
  %v2312 = vadd.f32 %v1468, %v2276
  %v2313 = vadd.f32 %v1471, %v2277
  %v2314 = vadd.f32 %v1518, %v2278
  %v2315 = vadd.f32 %v1521, %v2279
  %v2316 = vadd.f32 %v1568, %v2278
  %v2317 = vadd.f32 %v1571, %v2279
  %v2318 = vadd.f32 %v1618, %v2278
  %v2319 = vadd.f32 %v1621, %v2279
  %v2320 = vadd.f32 %v1668, %v2278
  %v2321 = vadd.f32 %v1671, %v2279
  %v2322 = vadd.f32 %v1718, %v2278
  %v2323 = vadd.f32 %v1721, %v2279
  %v2324 = vadd.f32 %v1768, %v2278
  %v2325 = vadd.f32 %v1771, %v2279
  %v2326 = vadd.f32 %v1818, %v2278
  %v2327 = vadd.f32 %v1821, %v2279
  %v2328 = vadd.f32 %v1868, %v2278
  %v2329 = vadd.f32 %v1871, %v2279
  %v2330 = vadd.f32 %v1918, %v2280
  %v2331 = vadd.f32 %v1921, %v2281
  %v2332 = vadd.f32 %v1968, %v2280
  %v2333 = vadd.f32 %v1971, %v2281
  %v2334 = vadd.f32 %v2018, %v2280
  %v2335 = vadd.f32 %v2021, %v2281
  %v2336 = vadd.f32 %v2068, %v2280
  %v2337 = vadd.f32 %v2071, %v2281
  %v2338 = vadd.f32 %v2118, %v2280
  %v2339 = vadd.f32 %v2121, %v2281
  %v2340 = vadd.f32 %v2168, %v2280
  %v2341 = vadd.f32 %v2171, %v2281
  %v2342 = vadd.f32 %v2218, %v2280
  %v2343 = vadd.f32 %v2221, %v2281
  %v2344 = vadd.f32 %v2268, %v2280
  %v2345 = vadd.f32 %v2271, %v2281
  %v2346 = vld [vmem:[%s2] sm:$0xff]
  %v2347 = vld [vmem:[%s2 + $0x8] sm:$0xff]
  %v2348 = vadd.f32 %v2282, %v2346
  %v2349 = vadd.f32 %v2283, %v2347
  %v2350 = vadd.f32 %v2284, %v2346
  %v2351 = vadd.f32 %v2285, %v2347
  %v2352 = vadd.f32 %v2286, %v2346
  %v2353 = vadd.f32 %v2287, %v2347
  %v2354 = vadd.f32 %v2288, %v2346
  %v2355 = vadd.f32 %v2289, %v2347
  %v2356 = vadd.f32 %v2290, %v2346
  %v2357 = vadd.f32 %v2291, %v2347
  %v2358 = vadd.f32 %v2292, %v2346
  %v2359 = vadd.f32 %v2293, %v2347
  %v2360 = vadd.f32 %v2294, %v2346
  %v2361 = vadd.f32 %v2295, %v2347
  %v2362 = vadd.f32 %v2296, %v2346
  %v2363 = vadd.f32 %v2297, %v2347
  %v2364 = vadd.f32 %v2298, %v2346
  %v2365 = vadd.f32 %v2299, %v2347
  %v2366 = vadd.f32 %v2300, %v2346
  %v2367 = vadd.f32 %v2301, %v2347
  %v2368 = vadd.f32 %v2302, %v2346
  %v2369 = vadd.f32 %v2303, %v2347
  %v2370 = vadd.f32 %v2304, %v2346
  %v2371 = vadd.f32 %v2305, %v2347
  %v2372 = vadd.f32 %v2306, %v2346
  %v2373 = vadd.f32 %v2307, %v2347
  %v2374 = vadd.f32 %v2308, %v2346
  %v2375 = vadd.f32 %v2309, %v2347
  %v2376 = vadd.f32 %v2310, %v2346
  %v2377 = vadd.f32 %v2311, %v2347
  %v2378 = vadd.f32 %v2312, %v2346
  %v2379 = vadd.f32 %v2313, %v2347
  %v2380 = vadd.f32 %v2314, %v2346
  %v2381 = vadd.f32 %v2315, %v2347
  %v2382 = vadd.f32 %v2316, %v2346
  %v2383 = vadd.f32 %v2317, %v2347
  %v2384 = vadd.f32 %v2318, %v2346
  %v2385 = vadd.f32 %v2319, %v2347
  %v2386 = vadd.f32 %v2320, %v2346
  %v2387 = vadd.f32 %v2321, %v2347
  %v2388 = vadd.f32 %v2322, %v2346
  %v2389 = vadd.f32 %v2323, %v2347
  %v2390 = vadd.f32 %v2324, %v2346
  %v2391 = vadd.f32 %v2325, %v2347
  %v2392 = vadd.f32 %v2326, %v2346
  %v2393 = vadd.f32 %v2327, %v2347
  %v2394 = vadd.f32 %v2328, %v2346
  %v2395 = vadd.f32 %v2329, %v2347
  %v2396 = vadd.f32 %v2330, %v2346
  %v2397 = vadd.f32 %v2331, %v2347
  %v2398 = vadd.f32 %v2332, %v2346
  %v2399 = vadd.f32 %v2333, %v2347
  %v2400 = vadd.f32 %v2334, %v2346
  %v2401 = vadd.f32 %v2335, %v2347
  %v2402 = vadd.f32 %v2336, %v2346
  %v2403 = vadd.f32 %v2337, %v2347
  %v2404 = vadd.f32 %v2338, %v2346
  %v2405 = vadd.f32 %v2339, %v2347
  %v2406 = vadd.f32 %v2340, %v2346
  %v2407 = vadd.f32 %v2341, %v2347
  %v2408 = vadd.f32 %v2342, %v2346
  %v2409 = vadd.f32 %v2343, %v2347
  %v2410 = vadd.f32 %v2344, %v2346
  %v2411 = vadd.f32 %v2345, %v2347
  %vm2412 = vcmask 130048
  %v2413 = vsel %vm2412, %v2348, -inf
  %2414 = vmax.xlane.f32.xlu0 %v2413
  %v2415 = vpop.xlane.xlu0 %2414
  %v2416 = vsel %vm2412, %v2349, -inf
  %2417 = vmax.xlane.f32.xlu0 %v2416
  %v2418 = vpop.xlane.xlu0 %2417
  %v2419 = vsel %vm2412, %v2350, -inf
  %2420 = vmax.xlane.f32.xlu0 %v2419
  %v2421 = vpop.xlane.xlu0 %2420
  %v2422 = vsel %vm2412, %v2351, -inf
  %2423 = vmax.xlane.f32.xlu0 %v2422
  %v2424 = vpop.xlane.xlu0 %2423
  %v2425 = vsel %vm2412, %v2352, -inf
  %2426 = vmax.xlane.f32.xlu0 %v2425
  %v2427 = vpop.xlane.xlu0 %2426
  %v2428 = vsel %vm2412, %v2353, -inf
  %2429 = vmax.xlane.f32.xlu0 %v2428
  %v2430 = vpop.xlane.xlu0 %2429
  %v2431 = vsel %vm2412, %v2354, -inf
  %2432 = vmax.xlane.f32.xlu0 %v2431
  %v2433 = vpop.xlane.xlu0 %2432
  %v2434 = vsel %vm2412, %v2355, -inf
  %2435 = vmax.xlane.f32.xlu0 %v2434
  %v2436 = vpop.xlane.xlu0 %2435
  %v2437 = vsel %vm2412, %v2356, -inf
  %2438 = vmax.xlane.f32.xlu0 %v2437
  %v2439 = vpop.xlane.xlu0 %2438
  %v2440 = vsel %vm2412, %v2357, -inf
  %2441 = vmax.xlane.f32.xlu0 %v2440
  %v2442 = vpop.xlane.xlu0 %2441
  %v2443 = vsel %vm2412, %v2358, -inf
  %2444 = vmax.xlane.f32.xlu0 %v2443
  %v2445 = vpop.xlane.xlu0 %2444
  %v2446 = vsel %vm2412, %v2359, -inf
  %2447 = vmax.xlane.f32.xlu0 %v2446
  %v2448 = vpop.xlane.xlu0 %2447
  %v2449 = vsel %vm2412, %v2360, -inf
  %2450 = vmax.xlane.f32.xlu0 %v2449
  %v2451 = vpop.xlane.xlu0 %2450
  %v2452 = vsel %vm2412, %v2361, -inf
  %2453 = vmax.xlane.f32.xlu0 %v2452
  %v2454 = vpop.xlane.xlu0 %2453
  %v2455 = vsel %vm2412, %v2362, -inf
  %2456 = vmax.xlane.f32.xlu0 %v2455
  %v2457 = vpop.xlane.xlu0 %2456
  %v2458 = vsel %vm2412, %v2363, -inf
  %2459 = vmax.xlane.f32.xlu0 %v2458
  %v2460 = vpop.xlane.xlu0 %2459
  %v2461 = vsel %vm2412, %v2364, -inf
  %2462 = vmax.xlane.f32.xlu0 %v2461
  %v2463 = vpop.xlane.xlu0 %2462
  %v2464 = vsel %vm2412, %v2365, -inf
  %2465 = vmax.xlane.f32.xlu0 %v2464
  %v2466 = vpop.xlane.xlu0 %2465
  %v2467 = vsel %vm2412, %v2366, -inf
  %2468 = vmax.xlane.f32.xlu0 %v2467
  %v2469 = vpop.xlane.xlu0 %2468
  %v2470 = vsel %vm2412, %v2367, -inf
  %2471 = vmax.xlane.f32.xlu0 %v2470
  %v2472 = vpop.xlane.xlu0 %2471
  %v2473 = vsel %vm2412, %v2368, -inf
  %2474 = vmax.xlane.f32.xlu0 %v2473
  %v2475 = vpop.xlane.xlu0 %2474
  %v2476 = vsel %vm2412, %v2369, -inf
  %2477 = vmax.xlane.f32.xlu0 %v2476
  %v2478 = vpop.xlane.xlu0 %2477
  %v2479 = vsel %vm2412, %v2370, -inf
  %2480 = vmax.xlane.f32.xlu0 %v2479
  %v2481 = vpop.xlane.xlu0 %2480
  %v2482 = vsel %vm2412, %v2371, -inf
  %2483 = vmax.xlane.f32.xlu0 %v2482
  %v2484 = vpop.xlane.xlu0 %2483
  %v2485 = vsel %vm2412, %v2372, -inf
  %2486 = vmax.xlane.f32.xlu0 %v2485
  %v2487 = vpop.xlane.xlu0 %2486
  %v2488 = vsel %vm2412, %v2373, -inf
  %2489 = vmax.xlane.f32.xlu0 %v2488
  %v2490 = vpop.xlane.xlu0 %2489
  %v2491 = vsel %vm2412, %v2374, -inf
  %2492 = vmax.xlane.f32.xlu0 %v2491
  %v2493 = vpop.xlane.xlu0 %2492
  %v2494 = vsel %vm2412, %v2375, -inf
  %2495 = vmax.xlane.f32.xlu0 %v2494
  %v2496 = vpop.xlane.xlu0 %2495
  %v2497 = vsel %vm2412, %v2376, -inf
  %2498 = vmax.xlane.f32.xlu0 %v2497
  %v2499 = vpop.xlane.xlu0 %2498
  %v2500 = vsel %vm2412, %v2377, -inf
  %2501 = vmax.xlane.f32.xlu0 %v2500
  %v2502 = vpop.xlane.xlu0 %2501
  %v2503 = vsel %vm2412, %v2378, -inf
  %2504 = vmax.xlane.f32.xlu0 %v2503
  %v2505 = vpop.xlane.xlu0 %2504
  %v2506 = vsel %vm2412, %v2379, -inf
  %2507 = vmax.xlane.f32.xlu0 %v2506
  %v2508 = vpop.xlane.xlu0 %2507
  %v2509 = vsel %vm2412, %v2380, -inf
  %2510 = vmax.xlane.f32.xlu0 %v2509
  %v2511 = vpop.xlane.xlu0 %2510
  %v2512 = vsel %vm2412, %v2381, -inf
  %2513 = vmax.xlane.f32.xlu0 %v2512
  %v2514 = vpop.xlane.xlu0 %2513
  %v2515 = vsel %vm2412, %v2382, -inf
  %2516 = vmax.xlane.f32.xlu0 %v2515
  %v2517 = vpop.xlane.xlu0 %2516
  %v2518 = vsel %vm2412, %v2383, -inf
  %2519 = vmax.xlane.f32.xlu0 %v2518
  %v2520 = vpop.xlane.xlu0 %2519
  %v2521 = vsel %vm2412, %v2384, -inf
  %2522 = vmax.xlane.f32.xlu0 %v2521
  %v2523 = vpop.xlane.xlu0 %2522
  %v2524 = vsel %vm2412, %v2385, -inf
  %2525 = vmax.xlane.f32.xlu0 %v2524
  %v2526 = vpop.xlane.xlu0 %2525
  %v2527 = vsel %vm2412, %v2386, -inf
  %2528 = vmax.xlane.f32.xlu0 %v2527
  %v2529 = vpop.xlane.xlu0 %2528
  %v2530 = vsel %vm2412, %v2387, -inf
  %2531 = vmax.xlane.f32.xlu0 %v2530
  %v2532 = vpop.xlane.xlu0 %2531
  %v2533 = vsel %vm2412, %v2388, -inf
  %2534 = vmax.xlane.f32.xlu0 %v2533
  %v2535 = vpop.xlane.xlu0 %2534
  %v2536 = vsel %vm2412, %v2389, -inf
  %2537 = vmax.xlane.f32.xlu0 %v2536
  %v2538 = vpop.xlane.xlu0 %2537
  %v2539 = vsel %vm2412, %v2390, -inf
  %2540 = vmax.xlane.f32.xlu0 %v2539
  %v2541 = vpop.xlane.xlu0 %2540
  %v2542 = vsel %vm2412, %v2391, -inf
  %2543 = vmax.xlane.f32.xlu0 %v2542
  %v2544 = vpop.xlane.xlu0 %2543
  %v2545 = vsel %vm2412, %v2392, -inf
  %2546 = vmax.xlane.f32.xlu0 %v2545
  %v2547 = vpop.xlane.xlu0 %2546
  %v2548 = vsel %vm2412, %v2393, -inf
  %2549 = vmax.xlane.f32.xlu0 %v2548
  %v2550 = vpop.xlane.xlu0 %2549
  %v2551 = vsel %vm2412, %v2394, -inf
  %2552 = vmax.xlane.f32.xlu0 %v2551
  %v2553 = vpop.xlane.xlu0 %2552
  %v2554 = vsel %vm2412, %v2395, -inf
  %2555 = vmax.xlane.f32.xlu0 %v2554
  %v2556 = vpop.xlane.xlu0 %2555
  %v2557 = vsel %vm2412, %v2396, -inf
  %2558 = vmax.xlane.f32.xlu0 %v2557
  %v2559 = vpop.xlane.xlu0 %2558
  %v2560 = vsel %vm2412, %v2397, -inf
  %2561 = vmax.xlane.f32.xlu0 %v2560
  %v2562 = vpop.xlane.xlu0 %2561
  %v2563 = vsel %vm2412, %v2398, -inf
  %2564 = vmax.xlane.f32.xlu0 %v2563
  %v2565 = vpop.xlane.xlu0 %2564
  %v2566 = vsel %vm2412, %v2399, -inf
  %2567 = vmax.xlane.f32.xlu0 %v2566
  %v2568 = vpop.xlane.xlu0 %2567
  %v2569 = vsel %vm2412, %v2400, -inf
  %2570 = vmax.xlane.f32.xlu0 %v2569
  %v2571 = vpop.xlane.xlu0 %2570
  %v2572 = vsel %vm2412, %v2401, -inf
  %2573 = vmax.xlane.f32.xlu0 %v2572
  %v2574 = vpop.xlane.xlu0 %2573
  %v2575 = vsel %vm2412, %v2402, -inf
  %2576 = vmax.xlane.f32.xlu0 %v2575
  %v2577 = vpop.xlane.xlu0 %2576
  %v2578 = vsel %vm2412, %v2403, -inf
  %2579 = vmax.xlane.f32.xlu0 %v2578
  %v2580 = vpop.xlane.xlu0 %2579
  %v2581 = vsel %vm2412, %v2404, -inf
  %2582 = vmax.xlane.f32.xlu0 %v2581
  %v2583 = vpop.xlane.xlu0 %2582
  %v2584 = vsel %vm2412, %v2405, -inf
  %2585 = vmax.xlane.f32.xlu0 %v2584
  %v2586 = vpop.xlane.xlu0 %2585
  %v2587 = vsel %vm2412, %v2406, -inf
  %2588 = vmax.xlane.f32.xlu0 %v2587
  %v2589 = vpop.xlane.xlu0 %2588
  %v2590 = vsel %vm2412, %v2407, -inf
  %2591 = vmax.xlane.f32.xlu0 %v2590
  %v2592 = vpop.xlane.xlu0 %2591
  %v2593 = vsel %vm2412, %v2408, -inf
  %2594 = vmax.xlane.f32.xlu0 %v2593
  %v2595 = vpop.xlane.xlu0 %2594
  %v2596 = vsel %vm2412, %v2409, -inf
  %2597 = vmax.xlane.f32.xlu0 %v2596
  %v2598 = vpop.xlane.xlu0 %2597
  %v2599 = vsel %vm2412, %v2410, -inf
  %2600 = vmax.xlane.f32.xlu0 %v2599
  %v2601 = vpop.xlane.xlu0 %2600
  %v2602 = vsel %vm2412, %v2411, -inf
  %2603 = vmax.xlane.f32.xlu0 %v2602
  %v2604 = vpop.xlane.xlu0 %2603
  %v2605 = vsub.f32 %v2348, %v2415
  %v2606 = vsub.f32 %v2349, %v2418
  %v2607 = vsub.f32 %v2350, %v2421
  %v2608 = vsub.f32 %v2351, %v2424
  %v2609 = vsub.f32 %v2352, %v2427
  %v2610 = vsub.f32 %v2353, %v2430
  %v2611 = vsub.f32 %v2354, %v2433
  %v2612 = vsub.f32 %v2355, %v2436
  %v2613 = vsub.f32 %v2356, %v2439
  %v2614 = vsub.f32 %v2357, %v2442
  %v2615 = vsub.f32 %v2358, %v2445
  %v2616 = vsub.f32 %v2359, %v2448
  %v2617 = vsub.f32 %v2360, %v2451
  %v2618 = vsub.f32 %v2361, %v2454
  %v2619 = vsub.f32 %v2362, %v2457
  %v2620 = vsub.f32 %v2363, %v2460
  %v2621 = vsub.f32 %v2364, %v2463
  %v2622 = vsub.f32 %v2365, %v2466
  %v2623 = vsub.f32 %v2366, %v2469
  %v2624 = vsub.f32 %v2367, %v2472
  %v2625 = vsub.f32 %v2368, %v2475
  %v2626 = vsub.f32 %v2369, %v2478
  %v2627 = vsub.f32 %v2370, %v2481
  %v2628 = vsub.f32 %v2371, %v2484
  %v2629 = vsub.f32 %v2372, %v2487
  %v2630 = vsub.f32 %v2373, %v2490
  %v2631 = vsub.f32 %v2374, %v2493
  %v2632 = vsub.f32 %v2375, %v2496
  %v2633 = vsub.f32 %v2376, %v2499
  %v2634 = vsub.f32 %v2377, %v2502
  %v2635 = vsub.f32 %v2378, %v2505
  %v2636 = vsub.f32 %v2379, %v2508
  %v2637 = vsub.f32 %v2380, %v2511
  %v2638 = vsub.f32 %v2381, %v2514
  %v2639 = vsub.f32 %v2382, %v2517
  %v2640 = vsub.f32 %v2383, %v2520
  %v2641 = vsub.f32 %v2384, %v2523
  %v2642 = vsub.f32 %v2385, %v2526
  %v2643 = vsub.f32 %v2386, %v2529
  %v2644 = vsub.f32 %v2387, %v2532
  %v2645 = vsub.f32 %v2388, %v2535
  %v2646 = vsub.f32 %v2389, %v2538
  %v2647 = vsub.f32 %v2390, %v2541
  %v2648 = vsub.f32 %v2391, %v2544
  %v2649 = vsub.f32 %v2392, %v2547
  %v2650 = vsub.f32 %v2393, %v2550
  %v2651 = vsub.f32 %v2394, %v2553
  %v2652 = vsub.f32 %v2395, %v2556
  %v2653 = vsub.f32 %v2396, %v2559
  %v2654 = vsub.f32 %v2397, %v2562
  %v2655 = vsub.f32 %v2398, %v2565
  %v2656 = vsub.f32 %v2399, %v2568
  %v2657 = vsub.f32 %v2400, %v2571
  %v2658 = vsub.f32 %v2401, %v2574
  %v2659 = vsub.f32 %v2402, %v2577
  %v2660 = vsub.f32 %v2403, %v2580
  %v2661 = vsub.f32 %v2404, %v2583
  %v2662 = vsub.f32 %v2405, %v2586
  %v2663 = vsub.f32 %v2406, %v2589
  %v2664 = vsub.f32 %v2407, %v2592
  %v2665 = vsub.f32 %v2408, %v2595
  %v2666 = vsub.f32 %v2409, %v2598
  %v2667 = vsub.f32 %v2410, %v2601
  %v2668 = vsub.f32 %v2411, %v2604
  %v2669 = vmul.f32 %v2605, 1.442695
  %v2670 = vpow.pop %v2669
  %v2671 = vmul.f32 %v2606, 1.442695
  %v2672 = vpow.pop %v2671
  %v2673 = vmul.f32 %v2607, 1.442695
  %v2674 = vpow.pop %v2673
  %v2675 = vmul.f32 %v2608, 1.442695
  %v2676 = vpow.pop %v2675
  %v2677 = vmul.f32 %v2609, 1.442695
  %v2678 = vpow.pop %v2677
  %v2679 = vmul.f32 %v2610, 1.442695
  %v2680 = vpow.pop %v2679
  %v2681 = vmul.f32 %v2611, 1.442695
  %v2682 = vpow.pop %v2681
  %v2683 = vmul.f32 %v2612, 1.442695
  %v2684 = vpow.pop %v2683
  %v2685 = vmul.f32 %v2613, 1.442695
  %v2686 = vpow.pop %v2685
  %v2687 = vmul.f32 %v2614, 1.442695
  %v2688 = vpow.pop %v2687
  %v2689 = vmul.f32 %v2615, 1.442695
  %v2690 = vpow.pop %v2689
  %v2691 = vmul.f32 %v2616, 1.442695
  %v2692 = vpow.pop %v2691
  %v2693 = vmul.f32 %v2617, 1.442695
  %v2694 = vpow.pop %v2693
  %v2695 = vmul.f32 %v2618, 1.442695
  %v2696 = vpow.pop %v2695
  %v2697 = vmul.f32 %v2619, 1.442695
  %v2698 = vpow.pop %v2697
  %v2699 = vmul.f32 %v2620, 1.442695
  %v2700 = vpow.pop %v2699
  %v2701 = vmul.f32 %v2621, 1.442695
  %v2702 = vpow.pop %v2701
  %v2703 = vmul.f32 %v2622, 1.442695
  %v2704 = vpow.pop %v2703
  %v2705 = vmul.f32 %v2623, 1.442695
  %v2706 = vpow.pop %v2705
  %v2707 = vmul.f32 %v2624, 1.442695
  %v2708 = vpow.pop %v2707
  %v2709 = vmul.f32 %v2625, 1.442695
  %v2710 = vpow.pop %v2709
  %v2711 = vmul.f32 %v2626, 1.442695
  %v2712 = vpow.pop %v2711
  %v2713 = vmul.f32 %v2627, 1.442695
  %v2714 = vpow.pop %v2713
  %v2715 = vmul.f32 %v2628, 1.442695
  %v2716 = vpow.pop %v2715
  %v2717 = vmul.f32 %v2629, 1.442695
  %v2718 = vpow.pop %v2717
  %v2719 = vmul.f32 %v2630, 1.442695
  %v2720 = vpow.pop %v2719
  %v2721 = vmul.f32 %v2631, 1.442695
  %v2722 = vpow.pop %v2721
  %v2723 = vmul.f32 %v2632, 1.442695
  %v2724 = vpow.pop %v2723
  %v2725 = vmul.f32 %v2633, 1.442695
  %v2726 = vpow.pop %v2725
  %v2727 = vmul.f32 %v2634, 1.442695
  %v2728 = vpow.pop %v2727
  %v2729 = vmul.f32 %v2635, 1.442695
  %v2730 = vpow.pop %v2729
  %v2731 = vmul.f32 %v2636, 1.442695
  %v2732 = vpow.pop %v2731
  %v2733 = vmul.f32 %v2637, 1.442695
  %v2734 = vpow.pop %v2733
  %v2735 = vmul.f32 %v2638, 1.442695
  %v2736 = vpow.pop %v2735
  %v2737 = vmul.f32 %v2639, 1.442695
  %v2738 = vpow.pop %v2737
  %v2739 = vmul.f32 %v2640, 1.442695
  %v2740 = vpow.pop %v2739
  %v2741 = vmul.f32 %v2641, 1.442695
  %v2742 = vpow.pop %v2741
  %v2743 = vmul.f32 %v2642, 1.442695
  %v2744 = vpow.pop %v2743
  %v2745 = vmul.f32 %v2643, 1.442695
  %v2746 = vpow.pop %v2745
  %v2747 = vmul.f32 %v2644, 1.442695
  %v2748 = vpow.pop %v2747
  %v2749 = vmul.f32 %v2645, 1.442695
  %v2750 = vpow.pop %v2749
  %v2751 = vmul.f32 %v2646, 1.442695
  %v2752 = vpow.pop %v2751
  %v2753 = vmul.f32 %v2647, 1.442695
  %v2754 = vpow.pop %v2753
  %v2755 = vmul.f32 %v2648, 1.442695
  %v2756 = vpow.pop %v2755
  %v2757 = vmul.f32 %v2649, 1.442695
  %v2758 = vpow.pop %v2757
  %v2759 = vmul.f32 %v2650, 1.442695
  %v2760 = vpow.pop %v2759
  %v2761 = vmul.f32 %v2651, 1.442695
  %v2762 = vpow.pop %v2761
  %v2763 = vmul.f32 %v2652, 1.442695
  %v2764 = vpow.pop %v2763
  %v2765 = vmul.f32 %v2653, 1.442695
  %v2766 = vpow.pop %v2765
  %v2767 = vmul.f32 %v2654, 1.442695
  %v2768 = vpow.pop %v2767
  %v2769 = vmul.f32 %v2655, 1.442695
  %v2770 = vpow.pop %v2769
  %v2771 = vmul.f32 %v2656, 1.442695
  %v2772 = vpow.pop %v2771
  %v2773 = vmul.f32 %v2657, 1.442695
  %v2774 = vpow.pop %v2773
  %v2775 = vmul.f32 %v2658, 1.442695
  %v2776 = vpow.pop %v2775
  %v2777 = vmul.f32 %v2659, 1.442695
  %v2778 = vpow.pop %v2777
  %v2779 = vmul.f32 %v2660, 1.442695
  %v2780 = vpow.pop %v2779
  %v2781 = vmul.f32 %v2661, 1.442695
  %v2782 = vpow.pop %v2781
  %v2783 = vmul.f32 %v2662, 1.442695
  %v2784 = vpow.pop %v2783
  %v2785 = vmul.f32 %v2663, 1.442695
  %v2786 = vpow.pop %v2785
  %v2787 = vmul.f32 %v2664, 1.442695
  %v2788 = vpow.pop %v2787
  %v2789 = vmul.f32 %v2665, 1.442695
  %v2790 = vpow.pop %v2789
  %v2791 = vmul.f32 %v2666, 1.442695
  %v2792 = vpow.pop %v2791
  %v2793 = vmul.f32 %v2667, 1.442695
  %v2794 = vpow.pop %v2793
  %v2795 = vmul.f32 %v2668, 1.442695
  %v2796 = vpow.pop %v2795
  %v2797 = vsel %vm2412, %v2670, 0.0
  %2798 = vadd.xlane.f32.xlu0 %v2797
  %v2799 = vpop.xlane.xlu0 %2798
  %v2800 = vsel %vm2412, %v2672, 0.0
  %2801 = vadd.xlane.f32.xlu0 %v2800
  %v2802 = vpop.xlane.xlu0 %2801
  %v2803 = vsel %vm2412, %v2674, 0.0
  %2804 = vadd.xlane.f32.xlu0 %v2803
  %v2805 = vpop.xlane.xlu0 %2804
  %v2806 = vsel %vm2412, %v2676, 0.0
  %2807 = vadd.xlane.f32.xlu0 %v2806
  %v2808 = vpop.xlane.xlu0 %2807
  %v2809 = vsel %vm2412, %v2678, 0.0
  %2810 = vadd.xlane.f32.xlu0 %v2809
  %v2811 = vpop.xlane.xlu0 %2810
  %v2812 = vsel %vm2412, %v2680, 0.0
  %2813 = vadd.xlane.f32.xlu0 %v2812
  %v2814 = vpop.xlane.xlu0 %2813
  %v2815 = vsel %vm2412, %v2682, 0.0
  %2816 = vadd.xlane.f32.xlu0 %v2815
  %v2817 = vpop.xlane.xlu0 %2816
  %v2818 = vsel %vm2412, %v2684, 0.0
  %2819 = vadd.xlane.f32.xlu0 %v2818
  %v2820 = vpop.xlane.xlu0 %2819
  %v2821 = vsel %vm2412, %v2686, 0.0
  %2822 = vadd.xlane.f32.xlu0 %v2821
  %v2823 = vpop.xlane.xlu0 %2822
  %v2824 = vsel %vm2412, %v2688, 0.0
  %2825 = vadd.xlane.f32.xlu0 %v2824
  %v2826 = vpop.xlane.xlu0 %2825
  %v2827 = vsel %vm2412, %v2690, 0.0
  %2828 = vadd.xlane.f32.xlu0 %v2827
  %v2829 = vpop.xlane.xlu0 %2828
  %v2830 = vsel %vm2412, %v2692, 0.0
  %2831 = vadd.xlane.f32.xlu0 %v2830
  %v2832 = vpop.xlane.xlu0 %2831
  %v2833 = vsel %vm2412, %v2694, 0.0
  %2834 = vadd.xlane.f32.xlu0 %v2833
  %v2835 = vpop.xlane.xlu0 %2834
  %v2836 = vsel %vm2412, %v2696, 0.0
  %2837 = vadd.xlane.f32.xlu0 %v2836
  %v2838 = vpop.xlane.xlu0 %2837
  %v2839 = vsel %vm2412, %v2698, 0.0
  %2840 = vadd.xlane.f32.xlu0 %v2839
  %v2841 = vpop.xlane.xlu0 %2840
  %v2842 = vsel %vm2412, %v2700, 0.0
  %2843 = vadd.xlane.f32.xlu0 %v2842
  %v2844 = vpop.xlane.xlu0 %2843
  %v2845 = vsel %vm2412, %v2702, 0.0
  %2846 = vadd.xlane.f32.xlu0 %v2845
  %v2847 = vpop.xlane.xlu0 %2846
  %v2848 = vsel %vm2412, %v2704, 0.0
  %2849 = vadd.xlane.f32.xlu0 %v2848
  %v2850 = vpop.xlane.xlu0 %2849
  %v2851 = vsel %vm2412, %v2706, 0.0
  %2852 = vadd.xlane.f32.xlu0 %v2851
  %v2853 = vpop.xlane.xlu0 %2852
  %v2854 = vsel %vm2412, %v2708, 0.0
  %2855 = vadd.xlane.f32.xlu0 %v2854
  %v2856 = vpop.xlane.xlu0 %2855
  %v2857 = vsel %vm2412, %v2710, 0.0
  %2858 = vadd.xlane.f32.xlu0 %v2857
  %v2859 = vpop.xlane.xlu0 %2858
  %v2860 = vsel %vm2412, %v2712, 0.0
  %2861 = vadd.xlane.f32.xlu0 %v2860
  %v2862 = vpop.xlane.xlu0 %2861
  %v2863 = vsel %vm2412, %v2714, 0.0
  %2864 = vadd.xlane.f32.xlu0 %v2863
  %v2865 = vpop.xlane.xlu0 %2864
  %v2866 = vsel %vm2412, %v2716, 0.0
  %2867 = vadd.xlane.f32.xlu0 %v2866
  %v2868 = vpop.xlane.xlu0 %2867
  %v2869 = vsel %vm2412, %v2718, 0.0
  %2870 = vadd.xlane.f32.xlu0 %v2869
  %v2871 = vpop.xlane.xlu0 %2870
  %v2872 = vsel %vm2412, %v2720, 0.0
  %2873 = vadd.xlane.f32.xlu0 %v2872
  %v2874 = vpop.xlane.xlu0 %2873
  %v2875 = vsel %vm2412, %v2722, 0.0
  %2876 = vadd.xlane.f32.xlu0 %v2875
  %v2877 = vpop.xlane.xlu0 %2876
  %v2878 = vsel %vm2412, %v2724, 0.0
  %2879 = vadd.xlane.f32.xlu0 %v2878
  %v2880 = vpop.xlane.xlu0 %2879
  %v2881 = vsel %vm2412, %v2726, 0.0
  %2882 = vadd.xlane.f32.xlu0 %v2881
  %v2883 = vpop.xlane.xlu0 %2882
  %v2884 = vsel %vm2412, %v2728, 0.0
  %2885 = vadd.xlane.f32.xlu0 %v2884
  %v2886 = vpop.xlane.xlu0 %2885
  %v2887 = vsel %vm2412, %v2730, 0.0
  %2888 = vadd.xlane.f32.xlu0 %v2887
  %v2889 = vpop.xlane.xlu0 %2888
  %v2890 = vsel %vm2412, %v2732, 0.0
  %2891 = vadd.xlane.f32.xlu0 %v2890
  %v2892 = vpop.xlane.xlu0 %2891
  %v2893 = vsel %vm2412, %v2734, 0.0
  %2894 = vadd.xlane.f32.xlu0 %v2893
  %v2895 = vpop.xlane.xlu0 %2894
  %v2896 = vsel %vm2412, %v2736, 0.0
  %2897 = vadd.xlane.f32.xlu0 %v2896
  %v2898 = vpop.xlane.xlu0 %2897
  %v2899 = vsel %vm2412, %v2738, 0.0
  %2900 = vadd.xlane.f32.xlu0 %v2899
  %v2901 = vpop.xlane.xlu0 %2900
  %v2902 = vsel %vm2412, %v2740, 0.0
  %2903 = vadd.xlane.f32.xlu0 %v2902
  %v2904 = vpop.xlane.xlu0 %2903
  %v2905 = vsel %vm2412, %v2742, 0.0
  %2906 = vadd.xlane.f32.xlu0 %v2905
  %v2907 = vpop.xlane.xlu0 %2906
  %v2908 = vsel %vm2412, %v2744, 0.0
  %2909 = vadd.xlane.f32.xlu0 %v2908
  %v2910 = vpop.xlane.xlu0 %2909
  %v2911 = vsel %vm2412, %v2746, 0.0
  %2912 = vadd.xlane.f32.xlu0 %v2911
  %v2913 = vpop.xlane.xlu0 %2912
  %v2914 = vsel %vm2412, %v2748, 0.0
  %2915 = vadd.xlane.f32.xlu0 %v2914
  %v2916 = vpop.xlane.xlu0 %2915
  %v2917 = vsel %vm2412, %v2750, 0.0
  %2918 = vadd.xlane.f32.xlu0 %v2917
  %v2919 = vpop.xlane.xlu0 %2918
  %v2920 = vsel %vm2412, %v2752, 0.0
  %2921 = vadd.xlane.f32.xlu0 %v2920
  %v2922 = vpop.xlane.xlu0 %2921
  %v2923 = vsel %vm2412, %v2754, 0.0
  %2924 = vadd.xlane.f32.xlu0 %v2923
  %v2925 = vpop.xlane.xlu0 %2924
  %v2926 = vsel %vm2412, %v2756, 0.0
  %2927 = vadd.xlane.f32.xlu0 %v2926
  %v2928 = vpop.xlane.xlu0 %2927
  %v2929 = vsel %vm2412, %v2758, 0.0
  %2930 = vadd.xlane.f32.xlu0 %v2929
  %v2931 = vpop.xlane.xlu0 %2930
  %v2932 = vsel %vm2412, %v2760, 0.0
  %2933 = vadd.xlane.f32.xlu0 %v2932
  %v2934 = vpop.xlane.xlu0 %2933
  %v2935 = vsel %vm2412, %v2762, 0.0
  %2936 = vadd.xlane.f32.xlu0 %v2935
  %v2937 = vpop.xlane.xlu0 %2936
  %v2938 = vsel %vm2412, %v2764, 0.0
  %2939 = vadd.xlane.f32.xlu0 %v2938
  %v2940 = vpop.xlane.xlu0 %2939
  %v2941 = vsel %vm2412, %v2766, 0.0
  %2942 = vadd.xlane.f32.xlu0 %v2941
  %v2943 = vpop.xlane.xlu0 %2942
  %v2944 = vsel %vm2412, %v2768, 0.0
  %2945 = vadd.xlane.f32.xlu0 %v2944
  %v2946 = vpop.xlane.xlu0 %2945
  %v2947 = vsel %vm2412, %v2770, 0.0
  %2948 = vadd.xlane.f32.xlu0 %v2947
  %v2949 = vpop.xlane.xlu0 %2948
  %v2950 = vsel %vm2412, %v2772, 0.0
  %2951 = vadd.xlane.f32.xlu0 %v2950
  %v2952 = vpop.xlane.xlu0 %2951
  %v2953 = vsel %vm2412, %v2774, 0.0
  %2954 = vadd.xlane.f32.xlu0 %v2953
  %v2955 = vpop.xlane.xlu0 %2954
  %v2956 = vsel %vm2412, %v2776, 0.0
  %2957 = vadd.xlane.f32.xlu0 %v2956
  %v2958 = vpop.xlane.xlu0 %2957
  %v2959 = vsel %vm2412, %v2778, 0.0
  %2960 = vadd.xlane.f32.xlu0 %v2959
  %v2961 = vpop.xlane.xlu0 %2960
  %v2962 = vsel %vm2412, %v2780, 0.0
  %2963 = vadd.xlane.f32.xlu0 %v2962
  %v2964 = vpop.xlane.xlu0 %2963
  %v2965 = vsel %vm2412, %v2782, 0.0
  %2966 = vadd.xlane.f32.xlu0 %v2965
  %v2967 = vpop.xlane.xlu0 %2966
  %v2968 = vsel %vm2412, %v2784, 0.0
  %2969 = vadd.xlane.f32.xlu0 %v2968
  %v2970 = vpop.xlane.xlu0 %2969
  %v2971 = vsel %vm2412, %v2786, 0.0
  %2972 = vadd.xlane.f32.xlu0 %v2971
  %v2973 = vpop.xlane.xlu0 %2972
  %v2974 = vsel %vm2412, %v2788, 0.0
  %2975 = vadd.xlane.f32.xlu0 %v2974
  %v2976 = vpop.xlane.xlu0 %2975
  %v2977 = vsel %vm2412, %v2790, 0.0
  %2978 = vadd.xlane.f32.xlu0 %v2977
  %v2979 = vpop.xlane.xlu0 %2978
  %v2980 = vsel %vm2412, %v2792, 0.0
  %2981 = vadd.xlane.f32.xlu0 %v2980
  %v2982 = vpop.xlane.xlu0 %2981
  %v2983 = vsel %vm2412, %v2794, 0.0
  %2984 = vadd.xlane.f32.xlu0 %v2983
  %v2985 = vpop.xlane.xlu0 %2984
  %v2986 = vsel %vm2412, %v2796, 0.0
  %2987 = vadd.xlane.f32.xlu0 %v2986
  %v2988 = vpop.xlane.xlu0 %2987
  %v2989 = vrcp.pop %v2799
  %v2990 = vrcp.pop %v2802
  %v2991 = vrcp.pop %v2805
  %v2992 = vrcp.pop %v2808
  %v2993 = vrcp.pop %v2811
  %v2994 = vrcp.pop %v2814
  %v2995 = vrcp.pop %v2817
  %v2996 = vrcp.pop %v2820
  %v2997 = vrcp.pop %v2823
  %v2998 = vrcp.pop %v2826
  %v2999 = vrcp.pop %v2829
  %v3000 = vrcp.pop %v2832
  %v3001 = vrcp.pop %v2835
  %v3002 = vrcp.pop %v2838
  %v3003 = vrcp.pop %v2841
  %v3004 = vrcp.pop %v2844
  %v3005 = vrcp.pop %v2847
  %v3006 = vrcp.pop %v2850
  %v3007 = vrcp.pop %v2853
  %v3008 = vrcp.pop %v2856
  %v3009 = vrcp.pop %v2859
  %v3010 = vrcp.pop %v2862
  %v3011 = vrcp.pop %v2865
  %v3012 = vrcp.pop %v2868
  %v3013 = vrcp.pop %v2871
  %v3014 = vrcp.pop %v2874
  %v3015 = vrcp.pop %v2877
  %v3016 = vrcp.pop %v2880
  %v3017 = vrcp.pop %v2883
  %v3018 = vrcp.pop %v2886
  %v3019 = vrcp.pop %v2889
  %v3020 = vrcp.pop %v2892
  %v3021 = vrcp.pop %v2895
  %v3022 = vrcp.pop %v2898
  %v3023 = vrcp.pop %v2901
  %v3024 = vrcp.pop %v2904
  %v3025 = vrcp.pop %v2907
  %v3026 = vrcp.pop %v2910
  %v3027 = vrcp.pop %v2913
  %v3028 = vrcp.pop %v2916
  %v3029 = vrcp.pop %v2919
  %v3030 = vrcp.pop %v2922
  %v3031 = vrcp.pop %v2925
  %v3032 = vrcp.pop %v2928
  %v3033 = vrcp.pop %v2931
  %v3034 = vrcp.pop %v2934
  %v3035 = vrcp.pop %v2937
  %v3036 = vrcp.pop %v2940
  %v3037 = vrcp.pop %v2943
  %v3038 = vrcp.pop %v2946
  %v3039 = vrcp.pop %v2949
  %v3040 = vrcp.pop %v2952
  %v3041 = vrcp.pop %v2955
  %v3042 = vrcp.pop %v2958
  %v3043 = vrcp.pop %v2961
  %v3044 = vrcp.pop %v2964
  %v3045 = vrcp.pop %v2967
  %v3046 = vrcp.pop %v2970
  %v3047 = vrcp.pop %v2973
  %v3048 = vrcp.pop %v2976
  %v3049 = vrcp.pop %v2979
  %v3050 = vrcp.pop %v2982
  %v3051 = vrcp.pop %v2985
  %v3052 = vrcp.pop %v2988
  %v3053 = vmul.f32 %v2670, %v2989
  %v3054 = vmul.f32 %v2672, %v2990
  %v3055 = vmul.f32 %v2674, %v2991
  %v3056 = vmul.f32 %v2676, %v2992
  %v3057 = vmul.f32 %v2678, %v2993
  %v3058 = vmul.f32 %v2680, %v2994
  %v3059 = vmul.f32 %v2682, %v2995
  %v3060 = vmul.f32 %v2684, %v2996
  %v3061 = vmul.f32 %v2686, %v2997
  %v3062 = vmul.f32 %v2688, %v2998
  %v3063 = vmul.f32 %v2690, %v2999
  %v3064 = vmul.f32 %v2692, %v3000
  %v3065 = vmul.f32 %v2694, %v3001
  %v3066 = vmul.f32 %v2696, %v3002
  %v3067 = vmul.f32 %v2698, %v3003
  %v3068 = vmul.f32 %v2700, %v3004
  %v3069 = vmul.f32 %v2702, %v3005
  %v3070 = vmul.f32 %v2704, %v3006
  %v3071 = vmul.f32 %v2706, %v3007
  %v3072 = vmul.f32 %v2708, %v3008
  %v3073 = vmul.f32 %v2710, %v3009
  %v3074 = vmul.f32 %v2712, %v3010
  %v3075 = vmul.f32 %v2714, %v3011
  %v3076 = vmul.f32 %v2716, %v3012
  %v3077 = vmul.f32 %v2718, %v3013
  %v3078 = vmul.f32 %v2720, %v3014
  %v3079 = vmul.f32 %v2722, %v3015
  %v3080 = vmul.f32 %v2724, %v3016
  %v3081 = vmul.f32 %v2726, %v3017
  %v3082 = vmul.f32 %v2728, %v3018
  %v3083 = vmul.f32 %v2730, %v3019
  %v3084 = vmul.f32 %v2732, %v3020
  %v3085 = vmul.f32 %v2734, %v3021
  %v3086 = vmul.f32 %v2736, %v3022
  %v3087 = vmul.f32 %v2738, %v3023
  %v3088 = vmul.f32 %v2740, %v3024
  %v3089 = vmul.f32 %v2742, %v3025
  %v3090 = vmul.f32 %v2744, %v3026
  %v3091 = vmul.f32 %v2746, %v3027
  %v3092 = vmul.f32 %v2748, %v3028
  %v3093 = vmul.f32 %v2750, %v3029
  %v3094 = vmul.f32 %v2752, %v3030
  %v3095 = vmul.f32 %v2754, %v3031
  %v3096 = vmul.f32 %v2756, %v3032
  %v3097 = vmul.f32 %v2758, %v3033
  %v3098 = vmul.f32 %v2760, %v3034
  %v3099 = vmul.f32 %v2762, %v3035
  %v3100 = vmul.f32 %v2764, %v3036
  %v3101 = vmul.f32 %v2766, %v3037
  %v3102 = vmul.f32 %v2768, %v3038
  %v3103 = vmul.f32 %v2770, %v3039
  %v3104 = vmul.f32 %v2772, %v3040
  %v3105 = vmul.f32 %v2774, %v3041
  %v3106 = vmul.f32 %v2776, %v3042
  %v3107 = vmul.f32 %v2778, %v3043
  %v3108 = vmul.f32 %v2780, %v3044
  %v3109 = vmul.f32 %v2782, %v3045
  %v3110 = vmul.f32 %v2784, %v3046
  %v3111 = vmul.f32 %v2786, %v3047
  %v3112 = vmul.f32 %v2788, %v3048
  %v3113 = vmul.f32 %v2790, %v3049
  %v3114 = vmul.f32 %v2792, %v3050
  %v3115 = vmul.f32 %v2794, %v3051
  %v3116 = vmul.f32 %v2796, %v3052
  %v3117 = vpack.c.bf16 %v3054, %v3053
  %v3118 = vpack.c.bf16 %v3056, %v3055
  %v3119 = vpack.c.bf16 %v3058, %v3057
  %v3120 = vpack.c.bf16 %v3060, %v3059
  %v3121 = vpack.c.bf16 %v3062, %v3061
  %v3122 = vpack.c.bf16 %v3064, %v3063
  %v3123 = vpack.c.bf16 %v3066, %v3065
  %v3124 = vpack.c.bf16 %v3068, %v3067
  %v3125 = vpack.c.bf16 %v3070, %v3069
  %v3126 = vpack.c.bf16 %v3072, %v3071
  %v3127 = vpack.c.bf16 %v3074, %v3073
  %v3128 = vpack.c.bf16 %v3076, %v3075
  %v3129 = vpack.c.bf16 %v3078, %v3077
  %v3130 = vpack.c.bf16 %v3080, %v3079
  %v3131 = vpack.c.bf16 %v3082, %v3081
  %v3132 = vpack.c.bf16 %v3084, %v3083
  %v3133 = vpack.c.bf16 %v3086, %v3085
  %v3134 = vpack.c.bf16 %v3088, %v3087
  %v3135 = vpack.c.bf16 %v3090, %v3089
  %v3136 = vpack.c.bf16 %v3092, %v3091
  %v3137 = vpack.c.bf16 %v3094, %v3093
  %v3138 = vpack.c.bf16 %v3096, %v3095
  %v3139 = vpack.c.bf16 %v3098, %v3097
  %v3140 = vpack.c.bf16 %v3100, %v3099
  %v3141 = vpack.c.bf16 %v3102, %v3101
  %v3142 = vpack.c.bf16 %v3104, %v3103
  %v3143 = vpack.c.bf16 %v3106, %v3105
  %v3144 = vpack.c.bf16 %v3108, %v3107
  %v3145 = vpack.c.bf16 %v3110, %v3109
  %v3146 = vpack.c.bf16 %v3112, %v3111
  %v3147 = vpack.c.bf16 %v3114, %v3113
  %v3148 = vpack.c.bf16 %v3116, %v3115
  %3149 = vrot.lane.b32.xlu0 %v641, 64
  %v3150 = vpop.permute.xlu0 %3149
  %v3153 = vsel %vm2412, %v3117, 0
  %3155 = vmatprep.subr.bf16.mxu0 0
  %3156 = vmatpush1.bf16.msra.mxu0 %v3150
  %3157 = vmatprep.subr.bf16.mxu0 0
  %3158 = vmatpush1.bf16.msra.mxu0 0
  %3159 = vmatprep.subr.bf16.mxu0 0
  %3160 = vmatpush1.bf16.msra.mxu0 0
  %3161 = vmatprep.subr.bf16.mxu0 0
  %3162 = vmatpush1.bf16.msra.mxu0 0
  %3163 = vmatprep.subr.bf16.mxu0 0
  %3164 = vmatpush1.bf16.msra.mxu0 0
  %3165 = vmatprep.subr.bf16.mxu0 0
  %3166 = vmatpush1.bf16.msra.mxu0 0
  %3167 = vmatprep.subr.bf16.mxu0 0
  %3168 = vmatpush1.bf16.msra.mxu0 0
  %3169 = vmatprep.subr.bf16.mxu0 0
  %3170 = vmatpush1.bf16.msra.mxu0 0
  %3171 = vmatprep.subr.bf16.mxu0 0
  %3172 = vmatpush1.bf16.msra.mxu0 0
  %3173 = vmatprep.subr.bf16.mxu0 0
  %3174 = vmatpush1.bf16.msra.mxu0 0
  %3175 = vmatprep.subr.bf16.mxu0 0
  %3176 = vmatpush1.bf16.msra.mxu0 0
  %3177 = vmatprep.subr.bf16.mxu0 0
  %3178 = vmatpush1.bf16.msra.mxu0 0
  %3179 = vmatprep.subr.bf16.mxu0 0
  %3180 = vmatpush1.bf16.msra.mxu0 0
  %3181 = vmatprep.subr.bf16.mxu0 0
  %3182 = vmatpush1.bf16.msra.mxu0 0
  %3183 = vmatprep.subr.bf16.mxu0 0
  %3184 = vmatpush1.bf16.msra.mxu0 0
  %3185 = vmatprep.subr.bf16.mxu0 0
  %3186 = vmatpush1.bf16.msra.mxu0 0
  %3187 = vmatprep.mubr.bf16.mxu0 0
  %3188 = vmatmul.mubr.bf16.gmra.mrb[0].mxu0 %v3153
  %v3189 = vpop.f32.mrb[0].mxu0
  %v3190 = vadd.f32 0.0, %v3189
  %v3191 = vpop.f32.mrb[0].mxu0
  %v3192 = vpop.f32.mrb[0].mxu0
  %v3193 = vadd.f32 0.0, %v3192
  %v3194 = vpop.f32.mrb[0].mxu0
  %3195 = vdwg.mxu0
  %3196 = vrot.lane.b32.xlu0 %v642, 64
  %v3197 = vpop.permute.xlu0 %3196
  %v3200 = vsel %vm2412, %v3118, 0
  %3202 = vmatprep.subr.bf16.mxu0 0
  %3203 = vmatpush1.bf16.msra.mxu0 %v3197
  %3204 = vmatprep.subr.bf16.mxu0 0
  %3205 = vmatpush1.bf16.msra.mxu0 0
  %3206 = vmatprep.subr.bf16.mxu0 0
  %3207 = vmatpush1.bf16.msra.mxu0 0
  %3208 = vmatprep.subr.bf16.mxu0 0
  %3209 = vmatpush1.bf16.msra.mxu0 0
  %3210 = vmatprep.subr.bf16.mxu0 0
  %3211 = vmatpush1.bf16.msra.mxu0 0
  %3212 = vmatprep.subr.bf16.mxu0 0
  %3213 = vmatpush1.bf16.msra.mxu0 0
  %3214 = vmatprep.subr.bf16.mxu0 0
  %3215 = vmatpush1.bf16.msra.mxu0 0
  %3216 = vmatprep.subr.bf16.mxu0 0
  %3217 = vmatpush1.bf16.msra.mxu0 0
  %3218 = vmatprep.subr.bf16.mxu0 0
  %3219 = vmatpush1.bf16.msra.mxu0 0
  %3220 = vmatprep.subr.bf16.mxu0 0
  %3221 = vmatpush1.bf16.msra.mxu0 0
  %3222 = vmatprep.subr.bf16.mxu0 0
  %3223 = vmatpush1.bf16.msra.mxu0 0
  %3224 = vmatprep.subr.bf16.mxu0 0
  %3225 = vmatpush1.bf16.msra.mxu0 0
  %3226 = vmatprep.subr.bf16.mxu0 0
  %3227 = vmatpush1.bf16.msra.mxu0 0
  %3228 = vmatprep.subr.bf16.mxu0 0
  %3229 = vmatpush1.bf16.msra.mxu0 0
  %3230 = vmatprep.subr.bf16.mxu0 0
  %3231 = vmatpush1.bf16.msra.mxu0 0
  %3232 = vmatprep.subr.bf16.mxu0 0
  %3233 = vmatpush1.bf16.msra.mxu0 0
  %3234 = vmatprep.mubr.bf16.mxu0 0
  %3235 = vmatmul.mubr.bf16.gmra.mrb[0].mxu0 %v3200
  %v3236 = vpop.f32.mrb[0].mxu0
  %v3237 = vadd.f32 0.0, %v3236
  %v3238 = vpop.f32.mrb[0].mxu0
  %v3239 = vpop.f32.mrb[0].mxu0
  %v3240 = vadd.f32 0.0, %v3239
  %v3241 = vpop.f32.mrb[0].mxu0
  %3242 = vdwg.mxu0
  %3243 = vrot.lane.b32.xlu0 %v643, 64
  %v3244 = vpop.permute.xlu0 %3243
  %v3247 = vsel %vm2412, %v3119, 0
  %3249 = vmatprep.subr.bf16.mxu0 0
  %3250 = vmatpush1.bf16.msra.mxu0 %v3244
  %3251 = vmatprep.subr.bf16.mxu0 0
  %3252 = vmatpush1.bf16.msra.mxu0 0
  %3253 = vmatprep.subr.bf16.mxu0 0
  %3254 = vmatpush1.bf16.msra.mxu0 0
  %3255 = vmatprep.subr.bf16.mxu0 0
  %3256 = vmatpush1.bf16.msra.mxu0 0
  %3257 = vmatprep.subr.bf16.mxu0 0
  %3258 = vmatpush1.bf16.msra.mxu0 0
  %3259 = vmatprep.subr.bf16.mxu0 0
  %3260 = vmatpush1.bf16.msra.mxu0 0
  %3261 = vmatprep.subr.bf16.mxu0 0
  %3262 = vmatpush1.bf16.msra.mxu0 0
  %3263 = vmatprep.subr.bf16.mxu0 0
  %3264 = vmatpush1.bf16.msra.mxu0 0
  %3265 = vmatprep.subr.bf16.mxu0 0
  %3266 = vmatpush1.bf16.msra.mxu0 0
  %3267 = vmatprep.subr.bf16.mxu0 0
  %3268 = vmatpush1.bf16.msra.mxu0 0
  %3269 = vmatprep.subr.bf16.mxu0 0
  %3270 = vmatpush1.bf16.msra.mxu0 0
  %3271 = vmatprep.subr.bf16.mxu0 0
  %3272 = vmatpush1.bf16.msra.mxu0 0
  %3273 = vmatprep.subr.bf16.mxu0 0
  %3274 = vmatpush1.bf16.msra.mxu0 0
  %3275 = vmatprep.subr.bf16.mxu0 0
  %3276 = vmatpush1.bf16.msra.mxu0 0
  %3277 = vmatprep.subr.bf16.mxu0 0
  %3278 = vmatpush1.bf16.msra.mxu0 0
  %3279 = vmatprep.subr.bf16.mxu0 0
  %3280 = vmatpush1.bf16.msra.mxu0 0
  %3281 = vmatprep.mubr.bf16.mxu0 0
  %3282 = vmatmul.mubr.bf16.gmra.mrb[0].mxu0 %v3247
  %v3283 = vpop.f32.mrb[0].mxu0
  %v3284 = vadd.f32 0.0, %v3283
  %v3285 = vpop.f32.mrb[0].mxu0
  %v3286 = vpop.f32.mrb[0].mxu0
  %v3287 = vadd.f32 0.0, %v3286
  %v3288 = vpop.f32.mrb[0].mxu0
  %3289 = vdwg.mxu0
  %3290 = vrot.lane.b32.xlu0 %v644, 64
  %v3291 = vpop.permute.xlu0 %3290
  %v3294 = vsel %vm2412, %v3120, 0
  %3296 = vmatprep.subr.bf16.mxu0 0
  %3297 = vmatpush1.bf16.msra.mxu0 %v3291
  %3298 = vmatprep.subr.bf16.mxu0 0
  %3299 = vmatpush1.bf16.msra.mxu0 0
  %3300 = vmatprep.subr.bf16.mxu0 0
  %3301 = vmatpush1.bf16.msra.mxu0 0
  %3302 = vmatprep.subr.bf16.mxu0 0
  %3303 = vmatpush1.bf16.msra.mxu0 0
  %3304 = vmatprep.subr.bf16.mxu0 0
  %3305 = vmatpush1.bf16.msra.mxu0 0
  %3306 = vmatprep.subr.bf16.mxu0 0
  %3307 = vmatpush1.bf16.msra.mxu0 0
  %3308 = vmatprep.subr.bf16.mxu0 0
  %3309 = vmatpush1.bf16.msra.mxu0 0
  %3310 = vmatprep.subr.bf16.mxu0 0
  %3311 = vmatpush1.bf16.msra.mxu0 0
  %3312 = vmatprep.subr.bf16.mxu0 0
  %3313 = vmatpush1.bf16.msra.mxu0 0
  %3314 = vmatprep.subr.bf16.mxu0 0
  %3315 = vmatpush1.bf16.msra.mxu0 0
  %3316 = vmatprep.subr.bf16.mxu0 0
  %3317 = vmatpush1.bf16.msra.mxu0 0
  %3318 = vmatprep.subr.bf16.mxu0 0
  %3319 = vmatpush1.bf16.msra.mxu0 0
  %3320 = vmatprep.subr.bf16.mxu0 0
  %3321 = vmatpush1.bf16.msra.mxu0 0
  %3322 = vmatprep.subr.bf16.mxu0 0
  %3323 = vmatpush1.bf16.msra.mxu0 0
  %3324 = vmatprep.subr.bf16.mxu0 0
  %3325 = vmatpush1.bf16.msra.mxu0 0
  %3326 = vmatprep.subr.bf16.mxu0 0
  %3327 = vmatpush1.bf16.msra.mxu0 0
  %3328 = vmatprep.mubr.bf16.mxu0 0
  %3329 = vmatmul.mubr.bf16.gmra.mrb[0].mxu0 %v3294
  %v3330 = vpop.f32.mrb[0].mxu0
  %v3331 = vadd.f32 0.0, %v3330
  %v3332 = vpop.f32.mrb[0].mxu0
  %v3333 = vpop.f32.mrb[0].mxu0
  %v3334 = vadd.f32 0.0, %v3333
  %v3335 = vpop.f32.mrb[0].mxu0
  %3336 = vdwg.mxu0
  %3337 = vrot.lane.b32.xlu0 %v645, 64
  %v3338 = vpop.permute.xlu0 %3337
  %v3341 = vsel %vm2412, %v3121, 0
  %3343 = vmatprep.subr.bf16.mxu0 0
  %3344 = vmatpush1.bf16.msra.mxu0 %v3338
  %3345 = vmatprep.subr.bf16.mxu0 0
  %3346 = vmatpush1.bf16.msra.mxu0 0
  %3347 = vmatprep.subr.bf16.mxu0 0
  %3348 = vmatpush1.bf16.msra.mxu0 0
  %3349 = vmatprep.subr.bf16.mxu0 0
  %3350 = vmatpush1.bf16.msra.mxu0 0
  %3351 = vmatprep.subr.bf16.mxu0 0
  %3352 = vmatpush1.bf16.msra.mxu0 0
  %3353 = vmatprep.subr.bf16.mxu0 0
  %3354 = vmatpush1.bf16.msra.mxu0 0
  %3355 = vmatprep.subr.bf16.mxu0 0
  %3356 = vmatpush1.bf16.msra.mxu0 0
  %3357 = vmatprep.subr.bf16.mxu0 0
  %3358 = vmatpush1.bf16.msra.mxu0 0
  %3359 = vmatprep.subr.bf16.mxu0 0
  %3360 = vmatpush1.bf16.msra.mxu0 0
  %3361 = vmatprep.subr.bf16.mxu0 0
  %3362 = vmatpush1.bf16.msra.mxu0 0
  %3363 = vmatprep.subr.bf16.mxu0 0
  %3364 = vmatpush1.bf16.msra.mxu0 0
  %3365 = vmatprep.subr.bf16.mxu0 0
  %3366 = vmatpush1.bf16.msra.mxu0 0
  %3367 = vmatprep.subr.bf16.mxu0 0
  %3368 = vmatpush1.bf16.msra.mxu0 0
  %3369 = vmatprep.subr.bf16.mxu0 0
  %3370 = vmatpush1.bf16.msra.mxu0 0
  %3371 = vmatprep.subr.bf16.mxu0 0
  %3372 = vmatpush1.bf16.msra.mxu0 0
  %3373 = vmatprep.subr.bf16.mxu0 0
  %3374 = vmatpush1.bf16.msra.mxu0 0
  %3375 = vmatprep.mubr.bf16.mxu0 0
  %3376 = vmatmul.mubr.bf16.gmra.mrb[0].mxu0 %v3341
  %v3377 = vpop.f32.mrb[0].mxu0
  %v3378 = vadd.f32 0.0, %v3377
  %v3379 = vpop.f32.mrb[0].mxu0
  %v3380 = vpop.f32.mrb[0].mxu0
  %v3381 = vadd.f32 0.0, %v3380
  %v3382 = vpop.f32.mrb[0].mxu0
  %3383 = vdwg.mxu0
  %3384 = vrot.lane.b32.xlu0 %v646, 64
  %v3385 = vpop.permute.xlu0 %3384
  %v3388 = vsel %vm2412, %v3122, 0
  %3390 = vmatprep.subr.bf16.mxu0 0
  %3391 = vmatpush1.bf16.msra.mxu0 %v3385
  %3392 = vmatprep.subr.bf16.mxu0 0
  %3393 = vmatpush1.bf16.msra.mxu0 0
  %3394 = vmatprep.subr.bf16.mxu0 0
  %3395 = vmatpush1.bf16.msra.mxu0 0
  %3396 = vmatprep.subr.bf16.mxu0 0
  %3397 = vmatpush1.bf16.msra.mxu0 0
  %3398 = vmatprep.subr.bf16.mxu0 0
  %3399 = vmatpush1.bf16.msra.mxu0 0
  %3400 = vmatprep.subr.bf16.mxu0 0
  %3401 = vmatpush1.bf16.msra.mxu0 0
  %3402 = vmatprep.subr.bf16.mxu0 0
  %3403 = vmatpush1.bf16.msra.mxu0 0
  %3404 = vmatprep.subr.bf16.mxu0 0
  %3405 = vmatpush1.bf16.msra.mxu0 0
  %3406 = vmatprep.subr.bf16.mxu0 0
  %3407 = vmatpush1.bf16.msra.mxu0 0
  %3408 = vmatprep.subr.bf16.mxu0 0
  %3409 = vmatpush1.bf16.msra.mxu0 0
  %3410 = vmatprep.subr.bf16.mxu0 0
  %3411 = vmatpush1.bf16.msra.mxu0 0
  %3412 = vmatprep.subr.bf16.mxu0 0
  %3413 = vmatpush1.bf16.msra.mxu0 0
  %3414 = vmatprep.subr.bf16.mxu0 0
  %3415 = vmatpush1.bf16.msra.mxu0 0
  %3416 = vmatprep.subr.bf16.mxu0 0
  %3417 = vmatpush1.bf16.msra.mxu0 0
  %3418 = vmatprep.subr.bf16.mxu0 0
  %3419 = vmatpush1.bf16.msra.mxu0 0
  %3420 = vmatprep.subr.bf16.mxu0 0
  %3421 = vmatpush1.bf16.msra.mxu0 0
  %3422 = vmatprep.mubr.bf16.mxu0 0
  %3423 = vmatmul.mubr.bf16.gmra.mrb[0].mxu0 %v3388
  %v3424 = vpop.f32.mrb[0].mxu0
  %v3425 = vadd.f32 0.0, %v3424
  %v3426 = vpop.f32.mrb[0].mxu0
  %v3427 = vpop.f32.mrb[0].mxu0
  %v3428 = vadd.f32 0.0, %v3427
  %v3429 = vpop.f32.mrb[0].mxu0
  %3430 = vdwg.mxu0
  %3431 = vrot.lane.b32.xlu0 %v647, 64
  %v3432 = vpop.permute.xlu0 %3431
  %v3435 = vsel %vm2412, %v3123, 0
  %3437 = vmatprep.subr.bf16.mxu0 0
  %3438 = vmatpush1.bf16.msra.mxu0 %v3432
  %3439 = vmatprep.subr.bf16.mxu0 0
  %3440 = vmatpush1.bf16.msra.mxu0 0
  %3441 = vmatprep.subr.bf16.mxu0 0
  %3442 = vmatpush1.bf16.msra.mxu0 0
  %3443 = vmatprep.subr.bf16.mxu0 0
  %3444 = vmatpush1.bf16.msra.mxu0 0
  %3445 = vmatprep.subr.bf16.mxu0 0
  %3446 = vmatpush1.bf16.msra.mxu0 0
  %3447 = vmatprep.subr.bf16.mxu0 0
  %3448 = vmatpush1.bf16.msra.mxu0 0
  %3449 = vmatprep.subr.bf16.mxu0 0
  %3450 = vmatpush1.bf16.msra.mxu0 0
  %3451 = vmatprep.subr.bf16.mxu0 0
  %3452 = vmatpush1.bf16.msra.mxu0 0
  %3453 = vmatprep.subr.bf16.mxu0 0
  %3454 = vmatpush1.bf16.msra.mxu0 0
  %3455 = vmatprep.subr.bf16.mxu0 0
  %3456 = vmatpush1.bf16.msra.mxu0 0
  %3457 = vmatprep.subr.bf16.mxu0 0
  %3458 = vmatpush1.bf16.msra.mxu0 0
  %3459 = vmatprep.subr.bf16.mxu0 0
  %3460 = vmatpush1.bf16.msra.mxu0 0
  %3461 = vmatprep.subr.bf16.mxu0 0
  %3462 = vmatpush1.bf16.msra.mxu0 0
  %3463 = vmatprep.subr.bf16.mxu0 0
  %3464 = vmatpush1.bf16.msra.mxu0 0
  %3465 = vmatprep.subr.bf16.mxu0 0
  %3466 = vmatpush1.bf16.msra.mxu0 0
  %3467 = vmatprep.subr.bf16.mxu0 0
  %3468 = vmatpush1.bf16.msra.mxu0 0
  %3469 = vmatprep.mubr.bf16.mxu0 0
  %3470 = vmatmul.mubr.bf16.gmra.mrb[0].mxu0 %v3435
  %v3471 = vpop.f32.mrb[0].mxu0
  %v3472 = vadd.f32 0.0, %v3471
  %v3473 = vpop.f32.mrb[0].mxu0
  %v3474 = vpop.f32.mrb[0].mxu0
  %v3475 = vadd.f32 0.0, %v3474
  %v3476 = vpop.f32.mrb[0].mxu0
  %3477 = vdwg.mxu0
  %3478 = vrot.lane.b32.xlu0 %v648, 64
  %v3479 = vpop.permute.xlu0 %3478
  %v3482 = vsel %vm2412, %v3124, 0
  %3484 = vmatprep.subr.bf16.mxu0 0
  %3485 = vmatpush1.bf16.msra.mxu0 %v3479
  %3486 = vmatprep.subr.bf16.mxu0 0
  %3487 = vmatpush1.bf16.msra.mxu0 0
  %3488 = vmatprep.subr.bf16.mxu0 0
  %3489 = vmatpush1.bf16.msra.mxu0 0
  %3490 = vmatprep.subr.bf16.mxu0 0
  %3491 = vmatpush1.bf16.msra.mxu0 0
  %3492 = vmatprep.subr.bf16.mxu0 0
  %3493 = vmatpush1.bf16.msra.mxu0 0
  %3494 = vmatprep.subr.bf16.mxu0 0
  %3495 = vmatpush1.bf16.msra.mxu0 0
  %3496 = vmatprep.subr.bf16.mxu0 0
  %3497 = vmatpush1.bf16.msra.mxu0 0
  %3498 = vmatprep.subr.bf16.mxu0 0
  %3499 = vmatpush1.bf16.msra.mxu0 0
  %3500 = vmatprep.subr.bf16.mxu0 0
  %3501 = vmatpush1.bf16.msra.mxu0 0
  %3502 = vmatprep.subr.bf16.mxu0 0
  %3503 = vmatpush1.bf16.msra.mxu0 0
  %3504 = vmatprep.subr.bf16.mxu0 0
  %3505 = vmatpush1.bf16.msra.mxu0 0
  %3506 = vmatprep.subr.bf16.mxu0 0
  %3507 = vmatpush1.bf16.msra.mxu0 0
  %3508 = vmatprep.subr.bf16.mxu0 0
  %3509 = vmatpush1.bf16.msra.mxu0 0
  %3510 = vmatprep.subr.bf16.mxu0 0
  %3511 = vmatpush1.bf16.msra.mxu0 0
  %3512 = vmatprep.subr.bf16.mxu0 0
  %3513 = vmatpush1.bf16.msra.mxu0 0
  %3514 = vmatprep.subr.bf16.mxu0 0
  %3515 = vmatpush1.bf16.msra.mxu0 0
  %3516 = vmatprep.mubr.bf16.mxu0 0
  %3517 = vmatmul.mubr.bf16.gmra.mrb[0].mxu0 %v3482
  %v3518 = vpop.f32.mrb[0].mxu0
  %v3519 = vadd.f32 0.0, %v3518
  %v3520 = vpop.f32.mrb[0].mxu0
  %v3521 = vpop.f32.mrb[0].mxu0
  %v3522 = vadd.f32 0.0, %v3521
  %v3523 = vpop.f32.mrb[0].mxu0
  %3524 = vdwg.mxu0
  %3525 = vrot.lane.b32.xlu0 %v649, 64
  %v3526 = vpop.permute.xlu0 %3525
  %v3529 = vsel %vm2412, %v3125, 0
  %3531 = vmatprep.subr.bf16.mxu0 0
  %3532 = vmatpush1.bf16.msra.mxu0 %v3526
  %3533 = vmatprep.subr.bf16.mxu0 0
  %3534 = vmatpush1.bf16.msra.mxu0 0
  %3535 = vmatprep.subr.bf16.mxu0 0
  %3536 = vmatpush1.bf16.msra.mxu0 0
  %3537 = vmatprep.subr.bf16.mxu0 0
  %3538 = vmatpush1.bf16.msra.mxu0 0
  %3539 = vmatprep.subr.bf16.mxu0 0
  %3540 = vmatpush1.bf16.msra.mxu0 0
  %3541 = vmatprep.subr.bf16.mxu0 0
  %3542 = vmatpush1.bf16.msra.mxu0 0
  %3543 = vmatprep.subr.bf16.mxu0 0
  %3544 = vmatpush1.bf16.msra.mxu0 0
  %3545 = vmatprep.subr.bf16.mxu0 0
  %3546 = vmatpush1.bf16.msra.mxu0 0
  %3547 = vmatprep.subr.bf16.mxu0 0
  %3548 = vmatpush1.bf16.msra.mxu0 0
  %3549 = vmatprep.subr.bf16.mxu0 0
  %3550 = vmatpush1.bf16.msra.mxu0 0
  %3551 = vmatprep.subr.bf16.mxu0 0
  %3552 = vmatpush1.bf16.msra.mxu0 0
  %3553 = vmatprep.subr.bf16.mxu0 0
  %3554 = vmatpush1.bf16.msra.mxu0 0
  %3555 = vmatprep.subr.bf16.mxu0 0
  %3556 = vmatpush1.bf16.msra.mxu0 0
  %3557 = vmatprep.subr.bf16.mxu0 0
  %3558 = vmatpush1.bf16.msra.mxu0 0
  %3559 = vmatprep.subr.bf16.mxu0 0
  %3560 = vmatpush1.bf16.msra.mxu0 0
  %3561 = vmatprep.subr.bf16.mxu0 0
  %3562 = vmatpush1.bf16.msra.mxu0 0
  %3563 = vmatprep.mubr.bf16.mxu0 0
  %3564 = vmatmul.mubr.bf16.gmra.mrb[0].mxu0 %v3529
  %v3565 = vpop.f32.mrb[0].mxu0
  %v3566 = vadd.f32 0.0, %v3565
  %v3567 = vpop.f32.mrb[0].mxu0
  %v3568 = vpop.f32.mrb[0].mxu0
  %v3569 = vadd.f32 0.0, %v3568
  %v3570 = vpop.f32.mrb[0].mxu0
  %3571 = vdwg.mxu0
  %3572 = vrot.lane.b32.xlu0 %v650, 64
  %v3573 = vpop.permute.xlu0 %3572
  %v3576 = vsel %vm2412, %v3126, 0
  %3578 = vmatprep.subr.bf16.mxu0 0
  %3579 = vmatpush1.bf16.msra.mxu0 %v3573
  %3580 = vmatprep.subr.bf16.mxu0 0
  %3581 = vmatpush1.bf16.msra.mxu0 0
  %3582 = vmatprep.subr.bf16.mxu0 0
  %3583 = vmatpush1.bf16.msra.mxu0 0
  %3584 = vmatprep.subr.bf16.mxu0 0
  %3585 = vmatpush1.bf16.msra.mxu0 0
  %3586 = vmatprep.subr.bf16.mxu0 0
  %3587 = vmatpush1.bf16.msra.mxu0 0
  %3588 = vmatprep.subr.bf16.mxu0 0
  %3589 = vmatpush1.bf16.msra.mxu0 0
  %3590 = vmatprep.subr.bf16.mxu0 0
  %3591 = vmatpush1.bf16.msra.mxu0 0
  %3592 = vmatprep.subr.bf16.mxu0 0
  %3593 = vmatpush1.bf16.msra.mxu0 0
  %3594 = vmatprep.subr.bf16.mxu0 0
  %3595 = vmatpush1.bf16.msra.mxu0 0
  %3596 = vmatprep.subr.bf16.mxu0 0
  %3597 = vmatpush1.bf16.msra.mxu0 0
  %3598 = vmatprep.subr.bf16.mxu0 0
  %3599 = vmatpush1.bf16.msra.mxu0 0
  %3600 = vmatprep.subr.bf16.mxu0 0
  %3601 = vmatpush1.bf16.msra.mxu0 0
  %3602 = vmatprep.subr.bf16.mxu0 0
  %3603 = vmatpush1.bf16.msra.mxu0 0
  %3604 = vmatprep.subr.bf16.mxu0 0
  %3605 = vmatpush1.bf16.msra.mxu0 0
  %3606 = vmatprep.subr.bf16.mxu0 0
  %3607 = vmatpush1.bf16.msra.mxu0 0
  %3608 = vmatprep.subr.bf16.mxu0 0
  %3609 = vmatpush1.bf16.msra.mxu0 0
  %3610 = vmatprep.mubr.bf16.mxu0 0
  %3611 = vmatmul.mubr.bf16.gmra.mrb[0].mxu0 %v3576
  %v3612 = vpop.f32.mrb[0].mxu0
  %v3613 = vadd.f32 0.0, %v3612
  %v3614 = vpop.f32.mrb[0].mxu0
  %v3615 = vpop.f32.mrb[0].mxu0
  %v3616 = vadd.f32 0.0, %v3615
  %v3617 = vpop.f32.mrb[0].mxu0
  %3618 = vdwg.mxu0
  %3619 = vrot.lane.b32.xlu0 %v651, 64
  %v3620 = vpop.permute.xlu0 %3619
  %v3623 = vsel %vm2412, %v3127, 0
  %3625 = vmatprep.subr.bf16.mxu0 0
  %3626 = vmatpush1.bf16.msra.mxu0 %v3620
  %3627 = vmatprep.subr.bf16.mxu0 0
  %3628 = vmatpush1.bf16.msra.mxu0 0
  %3629 = vmatprep.subr.bf16.mxu0 0
  %3630 = vmatpush1.bf16.msra.mxu0 0
  %3631 = vmatprep.subr.bf16.mxu0 0
  %3632 = vmatpush1.bf16.msra.mxu0 0
  %3633 = vmatprep.subr.bf16.mxu0 0
  %3634 = vmatpush1.bf16.msra.mxu0 0
  %3635 = vmatprep.subr.bf16.mxu0 0
  %3636 = vmatpush1.bf16.msra.mxu0 0
  %3637 = vmatprep.subr.bf16.mxu0 0
  %3638 = vmatpush1.bf16.msra.mxu0 0
  %3639 = vmatprep.subr.bf16.mxu0 0
  %3640 = vmatpush1.bf16.msra.mxu0 0
  %3641 = vmatprep.subr.bf16.mxu0 0
  %3642 = vmatpush1.bf16.msra.mxu0 0
  %3643 = vmatprep.subr.bf16.mxu0 0
  %3644 = vmatpush1.bf16.msra.mxu0 0
  %3645 = vmatprep.subr.bf16.mxu0 0
  %3646 = vmatpush1.bf16.msra.mxu0 0
  %3647 = vmatprep.subr.bf16.mxu0 0
  %3648 = vmatpush1.bf16.msra.mxu0 0
  %3649 = vmatprep.subr.bf16.mxu0 0
  %3650 = vmatpush1.bf16.msra.mxu0 0
  %3651 = vmatprep.subr.bf16.mxu0 0
  %3652 = vmatpush1.bf16.msra.mxu0 0
  %3653 = vmatprep.subr.bf16.mxu0 0
  %3654 = vmatpush1.bf16.msra.mxu0 0
  %3655 = vmatprep.subr.bf16.mxu0 0
  %3656 = vmatpush1.bf16.msra.mxu0 0
  %3657 = vmatprep.mubr.bf16.mxu0 0
  %3658 = vmatmul.mubr.bf16.gmra.mrb[0].mxu0 %v3623
  %v3659 = vpop.f32.mrb[0].mxu0
  %v3660 = vadd.f32 0.0, %v3659
  %v3661 = vpop.f32.mrb[0].mxu0
  %v3662 = vpop.f32.mrb[0].mxu0
  %v3663 = vadd.f32 0.0, %v3662
  %v3664 = vpop.f32.mrb[0].mxu0
  %3665 = vdwg.mxu0
  %3666 = vrot.lane.b32.xlu0 %v652, 64
  %v3667 = vpop.permute.xlu0 %3666
  %v3670 = vsel %vm2412, %v3128, 0
  %3672 = vmatprep.subr.bf16.mxu0 0
  %3673 = vmatpush1.bf16.msra.mxu0 %v3667
  %3674 = vmatprep.subr.bf16.mxu0 0
  %3675 = vmatpush1.bf16.msra.mxu0 0
  %3676 = vmatprep.subr.bf16.mxu0 0
  %3677 = vmatpush1.bf16.msra.mxu0 0
  %3678 = vmatprep.subr.bf16.mxu0 0
  %3679 = vmatpush1.bf16.msra.mxu0 0
  %3680 = vmatprep.subr.bf16.mxu0 0
  %3681 = vmatpush1.bf16.msra.mxu0 0
  %3682 = vmatprep.subr.bf16.mxu0 0
  %3683 = vmatpush1.bf16.msra.mxu0 0
  %3684 = vmatprep.subr.bf16.mxu0 0
  %3685 = vmatpush1.bf16.msra.mxu0 0
  %3686 = vmatprep.subr.bf16.mxu0 0
  %3687 = vmatpush1.bf16.msra.mxu0 0
  %3688 = vmatprep.subr.bf16.mxu0 0
  %3689 = vmatpush1.bf16.msra.mxu0 0
  %3690 = vmatprep.subr.bf16.mxu0 0
  %3691 = vmatpush1.bf16.msra.mxu0 0
  %3692 = vmatprep.subr.bf16.mxu0 0
  %3693 = vmatpush1.bf16.msra.mxu0 0
  %3694 = vmatprep.subr.bf16.mxu0 0
  %3695 = vmatpush1.bf16.msra.mxu0 0
  %3696 = vmatprep.subr.bf16.mxu0 0
  %3697 = vmatpush1.bf16.msra.mxu0 0
  %3698 = vmatprep.subr.bf16.mxu0 0
  %3699 = vmatpush1.bf16.msra.mxu0 0
  %3700 = vmatprep.subr.bf16.mxu0 0
  %3701 = vmatpush1.bf16.msra.mxu0 0
  %3702 = vmatprep.subr.bf16.mxu0 0
  %3703 = vmatpush1.bf16.msra.mxu0 0
  %3704 = vmatprep.mubr.bf16.mxu0 0
  %3705 = vmatmul.mubr.bf16.gmra.mrb[0].mxu0 %v3670
  %v3706 = vpop.f32.mrb[0].mxu0
  %v3707 = vadd.f32 0.0, %v3706
  %v3708 = vpop.f32.mrb[0].mxu0
  %v3709 = vpop.f32.mrb[0].mxu0
  %v3710 = vadd.f32 0.0, %v3709
  %v3711 = vpop.f32.mrb[0].mxu0
  %3712 = vdwg.mxu0
  %3713 = vrot.lane.b32.xlu0 %v653, 64
  %v3714 = vpop.permute.xlu0 %3713
  %v3717 = vsel %vm2412, %v3129, 0
  %3719 = vmatprep.subr.bf16.mxu0 0
  %3720 = vmatpush1.bf16.msra.mxu0 %v3714
  %3721 = vmatprep.subr.bf16.mxu0 0
  %3722 = vmatpush1.bf16.msra.mxu0 0
  %3723 = vmatprep.subr.bf16.mxu0 0
  %3724 = vmatpush1.bf16.msra.mxu0 0
  %3725 = vmatprep.subr.bf16.mxu0 0
  %3726 = vmatpush1.bf16.msra.mxu0 0
  %3727 = vmatprep.subr.bf16.mxu0 0
  %3728 = vmatpush1.bf16.msra.mxu0 0
  %3729 = vmatprep.subr.bf16.mxu0 0
  %3730 = vmatpush1.bf16.msra.mxu0 0
  %3731 = vmatprep.subr.bf16.mxu0 0
  %3732 = vmatpush1.bf16.msra.mxu0 0
  %3733 = vmatprep.subr.bf16.mxu0 0
  %3734 = vmatpush1.bf16.msra.mxu0 0
  %3735 = vmatprep.subr.bf16.mxu0 0
  %3736 = vmatpush1.bf16.msra.mxu0 0
  %3737 = vmatprep.subr.bf16.mxu0 0
  %3738 = vmatpush1.bf16.msra.mxu0 0
  %3739 = vmatprep.subr.bf16.mxu0 0
  %3740 = vmatpush1.bf16.msra.mxu0 0
  %3741 = vmatprep.subr.bf16.mxu0 0
  %3742 = vmatpush1.bf16.msra.mxu0 0
  %3743 = vmatprep.subr.bf16.mxu0 0
  %3744 = vmatpush1.bf16.msra.mxu0 0
  %3745 = vmatprep.subr.bf16.mxu0 0
  %3746 = vmatpush1.bf16.msra.mxu0 0
  %3747 = vmatprep.subr.bf16.mxu0 0
  %3748 = vmatpush1.bf16.msra.mxu0 0
  %3749 = vmatprep.subr.bf16.mxu0 0
  %3750 = vmatpush1.bf16.msra.mxu0 0
  %3751 = vmatprep.mubr.bf16.mxu0 0
  %3752 = vmatmul.mubr.bf16.gmra.mrb[0].mxu0 %v3717
  %v3753 = vpop.f32.mrb[0].mxu0
  %v3754 = vadd.f32 0.0, %v3753
  %v3755 = vpop.f32.mrb[0].mxu0
  %v3756 = vpop.f32.mrb[0].mxu0
  %v3757 = vadd.f32 0.0, %v3756
  %v3758 = vpop.f32.mrb[0].mxu0
  %3759 = vdwg.mxu0
  %3760 = vrot.lane.b32.xlu0 %v654, 64
  %v3761 = vpop.permute.xlu0 %3760
  %v3764 = vsel %vm2412, %v3130, 0
  %3766 = vmatprep.subr.bf16.mxu0 0
  %3767 = vmatpush1.bf16.msra.mxu0 %v3761
  %3768 = vmatprep.subr.bf16.mxu0 0
  %3769 = vmatpush1.bf16.msra.mxu0 0
  %3770 = vmatprep.subr.bf16.mxu0 0
  %3771 = vmatpush1.bf16.msra.mxu0 0
  %3772 = vmatprep.subr.bf16.mxu0 0
  %3773 = vmatpush1.bf16.msra.mxu0 0
  %3774 = vmatprep.subr.bf16.mxu0 0
  %3775 = vmatpush1.bf16.msra.mxu0 0
  %3776 = vmatprep.subr.bf16.mxu0 0
  %3777 = vmatpush1.bf16.msra.mxu0 0
  %3778 = vmatprep.subr.bf16.mxu0 0
  %3779 = vmatpush1.bf16.msra.mxu0 0
  %3780 = vmatprep.subr.bf16.mxu0 0
  %3781 = vmatpush1.bf16.msra.mxu0 0
  %3782 = vmatprep.subr.bf16.mxu0 0
  %3783 = vmatpush1.bf16.msra.mxu0 0
  %3784 = vmatprep.subr.bf16.mxu0 0
  %3785 = vmatpush1.bf16.msra.mxu0 0
  %3786 = vmatprep.subr.bf16.mxu0 0
  %3787 = vmatpush1.bf16.msra.mxu0 0
  %3788 = vmatprep.subr.bf16.mxu0 0
  %3789 = vmatpush1.bf16.msra.mxu0 0
  %3790 = vmatprep.subr.bf16.mxu0 0
  %3791 = vmatpush1.bf16.msra.mxu0 0
  %3792 = vmatprep.subr.bf16.mxu0 0
  %3793 = vmatpush1.bf16.msra.mxu0 0
  %3794 = vmatprep.subr.bf16.mxu0 0
  %3795 = vmatpush1.bf16.msra.mxu0 0
  %3796 = vmatprep.subr.bf16.mxu0 0
  %3797 = vmatpush1.bf16.msra.mxu0 0
  %3798 = vmatprep.mubr.bf16.mxu0 0
  %3799 = vmatmul.mubr.bf16.gmra.mrb[0].mxu0 %v3764
  %v3800 = vpop.f32.mrb[0].mxu0
  %v3801 = vadd.f32 0.0, %v3800
  %v3802 = vpop.f32.mrb[0].mxu0
  %v3803 = vpop.f32.mrb[0].mxu0
  %v3804 = vadd.f32 0.0, %v3803
  %v3805 = vpop.f32.mrb[0].mxu0
  %3806 = vdwg.mxu0
  %3807 = vrot.lane.b32.xlu0 %v655, 64
  %v3808 = vpop.permute.xlu0 %3807
  %v3811 = vsel %vm2412, %v3131, 0
  %3813 = vmatprep.subr.bf16.mxu0 0
  %3814 = vmatpush1.bf16.msra.mxu0 %v3808
  %3815 = vmatprep.subr.bf16.mxu0 0
  %3816 = vmatpush1.bf16.msra.mxu0 0
  %3817 = vmatprep.subr.bf16.mxu0 0
  %3818 = vmatpush1.bf16.msra.mxu0 0
  %3819 = vmatprep.subr.bf16.mxu0 0
  %3820 = vmatpush1.bf16.msra.mxu0 0
  %3821 = vmatprep.subr.bf16.mxu0 0
  %3822 = vmatpush1.bf16.msra.mxu0 0
  %3823 = vmatprep.subr.bf16.mxu0 0
  %3824 = vmatpush1.bf16.msra.mxu0 0
  %3825 = vmatprep.subr.bf16.mxu0 0
  %3826 = vmatpush1.bf16.msra.mxu0 0
  %3827 = vmatprep.subr.bf16.mxu0 0
  %3828 = vmatpush1.bf16.msra.mxu0 0
  %3829 = vmatprep.subr.bf16.mxu0 0
  %3830 = vmatpush1.bf16.msra.mxu0 0
  %3831 = vmatprep.subr.bf16.mxu0 0
  %3832 = vmatpush1.bf16.msra.mxu0 0
  %3833 = vmatprep.subr.bf16.mxu0 0
  %3834 = vmatpush1.bf16.msra.mxu0 0
  %3835 = vmatprep.subr.bf16.mxu0 0
  %3836 = vmatpush1.bf16.msra.mxu0 0
  %3837 = vmatprep.subr.bf16.mxu0 0
  %3838 = vmatpush1.bf16.msra.mxu0 0
  %3839 = vmatprep.subr.bf16.mxu0 0
  %3840 = vmatpush1.bf16.msra.mxu0 0
  %3841 = vmatprep.subr.bf16.mxu0 0
  %3842 = vmatpush1.bf16.msra.mxu0 0
  %3843 = vmatprep.subr.bf16.mxu0 0
  %3844 = vmatpush1.bf16.msra.mxu0 0
  %3845 = vmatprep.mubr.bf16.mxu0 0
  %3846 = vmatmul.mubr.bf16.gmra.mrb[0].mxu0 %v3811
  %v3847 = vpop.f32.mrb[0].mxu0
  %v3848 = vadd.f32 0.0, %v3847
  %v3849 = vpop.f32.mrb[0].mxu0
  %v3850 = vpop.f32.mrb[0].mxu0
  %v3851 = vadd.f32 0.0, %v3850
  %v3852 = vpop.f32.mrb[0].mxu0
  %3853 = vdwg.mxu0
  %3854 = vrot.lane.b32.xlu0 %v656, 64
  %v3855 = vpop.permute.xlu0 %3854
  %v3858 = vsel %vm2412, %v3132, 0
  %3860 = vmatprep.subr.bf16.mxu0 0
  %3861 = vmatpush1.bf16.msra.mxu0 %v3855
  %3862 = vmatprep.subr.bf16.mxu0 0
  %3863 = vmatpush1.bf16.msra.mxu0 0
  %3864 = vmatprep.subr.bf16.mxu0 0
  %3865 = vmatpush1.bf16.msra.mxu0 0
  %3866 = vmatprep.subr.bf16.mxu0 0
  %3867 = vmatpush1.bf16.msra.mxu0 0
  %3868 = vmatprep.subr.bf16.mxu0 0
  %3869 = vmatpush1.bf16.msra.mxu0 0
  %3870 = vmatprep.subr.bf16.mxu0 0
  %3871 = vmatpush1.bf16.msra.mxu0 0
  %3872 = vmatprep.subr.bf16.mxu0 0
  %3873 = vmatpush1.bf16.msra.mxu0 0
  %3874 = vmatprep.subr.bf16.mxu0 0
  %3875 = vmatpush1.bf16.msra.mxu0 0
  %3876 = vmatprep.subr.bf16.mxu0 0
  %3877 = vmatpush1.bf16.msra.mxu0 0
  %3878 = vmatprep.subr.bf16.mxu0 0
  %3879 = vmatpush1.bf16.msra.mxu0 0
  %3880 = vmatprep.subr.bf16.mxu0 0
  %3881 = vmatpush1.bf16.msra.mxu0 0
  %3882 = vmatprep.subr.bf16.mxu0 0
  %3883 = vmatpush1.bf16.msra.mxu0 0
  %3884 = vmatprep.subr.bf16.mxu0 0
  %3885 = vmatpush1.bf16.msra.mxu0 0
  %3886 = vmatprep.subr.bf16.mxu0 0
  %3887 = vmatpush1.bf16.msra.mxu0 0
  %3888 = vmatprep.subr.bf16.mxu0 0
  %3889 = vmatpush1.bf16.msra.mxu0 0
  %3890 = vmatprep.subr.bf16.mxu0 0
  %3891 = vmatpush1.bf16.msra.mxu0 0
  %3892 = vmatprep.mubr.bf16.mxu0 0
  %3893 = vmatmul.mubr.bf16.gmra.mrb[0].mxu0 %v3858
  %v3894 = vpop.f32.mrb[0].mxu0
  %v3895 = vadd.f32 0.0, %v3894
  %v3896 = vpop.f32.mrb[0].mxu0
  %v3897 = vpop.f32.mrb[0].mxu0
  %v3898 = vadd.f32 0.0, %v3897
  %v3899 = vpop.f32.mrb[0].mxu0
  %3900 = vdwg.mxu0
  %3901 = vrot.lane.b32.xlu0 %v657, 64
  %v3902 = vpop.permute.xlu0 %3901
  %v3905 = vsel %vm2412, %v3133, 0
  %3907 = vmatprep.subr.bf16.mxu0 0
  %3908 = vmatpush1.bf16.msra.mxu0 %v3902
  %3909 = vmatprep.subr.bf16.mxu0 0
  %3910 = vmatpush1.bf16.msra.mxu0 0
  %3911 = vmatprep.subr.bf16.mxu0 0
  %3912 = vmatpush1.bf16.msra.mxu0 0
  %3913 = vmatprep.subr.bf16.mxu0 0
  %3914 = vmatpush1.bf16.msra.mxu0 0
  %3915 = vmatprep.subr.bf16.mxu0 0
  %3916 = vmatpush1.bf16.msra.mxu0 0
  %3917 = vmatprep.subr.bf16.mxu0 0
  %3918 = vmatpush1.bf16.msra.mxu0 0
  %3919 = vmatprep.subr.bf16.mxu0 0
  %3920 = vmatpush1.bf16.msra.mxu0 0
  %3921 = vmatprep.subr.bf16.mxu0 0
  %3922 = vmatpush1.bf16.msra.mxu0 0
  %3923 = vmatprep.subr.bf16.mxu0 0
  %3924 = vmatpush1.bf16.msra.mxu0 0
  %3925 = vmatprep.subr.bf16.mxu0 0
  %3926 = vmatpush1.bf16.msra.mxu0 0
  %3927 = vmatprep.subr.bf16.mxu0 0
  %3928 = vmatpush1.bf16.msra.mxu0 0
  %3929 = vmatprep.subr.bf16.mxu0 0
  %3930 = vmatpush1.bf16.msra.mxu0 0
  %3931 = vmatprep.subr.bf16.mxu0 0
  %3932 = vmatpush1.bf16.msra.mxu0 0
  %3933 = vmatprep.subr.bf16.mxu0 0
  %3934 = vmatpush1.bf16.msra.mxu0 0
  %3935 = vmatprep.subr.bf16.mxu0 0
  %3936 = vmatpush1.bf16.msra.mxu0 0
  %3937 = vmatprep.subr.bf16.mxu0 0
  %3938 = vmatpush1.bf16.msra.mxu0 0
  %3939 = vmatprep.mubr.bf16.mxu0 0
  %3940 = vmatmul.mubr.bf16.gmra.mrb[0].mxu0 %v3905
  %v3941 = vpop.f32.mrb[0].mxu0
  %v3942 = vadd.f32 0.0, %v3941
  %v3943 = vpop.f32.mrb[0].mxu0
  %v3944 = vpop.f32.mrb[0].mxu0
  %v3945 = vadd.f32 0.0, %v3944
  %v3946 = vpop.f32.mrb[0].mxu0
  %3947 = vdwg.mxu0
  %3948 = vrot.lane.b32.xlu0 %v658, 64
  %v3949 = vpop.permute.xlu0 %3948
  %v3952 = vsel %vm2412, %v3134, 0
  %3954 = vmatprep.subr.bf16.mxu0 0
  %3955 = vmatpush1.bf16.msra.mxu0 %v3949
  %3956 = vmatprep.subr.bf16.mxu0 0
  %3957 = vmatpush1.bf16.msra.mxu0 0
  %3958 = vmatprep.subr.bf16.mxu0 0
  %3959 = vmatpush1.bf16.msra.mxu0 0
  %3960 = vmatprep.subr.bf16.mxu0 0
  %3961 = vmatpush1.bf16.msra.mxu0 0
  %3962 = vmatprep.subr.bf16.mxu0 0
  %3963 = vmatpush1.bf16.msra.mxu0 0
  %3964 = vmatprep.subr.bf16.mxu0 0
  %3965 = vmatpush1.bf16.msra.mxu0 0
  %3966 = vmatprep.subr.bf16.mxu0 0
  %3967 = vmatpush1.bf16.msra.mxu0 0
  %3968 = vmatprep.subr.bf16.mxu0 0
  %3969 = vmatpush1.bf16.msra.mxu0 0
  %3970 = vmatprep.subr.bf16.mxu0 0
  %3971 = vmatpush1.bf16.msra.mxu0 0
  %3972 = vmatprep.subr.bf16.mxu0 0
  %3973 = vmatpush1.bf16.msra.mxu0 0
  %3974 = vmatprep.subr.bf16.mxu0 0
  %3975 = vmatpush1.bf16.msra.mxu0 0
  %3976 = vmatprep.subr.bf16.mxu0 0
  %3977 = vmatpush1.bf16.msra.mxu0 0
  %3978 = vmatprep.subr.bf16.mxu0 0
  %3979 = vmatpush1.bf16.msra.mxu0 0
  %3980 = vmatprep.subr.bf16.mxu0 0
  %3981 = vmatpush1.bf16.msra.mxu0 0
  %3982 = vmatprep.subr.bf16.mxu0 0
  %3983 = vmatpush1.bf16.msra.mxu0 0
  %3984 = vmatprep.subr.bf16.mxu0 0
  %3985 = vmatpush1.bf16.msra.mxu0 0
  %3986 = vmatprep.mubr.bf16.mxu0 0
  %3987 = vmatmul.mubr.bf16.gmra.mrb[0].mxu0 %v3952
  %v3988 = vpop.f32.mrb[0].mxu0
  %v3989 = vadd.f32 0.0, %v3988
  %v3990 = vpop.f32.mrb[0].mxu0
  %v3991 = vpop.f32.mrb[0].mxu0
  %v3992 = vadd.f32 0.0, %v3991
  %v3993 = vpop.f32.mrb[0].mxu0
  %3994 = vdwg.mxu0
  %3995 = vrot.lane.b32.xlu0 %v659, 64
  %v3996 = vpop.permute.xlu0 %3995
  %v3999 = vsel %vm2412, %v3135, 0
  %4001 = vmatprep.subr.bf16.mxu0 0
  %4002 = vmatpush1.bf16.msra.mxu0 %v3996
  %4003 = vmatprep.subr.bf16.mxu0 0
  %4004 = vmatpush1.bf16.msra.mxu0 0
  %4005 = vmatprep.subr.bf16.mxu0 0
  %4006 = vmatpush1.bf16.msra.mxu0 0
  %4007 = vmatprep.subr.bf16.mxu0 0
  %4008 = vmatpush1.bf16.msra.mxu0 0
  %4009 = vmatprep.subr.bf16.mxu0 0
  %4010 = vmatpush1.bf16.msra.mxu0 0
  %4011 = vmatprep.subr.bf16.mxu0 0
  %4012 = vmatpush1.bf16.msra.mxu0 0
  %4013 = vmatprep.subr.bf16.mxu0 0
  %4014 = vmatpush1.bf16.msra.mxu0 0
  %4015 = vmatprep.subr.bf16.mxu0 0
  %4016 = vmatpush1.bf16.msra.mxu0 0
  %4017 = vmatprep.subr.bf16.mxu0 0
  %4018 = vmatpush1.bf16.msra.mxu0 0
  %4019 = vmatprep.subr.bf16.mxu0 0
  %4020 = vmatpush1.bf16.msra.mxu0 0
  %4021 = vmatprep.subr.bf16.mxu0 0
  %4022 = vmatpush1.bf16.msra.mxu0 0
  %4023 = vmatprep.subr.bf16.mxu0 0
  %4024 = vmatpush1.bf16.msra.mxu0 0
  %4025 = vmatprep.subr.bf16.mxu0 0
  %4026 = vmatpush1.bf16.msra.mxu0 0
  %4027 = vmatprep.subr.bf16.mxu0 0
  %4028 = vmatpush1.bf16.msra.mxu0 0
  %4029 = vmatprep.subr.bf16.mxu0 0
  %4030 = vmatpush1.bf16.msra.mxu0 0
  %4031 = vmatprep.subr.bf16.mxu0 0
  %4032 = vmatpush1.bf16.msra.mxu0 0
  %4033 = vmatprep.mubr.bf16.mxu0 0
  %4034 = vmatmul.mubr.bf16.gmra.mrb[0].mxu0 %v3999
  %v4035 = vpop.f32.mrb[0].mxu0
  %v4036 = vadd.f32 0.0, %v4035
  %v4037 = vpop.f32.mrb[0].mxu0
  %v4038 = vpop.f32.mrb[0].mxu0
  %v4039 = vadd.f32 0.0, %v4038
  %v4040 = vpop.f32.mrb[0].mxu0
  %4041 = vdwg.mxu0
  %4042 = vrot.lane.b32.xlu0 %v660, 64
  %v4043 = vpop.permute.xlu0 %4042
  %v4046 = vsel %vm2412, %v3136, 0
  %4048 = vmatprep.subr.bf16.mxu0 0
  %4049 = vmatpush1.bf16.msra.mxu0 %v4043
  %4050 = vmatprep.subr.bf16.mxu0 0
  %4051 = vmatpush1.bf16.msra.mxu0 0
  %4052 = vmatprep.subr.bf16.mxu0 0
  %4053 = vmatpush1.bf16.msra.mxu0 0
  %4054 = vmatprep.subr.bf16.mxu0 0
  %4055 = vmatpush1.bf16.msra.mxu0 0
  %4056 = vmatprep.subr.bf16.mxu0 0
  %4057 = vmatpush1.bf16.msra.mxu0 0
  %4058 = vmatprep.subr.bf16.mxu0 0
  %4059 = vmatpush1.bf16.msra.mxu0 0
  %4060 = vmatprep.subr.bf16.mxu0 0
  %4061 = vmatpush1.bf16.msra.mxu0 0
  %4062 = vmatprep.subr.bf16.mxu0 0
  %4063 = vmatpush1.bf16.msra.mxu0 0
  %4064 = vmatprep.subr.bf16.mxu0 0
  %4065 = vmatpush1.bf16.msra.mxu0 0
  %4066 = vmatprep.subr.bf16.mxu0 0
  %4067 = vmatpush1.bf16.msra.mxu0 0
  %4068 = vmatprep.subr.bf16.mxu0 0
  %4069 = vmatpush1.bf16.msra.mxu0 0
  %4070 = vmatprep.subr.bf16.mxu0 0
  %4071 = vmatpush1.bf16.msra.mxu0 0
  %4072 = vmatprep.subr.bf16.mxu0 0
  %4073 = vmatpush1.bf16.msra.mxu0 0
  %4074 = vmatprep.subr.bf16.mxu0 0
  %4075 = vmatpush1.bf16.msra.mxu0 0
  %4076 = vmatprep.subr.bf16.mxu0 0
  %4077 = vmatpush1.bf16.msra.mxu0 0
  %4078 = vmatprep.subr.bf16.mxu0 0
  %4079 = vmatpush1.bf16.msra.mxu0 0
  %4080 = vmatprep.mubr.bf16.mxu0 0
  %4081 = vmatmul.mubr.bf16.gmra.mrb[0].mxu0 %v4046
  %v4082 = vpop.f32.mrb[0].mxu0
  %v4083 = vadd.f32 0.0, %v4082
  %v4084 = vpop.f32.mrb[0].mxu0
  %v4085 = vpop.f32.mrb[0].mxu0
  %v4086 = vadd.f32 0.0, %v4085
  %v4087 = vpop.f32.mrb[0].mxu0
  %4088 = vdwg.mxu0
  %4089 = vrot.lane.b32.xlu0 %v661, 64
  %v4090 = vpop.permute.xlu0 %4089
  %v4093 = vsel %vm2412, %v3137, 0
  %4095 = vmatprep.subr.bf16.mxu0 0
  %4096 = vmatpush1.bf16.msra.mxu0 %v4090
  %4097 = vmatprep.subr.bf16.mxu0 0
  %4098 = vmatpush1.bf16.msra.mxu0 0
  %4099 = vmatprep.subr.bf16.mxu0 0
  %4100 = vmatpush1.bf16.msra.mxu0 0
  %4101 = vmatprep.subr.bf16.mxu0 0
  %4102 = vmatpush1.bf16.msra.mxu0 0
  %4103 = vmatprep.subr.bf16.mxu0 0
  %4104 = vmatpush1.bf16.msra.mxu0 0
  %4105 = vmatprep.subr.bf16.mxu0 0
  %4106 = vmatpush1.bf16.msra.mxu0 0
  %4107 = vmatprep.subr.bf16.mxu0 0
  %4108 = vmatpush1.bf16.msra.mxu0 0
  %4109 = vmatprep.subr.bf16.mxu0 0
  %4110 = vmatpush1.bf16.msra.mxu0 0
  %4111 = vmatprep.subr.bf16.mxu0 0
  %4112 = vmatpush1.bf16.msra.mxu0 0
  %4113 = vmatprep.subr.bf16.mxu0 0
  %4114 = vmatpush1.bf16.msra.mxu0 0
  %4115 = vmatprep.subr.bf16.mxu0 0
  %4116 = vmatpush1.bf16.msra.mxu0 0
  %4117 = vmatprep.subr.bf16.mxu0 0
  %4118 = vmatpush1.bf16.msra.mxu0 0
  %4119 = vmatprep.subr.bf16.mxu0 0
  %4120 = vmatpush1.bf16.msra.mxu0 0
  %4121 = vmatprep.subr.bf16.mxu0 0
  %4122 = vmatpush1.bf16.msra.mxu0 0
  %4123 = vmatprep.subr.bf16.mxu0 0
  %4124 = vmatpush1.bf16.msra.mxu0 0
  %4125 = vmatprep.subr.bf16.mxu0 0
  %4126 = vmatpush1.bf16.msra.mxu0 0
  %4127 = vmatprep.mubr.bf16.mxu0 0
  %4128 = vmatmul.mubr.bf16.gmra.mrb[0].mxu0 %v4093
  %v4129 = vpop.f32.mrb[0].mxu0
  %v4130 = vadd.f32 0.0, %v4129
  %v4131 = vpop.f32.mrb[0].mxu0
  %v4132 = vpop.f32.mrb[0].mxu0
  %v4133 = vadd.f32 0.0, %v4132
  %v4134 = vpop.f32.mrb[0].mxu0
  %4135 = vdwg.mxu0
  %4136 = vrot.lane.b32.xlu0 %v662, 64
  %v4137 = vpop.permute.xlu0 %4136
  %v4140 = vsel %vm2412, %v3138, 0
  %4142 = vmatprep.subr.bf16.mxu0 0
  %4143 = vmatpush1.bf16.msra.mxu0 %v4137
  %4144 = vmatprep.subr.bf16.mxu0 0
  %4145 = vmatpush1.bf16.msra.mxu0 0
  %4146 = vmatprep.subr.bf16.mxu0 0
  %4147 = vmatpush1.bf16.msra.mxu0 0
  %4148 = vmatprep.subr.bf16.mxu0 0
  %4149 = vmatpush1.bf16.msra.mxu0 0
  %4150 = vmatprep.subr.bf16.mxu0 0
  %4151 = vmatpush1.bf16.msra.mxu0 0
  %4152 = vmatprep.subr.bf16.mxu0 0
  %4153 = vmatpush1.bf16.msra.mxu0 0
  %4154 = vmatprep.subr.bf16.mxu0 0
  %4155 = vmatpush1.bf16.msra.mxu0 0
  %4156 = vmatprep.subr.bf16.mxu0 0
  %4157 = vmatpush1.bf16.msra.mxu0 0
  %4158 = vmatprep.subr.bf16.mxu0 0
  %4159 = vmatpush1.bf16.msra.mxu0 0
  %4160 = vmatprep.subr.bf16.mxu0 0
  %4161 = vmatpush1.bf16.msra.mxu0 0
  %4162 = vmatprep.subr.bf16.mxu0 0
  %4163 = vmatpush1.bf16.msra.mxu0 0
  %4164 = vmatprep.subr.bf16.mxu0 0
  %4165 = vmatpush1.bf16.msra.mxu0 0
  %4166 = vmatprep.subr.bf16.mxu0 0
  %4167 = vmatpush1.bf16.msra.mxu0 0
  %4168 = vmatprep.subr.bf16.mxu0 0
  %4169 = vmatpush1.bf16.msra.mxu0 0
  %4170 = vmatprep.subr.bf16.mxu0 0
  %4171 = vmatpush1.bf16.msra.mxu0 0
  %4172 = vmatprep.subr.bf16.mxu0 0
  %4173 = vmatpush1.bf16.msra.mxu0 0
  %4174 = vmatprep.mubr.bf16.mxu0 0
  %4175 = vmatmul.mubr.bf16.gmra.mrb[0].mxu0 %v4140
  %v4176 = vpop.f32.mrb[0].mxu0
  %v4177 = vadd.f32 0.0, %v4176
  %v4178 = vpop.f32.mrb[0].mxu0
  %v4179 = vpop.f32.mrb[0].mxu0
  %v4180 = vadd.f32 0.0, %v4179
  %v4181 = vpop.f32.mrb[0].mxu0
  %4182 = vdwg.mxu0
  %4183 = vrot.lane.b32.xlu0 %v663, 64
  %v4184 = vpop.permute.xlu0 %4183
  %v4187 = vsel %vm2412, %v3139, 0
  %4189 = vmatprep.subr.bf16.mxu0 0
  %4190 = vmatpush1.bf16.msra.mxu0 %v4184
  %4191 = vmatprep.subr.bf16.mxu0 0
  %4192 = vmatpush1.bf16.msra.mxu0 0
  %4193 = vmatprep.subr.bf16.mxu0 0
  %4194 = vmatpush1.bf16.msra.mxu0 0
  %4195 = vmatprep.subr.bf16.mxu0 0
  %4196 = vmatpush1.bf16.msra.mxu0 0
  %4197 = vmatprep.subr.bf16.mxu0 0
  %4198 = vmatpush1.bf16.msra.mxu0 0
  %4199 = vmatprep.subr.bf16.mxu0 0
  %4200 = vmatpush1.bf16.msra.mxu0 0
  %4201 = vmatprep.subr.bf16.mxu0 0
  %4202 = vmatpush1.bf16.msra.mxu0 0
  %4203 = vmatprep.subr.bf16.mxu0 0
  %4204 = vmatpush1.bf16.msra.mxu0 0
  %4205 = vmatprep.subr.bf16.mxu0 0
  %4206 = vmatpush1.bf16.msra.mxu0 0
  %4207 = vmatprep.subr.bf16.mxu0 0
  %4208 = vmatpush1.bf16.msra.mxu0 0
  %4209 = vmatprep.subr.bf16.mxu0 0
  %4210 = vmatpush1.bf16.msra.mxu0 0
  %4211 = vmatprep.subr.bf16.mxu0 0
  %4212 = vmatpush1.bf16.msra.mxu0 0
  %4213 = vmatprep.subr.bf16.mxu0 0
  %4214 = vmatpush1.bf16.msra.mxu0 0
  %4215 = vmatprep.subr.bf16.mxu0 0
  %4216 = vmatpush1.bf16.msra.mxu0 0
  %4217 = vmatprep.subr.bf16.mxu0 0
  %4218 = vmatpush1.bf16.msra.mxu0 0
  %4219 = vmatprep.subr.bf16.mxu0 0
  %4220 = vmatpush1.bf16.msra.mxu0 0
  %4221 = vmatprep.mubr.bf16.mxu0 0
  %4222 = vmatmul.mubr.bf16.gmra.mrb[0].mxu0 %v4187
  %v4223 = vpop.f32.mrb[0].mxu0
  %v4224 = vadd.f32 0.0, %v4223
  %v4225 = vpop.f32.mrb[0].mxu0
  %v4226 = vpop.f32.mrb[0].mxu0
  %v4227 = vadd.f32 0.0, %v4226
  %v4228 = vpop.f32.mrb[0].mxu0
  %4229 = vdwg.mxu0
  %4230 = vrot.lane.b32.xlu0 %v664, 64
  %v4231 = vpop.permute.xlu0 %4230
  %v4234 = vsel %vm2412, %v3140, 0
  %4236 = vmatprep.subr.bf16.mxu0 0
  %4237 = vmatpush1.bf16.msra.mxu0 %v4231
  %4238 = vmatprep.subr.bf16.mxu0 0
  %4239 = vmatpush1.bf16.msra.mxu0 0
  %4240 = vmatprep.subr.bf16.mxu0 0
  %4241 = vmatpush1.bf16.msra.mxu0 0
  %4242 = vmatprep.subr.bf16.mxu0 0
  %4243 = vmatpush1.bf16.msra.mxu0 0
  %4244 = vmatprep.subr.bf16.mxu0 0
  %4245 = vmatpush1.bf16.msra.mxu0 0
  %4246 = vmatprep.subr.bf16.mxu0 0
  %4247 = vmatpush1.bf16.msra.mxu0 0
  %4248 = vmatprep.subr.bf16.mxu0 0
  %4249 = vmatpush1.bf16.msra.mxu0 0
  %4250 = vmatprep.subr.bf16.mxu0 0
  %4251 = vmatpush1.bf16.msra.mxu0 0
  %4252 = vmatprep.subr.bf16.mxu0 0
  %4253 = vmatpush1.bf16.msra.mxu0 0
  %4254 = vmatprep.subr.bf16.mxu0 0
  %4255 = vmatpush1.bf16.msra.mxu0 0
  %4256 = vmatprep.subr.bf16.mxu0 0
  %4257 = vmatpush1.bf16.msra.mxu0 0
  %4258 = vmatprep.subr.bf16.mxu0 0
  %4259 = vmatpush1.bf16.msra.mxu0 0
  %4260 = vmatprep.subr.bf16.mxu0 0
  %4261 = vmatpush1.bf16.msra.mxu0 0
  %4262 = vmatprep.subr.bf16.mxu0 0
  %4263 = vmatpush1.bf16.msra.mxu0 0
  %4264 = vmatprep.subr.bf16.mxu0 0
  %4265 = vmatpush1.bf16.msra.mxu0 0
  %4266 = vmatprep.subr.bf16.mxu0 0
  %4267 = vmatpush1.bf16.msra.mxu0 0
  %4268 = vmatprep.mubr.bf16.mxu0 0
  %4269 = vmatmul.mubr.bf16.gmra.mrb[0].mxu0 %v4234
  %v4270 = vpop.f32.mrb[0].mxu0
  %v4271 = vadd.f32 0.0, %v4270
  %v4272 = vpop.f32.mrb[0].mxu0
  %v4273 = vpop.f32.mrb[0].mxu0
  %v4274 = vadd.f32 0.0, %v4273
  %v4275 = vpop.f32.mrb[0].mxu0
  %4276 = vdwg.mxu0
  %4277 = vrot.lane.b32.xlu0 %v665, 64
  %v4278 = vpop.permute.xlu0 %4277
  %v4281 = vsel %vm2412, %v3141, 0
  %4283 = vmatprep.subr.bf16.mxu0 0
  %4284 = vmatpush1.bf16.msra.mxu0 %v4278
  %4285 = vmatprep.subr.bf16.mxu0 0
  %4286 = vmatpush1.bf16.msra.mxu0 0
  %4287 = vmatprep.subr.bf16.mxu0 0
  %4288 = vmatpush1.bf16.msra.mxu0 0
  %4289 = vmatprep.subr.bf16.mxu0 0
  %4290 = vmatpush1.bf16.msra.mxu0 0
  %4291 = vmatprep.subr.bf16.mxu0 0
  %4292 = vmatpush1.bf16.msra.mxu0 0
  %4293 = vmatprep.subr.bf16.mxu0 0
  %4294 = vmatpush1.bf16.msra.mxu0 0
  %4295 = vmatprep.subr.bf16.mxu0 0
  %4296 = vmatpush1.bf16.msra.mxu0 0
  %4297 = vmatprep.subr.bf16.mxu0 0
  %4298 = vmatpush1.bf16.msra.mxu0 0
  %4299 = vmatprep.subr.bf16.mxu0 0
  %4300 = vmatpush1.bf16.msra.mxu0 0
  %4301 = vmatprep.subr.bf16.mxu0 0
  %4302 = vmatpush1.bf16.msra.mxu0 0
  %4303 = vmatprep.subr.bf16.mxu0 0
  %4304 = vmatpush1.bf16.msra.mxu0 0
  %4305 = vmatprep.subr.bf16.mxu0 0
  %4306 = vmatpush1.bf16.msra.mxu0 0
  %4307 = vmatprep.subr.bf16.mxu0 0
  %4308 = vmatpush1.bf16.msra.mxu0 0
  %4309 = vmatprep.subr.bf16.mxu0 0
  %4310 = vmatpush1.bf16.msra.mxu0 0
  %4311 = vmatprep.subr.bf16.mxu0 0
  %4312 = vmatpush1.bf16.msra.mxu0 0
  %4313 = vmatprep.subr.bf16.mxu0 0
  %4314 = vmatpush1.bf16.msra.mxu0 0
  %4315 = vmatprep.mubr.bf16.mxu0 0
  %4316 = vmatmul.mubr.bf16.gmra.mrb[0].mxu0 %v4281
  %v4317 = vpop.f32.mrb[0].mxu0
  %v4318 = vadd.f32 0.0, %v4317
  %v4319 = vpop.f32.mrb[0].mxu0
  %v4320 = vpop.f32.mrb[0].mxu0
  %v4321 = vadd.f32 0.0, %v4320
  %v4322 = vpop.f32.mrb[0].mxu0
  %4323 = vdwg.mxu0
  %4324 = vrot.lane.b32.xlu0 %v666, 64
  %v4325 = vpop.permute.xlu0 %4324
  %v4328 = vsel %vm2412, %v3142, 0
  %4330 = vmatprep.subr.bf16.mxu0 0
  %4331 = vmatpush1.bf16.msra.mxu0 %v4325
  %4332 = vmatprep.subr.bf16.mxu0 0
  %4333 = vmatpush1.bf16.msra.mxu0 0
  %4334 = vmatprep.subr.bf16.mxu0 0
  %4335 = vmatpush1.bf16.msra.mxu0 0
  %4336 = vmatprep.subr.bf16.mxu0 0
  %4337 = vmatpush1.bf16.msra.mxu0 0
  %4338 = vmatprep.subr.bf16.mxu0 0
  %4339 = vmatpush1.bf16.msra.mxu0 0
  %4340 = vmatprep.subr.bf16.mxu0 0
  %4341 = vmatpush1.bf16.msra.mxu0 0
  %4342 = vmatprep.subr.bf16.mxu0 0
  %4343 = vmatpush1.bf16.msra.mxu0 0
  %4344 = vmatprep.subr.bf16.mxu0 0
  %4345 = vmatpush1.bf16.msra.mxu0 0
  %4346 = vmatprep.subr.bf16.mxu0 0
  %4347 = vmatpush1.bf16.msra.mxu0 0
  %4348 = vmatprep.subr.bf16.mxu0 0
  %4349 = vmatpush1.bf16.msra.mxu0 0
  %4350 = vmatprep.subr.bf16.mxu0 0
  %4351 = vmatpush1.bf16.msra.mxu0 0
  %4352 = vmatprep.subr.bf16.mxu0 0
  %4353 = vmatpush1.bf16.msra.mxu0 0
  %4354 = vmatprep.subr.bf16.mxu0 0
  %4355 = vmatpush1.bf16.msra.mxu0 0
  %4356 = vmatprep.subr.bf16.mxu0 0
  %4357 = vmatpush1.bf16.msra.mxu0 0
  %4358 = vmatprep.subr.bf16.mxu0 0
  %4359 = vmatpush1.bf16.msra.mxu0 0
  %4360 = vmatprep.subr.bf16.mxu0 0
  %4361 = vmatpush1.bf16.msra.mxu0 0
  %4362 = vmatprep.mubr.bf16.mxu0 0
  %4363 = vmatmul.mubr.bf16.gmra.mrb[0].mxu0 %v4328
  %v4364 = vpop.f32.mrb[0].mxu0
  %v4365 = vadd.f32 0.0, %v4364
  %v4366 = vpop.f32.mrb[0].mxu0
  %v4367 = vpop.f32.mrb[0].mxu0
  %v4368 = vadd.f32 0.0, %v4367
  %v4369 = vpop.f32.mrb[0].mxu0
  %4370 = vdwg.mxu0
  %4371 = vrot.lane.b32.xlu0 %v667, 64
  %v4372 = vpop.permute.xlu0 %4371
  %v4375 = vsel %vm2412, %v3143, 0
  %4377 = vmatprep.subr.bf16.mxu0 0
  %4378 = vmatpush1.bf16.msra.mxu0 %v4372
  %4379 = vmatprep.subr.bf16.mxu0 0
  %4380 = vmatpush1.bf16.msra.mxu0 0
  %4381 = vmatprep.subr.bf16.mxu0 0
  %4382 = vmatpush1.bf16.msra.mxu0 0
  %4383 = vmatprep.subr.bf16.mxu0 0
  %4384 = vmatpush1.bf16.msra.mxu0 0
  %4385 = vmatprep.subr.bf16.mxu0 0
  %4386 = vmatpush1.bf16.msra.mxu0 0
  %4387 = vmatprep.subr.bf16.mxu0 0
  %4388 = vmatpush1.bf16.msra.mxu0 0
  %4389 = vmatprep.subr.bf16.mxu0 0
  %4390 = vmatpush1.bf16.msra.mxu0 0
  %4391 = vmatprep.subr.bf16.mxu0 0
  %4392 = vmatpush1.bf16.msra.mxu0 0
  %4393 = vmatprep.subr.bf16.mxu0 0
  %4394 = vmatpush1.bf16.msra.mxu0 0
  %4395 = vmatprep.subr.bf16.mxu0 0
  %4396 = vmatpush1.bf16.msra.mxu0 0
  %4397 = vmatprep.subr.bf16.mxu0 0
  %4398 = vmatpush1.bf16.msra.mxu0 0
  %4399 = vmatprep.subr.bf16.mxu0 0
  %4400 = vmatpush1.bf16.msra.mxu0 0
  %4401 = vmatprep.subr.bf16.mxu0 0
  %4402 = vmatpush1.bf16.msra.mxu0 0
  %4403 = vmatprep.subr.bf16.mxu0 0
  %4404 = vmatpush1.bf16.msra.mxu0 0
  %4405 = vmatprep.subr.bf16.mxu0 0
  %4406 = vmatpush1.bf16.msra.mxu0 0
  %4407 = vmatprep.subr.bf16.mxu0 0
  %4408 = vmatpush1.bf16.msra.mxu0 0
  %4409 = vmatprep.mubr.bf16.mxu0 0
  %4410 = vmatmul.mubr.bf16.gmra.mrb[0].mxu0 %v4375
  %v4411 = vpop.f32.mrb[0].mxu0
  %v4412 = vadd.f32 0.0, %v4411
  %v4413 = vpop.f32.mrb[0].mxu0
  %v4414 = vpop.f32.mrb[0].mxu0
  %v4415 = vadd.f32 0.0, %v4414
  %v4416 = vpop.f32.mrb[0].mxu0
  %4417 = vdwg.mxu0
  %4418 = vrot.lane.b32.xlu0 %v668, 64
  %v4419 = vpop.permute.xlu0 %4418
  %v4422 = vsel %vm2412, %v3144, 0
  %4424 = vmatprep.subr.bf16.mxu0 0
  %4425 = vmatpush1.bf16.msra.mxu0 %v4419
  %4426 = vmatprep.subr.bf16.mxu0 0
  %4427 = vmatpush1.bf16.msra.mxu0 0
  %4428 = vmatprep.subr.bf16.mxu0 0
  %4429 = vmatpush1.bf16.msra.mxu0 0
  %4430 = vmatprep.subr.bf16.mxu0 0
  %4431 = vmatpush1.bf16.msra.mxu0 0
  %4432 = vmatprep.subr.bf16.mxu0 0
  %4433 = vmatpush1.bf16.msra.mxu0 0
  %4434 = vmatprep.subr.bf16.mxu0 0
  %4435 = vmatpush1.bf16.msra.mxu0 0
  %4436 = vmatprep.subr.bf16.mxu0 0
  %4437 = vmatpush1.bf16.msra.mxu0 0
  %4438 = vmatprep.subr.bf16.mxu0 0
  %4439 = vmatpush1.bf16.msra.mxu0 0
  %4440 = vmatprep.subr.bf16.mxu0 0
  %4441 = vmatpush1.bf16.msra.mxu0 0
  %4442 = vmatprep.subr.bf16.mxu0 0
  %4443 = vmatpush1.bf16.msra.mxu0 0
  %4444 = vmatprep.subr.bf16.mxu0 0
  %4445 = vmatpush1.bf16.msra.mxu0 0
  %4446 = vmatprep.subr.bf16.mxu0 0
  %4447 = vmatpush1.bf16.msra.mxu0 0
  %4448 = vmatprep.subr.bf16.mxu0 0
  %4449 = vmatpush1.bf16.msra.mxu0 0
  %4450 = vmatprep.subr.bf16.mxu0 0
  %4451 = vmatpush1.bf16.msra.mxu0 0
  %4452 = vmatprep.subr.bf16.mxu0 0
  %4453 = vmatpush1.bf16.msra.mxu0 0
  %4454 = vmatprep.subr.bf16.mxu0 0
  %4455 = vmatpush1.bf16.msra.mxu0 0
  %4456 = vmatprep.mubr.bf16.mxu0 0
  %4457 = vmatmul.mubr.bf16.gmra.mrb[0].mxu0 %v4422
  %v4458 = vpop.f32.mrb[0].mxu0
  %v4459 = vadd.f32 0.0, %v4458
  %v4460 = vpop.f32.mrb[0].mxu0
  %v4461 = vpop.f32.mrb[0].mxu0
  %v4462 = vadd.f32 0.0, %v4461
  %v4463 = vpop.f32.mrb[0].mxu0
  %4464 = vdwg.mxu0
  %4465 = vrot.lane.b32.xlu0 %v669, 64
  %v4466 = vpop.permute.xlu0 %4465
  %v4469 = vsel %vm2412, %v3145, 0
  %4471 = vmatprep.subr.bf16.mxu0 0
  %4472 = vmatpush1.bf16.msra.mxu0 %v4466
  %4473 = vmatprep.subr.bf16.mxu0 0
  %4474 = vmatpush1.bf16.msra.mxu0 0
  %4475 = vmatprep.subr.bf16.mxu0 0
  %4476 = vmatpush1.bf16.msra.mxu0 0
  %4477 = vmatprep.subr.bf16.mxu0 0
  %4478 = vmatpush1.bf16.msra.mxu0 0
  %4479 = vmatprep.subr.bf16.mxu0 0
  %4480 = vmatpush1.bf16.msra.mxu0 0
  %4481 = vmatprep.subr.bf16.mxu0 0
  %4482 = vmatpush1.bf16.msra.mxu0 0
  %4483 = vmatprep.subr.bf16.mxu0 0
  %4484 = vmatpush1.bf16.msra.mxu0 0
  %4485 = vmatprep.subr.bf16.mxu0 0
  %4486 = vmatpush1.bf16.msra.mxu0 0
  %4487 = vmatprep.subr.bf16.mxu0 0
  %4488 = vmatpush1.bf16.msra.mxu0 0
  %4489 = vmatprep.subr.bf16.mxu0 0
  %4490 = vmatpush1.bf16.msra.mxu0 0
  %4491 = vmatprep.subr.bf16.mxu0 0
  %4492 = vmatpush1.bf16.msra.mxu0 0
  %4493 = vmatprep.subr.bf16.mxu0 0
  %4494 = vmatpush1.bf16.msra.mxu0 0
  %4495 = vmatprep.subr.bf16.mxu0 0
  %4496 = vmatpush1.bf16.msra.mxu0 0
  %4497 = vmatprep.subr.bf16.mxu0 0
  %4498 = vmatpush1.bf16.msra.mxu0 0
  %4499 = vmatprep.subr.bf16.mxu0 0
  %4500 = vmatpush1.bf16.msra.mxu0 0
  %4501 = vmatprep.subr.bf16.mxu0 0
  %4502 = vmatpush1.bf16.msra.mxu0 0
  %4503 = vmatprep.mubr.bf16.mxu0 0
  %4504 = vmatmul.mubr.bf16.gmra.mrb[0].mxu0 %v4469
  %v4505 = vpop.f32.mrb[0].mxu0
  %v4506 = vadd.f32 0.0, %v4505
  %v4507 = vpop.f32.mrb[0].mxu0
  %v4508 = vpop.f32.mrb[0].mxu0
  %v4509 = vadd.f32 0.0, %v4508
  %v4510 = vpop.f32.mrb[0].mxu0
  %4511 = vdwg.mxu0
  %4512 = vrot.lane.b32.xlu0 %v670, 64
  %v4513 = vpop.permute.xlu0 %4512
  %v4516 = vsel %vm2412, %v3146, 0
  %4518 = vmatprep.subr.bf16.mxu0 0
  %4519 = vmatpush1.bf16.msra.mxu0 %v4513
  %4520 = vmatprep.subr.bf16.mxu0 0
  %4521 = vmatpush1.bf16.msra.mxu0 0
  %4522 = vmatprep.subr.bf16.mxu0 0
  %4523 = vmatpush1.bf16.msra.mxu0 0
  %4524 = vmatprep.subr.bf16.mxu0 0
  %4525 = vmatpush1.bf16.msra.mxu0 0
  %4526 = vmatprep.subr.bf16.mxu0 0
  %4527 = vmatpush1.bf16.msra.mxu0 0
  %4528 = vmatprep.subr.bf16.mxu0 0
  %4529 = vmatpush1.bf16.msra.mxu0 0
  %4530 = vmatprep.subr.bf16.mxu0 0
  %4531 = vmatpush1.bf16.msra.mxu0 0
  %4532 = vmatprep.subr.bf16.mxu0 0
  %4533 = vmatpush1.bf16.msra.mxu0 0
  %4534 = vmatprep.subr.bf16.mxu0 0
  %4535 = vmatpush1.bf16.msra.mxu0 0
  %4536 = vmatprep.subr.bf16.mxu0 0
  %4537 = vmatpush1.bf16.msra.mxu0 0
  %4538 = vmatprep.subr.bf16.mxu0 0
  %4539 = vmatpush1.bf16.msra.mxu0 0
  %4540 = vmatprep.subr.bf16.mxu0 0
  %4541 = vmatpush1.bf16.msra.mxu0 0
  %4542 = vmatprep.subr.bf16.mxu0 0
  %4543 = vmatpush1.bf16.msra.mxu0 0
  %4544 = vmatprep.subr.bf16.mxu0 0
  %4545 = vmatpush1.bf16.msra.mxu0 0
  %4546 = vmatprep.subr.bf16.mxu0 0
  %4547 = vmatpush1.bf16.msra.mxu0 0
  %4548 = vmatprep.subr.bf16.mxu0 0
  %4549 = vmatpush1.bf16.msra.mxu0 0
  %4550 = vmatprep.mubr.bf16.mxu0 0
  %4551 = vmatmul.mubr.bf16.gmra.mrb[0].mxu0 %v4516
  %v4552 = vpop.f32.mrb[0].mxu0
  %v4553 = vadd.f32 0.0, %v4552
  %v4554 = vpop.f32.mrb[0].mxu0
  %v4555 = vpop.f32.mrb[0].mxu0
  %v4556 = vadd.f32 0.0, %v4555
  %v4557 = vpop.f32.mrb[0].mxu0
  %4558 = vdwg.mxu0
  %4559 = vrot.lane.b32.xlu0 %v671, 64
  %v4560 = vpop.permute.xlu0 %4559
  %v4563 = vsel %vm2412, %v3147, 0
  %4565 = vmatprep.subr.bf16.mxu0 0
  %4566 = vmatpush1.bf16.msra.mxu0 %v4560
  %4567 = vmatprep.subr.bf16.mxu0 0
  %4568 = vmatpush1.bf16.msra.mxu0 0
  %4569 = vmatprep.subr.bf16.mxu0 0
  %4570 = vmatpush1.bf16.msra.mxu0 0
  %4571 = vmatprep.subr.bf16.mxu0 0
  %4572 = vmatpush1.bf16.msra.mxu0 0
  %4573 = vmatprep.subr.bf16.mxu0 0
  %4574 = vmatpush1.bf16.msra.mxu0 0
  %4575 = vmatprep.subr.bf16.mxu0 0
  %4576 = vmatpush1.bf16.msra.mxu0 0
  %4577 = vmatprep.subr.bf16.mxu0 0
  %4578 = vmatpush1.bf16.msra.mxu0 0
  %4579 = vmatprep.subr.bf16.mxu0 0
  %4580 = vmatpush1.bf16.msra.mxu0 0
  %4581 = vmatprep.subr.bf16.mxu0 0
  %4582 = vmatpush1.bf16.msra.mxu0 0
  %4583 = vmatprep.subr.bf16.mxu0 0
  %4584 = vmatpush1.bf16.msra.mxu0 0
  %4585 = vmatprep.subr.bf16.mxu0 0
  %4586 = vmatpush1.bf16.msra.mxu0 0
  %4587 = vmatprep.subr.bf16.mxu0 0
  %4588 = vmatpush1.bf16.msra.mxu0 0
  %4589 = vmatprep.subr.bf16.mxu0 0
  %4590 = vmatpush1.bf16.msra.mxu0 0
  %4591 = vmatprep.subr.bf16.mxu0 0
  %4592 = vmatpush1.bf16.msra.mxu0 0
  %4593 = vmatprep.subr.bf16.mxu0 0
  %4594 = vmatpush1.bf16.msra.mxu0 0
  %4595 = vmatprep.subr.bf16.mxu0 0
  %4596 = vmatpush1.bf16.msra.mxu0 0
  %4597 = vmatprep.mubr.bf16.mxu0 0
  %4598 = vmatmul.mubr.bf16.gmra.mrb[0].mxu0 %v4563
  %v4599 = vpop.f32.mrb[0].mxu0
  %v4600 = vadd.f32 0.0, %v4599
  %v4601 = vpop.f32.mrb[0].mxu0
  %v4602 = vpop.f32.mrb[0].mxu0
  %v4603 = vadd.f32 0.0, %v4602
  %v4604 = vpop.f32.mrb[0].mxu0
  %4605 = vdwg.mxu0
  %4606 = vrot.lane.b32.xlu0 %v672, 64
  %v4607 = vpop.permute.xlu0 %4606
  %v4610 = vsel %vm2412, %v3148, 0
  %4612 = vmatprep.subr.bf16.mxu0 0
  %4613 = vmatpush1.bf16.msra.mxu0 %v4607
  %4614 = vmatprep.subr.bf16.mxu0 0
  %4615 = vmatpush1.bf16.msra.mxu0 0
  %4616 = vmatprep.subr.bf16.mxu0 0
  %4617 = vmatpush1.bf16.msra.mxu0 0
  %4618 = vmatprep.subr.bf16.mxu0 0
  %4619 = vmatpush1.bf16.msra.mxu0 0
  %4620 = vmatprep.subr.bf16.mxu0 0
  %4621 = vmatpush1.bf16.msra.mxu0 0
  %4622 = vmatprep.subr.bf16.mxu0 0
  %4623 = vmatpush1.bf16.msra.mxu0 0
  %4624 = vmatprep.subr.bf16.mxu0 0
  %4625 = vmatpush1.bf16.msra.mxu0 0
  %4626 = vmatprep.subr.bf16.mxu0 0
  %4627 = vmatpush1.bf16.msra.mxu0 0
  %4628 = vmatprep.subr.bf16.mxu0 0
  %4629 = vmatpush1.bf16.msra.mxu0 0
  %4630 = vmatprep.subr.bf16.mxu0 0
  %4631 = vmatpush1.bf16.msra.mxu0 0
  %4632 = vmatprep.subr.bf16.mxu0 0
  %4633 = vmatpush1.bf16.msra.mxu0 0
  %4634 = vmatprep.subr.bf16.mxu0 0
  %4635 = vmatpush1.bf16.msra.mxu0 0
  %4636 = vmatprep.subr.bf16.mxu0 0
  %4637 = vmatpush1.bf16.msra.mxu0 0
  %4638 = vmatprep.subr.bf16.mxu0 0
  %4639 = vmatpush1.bf16.msra.mxu0 0
  %4640 = vmatprep.subr.bf16.mxu0 0
  %4641 = vmatpush1.bf16.msra.mxu0 0
  %4642 = vmatprep.subr.bf16.mxu0 0
  %4643 = vmatpush1.bf16.msra.mxu0 0
  %4644 = vmatprep.mubr.bf16.mxu0 0
  %4645 = vmatmul.mubr.bf16.gmra.mrb[0].mxu0 %v4610
  %v4646 = vpop.f32.mrb[0].mxu0
  %v4647 = vadd.f32 0.0, %v4646
  %v4648 = vpop.f32.mrb[0].mxu0
  %v4649 = vpop.f32.mrb[0].mxu0
  %v4650 = vadd.f32 0.0, %v4649
  %v4651 = vpop.f32.mrb[0].mxu0
  %4652 = vdwg.mxu0
  %4669 = vrot.lane.b32.xlu0 %v3566, 8
  %v4670 = vpop.permute.xlu0 %4669
  %4671 = vrot.lane.b32.xlu0 %v3569, 8
  %v4672 = vpop.permute.xlu0 %4671
  %4673 = vrot.lane.b32.xlu0 %v3613, 8
  %v4674 = vpop.permute.xlu0 %4673
  %4675 = vrot.lane.b32.xlu0 %v3616, 8
  %v4676 = vpop.permute.xlu0 %4675
  %4677 = vrot.lane.b32.xlu0 %v3660, 8
  %v4678 = vpop.permute.xlu0 %4677
  %4679 = vrot.lane.b32.xlu0 %v3663, 8
  %v4680 = vpop.permute.xlu0 %4679
  %4681 = vrot.lane.b32.xlu0 %v3707, 8
  %v4682 = vpop.permute.xlu0 %4681
  %4683 = vrot.lane.b32.xlu0 %v3710, 8
  %v4684 = vpop.permute.xlu0 %4683
  %4685 = vrot.lane.b32.xlu0 %v3754, 8
  %v4686 = vpop.permute.xlu0 %4685
  %4687 = vrot.lane.b32.xlu0 %v3757, 8
  %v4688 = vpop.permute.xlu0 %4687
  %4689 = vrot.lane.b32.xlu0 %v3801, 8
  %v4690 = vpop.permute.xlu0 %4689
  %4691 = vrot.lane.b32.xlu0 %v3804, 8
  %v4692 = vpop.permute.xlu0 %4691
  %4693 = vrot.lane.b32.xlu0 %v3848, 8
  %v4694 = vpop.permute.xlu0 %4693
  %4695 = vrot.lane.b32.xlu0 %v3851, 8
  %v4696 = vpop.permute.xlu0 %4695
  %4697 = vrot.lane.b32.xlu0 %v3895, 8
  %v4698 = vpop.permute.xlu0 %4697
  %4699 = vrot.lane.b32.xlu0 %v3898, 8
  %v4700 = vpop.permute.xlu0 %4699
  %4733 = vrot.lane.b32.xlu0 %v3942, 16
  %v4734 = vpop.permute.xlu0 %4733
  %4735 = vrot.lane.b32.xlu0 %v3945, 16
  %v4736 = vpop.permute.xlu0 %4735
  %4737 = vrot.lane.b32.xlu0 %v3989, 16
  %v4738 = vpop.permute.xlu0 %4737
  %4739 = vrot.lane.b32.xlu0 %v3992, 16
  %v4740 = vpop.permute.xlu0 %4739
  %4741 = vrot.lane.b32.xlu0 %v4036, 16
  %v4742 = vpop.permute.xlu0 %4741
  %4743 = vrot.lane.b32.xlu0 %v4039, 16
  %v4744 = vpop.permute.xlu0 %4743
  %4745 = vrot.lane.b32.xlu0 %v4083, 16
  %v4746 = vpop.permute.xlu0 %4745
  %4747 = vrot.lane.b32.xlu0 %v4086, 16
  %v4748 = vpop.permute.xlu0 %4747
  %4749 = vrot.lane.b32.xlu0 %v4130, 16
  %v4750 = vpop.permute.xlu0 %4749
  %4751 = vrot.lane.b32.xlu0 %v4133, 16
  %v4752 = vpop.permute.xlu0 %4751
  %4753 = vrot.lane.b32.xlu0 %v4177, 16
  %v4754 = vpop.permute.xlu0 %4753
  %4755 = vrot.lane.b32.xlu0 %v4180, 16
  %v4756 = vpop.permute.xlu0 %4755
  %4757 = vrot.lane.b32.xlu0 %v4224, 16
  %v4758 = vpop.permute.xlu0 %4757
  %4759 = vrot.lane.b32.xlu0 %v4227, 16
  %v4760 = vpop.permute.xlu0 %4759
  %4761 = vrot.lane.b32.xlu0 %v4271, 16
  %v4762 = vpop.permute.xlu0 %4761
  %4763 = vrot.lane.b32.xlu0 %v4274, 16
  %v4764 = vpop.permute.xlu0 %4763
  %4797 = vrot.lane.b32.xlu0 %v4318, 24
  %v4798 = vpop.permute.xlu0 %4797
  %4799 = vrot.lane.b32.xlu0 %v4321, 24
  %v4800 = vpop.permute.xlu0 %4799
  %4801 = vrot.lane.b32.xlu0 %v4365, 24
  %v4802 = vpop.permute.xlu0 %4801
  %4803 = vrot.lane.b32.xlu0 %v4368, 24
  %v4804 = vpop.permute.xlu0 %4803
  %4805 = vrot.lane.b32.xlu0 %v4412, 24
  %v4806 = vpop.permute.xlu0 %4805
  %4807 = vrot.lane.b32.xlu0 %v4415, 24
  %v4808 = vpop.permute.xlu0 %4807
  %4809 = vrot.lane.b32.xlu0 %v4459, 24
  %v4810 = vpop.permute.xlu0 %4809
  %4811 = vrot.lane.b32.xlu0 %v4462, 24
  %v4812 = vpop.permute.xlu0 %4811
  %4813 = vrot.lane.b32.xlu0 %v4506, 24
  %v4814 = vpop.permute.xlu0 %4813
  %4815 = vrot.lane.b32.xlu0 %v4509, 24
  %v4816 = vpop.permute.xlu0 %4815
  %4817 = vrot.lane.b32.xlu0 %v4553, 24
  %v4818 = vpop.permute.xlu0 %4817
  %4819 = vrot.lane.b32.xlu0 %v4556, 24
  %v4820 = vpop.permute.xlu0 %4819
  %4821 = vrot.lane.b32.xlu0 %v4600, 24
  %v4822 = vpop.permute.xlu0 %4821
  %4823 = vrot.lane.b32.xlu0 %v4603, 24
  %v4824 = vpop.permute.xlu0 %4823
  %4825 = vrot.lane.b32.xlu0 %v4647, 24
  %v4826 = vpop.permute.xlu0 %4825
  %4827 = vrot.lane.b32.xlu0 %v4650, 24
  %v4828 = vpop.permute.xlu0 %4827
  %v4845 = vsel %vm676, %v3190, %v4670
  %v4846 = vsel %vm676, %v3193, %v4672
  %v4847 = vsel %vm676, %v3237, %v4674
  %v4848 = vsel %vm676, %v3240, %v4676
  %v4849 = vsel %vm676, %v3284, %v4678
  %v4850 = vsel %vm676, %v3287, %v4680
  %v4851 = vsel %vm676, %v3331, %v4682
  %v4852 = vsel %vm676, %v3334, %v4684
  %v4853 = vsel %vm676, %v3378, %v4686
  %v4854 = vsel %vm676, %v3381, %v4688
  %v4855 = vsel %vm676, %v3425, %v4690
  %v4856 = vsel %vm676, %v3428, %v4692
  %v4857 = vsel %vm676, %v3472, %v4694
  %v4858 = vsel %vm676, %v3475, %v4696
  %v4859 = vsel %vm676, %v3519, %v4698
  %v4860 = vsel %vm676, %v3522, %v4700
  %v4861 = vsel %vm2412, %v4845, %v4734
  %v4862 = vsel %vm2412, %v4846, %v4736
  %v4863 = vsel %vm2412, %v4847, %v4738
  %v4864 = vsel %vm2412, %v4848, %v4740
  %v4865 = vsel %vm2412, %v4849, %v4742
  %v4866 = vsel %vm2412, %v4850, %v4744
  %v4867 = vsel %vm2412, %v4851, %v4746
  %v4868 = vsel %vm2412, %v4852, %v4748
  %v4869 = vsel %vm2412, %v4853, %v4750
  %v4870 = vsel %vm2412, %v4854, %v4752
  %v4871 = vsel %vm2412, %v4855, %v4754
  %v4872 = vsel %vm2412, %v4856, %v4756
  %v4873 = vsel %vm2412, %v4857, %v4758
  %v4874 = vsel %vm2412, %v4858, %v4760
  %v4875 = vsel %vm2412, %v4859, %v4762
  %v4876 = vsel %vm2412, %v4860, %v4764
  %vm4877 = vcmask 195584
  %v4878 = vsel %vm4877, %v4861, %v4798
  %v4879 = vsel %vm4877, %v4862, %v4800
  %v4880 = vsel %vm4877, %v4863, %v4802
  %v4881 = vsel %vm4877, %v4864, %v4804
  %v4882 = vsel %vm4877, %v4865, %v4806
  %v4883 = vsel %vm4877, %v4866, %v4808
  %v4884 = vsel %vm4877, %v4867, %v4810
  %v4885 = vsel %vm4877, %v4868, %v4812
  %v4886 = vsel %vm4877, %v4869, %v4814
  %v4887 = vsel %vm4877, %v4870, %v4816
  %v4888 = vsel %vm4877, %v4871, %v4818
  %v4889 = vsel %vm4877, %v4872, %v4820
  %v4890 = vsel %vm4877, %v4873, %v4822
  %v4891 = vsel %vm4877, %v4874, %v4824
  %v4892 = vsel %vm4877, %v4875, %v4826
  %v4893 = vsel %vm4877, %v4876, %v4828
  %v4894 = vpack.c.bf16 %v4879, %v4878
  %v4895 = vpack.c.bf16 %v4881, %v4880
  %v4896 = vpack.c.bf16 %v4883, %v4882
  %v4897 = vpack.c.bf16 %v4885, %v4884
  %v4898 = vpack.c.bf16 %v4887, %v4886
  %v4899 = vpack.c.bf16 %v4889, %v4888
  %v4900 = vpack.c.bf16 %v4891, %v4890
  %v4901 = vpack.c.bf16 %v4893, %v4892
  %v4902 = vld [vmem:[%s7] sm:$0xf]
  %v4903 = vld [vmem:[%s7 + $0x4] sm:$0xf]
  %v4904 = vld [vmem:[%s7 + $0x8] sm:$0xf]
  %v4905 = vld [vmem:[%s7 + $0xc] sm:$0xf]
  %v4906 = vld [vmem:[%s8] sm:$0x1]
  %v4908 = vlaneseq
  %v4909 = vshrl.u32 %v4908, 7
  %v4910 = vsub.s32 0, %v4909
  %v4911 = vrot.slane %v4906, %v4910
  %v4917 = vunpack.c.l.b16 %v4902
  %v4918 = vunpack.c.l.b16 %v4903
  %v4919 = vunpack.c.l.b16 %v4904
  %v4920 = vunpack.c.l.b16 %v4905
  %v4921 = vpack.c.b16 %v4918, %v4917
  %v4922 = vpack.c.b16 %v4920, %v4919
  %v4926 = vsel %vm73, %v4894, 0
  %v4929 = vsel %vm73, %v4895, 0
  %v4932 = vsel %vm73, %v4896, 0
  %v4935 = vsel %vm73, %v4897, 0
  %v4938 = vsel %vm73, %v4898, 0
  %v4941 = vsel %vm73, %v4899, 0
  %v4944 = vsel %vm73, %v4900, 0
  %v4947 = vsel %vm73, %v4901, 0
  %4949 = vmatprep.subr.bf16.mxu0 0
  %4950 = vmatpush1.bf16.msra.mxu0 %v4921
  %4951 = vmatprep.subr.bf16.mxu0 0
  %4952 = vmatpush1.bf16.msra.mxu0 %v4922
  %4953 = vmatprep.subr.bf16.mxu0 0
  %4954 = vmatpush1.bf16.msra.mxu0 0
  %4955 = vmatprep.subr.bf16.mxu0 0
  %4956 = vmatpush1.bf16.msra.mxu0 0
  %4957 = vmatprep.subr.bf16.mxu0 0
  %4958 = vmatpush1.bf16.msra.mxu0 0
  %4959 = vmatprep.subr.bf16.mxu0 0
  %4960 = vmatpush1.bf16.msra.mxu0 0
  %4961 = vmatprep.subr.bf16.mxu0 0
  %4962 = vmatpush1.bf16.msra.mxu0 0
  %4963 = vmatprep.subr.bf16.mxu0 0
  %4964 = vmatpush1.bf16.msra.mxu0 0
  %4965 = vmatprep.subr.bf16.mxu0 0
  %4966 = vmatpush1.bf16.msra.mxu0 0
  %4967 = vmatprep.subr.bf16.mxu0 0
  %4968 = vmatpush1.bf16.msra.mxu0 0
  %4969 = vmatprep.subr.bf16.mxu0 0
  %4970 = vmatpush1.bf16.msra.mxu0 0
  %4971 = vmatprep.subr.bf16.mxu0 0
  %4972 = vmatpush1.bf16.msra.mxu0 0
  %4973 = vmatprep.subr.bf16.mxu0 0
  %4974 = vmatpush1.bf16.msra.mxu0 0
  %4975 = vmatprep.subr.bf16.mxu0 0
  %4976 = vmatpush1.bf16.msra.mxu0 0
  %4977 = vmatprep.subr.bf16.mxu0 0
  %4978 = vmatpush1.bf16.msra.mxu0 0
  %4979 = vmatprep.subr.bf16.mxu0 0
  %4980 = vmatpush1.bf16.msra.mxu0 0
  %4981 = vmatprep.mubr.bf16.mxu0 0
  %4982 = vmatmul.mubr.bf16.gmra.mrb[0].mxu0 %v4926
  %v4983 = vpop.f32.mrb[0].mxu0
  %v4984 = vadd.f32 %v4911, %v4983
  %v4985 = vpop.f32.mrb[0].mxu0
  %v4986 = vpop.f32.mrb[0].mxu0
  %v4987 = vadd.f32 %v4911, %v4986
  %v4988 = vpop.f32.mrb[0].mxu0
  %4989 = vmatprep.mubr.bf16.mxu0 0
  %4990 = vmatmul.mubr.bf16.gmra.mrb[0].mxu0 %v4929
  %v4991 = vpop.f32.mrb[0].mxu0
  %v4992 = vadd.f32 %v4911, %v4991
  %v4993 = vpop.f32.mrb[0].mxu0
  %v4994 = vpop.f32.mrb[0].mxu0
  %v4995 = vadd.f32 %v4911, %v4994
  %v4996 = vpop.f32.mrb[0].mxu0
  %4997 = vmatprep.mubr.bf16.mxu0 0
  %4998 = vmatmul.mubr.bf16.gmra.mrb[0].mxu0 %v4932
  %v4999 = vpop.f32.mrb[0].mxu0
  %v5000 = vadd.f32 %v4911, %v4999
  %v5001 = vpop.f32.mrb[0].mxu0
  %v5002 = vpop.f32.mrb[0].mxu0
  %v5003 = vadd.f32 %v4911, %v5002
  %v5004 = vpop.f32.mrb[0].mxu0
  %5005 = vmatprep.mubr.bf16.mxu0 0
  %5006 = vmatmul.mubr.bf16.gmra.mrb[0].mxu0 %v4935
  %v5007 = vpop.f32.mrb[0].mxu0
  %v5008 = vadd.f32 %v4911, %v5007
  %v5009 = vpop.f32.mrb[0].mxu0
  %v5010 = vpop.f32.mrb[0].mxu0
  %v5011 = vadd.f32 %v4911, %v5010
  %v5012 = vpop.f32.mrb[0].mxu0
  %5013 = vmatprep.mubr.bf16.mxu0 0
  %5014 = vmatmul.mubr.bf16.gmra.mrb[0].mxu0 %v4938
  %v5015 = vpop.f32.mrb[0].mxu0
  %v5016 = vadd.f32 %v4911, %v5015
  %v5017 = vpop.f32.mrb[0].mxu0
  %v5018 = vpop.f32.mrb[0].mxu0
  %v5019 = vadd.f32 %v4911, %v5018
  %v5020 = vpop.f32.mrb[0].mxu0
  %5021 = vmatprep.mubr.bf16.mxu0 0
  %5022 = vmatmul.mubr.bf16.gmra.mrb[0].mxu0 %v4941
  %v5023 = vpop.f32.mrb[0].mxu0
  %v5024 = vadd.f32 %v4911, %v5023
  %v5025 = vpop.f32.mrb[0].mxu0
  %v5026 = vpop.f32.mrb[0].mxu0
  %v5027 = vadd.f32 %v4911, %v5026
  %v5028 = vpop.f32.mrb[0].mxu0
  %5029 = vmatprep.mubr.bf16.mxu0 0
  %5030 = vmatmul.mubr.bf16.gmra.mrb[0].mxu0 %v4944
  %v5031 = vpop.f32.mrb[0].mxu0
  %v5032 = vadd.f32 %v4911, %v5031
  %v5033 = vpop.f32.mrb[0].mxu0
  %v5034 = vpop.f32.mrb[0].mxu0
  %v5035 = vadd.f32 %v4911, %v5034
  %v5036 = vpop.f32.mrb[0].mxu0
  %5037 = vmatprep.mubr.bf16.mxu0 0
  %5038 = vmatmul.mubr.bf16.gmra.mrb[0].mxu0 %v4947
  %v5039 = vpop.f32.mrb[0].mxu0
  %v5040 = vadd.f32 %v4911, %v5039
  %v5041 = vpop.f32.mrb[0].mxu0
  %v5042 = vpop.f32.mrb[0].mxu0
  %v5043 = vadd.f32 %v4911, %v5042
  %v5044 = vpop.f32.mrb[0].mxu0
  %5045 = vdwg.mxu0
  %v5046 = vadd.f32 %v57, %v4984
  %v5047 = vadd.f32 %v58, %v4987
  %v5048 = vadd.f32 %v59, %v4992
  %v5049 = vadd.f32 %v60, %v4995
  %v5050 = vadd.f32 %v61, %v5000
  %v5051 = vadd.f32 %v62, %v5003
  %v5052 = vadd.f32 %v63, %v5008
  %v5053 = vadd.f32 %v64, %v5011
  %v5054 = vadd.f32 %v65, %v5016
  %v5055 = vadd.f32 %v66, %v5019
  %v5056 = vadd.f32 %v67, %v5024
  %v5057 = vadd.f32 %v68, %v5027
  %v5058 = vadd.f32 %v69, %v5032
  %v5059 = vadd.f32 %v70, %v5035
  %v5060 = vadd.f32 %v71, %v5040
  %v5061 = vadd.f32 %v72, %v5043
  %v5062 = vsel %vm73, %v5046, 0.0
  %5063 = vadd.xlane.f32.xlu0 %v5062
  %v5064 = vpop.xlane.xlu0 %5063
  %v5065 = vsel %vm73, %v5047, 0.0
  %5066 = vadd.xlane.f32.xlu0 %v5065
  %v5067 = vpop.xlane.xlu0 %5066
  %v5068 = vsel %vm73, %v5048, 0.0
  %5069 = vadd.xlane.f32.xlu0 %v5068
  %v5070 = vpop.xlane.xlu0 %5069
  %v5071 = vsel %vm73, %v5049, 0.0
  %5072 = vadd.xlane.f32.xlu0 %v5071
  %v5073 = vpop.xlane.xlu0 %5072
  %v5074 = vsel %vm73, %v5050, 0.0
  %5075 = vadd.xlane.f32.xlu0 %v5074
  %v5076 = vpop.xlane.xlu0 %5075
  %v5077 = vsel %vm73, %v5051, 0.0
  %5078 = vadd.xlane.f32.xlu0 %v5077
  %v5079 = vpop.xlane.xlu0 %5078
  %v5080 = vsel %vm73, %v5052, 0.0
  %5081 = vadd.xlane.f32.xlu0 %v5080
  %v5082 = vpop.xlane.xlu0 %5081
  %v5083 = vsel %vm73, %v5053, 0.0
  %5084 = vadd.xlane.f32.xlu0 %v5083
  %v5085 = vpop.xlane.xlu0 %5084
  %v5086 = vsel %vm73, %v5054, 0.0
  %5087 = vadd.xlane.f32.xlu0 %v5086
  %v5088 = vpop.xlane.xlu0 %5087
  %v5089 = vsel %vm73, %v5055, 0.0
  %5090 = vadd.xlane.f32.xlu0 %v5089
  %v5091 = vpop.xlane.xlu0 %5090
  %v5092 = vsel %vm73, %v5056, 0.0
  %5093 = vadd.xlane.f32.xlu0 %v5092
  %v5094 = vpop.xlane.xlu0 %5093
  %v5095 = vsel %vm73, %v5057, 0.0
  %5096 = vadd.xlane.f32.xlu0 %v5095
  %v5097 = vpop.xlane.xlu0 %5096
  %v5098 = vsel %vm73, %v5058, 0.0
  %5099 = vadd.xlane.f32.xlu0 %v5098
  %v5100 = vpop.xlane.xlu0 %5099
  %v5101 = vsel %vm73, %v5059, 0.0
  %5102 = vadd.xlane.f32.xlu0 %v5101
  %v5103 = vpop.xlane.xlu0 %5102
  %v5104 = vsel %vm73, %v5060, 0.0
  %5105 = vadd.xlane.f32.xlu0 %v5104
  %v5106 = vpop.xlane.xlu0 %5105
  %v5107 = vsel %vm73, %v5061, 0.0
  %5108 = vadd.xlane.f32.xlu0 %v5107
  %v5109 = vpop.xlane.xlu0 %5108
  %v5110 = vmul.f32 %v5064, %v122
  %v5111 = vmul.f32 %v5067, %v122
  %v5112 = vmul.f32 %v5070, %v122
  %v5113 = vmul.f32 %v5073, %v122
  %v5114 = vmul.f32 %v5076, %v122
  %v5115 = vmul.f32 %v5079, %v122
  %v5116 = vmul.f32 %v5082, %v122
  %v5117 = vmul.f32 %v5085, %v122
  %v5118 = vmul.f32 %v5088, %v122
  %v5119 = vmul.f32 %v5091, %v122
  %v5120 = vmul.f32 %v5094, %v122
  %v5121 = vmul.f32 %v5097, %v122
  %v5122 = vmul.f32 %v5100, %v122
  %v5123 = vmul.f32 %v5103, %v122
  %v5124 = vmul.f32 %v5106, %v122
  %v5125 = vmul.f32 %v5109, %v122
  %v5126 = vsub.f32 %v5046, %v5110
  %v5127 = vsub.f32 %v5047, %v5111
  %v5128 = vsub.f32 %v5048, %v5112
  %v5129 = vsub.f32 %v5049, %v5113
  %v5130 = vsub.f32 %v5050, %v5114
  %v5131 = vsub.f32 %v5051, %v5115
  %v5132 = vsub.f32 %v5052, %v5116
  %v5133 = vsub.f32 %v5053, %v5117
  %v5134 = vsub.f32 %v5054, %v5118
  %v5135 = vsub.f32 %v5055, %v5119
  %v5136 = vsub.f32 %v5056, %v5120
  %v5137 = vsub.f32 %v5057, %v5121
  %v5138 = vsub.f32 %v5058, %v5122
  %v5139 = vsub.f32 %v5059, %v5123
  %v5140 = vsub.f32 %v5060, %v5124
  %v5141 = vsub.f32 %v5061, %v5125
  %v5142 = vmul.f32 %v5126, %v5126
  %v5143 = vmul.f32 %v5127, %v5127
  %v5144 = vmul.f32 %v5128, %v5128
  %v5145 = vmul.f32 %v5129, %v5129
  %v5146 = vmul.f32 %v5130, %v5130
  %v5147 = vmul.f32 %v5131, %v5131
  %v5148 = vmul.f32 %v5132, %v5132
  %v5149 = vmul.f32 %v5133, %v5133
  %v5150 = vmul.f32 %v5134, %v5134
  %v5151 = vmul.f32 %v5135, %v5135
  %v5152 = vmul.f32 %v5136, %v5136
  %v5153 = vmul.f32 %v5137, %v5137
  %v5154 = vmul.f32 %v5138, %v5138
  %v5155 = vmul.f32 %v5139, %v5139
  %v5156 = vmul.f32 %v5140, %v5140
  %v5157 = vmul.f32 %v5141, %v5141
  %v5158 = vsel %vm73, %v5142, 0.0
  %5159 = vadd.xlane.f32.xlu0 %v5158
  %v5160 = vpop.xlane.xlu0 %5159
  %v5161 = vsel %vm73, %v5143, 0.0
  %5162 = vadd.xlane.f32.xlu0 %v5161
  %v5163 = vpop.xlane.xlu0 %5162
  %v5164 = vsel %vm73, %v5144, 0.0
  %5165 = vadd.xlane.f32.xlu0 %v5164
  %v5166 = vpop.xlane.xlu0 %5165
  %v5167 = vsel %vm73, %v5145, 0.0
  %5168 = vadd.xlane.f32.xlu0 %v5167
  %v5169 = vpop.xlane.xlu0 %5168
  %v5170 = vsel %vm73, %v5146, 0.0
  %5171 = vadd.xlane.f32.xlu0 %v5170
  %v5172 = vpop.xlane.xlu0 %5171
  %v5173 = vsel %vm73, %v5147, 0.0
  %5174 = vadd.xlane.f32.xlu0 %v5173
  %v5175 = vpop.xlane.xlu0 %5174
  %v5176 = vsel %vm73, %v5148, 0.0
  %5177 = vadd.xlane.f32.xlu0 %v5176
  %v5178 = vpop.xlane.xlu0 %5177
  %v5179 = vsel %vm73, %v5149, 0.0
  %5180 = vadd.xlane.f32.xlu0 %v5179
  %v5181 = vpop.xlane.xlu0 %5180
  %v5182 = vsel %vm73, %v5150, 0.0
  %5183 = vadd.xlane.f32.xlu0 %v5182
  %v5184 = vpop.xlane.xlu0 %5183
  %v5185 = vsel %vm73, %v5151, 0.0
  %5186 = vadd.xlane.f32.xlu0 %v5185
  %v5187 = vpop.xlane.xlu0 %5186
  %v5188 = vsel %vm73, %v5152, 0.0
  %5189 = vadd.xlane.f32.xlu0 %v5188
  %v5190 = vpop.xlane.xlu0 %5189
  %v5191 = vsel %vm73, %v5153, 0.0
  %5192 = vadd.xlane.f32.xlu0 %v5191
  %v5193 = vpop.xlane.xlu0 %5192
  %v5194 = vsel %vm73, %v5154, 0.0
  %5195 = vadd.xlane.f32.xlu0 %v5194
  %v5196 = vpop.xlane.xlu0 %5195
  %v5197 = vsel %vm73, %v5155, 0.0
  %5198 = vadd.xlane.f32.xlu0 %v5197
  %v5199 = vpop.xlane.xlu0 %5198
  %v5200 = vsel %vm73, %v5156, 0.0
  %5201 = vadd.xlane.f32.xlu0 %v5200
  %v5202 = vpop.xlane.xlu0 %5201
  %v5203 = vsel %vm73, %v5157, 0.0
  %5204 = vadd.xlane.f32.xlu0 %v5203
  %v5205 = vpop.xlane.xlu0 %5204
  %v5206 = vmul.f32 %v5160, %v122
  %v5207 = vmul.f32 %v5163, %v122
  %v5208 = vmul.f32 %v5166, %v122
  %v5209 = vmul.f32 %v5169, %v122
  %v5210 = vmul.f32 %v5172, %v122
  %v5211 = vmul.f32 %v5175, %v122
  %v5212 = vmul.f32 %v5178, %v122
  %v5213 = vmul.f32 %v5181, %v122
  %v5214 = vmul.f32 %v5184, %v122
  %v5215 = vmul.f32 %v5187, %v122
  %v5216 = vmul.f32 %v5190, %v122
  %v5217 = vmul.f32 %v5193, %v122
  %v5218 = vmul.f32 %v5196, %v122
  %v5219 = vmul.f32 %v5199, %v122
  %v5220 = vmul.f32 %v5202, %v122
  %v5221 = vmul.f32 %v5205, %v122
  %v5222 = vadd.f32 %v5206, 1e-05
  %v5223 = vadd.f32 %v5207, 1e-05
  %v5224 = vadd.f32 %v5208, 1e-05
  %v5225 = vadd.f32 %v5209, 1e-05
  %v5226 = vadd.f32 %v5210, 1e-05
  %v5227 = vadd.f32 %v5211, 1e-05
  %v5228 = vadd.f32 %v5212, 1e-05
  %v5229 = vadd.f32 %v5213, 1e-05
  %v5230 = vadd.f32 %v5214, 1e-05
  %v5231 = vadd.f32 %v5215, 1e-05
  %v5232 = vadd.f32 %v5216, 1e-05
  %v5233 = vadd.f32 %v5217, 1e-05
  %v5234 = vadd.f32 %v5218, 1e-05
  %v5235 = vadd.f32 %v5219, 1e-05
  %v5236 = vadd.f32 %v5220, 1e-05
  %v5237 = vadd.f32 %v5221, 1e-05
  %v5238 = vrsqrt.pop %v5222
  %v5239 = vrsqrt.pop %v5223
  %v5240 = vrsqrt.pop %v5224
  %v5241 = vrsqrt.pop %v5225
  %v5242 = vrsqrt.pop %v5226
  %v5243 = vrsqrt.pop %v5227
  %v5244 = vrsqrt.pop %v5228
  %v5245 = vrsqrt.pop %v5229
  %v5246 = vrsqrt.pop %v5230
  %v5247 = vrsqrt.pop %v5231
  %v5248 = vrsqrt.pop %v5232
  %v5249 = vrsqrt.pop %v5233
  %v5250 = vrsqrt.pop %v5234
  %v5251 = vrsqrt.pop %v5235
  %v5252 = vrsqrt.pop %v5236
  %v5253 = vrsqrt.pop %v5237
  %v5254 = vmul.f32 %v5126, %v5238
  %v5255 = vmul.f32 %v5127, %v5239
  %v5256 = vmul.f32 %v5128, %v5240
  %v5257 = vmul.f32 %v5129, %v5241
  %v5258 = vmul.f32 %v5130, %v5242
  %v5259 = vmul.f32 %v5131, %v5243
  %v5260 = vmul.f32 %v5132, %v5244
  %v5261 = vmul.f32 %v5133, %v5245
  %v5262 = vmul.f32 %v5134, %v5246
  %v5263 = vmul.f32 %v5135, %v5247
  %v5264 = vmul.f32 %v5136, %v5248
  %v5265 = vmul.f32 %v5137, %v5249
  %v5266 = vmul.f32 %v5138, %v5250
  %v5267 = vmul.f32 %v5139, %v5251
  %v5268 = vmul.f32 %v5140, %v5252
  %v5269 = vmul.f32 %v5141, %v5253
  %v5270 = vld [vmem:[%s9] sm:$0x1]
  %v5272 = vlaneseq
  %v5273 = vshrl.u32 %v5272, 7
  %v5274 = vsub.s32 0, %v5273
  %v5275 = vrot.slane %v5270, %v5274
  %v5277 = vmul.f32 %v5254, %v5275
  %v5278 = vmul.f32 %v5255, %v5275
  %v5279 = vmul.f32 %v5256, %v5275
  %v5280 = vmul.f32 %v5257, %v5275
  %v5281 = vmul.f32 %v5258, %v5275
  %v5282 = vmul.f32 %v5259, %v5275
  %v5283 = vmul.f32 %v5260, %v5275
  %v5284 = vmul.f32 %v5261, %v5275
  %v5285 = vmul.f32 %v5262, %v5275
  %v5286 = vmul.f32 %v5263, %v5275
  %v5287 = vmul.f32 %v5264, %v5275
  %v5288 = vmul.f32 %v5265, %v5275
  %v5289 = vmul.f32 %v5266, %v5275
  %v5290 = vmul.f32 %v5267, %v5275
  %v5291 = vmul.f32 %v5268, %v5275
  %v5292 = vmul.f32 %v5269, %v5275
  %v5293 = vld [vmem:[%s10] sm:$0x1]
  %v5295 = vlaneseq
  %v5296 = vshrl.u32 %v5295, 7
  %v5297 = vsub.s32 0, %v5296
  %v5298 = vrot.slane %v5293, %v5297
  %v5300 = vadd.f32 %v5277, %v5298
  %v5301 = vadd.f32 %v5278, %v5298
  %v5302 = vadd.f32 %v5279, %v5298
  %v5303 = vadd.f32 %v5280, %v5298
  %v5304 = vadd.f32 %v5281, %v5298
  %v5305 = vadd.f32 %v5282, %v5298
  %v5306 = vadd.f32 %v5283, %v5298
  %v5307 = vadd.f32 %v5284, %v5298
  %v5308 = vadd.f32 %v5285, %v5298
  %v5309 = vadd.f32 %v5286, %v5298
  %v5310 = vadd.f32 %v5287, %v5298
  %v5311 = vadd.f32 %v5288, %v5298
  %v5312 = vadd.f32 %v5289, %v5298
  %v5313 = vadd.f32 %v5290, %v5298
  %v5314 = vadd.f32 %v5291, %v5298
  %v5315 = vadd.f32 %v5292, %v5298
  %v5316 = vpack.c.bf16 %v5301, %v5300
  %v5317 = vpack.c.bf16 %v5303, %v5302
  %v5318 = vpack.c.bf16 %v5305, %v5304
  %v5319 = vpack.c.bf16 %v5307, %v5306
  %v5320 = vpack.c.bf16 %v5309, %v5308
  %v5321 = vpack.c.bf16 %v5311, %v5310
  %v5322 = vpack.c.bf16 %v5313, %v5312
  %v5323 = vpack.c.bf16 %v5315, %v5314
  %v5324 = vld [vmem:[%s11] sm:$0xf]
  %v5325 = vld [vmem:[%s11 + $0x4] sm:$0xf]
  %v5326 = vld [vmem:[%s11 + $0x8] sm:$0xf]
  %v5327 = vld [vmem:[%s11 + $0xc] sm:$0xf]
  %v5328 = vld [vmem:[%s12] sm:$0x1]
  %v5330 = vlaneseq
  %v5331 = vshrl.u32 %v5330, 7
  %v5332 = vsub.s32 0, %v5331
  %v5333 = vrot.slane %v5328, %v5332
  %v5339 = vunpack.c.l.b16 %v5324
  %v5340 = vunpack.c.l.b16 %v5325
  %v5341 = vunpack.c.l.b16 %v5326
  %v5342 = vunpack.c.l.b16 %v5327
  %v5343 = vpack.c.b16 %v5340, %v5339
  %v5344 = vpack.c.b16 %v5342, %v5341
  %v5348 = vsel %vm73, %v5316, 0
  %v5351 = vsel %vm73, %v5317, 0
  %v5354 = vsel %vm73, %v5318, 0
  %v5357 = vsel %vm73, %v5319, 0
  %v5360 = vsel %vm73, %v5320, 0
  %v5363 = vsel %vm73, %v5321, 0
  %v5366 = vsel %vm73, %v5322, 0
  %v5369 = vsel %vm73, %v5323, 0
  %5371 = vmatprep.subr.bf16.mxu0 0
  %5372 = vmatpush1.bf16.msra.mxu0 %v5343
  %5373 = vmatprep.subr.bf16.mxu0 0
  %5374 = vmatpush1.bf16.msra.mxu0 %v5344
  %5375 = vmatprep.subr.bf16.mxu0 0
  %5376 = vmatpush1.bf16.msra.mxu0 0
  %5377 = vmatprep.subr.bf16.mxu0 0
  %5378 = vmatpush1.bf16.msra.mxu0 0
  %5379 = vmatprep.subr.bf16.mxu0 0
  %5380 = vmatpush1.bf16.msra.mxu0 0
  %5381 = vmatprep.subr.bf16.mxu0 0
  %5382 = vmatpush1.bf16.msra.mxu0 0
  %5383 = vmatprep.subr.bf16.mxu0 0
  %5384 = vmatpush1.bf16.msra.mxu0 0
  %5385 = vmatprep.subr.bf16.mxu0 0
  %5386 = vmatpush1.bf16.msra.mxu0 0
  %5387 = vmatprep.subr.bf16.mxu0 0
  %5388 = vmatpush1.bf16.msra.mxu0 0
  %5389 = vmatprep.subr.bf16.mxu0 0
  %5390 = vmatpush1.bf16.msra.mxu0 0
  %5391 = vmatprep.subr.bf16.mxu0 0
  %5392 = vmatpush1.bf16.msra.mxu0 0
  %5393 = vmatprep.subr.bf16.mxu0 0
  %5394 = vmatpush1.bf16.msra.mxu0 0
  %5395 = vmatprep.subr.bf16.mxu0 0
  %5396 = vmatpush1.bf16.msra.mxu0 0
  %5397 = vmatprep.subr.bf16.mxu0 0
  %5398 = vmatpush1.bf16.msra.mxu0 0
  %5399 = vmatprep.subr.bf16.mxu0 0
  %5400 = vmatpush1.bf16.msra.mxu0 0
  %5401 = vmatprep.subr.bf16.mxu0 0
  %5402 = vmatpush1.bf16.msra.mxu0 0
  %5403 = vmatprep.mubr.bf16.mxu0 0
  %5404 = vmatmul.mubr.bf16.gmra.mrb[0].mxu0 %v5348
  %v5405 = vpop.f32.mrb[0].mxu0
  %v5406 = vadd.f32 %v5333, %v5405
  %v5407 = vpop.f32.mrb[0].mxu0
  %v5408 = vpop.f32.mrb[0].mxu0
  %v5409 = vadd.f32 %v5333, %v5408
  %v5410 = vpop.f32.mrb[0].mxu0
  %5411 = vmatprep.mubr.bf16.mxu0 0
  %5412 = vmatmul.mubr.bf16.gmra.mrb[0].mxu0 %v5351
  %v5413 = vpop.f32.mrb[0].mxu0
  %v5414 = vadd.f32 %v5333, %v5413
  %v5415 = vpop.f32.mrb[0].mxu0
  %v5416 = vpop.f32.mrb[0].mxu0
  %v5417 = vadd.f32 %v5333, %v5416
  %v5418 = vpop.f32.mrb[0].mxu0
  %5419 = vmatprep.mubr.bf16.mxu0 0
  %5420 = vmatmul.mubr.bf16.gmra.mrb[0].mxu0 %v5354
  %v5421 = vpop.f32.mrb[0].mxu0
  %v5422 = vadd.f32 %v5333, %v5421
  %v5423 = vpop.f32.mrb[0].mxu0
  %v5424 = vpop.f32.mrb[0].mxu0
  %v5425 = vadd.f32 %v5333, %v5424
  %v5426 = vpop.f32.mrb[0].mxu0
  %5427 = vmatprep.mubr.bf16.mxu0 0
  %5428 = vmatmul.mubr.bf16.gmra.mrb[0].mxu0 %v5357
  %v5429 = vpop.f32.mrb[0].mxu0
  %v5430 = vadd.f32 %v5333, %v5429
  %v5431 = vpop.f32.mrb[0].mxu0
  %v5432 = vpop.f32.mrb[0].mxu0
  %v5433 = vadd.f32 %v5333, %v5432
  %v5434 = vpop.f32.mrb[0].mxu0
  %5435 = vmatprep.mubr.bf16.mxu0 0
  %5436 = vmatmul.mubr.bf16.gmra.mrb[0].mxu0 %v5360
  %v5437 = vpop.f32.mrb[0].mxu0
  %v5438 = vadd.f32 %v5333, %v5437
  %v5439 = vpop.f32.mrb[0].mxu0
  %v5440 = vpop.f32.mrb[0].mxu0
  %v5441 = vadd.f32 %v5333, %v5440
  %v5442 = vpop.f32.mrb[0].mxu0
  %5443 = vmatprep.mubr.bf16.mxu0 0
  %5444 = vmatmul.mubr.bf16.gmra.mrb[0].mxu0 %v5363
  %v5445 = vpop.f32.mrb[0].mxu0
  %v5446 = vadd.f32 %v5333, %v5445
  %v5447 = vpop.f32.mrb[0].mxu0
  %v5448 = vpop.f32.mrb[0].mxu0
  %v5449 = vadd.f32 %v5333, %v5448
  %v5450 = vpop.f32.mrb[0].mxu0
  %5451 = vmatprep.mubr.bf16.mxu0 0
  %5452 = vmatmul.mubr.bf16.gmra.mrb[0].mxu0 %v5366
  %v5453 = vpop.f32.mrb[0].mxu0
  %v5454 = vadd.f32 %v5333, %v5453
  %v5455 = vpop.f32.mrb[0].mxu0
  %v5456 = vpop.f32.mrb[0].mxu0
  %v5457 = vadd.f32 %v5333, %v5456
  %v5458 = vpop.f32.mrb[0].mxu0
  %5459 = vmatprep.mubr.bf16.mxu0 0
  %5460 = vmatmul.mubr.bf16.gmra.mrb[0].mxu0 %v5369
  %v5461 = vpop.f32.mrb[0].mxu0
  %v5462 = vadd.f32 %v5333, %v5461
  %v5463 = vpop.f32.mrb[0].mxu0
  %v5464 = vpop.f32.mrb[0].mxu0
  %v5465 = vadd.f32 %v5333, %v5464
  %v5466 = vpop.f32.mrb[0].mxu0
  %5467 = vdwg.mxu0
  %v5468 = vmul.f32 %v5406, 0.5
  %v5469 = vmul.f32 %v5409, 0.5
  %v5470 = vmul.f32 %v5414, 0.5
  %v5471 = vmul.f32 %v5417, 0.5
  %v5472 = vmul.f32 %v5422, 0.5
  %v5473 = vmul.f32 %v5425, 0.5
  %v5474 = vmul.f32 %v5430, 0.5
  %v5475 = vmul.f32 %v5433, 0.5
  %v5476 = vmul.f32 %v5438, 0.5
  %v5477 = vmul.f32 %v5441, 0.5
  %v5478 = vmul.f32 %v5446, 0.5
  %v5479 = vmul.f32 %v5449, 0.5
  %v5480 = vmul.f32 %v5454, 0.5
  %v5481 = vmul.f32 %v5457, 0.5
  %v5482 = vmul.f32 %v5462, 0.5
  %v5483 = vmul.f32 %v5465, 0.5
  %v5484 = vmul.f32 %v5406, 0.70710677
  %v5485 = vmul.f32 %v5409, 0.70710677
  %v5486 = vmul.f32 %v5414, 0.70710677
  %v5487 = vmul.f32 %v5417, 0.70710677
  %v5488 = vmul.f32 %v5422, 0.70710677
  %v5489 = vmul.f32 %v5425, 0.70710677
  %v5490 = vmul.f32 %v5430, 0.70710677
  %v5491 = vmul.f32 %v5433, 0.70710677
  %v5492 = vmul.f32 %v5438, 0.70710677
  %v5493 = vmul.f32 %v5441, 0.70710677
  %v5494 = vmul.f32 %v5446, 0.70710677
  %v5495 = vmul.f32 %v5449, 0.70710677
  %v5496 = vmul.f32 %v5454, 0.70710677
  %v5497 = vmul.f32 %v5457, 0.70710677
  %v5498 = vmul.f32 %v5462, 0.70710677
  %v5499 = vmul.f32 %v5465, 0.70710677
  %v5500 = verf.f32.pop %v5484
  %v5501 = verf.f32.pop %v5485
  %v5502 = verf.f32.pop %v5486
  %v5503 = verf.f32.pop %v5487
  %v5504 = verf.f32.pop %v5488
  %v5505 = verf.f32.pop %v5489
  %v5506 = verf.f32.pop %v5490
  %v5507 = verf.f32.pop %v5491
  %v5508 = verf.f32.pop %v5492
  %v5509 = verf.f32.pop %v5493
  %v5510 = verf.f32.pop %v5494
  %v5511 = verf.f32.pop %v5495
  %v5512 = verf.f32.pop %v5496
  %v5513 = verf.f32.pop %v5497
  %v5514 = verf.f32.pop %v5498
  %v5515 = verf.f32.pop %v5499
  %v5516 = vadd.f32 %v5500, 1.0
  %v5517 = vadd.f32 %v5501, 1.0
  %v5518 = vadd.f32 %v5502, 1.0
  %v5519 = vadd.f32 %v5503, 1.0
  %v5520 = vadd.f32 %v5504, 1.0
  %v5521 = vadd.f32 %v5505, 1.0
  %v5522 = vadd.f32 %v5506, 1.0
  %v5523 = vadd.f32 %v5507, 1.0
  %v5524 = vadd.f32 %v5508, 1.0
  %v5525 = vadd.f32 %v5509, 1.0
  %v5526 = vadd.f32 %v5510, 1.0
  %v5527 = vadd.f32 %v5511, 1.0
  %v5528 = vadd.f32 %v5512, 1.0
  %v5529 = vadd.f32 %v5513, 1.0
  %v5530 = vadd.f32 %v5514, 1.0
  %v5531 = vadd.f32 %v5515, 1.0
  %v5532 = vmul.f32 %v5468, %v5516
  %v5533 = vmul.f32 %v5469, %v5517
  %v5534 = vmul.f32 %v5470, %v5518
  %v5535 = vmul.f32 %v5471, %v5519
  %v5536 = vmul.f32 %v5472, %v5520
  %v5537 = vmul.f32 %v5473, %v5521
  %v5538 = vmul.f32 %v5474, %v5522
  %v5539 = vmul.f32 %v5475, %v5523
  %v5540 = vmul.f32 %v5476, %v5524
  %v5541 = vmul.f32 %v5477, %v5525
  %v5542 = vmul.f32 %v5478, %v5526
  %v5543 = vmul.f32 %v5479, %v5527
  %v5544 = vmul.f32 %v5480, %v5528
  %v5545 = vmul.f32 %v5481, %v5529
  %v5546 = vmul.f32 %v5482, %v5530
  %v5547 = vmul.f32 %v5483, %v5531
  %v5548 = vpack.c.bf16 %v5533, %v5532
  %v5549 = vpack.c.bf16 %v5535, %v5534
  %v5550 = vpack.c.bf16 %v5537, %v5536
  %v5551 = vpack.c.bf16 %v5539, %v5538
  %v5552 = vpack.c.bf16 %v5541, %v5540
  %v5553 = vpack.c.bf16 %v5543, %v5542
  %v5554 = vpack.c.bf16 %v5545, %v5544
  %v5555 = vpack.c.bf16 %v5547, %v5546
  %v5556 = vld [vmem:[%s13] sm:$0xf]
  %v5557 = vld [vmem:[%s13 + $0x4] sm:$0xf]
  %v5558 = vld [vmem:[%s13 + $0x8] sm:$0xf]
  %v5559 = vld [vmem:[%s13 + $0xc] sm:$0xf]
  %v5560 = vld [vmem:[%s13 + $0x10] sm:$0xf]
  %v5561 = vld [vmem:[%s13 + $0x14] sm:$0xf]
  %v5562 = vld [vmem:[%s13 + $0x18] sm:$0xf]
  %v5563 = vld [vmem:[%s13 + $0x1c] sm:$0xf]
  %v5564 = vld [vmem:[%s13 + $0x20] sm:$0xf]
  %v5565 = vld [vmem:[%s13 + $0x24] sm:$0xf]
  %v5566 = vld [vmem:[%s13 + $0x28] sm:$0xf]
  %v5567 = vld [vmem:[%s13 + $0x2c] sm:$0xf]
  %v5568 = vld [vmem:[%s13 + $0x30] sm:$0xf]
  %v5569 = vld [vmem:[%s13 + $0x34] sm:$0xf]
  %v5570 = vld [vmem:[%s13 + $0x38] sm:$0xf]
  %v5571 = vld [vmem:[%s13 + $0x3c] sm:$0xf]
  %v5572 = vld [vmem:[%s14] sm:$0x1]
  %v5574 = vlaneseq
  %v5575 = vshrl.u32 %v5574, 7
  %v5576 = vsub.s32 0, %v5575
  %v5577 = vrot.slane %v5572, %v5576
  %v5595 = vunpack.c.l.b16 %v5556
  %v5596 = vunpack.c.l.b16 %v5557
  %v5597 = vunpack.c.l.b16 %v5558
  %v5598 = vunpack.c.l.b16 %v5559
  %v5599 = vunpack.c.l.b16 %v5560
  %v5600 = vunpack.c.l.b16 %v5561
  %v5601 = vunpack.c.l.b16 %v5562
  %v5602 = vunpack.c.l.b16 %v5563
  %v5603 = vunpack.c.l.b16 %v5564
  %v5604 = vunpack.c.l.b16 %v5565
  %v5605 = vunpack.c.l.b16 %v5566
  %v5606 = vunpack.c.l.b16 %v5567
  %v5607 = vunpack.c.l.b16 %v5568
  %v5608 = vunpack.c.l.b16 %v5569
  %v5609 = vunpack.c.l.b16 %v5570
  %v5610 = vunpack.c.l.b16 %v5571
  %v5611 = vpack.c.b16 %v5596, %v5595
  %v5612 = vpack.c.b16 %v5598, %v5597
  %v5613 = vpack.c.b16 %v5600, %v5599
  %v5614 = vpack.c.b16 %v5602, %v5601
  %v5615 = vpack.c.b16 %v5604, %v5603
  %v5616 = vpack.c.b16 %v5606, %v5605
  %v5617 = vpack.c.b16 %v5608, %v5607
  %v5618 = vpack.c.b16 %v5610, %v5609
  %5627 = vmatprep.subr.bf16.mxu0 0
  %5628 = vmatpush1.bf16.msra.mxu0 %v5611
  %5629 = vmatprep.subr.bf16.mxu0 0
  %5630 = vmatpush1.bf16.msra.mxu0 %v5612
  %5631 = vmatprep.subr.bf16.mxu0 0
  %5632 = vmatpush1.bf16.msra.mxu0 %v5613
  %5633 = vmatprep.subr.bf16.mxu0 0
  %5634 = vmatpush1.bf16.msra.mxu0 %v5614
  %5635 = vmatprep.subr.bf16.mxu0 0
  %5636 = vmatpush1.bf16.msra.mxu0 %v5615
  %5637 = vmatprep.subr.bf16.mxu0 0
  %5638 = vmatpush1.bf16.msra.mxu0 %v5616
  %5639 = vmatprep.subr.bf16.mxu0 0
  %5640 = vmatpush1.bf16.msra.mxu0 %v5617
  %5641 = vmatprep.subr.bf16.mxu0 0
  %5642 = vmatpush1.bf16.msra.mxu0 %v5618
  %5643 = vmatprep.subr.bf16.mxu0 0
  %5644 = vmatpush1.bf16.msra.mxu0 0
  %5645 = vmatprep.subr.bf16.mxu0 0
  %5646 = vmatpush1.bf16.msra.mxu0 0
  %5647 = vmatprep.subr.bf16.mxu0 0
  %5648 = vmatpush1.bf16.msra.mxu0 0
  %5649 = vmatprep.subr.bf16.mxu0 0
  %5650 = vmatpush1.bf16.msra.mxu0 0
  %5651 = vmatprep.subr.bf16.mxu0 0
  %5652 = vmatpush1.bf16.msra.mxu0 0
  %5653 = vmatprep.subr.bf16.mxu0 0
  %5654 = vmatpush1.bf16.msra.mxu0 0
  %5655 = vmatprep.subr.bf16.mxu0 0
  %5656 = vmatpush1.bf16.msra.mxu0 0
  %5657 = vmatprep.subr.bf16.mxu0 0
  %5658 = vmatpush1.bf16.msra.mxu0 0
  %5659 = vmatprep.mubr.bf16.mxu0 0
  %5660 = vmatmul.mubr.bf16.gmra.mrb[0].mxu0 %v5548
  %v5661 = vpop.f32.mrb[0].mxu0
  %v5662 = vadd.f32 %v5577, %v5661
  %v5663 = vpop.f32.mrb[0].mxu0
  %v5664 = vpop.f32.mrb[0].mxu0
  %v5665 = vadd.f32 %v5577, %v5664
  %v5666 = vpop.f32.mrb[0].mxu0
  %5667 = vmatprep.mubr.bf16.mxu0 0
  %5668 = vmatmul.mubr.bf16.gmra.mrb[0].mxu0 %v5549
  %v5669 = vpop.f32.mrb[0].mxu0
  %v5670 = vadd.f32 %v5577, %v5669
  %v5671 = vpop.f32.mrb[0].mxu0
  %v5672 = vpop.f32.mrb[0].mxu0
  %v5673 = vadd.f32 %v5577, %v5672
  %v5674 = vpop.f32.mrb[0].mxu0
  %5675 = vmatprep.mubr.bf16.mxu0 0
  %5676 = vmatmul.mubr.bf16.gmra.mrb[0].mxu0 %v5550
  %v5677 = vpop.f32.mrb[0].mxu0
  %v5678 = vadd.f32 %v5577, %v5677
  %v5679 = vpop.f32.mrb[0].mxu0
  %v5680 = vpop.f32.mrb[0].mxu0
  %v5681 = vadd.f32 %v5577, %v5680
  %v5682 = vpop.f32.mrb[0].mxu0
  %5683 = vmatprep.mubr.bf16.mxu0 0
  %5684 = vmatmul.mubr.bf16.gmra.mrb[0].mxu0 %v5551
  %v5685 = vpop.f32.mrb[0].mxu0
  %v5686 = vadd.f32 %v5577, %v5685
  %v5687 = vpop.f32.mrb[0].mxu0
  %v5688 = vpop.f32.mrb[0].mxu0
  %v5689 = vadd.f32 %v5577, %v5688
  %v5690 = vpop.f32.mrb[0].mxu0
  %5691 = vmatprep.mubr.bf16.mxu0 0
  %5692 = vmatmul.mubr.bf16.gmra.mrb[0].mxu0 %v5552
  %v5693 = vpop.f32.mrb[0].mxu0
  %v5694 = vadd.f32 %v5577, %v5693
  %v5695 = vpop.f32.mrb[0].mxu0
  %v5696 = vpop.f32.mrb[0].mxu0
  %v5697 = vadd.f32 %v5577, %v5696
  %v5698 = vpop.f32.mrb[0].mxu0
  %5699 = vmatprep.mubr.bf16.mxu0 0
  %5700 = vmatmul.mubr.bf16.gmra.mrb[0].mxu0 %v5553
  %v5701 = vpop.f32.mrb[0].mxu0
  %v5702 = vadd.f32 %v5577, %v5701
  %v5703 = vpop.f32.mrb[0].mxu0
  %v5704 = vpop.f32.mrb[0].mxu0
  %v5705 = vadd.f32 %v5577, %v5704
  %v5706 = vpop.f32.mrb[0].mxu0
  %5707 = vmatprep.mubr.bf16.mxu0 0
  %5708 = vmatmul.mubr.bf16.gmra.mrb[0].mxu0 %v5554
  %v5709 = vpop.f32.mrb[0].mxu0
  %v5710 = vadd.f32 %v5577, %v5709
  %v5711 = vpop.f32.mrb[0].mxu0
  %v5712 = vpop.f32.mrb[0].mxu0
  %v5713 = vadd.f32 %v5577, %v5712
  %v5714 = vpop.f32.mrb[0].mxu0
  %5715 = vmatprep.mubr.bf16.mxu0 0
  %5716 = vmatmul.mubr.bf16.gmra.mrb[0].mxu0 %v5555
  %v5717 = vpop.f32.mrb[0].mxu0
  %v5718 = vadd.f32 %v5577, %v5717
  %v5719 = vpop.f32.mrb[0].mxu0
  %v5720 = vpop.f32.mrb[0].mxu0
  %v5721 = vadd.f32 %v5577, %v5720
  %v5722 = vpop.f32.mrb[0].mxu0
  %5723 = vdwg.mxu0
  %v5724 = vadd.f32 %v5046, %v5662
  %v5725 = vadd.f32 %v5047, %v5665
  %v5726 = vadd.f32 %v5048, %v5670
  %v5727 = vadd.f32 %v5049, %v5673
  %v5728 = vadd.f32 %v5050, %v5678
  %v5729 = vadd.f32 %v5051, %v5681
  %v5730 = vadd.f32 %v5052, %v5686
  %v5731 = vadd.f32 %v5053, %v5689
  %v5732 = vadd.f32 %v5054, %v5694
  %v5733 = vadd.f32 %v5055, %v5697
  %v5734 = vadd.f32 %v5056, %v5702
  %v5735 = vadd.f32 %v5057, %v5705
  %v5736 = vadd.f32 %v5058, %v5710
  %v5737 = vadd.f32 %v5059, %v5713
  %v5738 = vadd.f32 %v5060, %v5718
  %v5739 = vadd.f32 %v5061, %v5721
  %5740 = vst.msk [vmem:[%s17] sm:$0xff] %vm73, %v5724
  %5741 = vst.msk [vmem:[%s17 + $0x8] sm:$0xff] %vm73, %v5725
  %5742 = vst.msk [vmem:[%s17 + $0x10] sm:$0xff] %vm73, %v5726
  %5743 = vst.msk [vmem:[%s17 + $0x18] sm:$0xff] %vm73, %v5727
  %5744 = vst.msk [vmem:[%s17 + $0x20] sm:$0xff] %vm73, %v5728
  %5745 = vst.msk [vmem:[%s17 + $0x28] sm:$0xff] %vm73, %v5729
  %5746 = vst.msk [vmem:[%s17 + $0x30] sm:$0xff] %vm73, %v5730
  %5747 = vst.msk [vmem:[%s17 + $0x38] sm:$0xff] %vm73, %v5731
  %5748 = vst.msk [vmem:[%s17 + $0x40] sm:$0xff] %vm73, %v5732
  %5749 = vst.msk [vmem:[%s17 + $0x48] sm:$0xff] %vm73, %v5733
  %5750 = vst.msk [vmem:[%s17 + $0x50] sm:$0xff] %vm73, %v5734
  %5751 = vst.msk [vmem:[%s17 + $0x58] sm:$0xff] %vm73, %v5735
  %5752 = vst.msk [vmem:[%s17 + $0x60] sm:$0xff] %vm73, %v5736
  %5753 = vst.msk [vmem:[%s17 + $0x68] sm:$0xff] %vm73, %v5737
  %5754 = vst.msk [vmem:[%s17 + $0x70] sm:$0xff] %vm73, %v5738
  %5755 = vst.msk [vmem:[%s17 + $0x78] sm:$0xff] %vm73, %v5739
  // Predicated region
  $region70: #{forward.4} parent=0 // pred_check
    _
  $region71: #{forward.4} parent=0 // pred_check_branch
    %5757 = sbr.rel (0) target = $region73
  $region72: #{forward.4} parent=0 // pred_region
    _
  $region73: #{forward.4} parent=0 // pred_fallthru
    _
  // Predicated region
  $region74: #{forward.4} parent=0 // pred_check
    _
  $region75: #{forward.4} parent=0 // pred_check_branch
    %5759 = sbr.rel (0) target = $region77
  $region76: #{forward.4} parent=0 // pred_region
    _
  $region77: #{forward.4} parent=0 // pred_fallthru
    _

// kernel: forward.5
$region0: #{forward.5}
  #allocation0 [shape = 'u32[]', space=smem, size = 0x4, offset = 0x4, fixed_abs, tag = 'smem constant byte address 0x4 - core index']
  #allocation1 [shape = 'u32[144,128]{1,0:T(1,128)}', space=vmem, size = 0x12000, scoped, tag = 'internal scratch']
  %s0 = inlined_call_operand.vmem [shape: f32[8,16,32], index: 0, kind: input, shape index: {}]
  %s1 = inlined_call_operand.vmem [shape: f32[4,16,16], index: 1, kind: input, shape index: {}]
  %s2 = inlined_call_operand.vmem [shape: f32[4,16,16], index: 2, kind: input, shape index: {}]
  %s3 = inlined_call_operand.vmem [shape: f32[1,32], index: 3, kind: input, shape index: {}]
  %s4 = inlined_call_operand.vmem [shape: f32[1,32], index: 4, kind: input, shape index: {}]
  %s5 = inlined_call_operand.vmem [shape: bf16[32,96], index: 5, kind: input, shape index: {}]
  %s6 = inlined_call_operand.vmem [shape: f32[1,96], index: 6, kind: input, shape index: {}]
  %s7 = inlined_call_operand.vmem [shape: bf16[32,32], index: 7, kind: input, shape index: {}]
  %s8 = inlined_call_operand.vmem [shape: f32[1,32], index: 8, kind: input, shape index: {}]
  %s9 = inlined_call_operand.vmem [shape: f32[1,32], index: 9, kind: input, shape index: {}]
  %s10 = inlined_call_operand.vmem [shape: f32[1,32], index: 10, kind: input, shape index: {}]
  %s11 = inlined_call_operand.vmem [shape: bf16[32,128], index: 11, kind: input, shape index: {}]
  %s12 = inlined_call_operand.vmem [shape: f32[1,128], index: 12, kind: input, shape index: {}]
  %s13 = inlined_call_operand.vmem [shape: bf16[128,32], index: 13, kind: input, shape index: {}]
  %s14 = inlined_call_operand.vmem [shape: f32[1,32], index: 14, kind: input, shape index: {}]
  %s15 = inlined_call_operand.vmem [shape: f32[1,32], index: 15, kind: input, shape index: {}]
  %s16 = inlined_call_operand.vmem [shape: f32[1,32], index: 16, kind: input, shape index: {}]
  %s17 = inlined_call_operand.vmem [shape: f32[8,16,32], index: 17, kind: output, shape index: {}]
  %s18 = sld [smem:[#allocation0]]
  $region78: #{forward.5} parent=0
    _
  %s20 = ssub.s32 1, %s18
  %s21 = scalar_select 0, %s20, %s18
  // Predicated region
  $region2: #{forward.5} parent=0 // pred_check
    _
  $region3: #{forward.5} parent=0 // pred_check_branch
    %23 = sbr.rel (0) target = $region5
  $region4: #{forward.5} parent=0 // pred_region
    _
  $region5: #{forward.5} parent=0 // pred_fallthru
    _
  // Predicated region
  $region6: #{forward.5} parent=0 // pred_check
    _
  $region7: #{forward.5} parent=0 // pred_check_branch
    %25 = sbr.rel (0) target = $region9
  $region8: #{forward.5} parent=0 // pred_region
    _
  $region9: #{forward.5} parent=0 // pred_fallthru
    _
  // Predicated region
  $region10: #{forward.5} parent=0 // pred_check
    _
  $region11: #{forward.5} parent=0 // pred_check_branch
    %27 = sbr.rel (0) target = $region13
  $region12: #{forward.5} parent=0 // pred_region
    _
  $region13: #{forward.5} parent=0 // pred_fallthru
    _
  // Predicated region
  $region14: #{forward.5} parent=0 // pred_check
    _
  $region15: #{forward.5} parent=0 // pred_check_branch
    %29 = sbr.rel (0) target = $region17
  $region16: #{forward.5} parent=0 // pred_region
    _
  $region17: #{forward.5} parent=0 // pred_fallthru
    _
  // Predicated region
  $region18: #{forward.5} parent=0 // pred_check
    _
  $region19: #{forward.5} parent=0 // pred_check_branch
    %31 = sbr.rel (0) target = $region21
  $region20: #{forward.5} parent=0 // pred_region
    _
  $region21: #{forward.5} parent=0 // pred_fallthru
    _
  // Predicated region
  $region22: #{forward.5} parent=0 // pred_check
    _
  $region23: #{forward.5} parent=0 // pred_check_branch
    %33 = sbr.rel (0) target = $region25
  $region24: #{forward.5} parent=0 // pred_region
    _
  $region25: #{forward.5} parent=0 // pred_fallthru
    _
  // Predicated region
  $region26: #{forward.5} parent=0 // pred_check
    _
  $region27: #{forward.5} parent=0 // pred_check_branch
    %35 = sbr.rel (0) target = $region29
  $region28: #{forward.5} parent=0 // pred_region
    _
  $region29: #{forward.5} parent=0 // pred_fallthru
    _
  // Predicated region
  $region30: #{forward.5} parent=0 // pred_check
    _
  $region31: #{forward.5} parent=0 // pred_check_branch
    %37 = sbr.rel (0) target = $region33
  $region32: #{forward.5} parent=0 // pred_region
    _
  $region33: #{forward.5} parent=0 // pred_fallthru
    _
  // Predicated region
  $region34: #{forward.5} parent=0 // pred_check
    _
  $region35: #{forward.5} parent=0 // pred_check_branch
    %39 = sbr.rel (0) target = $region37
  $region36: #{forward.5} parent=0 // pred_region
    _
  $region37: #{forward.5} parent=0 // pred_fallthru
    _
  // Predicated region
  $region38: #{forward.5} parent=0 // pred_check
    _
  $region39: #{forward.5} parent=0 // pred_check_branch
    %41 = sbr.rel (0) target = $region41
  $region40: #{forward.5} parent=0 // pred_region
    _
  $region41: #{forward.5} parent=0 // pred_fallthru
    _
  // Predicated region
  $region42: #{forward.5} parent=0 // pred_check
    _
  $region43: #{forward.5} parent=0 // pred_check_branch
    %43 = sbr.rel (0) target = $region45
  $region44: #{forward.5} parent=0 // pred_region
    _
  $region45: #{forward.5} parent=0 // pred_fallthru
    _
  // Predicated region
  $region46: #{forward.5} parent=0 // pred_check
    _
  $region47: #{forward.5} parent=0 // pred_check_branch
    %45 = sbr.rel (0) target = $region49
  $region48: #{forward.5} parent=0 // pred_region
    _
  $region49: #{forward.5} parent=0 // pred_fallthru
    _
  // Predicated region
  $region50: #{forward.5} parent=0 // pred_check
    _
  $region51: #{forward.5} parent=0 // pred_check_branch
    %47 = sbr.rel (0) target = $region53
  $region52: #{forward.5} parent=0 // pred_region
    _
  $region53: #{forward.5} parent=0 // pred_fallthru
    _
  // Predicated region
  $region54: #{forward.5} parent=0 // pred_check
    _
  $region55: #{forward.5} parent=0 // pred_check_branch
    %49 = sbr.rel (0) target = $region57
  $region56: #{forward.5} parent=0 // pred_region
    _
  $region57: #{forward.5} parent=0 // pred_fallthru
    _
  // Predicated region
  $region58: #{forward.5} parent=0 // pred_check
    _
  $region59: #{forward.5} parent=0 // pred_check_branch
    %51 = sbr.rel (0) target = $region61
  $region60: #{forward.5} parent=0 // pred_region
    _
  $region61: #{forward.5} parent=0 // pred_fallthru
    _
  // Predicated region
  $region62: #{forward.5} parent=0 // pred_check
    _
  $region63: #{forward.5} parent=0 // pred_check_branch
    %53 = sbr.rel (0) target = $region65
  $region64: #{forward.5} parent=0 // pred_region
    _
  $region65: #{forward.5} parent=0 // pred_fallthru
    _
  // Predicated region
  $region66: #{forward.5} parent=0 // pred_check
    _
  $region67: #{forward.5} parent=0 // pred_check_branch
    %55 = sbr.rel (0) target = $region69
  $region68: #{forward.5} parent=0 // pred_region
    _
  $region69: #{forward.5} parent=0 // pred_fallthru
    _
  %v57 = vld [vmem:[%s0] sm:$0xff]
  %v58 = vld [vmem:[%s0 + $0x8] sm:$0xff]
  %v59 = vld [vmem:[%s0 + $0x10] sm:$0xff]
  %v60 = vld [vmem:[%s0 + $0x18] sm:$0xff]
  %v61 = vld [vmem:[%s0 + $0x20] sm:$0xff]
  %v62 = vld [vmem:[%s0 + $0x28] sm:$0xff]
  %v63 = vld [vmem:[%s0 + $0x30] sm:$0xff]
  %v64 = vld [vmem:[%s0 + $0x38] sm:$0xff]
  %v65 = vld [vmem:[%s0 + $0x40] sm:$0xff]
  %v66 = vld [vmem:[%s0 + $0x48] sm:$0xff]
  %v67 = vld [vmem:[%s0 + $0x50] sm:$0xff]
  %v68 = vld [vmem:[%s0 + $0x58] sm:$0xff]
  %v69 = vld [vmem:[%s0 + $0x60] sm:$0xff]
  %v70 = vld [vmem:[%s0 + $0x68] sm:$0xff]
  %v71 = vld [vmem:[%s0 + $0x70] sm:$0xff]
  %v72 = vld [vmem:[%s0 + $0x78] sm:$0xff]
  %vm73 = vcmask 261120
  %v74 = vsel %vm73, %v57, 0.0
  %75 = vadd.xlane.f32.xlu0 %v74
  %v76 = vpop.xlane.xlu0 %75
  %v77 = vsel %vm73, %v58, 0.0
  %78 = vadd.xlane.f32.xlu0 %v77
  %v79 = vpop.xlane.xlu0 %78
  %v80 = vsel %vm73, %v59, 0.0
  %81 = vadd.xlane.f32.xlu0 %v80
  %v82 = vpop.xlane.xlu0 %81
  %v83 = vsel %vm73, %v60, 0.0
  %84 = vadd.xlane.f32.xlu0 %v83
  %v85 = vpop.xlane.xlu0 %84
  %v86 = vsel %vm73, %v61, 0.0
  %87 = vadd.xlane.f32.xlu0 %v86
  %v88 = vpop.xlane.xlu0 %87
  %v89 = vsel %vm73, %v62, 0.0
  %90 = vadd.xlane.f32.xlu0 %v89
  %v91 = vpop.xlane.xlu0 %90
  %v92 = vsel %vm73, %v63, 0.0
  %93 = vadd.xlane.f32.xlu0 %v92
  %v94 = vpop.xlane.xlu0 %93
  %v95 = vsel %vm73, %v64, 0.0
  %96 = vadd.xlane.f32.xlu0 %v95
  %v97 = vpop.xlane.xlu0 %96
  %v98 = vsel %vm73, %v65, 0.0
  %99 = vadd.xlane.f32.xlu0 %v98
  %v100 = vpop.xlane.xlu0 %99
  %v101 = vsel %vm73, %v66, 0.0
  %102 = vadd.xlane.f32.xlu0 %v101
  %v103 = vpop.xlane.xlu0 %102
  %v104 = vsel %vm73, %v67, 0.0
  %105 = vadd.xlane.f32.xlu0 %v104
  %v106 = vpop.xlane.xlu0 %105
  %v107 = vsel %vm73, %v68, 0.0
  %108 = vadd.xlane.f32.xlu0 %v107
  %v109 = vpop.xlane.xlu0 %108
  %v110 = vsel %vm73, %v69, 0.0
  %111 = vadd.xlane.f32.xlu0 %v110
  %v112 = vpop.xlane.xlu0 %111
  %v113 = vsel %vm73, %v70, 0.0
  %114 = vadd.xlane.f32.xlu0 %v113
  %v115 = vpop.xlane.xlu0 %114
  %v116 = vsel %vm73, %v71, 0.0
  %117 = vadd.xlane.f32.xlu0 %v116
  %v118 = vpop.xlane.xlu0 %117
  %v119 = vsel %vm73, %v72, 0.0
  %120 = vadd.xlane.f32.xlu0 %v119
  %v121 = vpop.xlane.xlu0 %120
  %v122 = vrcp.pop 32.0
  %v123 = vmul.f32 %v76, %v122
  %v124 = vmul.f32 %v79, %v122
  %v125 = vmul.f32 %v82, %v122
  %v126 = vmul.f32 %v85, %v122
  %v127 = vmul.f32 %v88, %v122
  %v128 = vmul.f32 %v91, %v122
  %v129 = vmul.f32 %v94, %v122
  %v130 = vmul.f32 %v97, %v122
  %v131 = vmul.f32 %v100, %v122
  %v132 = vmul.f32 %v103, %v122
  %v133 = vmul.f32 %v106, %v122
  %v134 = vmul.f32 %v109, %v122
  %v135 = vmul.f32 %v112, %v122
  %v136 = vmul.f32 %v115, %v122
  %v137 = vmul.f32 %v118, %v122
  %v138 = vmul.f32 %v121, %v122
  %v139 = vsub.f32 %v57, %v123
  %v140 = vsub.f32 %v58, %v124
  %v141 = vsub.f32 %v59, %v125
  %v142 = vsub.f32 %v60, %v126
  %v143 = vsub.f32 %v61, %v127
  %v144 = vsub.f32 %v62, %v128
  %v145 = vsub.f32 %v63, %v129
  %v146 = vsub.f32 %v64, %v130
  %v147 = vsub.f32 %v65, %v131
  %v148 = vsub.f32 %v66, %v132
  %v149 = vsub.f32 %v67, %v133
  %v150 = vsub.f32 %v68, %v134
  %v151 = vsub.f32 %v69, %v135
  %v152 = vsub.f32 %v70, %v136
  %v153 = vsub.f32 %v71, %v137
  %v154 = vsub.f32 %v72, %v138
  %v155 = vmul.f32 %v139, %v139
  %v156 = vmul.f32 %v140, %v140
  %v157 = vmul.f32 %v141, %v141
  %v158 = vmul.f32 %v142, %v142
  %v159 = vmul.f32 %v143, %v143
  %v160 = vmul.f32 %v144, %v144
  %v161 = vmul.f32 %v145, %v145
  %v162 = vmul.f32 %v146, %v146
  %v163 = vmul.f32 %v147, %v147
  %v164 = vmul.f32 %v148, %v148
  %v165 = vmul.f32 %v149, %v149
  %v166 = vmul.f32 %v150, %v150
  %v167 = vmul.f32 %v151, %v151
  %v168 = vmul.f32 %v152, %v152
  %v169 = vmul.f32 %v153, %v153
  %v170 = vmul.f32 %v154, %v154
  %v171 = vsel %vm73, %v155, 0.0
  %172 = vadd.xlane.f32.xlu0 %v171
  %v173 = vpop.xlane.xlu0 %172
  %v174 = vsel %vm73, %v156, 0.0
  %175 = vadd.xlane.f32.xlu0 %v174
  %v176 = vpop.xlane.xlu0 %175
  %v177 = vsel %vm73, %v157, 0.0
  %178 = vadd.xlane.f32.xlu0 %v177
  %v179 = vpop.xlane.xlu0 %178
  %v180 = vsel %vm73, %v158, 0.0
  %181 = vadd.xlane.f32.xlu0 %v180
  %v182 = vpop.xlane.xlu0 %181
  %v183 = vsel %vm73, %v159, 0.0
  %184 = vadd.xlane.f32.xlu0 %v183
  %v185 = vpop.xlane.xlu0 %184
  %v186 = vsel %vm73, %v160, 0.0
  %187 = vadd.xlane.f32.xlu0 %v186
  %v188 = vpop.xlane.xlu0 %187
  %v189 = vsel %vm73, %v161, 0.0
  %190 = vadd.xlane.f32.xlu0 %v189
  %v191 = vpop.xlane.xlu0 %190
  %v192 = vsel %vm73, %v162, 0.0
  %193 = vadd.xlane.f32.xlu0 %v192
  %v194 = vpop.xlane.xlu0 %193
  %v195 = vsel %vm73, %v163, 0.0
  %196 = vadd.xlane.f32.xlu0 %v195
  %v197 = vpop.xlane.xlu0 %196
  %v198 = vsel %vm73, %v164, 0.0
  %199 = vadd.xlane.f32.xlu0 %v198
  %v200 = vpop.xlane.xlu0 %199
  %v201 = vsel %vm73, %v165, 0.0
  %202 = vadd.xlane.f32.xlu0 %v201
  %v203 = vpop.xlane.xlu0 %202
  %v204 = vsel %vm73, %v166, 0.0
  %205 = vadd.xlane.f32.xlu0 %v204
  %v206 = vpop.xlane.xlu0 %205
  %v207 = vsel %vm73, %v167, 0.0
  %208 = vadd.xlane.f32.xlu0 %v207
  %v209 = vpop.xlane.xlu0 %208
  %v210 = vsel %vm73, %v168, 0.0
  %211 = vadd.xlane.f32.xlu0 %v210
  %v212 = vpop.xlane.xlu0 %211
  %v213 = vsel %vm73, %v169, 0.0
  %214 = vadd.xlane.f32.xlu0 %v213
  %v215 = vpop.xlane.xlu0 %214
  %v216 = vsel %vm73, %v170, 0.0
  %217 = vadd.xlane.f32.xlu0 %v216
  %v218 = vpop.xlane.xlu0 %217
  %v219 = vmul.f32 %v173, %v122
  %v220 = vmul.f32 %v176, %v122
  %v221 = vmul.f32 %v179, %v122
  %v222 = vmul.f32 %v182, %v122
  %v223 = vmul.f32 %v185, %v122
  %v224 = vmul.f32 %v188, %v122
  %v225 = vmul.f32 %v191, %v122
  %v226 = vmul.f32 %v194, %v122
  %v227 = vmul.f32 %v197, %v122
  %v228 = vmul.f32 %v200, %v122
  %v229 = vmul.f32 %v203, %v122
  %v230 = vmul.f32 %v206, %v122
  %v231 = vmul.f32 %v209, %v122
  %v232 = vmul.f32 %v212, %v122
  %v233 = vmul.f32 %v215, %v122
  %v234 = vmul.f32 %v218, %v122
  %v235 = vadd.f32 %v219, 1e-05
  %v236 = vadd.f32 %v220, 1e-05
  %v237 = vadd.f32 %v221, 1e-05
  %v238 = vadd.f32 %v222, 1e-05
  %v239 = vadd.f32 %v223, 1e-05
  %v240 = vadd.f32 %v224, 1e-05
  %v241 = vadd.f32 %v225, 1e-05
  %v242 = vadd.f32 %v226, 1e-05
  %v243 = vadd.f32 %v227, 1e-05
  %v244 = vadd.f32 %v228, 1e-05
  %v245 = vadd.f32 %v229, 1e-05
  %v246 = vadd.f32 %v230, 1e-05
  %v247 = vadd.f32 %v231, 1e-05
  %v248 = vadd.f32 %v232, 1e-05
  %v249 = vadd.f32 %v233, 1e-05
  %v250 = vadd.f32 %v234, 1e-05
  %v251 = vrsqrt.pop %v235
  %v252 = vrsqrt.pop %v236
  %v253 = vrsqrt.pop %v237
  %v254 = vrsqrt.pop %v238
  %v255 = vrsqrt.pop %v239
  %v256 = vrsqrt.pop %v240
  %v257 = vrsqrt.pop %v241
  %v258 = vrsqrt.pop %v242
  %v259 = vrsqrt.pop %v243
  %v260 = vrsqrt.pop %v244
  %v261 = vrsqrt.pop %v245
  %v262 = vrsqrt.pop %v246
  %v263 = vrsqrt.pop %v247
  %v264 = vrsqrt.pop %v248
  %v265 = vrsqrt.pop %v249
  %v266 = vrsqrt.pop %v250
  %v267 = vmul.f32 %v139, %v251
  %v268 = vmul.f32 %v140, %v252
  %v269 = vmul.f32 %v141, %v253
  %v270 = vmul.f32 %v142, %v254
  %v271 = vmul.f32 %v143, %v255
  %v272 = vmul.f32 %v144, %v256
  %v273 = vmul.f32 %v145, %v257
  %v274 = vmul.f32 %v146, %v258
  %v275 = vmul.f32 %v147, %v259
  %v276 = vmul.f32 %v148, %v260
  %v277 = vmul.f32 %v149, %v261
  %v278 = vmul.f32 %v150, %v262
  %v279 = vmul.f32 %v151, %v263
  %v280 = vmul.f32 %v152, %v264
  %v281 = vmul.f32 %v153, %v265
  %v282 = vmul.f32 %v154, %v266
  %v283 = vld [vmem:[%s3] sm:$0x1]
  %v285 = vlaneseq
  %v286 = vshrl.u32 %v285, 7
  %v287 = vsub.s32 0, %v286
  %v288 = vrot.slane %v283, %v287
  %v290 = vmul.f32 %v267, %v288
  %v291 = vmul.f32 %v268, %v288
  %v292 = vmul.f32 %v269, %v288
  %v293 = vmul.f32 %v270, %v288
  %v294 = vmul.f32 %v271, %v288
  %v295 = vmul.f32 %v272, %v288
  %v296 = vmul.f32 %v273, %v288
  %v297 = vmul.f32 %v274, %v288
  %v298 = vmul.f32 %v275, %v288
  %v299 = vmul.f32 %v276, %v288
  %v300 = vmul.f32 %v277, %v288
  %v301 = vmul.f32 %v278, %v288
  %v302 = vmul.f32 %v279, %v288
  %v303 = vmul.f32 %v280, %v288
  %v304 = vmul.f32 %v281, %v288
  %v305 = vmul.f32 %v282, %v288
  %v306 = vld [vmem:[%s4] sm:$0x1]
  %v308 = vlaneseq
  %v309 = vshrl.u32 %v308, 7
  %v310 = vsub.s32 0, %v309
  %v311 = vrot.slane %v306, %v310
  %v313 = vadd.f32 %v290, %v311
  %v314 = vadd.f32 %v291, %v311
  %v315 = vadd.f32 %v292, %v311
  %v316 = vadd.f32 %v293, %v311
  %v317 = vadd.f32 %v294, %v311
  %v318 = vadd.f32 %v295, %v311
  %v319 = vadd.f32 %v296, %v311
  %v320 = vadd.f32 %v297, %v311
  %v321 = vadd.f32 %v298, %v311
  %v322 = vadd.f32 %v299, %v311
  %v323 = vadd.f32 %v300, %v311
  %v324 = vadd.f32 %v301, %v311
  %v325 = vadd.f32 %v302, %v311
  %v326 = vadd.f32 %v303, %v311
  %v327 = vadd.f32 %v304, %v311
  %v328 = vadd.f32 %v305, %v311
  %v329 = vpack.c.bf16 %v314, %v313
  %v330 = vpack.c.bf16 %v316, %v315
  %v331 = vpack.c.bf16 %v318, %v317
  %v332 = vpack.c.bf16 %v320, %v319
  %v333 = vpack.c.bf16 %v322, %v321
  %v334 = vpack.c.bf16 %v324, %v323
  %v335 = vpack.c.bf16 %v326, %v325
  %v336 = vpack.c.bf16 %v328, %v327
  %v337 = vld [vmem:[%s5] sm:$0xf]
  %v338 = vld [vmem:[%s5 + $0x4] sm:$0xf]
  %v339 = vld [vmem:[%s5 + $0x8] sm:$0xf]
  %v340 = vld [vmem:[%s5 + $0xc] sm:$0xf]
  %v341 = vld [vmem:[%s6] sm:$0x1]
  %v343 = vlaneseq
  %v344 = vshrl.u32 %v343, 7
  %v345 = vsub.s32 0, %v344
  %v346 = vrot.slane %v341, %v345
  %v352 = vunpack.c.l.b16 %v337
  %v353 = vunpack.c.l.b16 %v338
  %v354 = vunpack.c.l.b16 %v339
  %v355 = vunpack.c.l.b16 %v340
  %v356 = vpack.c.b16 %v353, %v352
  %v357 = vpack.c.b16 %v355, %v354
  %v361 = vsel %vm73, %v329, 0
  %v364 = vsel %vm73, %v330, 0
  %v367 = vsel %vm73, %v331, 0
  %v370 = vsel %vm73, %v332, 0
  %v373 = vsel %vm73, %v333, 0
  %v376 = vsel %vm73, %v334, 0
  %v379 = vsel %vm73, %v335, 0
  %v382 = vsel %vm73, %v336, 0
  %384 = vmatprep.subr.bf16.mxu0 0
  %385 = vmatpush1.bf16.msra.mxu0 %v356
  %386 = vmatprep.subr.bf16.mxu0 0
  %387 = vmatpush1.bf16.msra.mxu0 %v357
  %388 = vmatprep.subr.bf16.mxu0 0
  %389 = vmatpush1.bf16.msra.mxu0 0
  %390 = vmatprep.subr.bf16.mxu0 0
  %391 = vmatpush1.bf16.msra.mxu0 0
  %392 = vmatprep.subr.bf16.mxu0 0
  %393 = vmatpush1.bf16.msra.mxu0 0
  %394 = vmatprep.subr.bf16.mxu0 0
  %395 = vmatpush1.bf16.msra.mxu0 0
  %396 = vmatprep.subr.bf16.mxu0 0
  %397 = vmatpush1.bf16.msra.mxu0 0
  %398 = vmatprep.subr.bf16.mxu0 0
  %399 = vmatpush1.bf16.msra.mxu0 0
  %400 = vmatprep.subr.bf16.mxu0 0
  %401 = vmatpush1.bf16.msra.mxu0 0
  %402 = vmatprep.subr.bf16.mxu0 0
  %403 = vmatpush1.bf16.msra.mxu0 0
  %404 = vmatprep.subr.bf16.mxu0 0
  %405 = vmatpush1.bf16.msra.mxu0 0
  %406 = vmatprep.subr.bf16.mxu0 0
  %407 = vmatpush1.bf16.msra.mxu0 0
  %408 = vmatprep.subr.bf16.mxu0 0
  %409 = vmatpush1.bf16.msra.mxu0 0
  %410 = vmatprep.subr.bf16.mxu0 0
  %411 = vmatpush1.bf16.msra.mxu0 0
  %412 = vmatprep.subr.bf16.mxu0 0
  %413 = vmatpush1.bf16.msra.mxu0 0
  %414 = vmatprep.subr.bf16.mxu0 0
  %415 = vmatpush1.bf16.msra.mxu0 0
  %416 = vmatprep.mubr.bf16.mxu0 0
  %417 = vmatmul.mubr.bf16.gmra.mrb[0].mxu0 %v361
  %v418 = vpop.f32.mrb[0].mxu0
  %v419 = vadd.f32 %v346, %v418
  %v420 = vpop.f32.mrb[0].mxu0
  %v421 = vpop.f32.mrb[0].mxu0
  %v422 = vadd.f32 %v346, %v421
  %v423 = vpop.f32.mrb[0].mxu0
  %424 = vmatprep.mubr.bf16.mxu0 0
  %425 = vmatmul.mubr.bf16.gmra.mrb[0].mxu0 %v364
  %v426 = vpop.f32.mrb[0].mxu0
  %v427 = vadd.f32 %v346, %v426
  %v428 = vpop.f32.mrb[0].mxu0
  %v429 = vpop.f32.mrb[0].mxu0
  %v430 = vadd.f32 %v346, %v429
  %v431 = vpop.f32.mrb[0].mxu0
  %432 = vmatprep.mubr.bf16.mxu0 0
  %433 = vmatmul.mubr.bf16.gmra.mrb[0].mxu0 %v367
  %v434 = vpop.f32.mrb[0].mxu0
  %v435 = vadd.f32 %v346, %v434
  %v436 = vpop.f32.mrb[0].mxu0
  %v437 = vpop.f32.mrb[0].mxu0
  %v438 = vadd.f32 %v346, %v437
  %v439 = vpop.f32.mrb[0].mxu0
  %440 = vmatprep.mubr.bf16.mxu0 0
  %441 = vmatmul.mubr.bf16.gmra.mrb[0].mxu0 %v370
  %v442 = vpop.f32.mrb[0].mxu0
  %v443 = vadd.f32 %v346, %v442
  %v444 = vpop.f32.mrb[0].mxu0
  %v445 = vpop.f32.mrb[0].mxu0
  %v446 = vadd.f32 %v346, %v445
  %v447 = vpop.f32.mrb[0].mxu0
  %448 = vmatprep.mubr.bf16.mxu0 0
  %449 = vmatmul.mubr.bf16.gmra.mrb[0].mxu0 %v373
  %v450 = vpop.f32.mrb[0].mxu0
  %v451 = vadd.f32 %v346, %v450
  %v452 = vpop.f32.mrb[0].mxu0
  %v453 = vpop.f32.mrb[0].mxu0
  %v454 = vadd.f32 %v346, %v453
  %v455 = vpop.f32.mrb[0].mxu0
  %456 = vmatprep.mubr.bf16.mxu0 0
  %457 = vmatmul.mubr.bf16.gmra.mrb[0].mxu0 %v376
  %v458 = vpop.f32.mrb[0].mxu0
  %v459 = vadd.f32 %v346, %v458
  %v460 = vpop.f32.mrb[0].mxu0
  %v461 = vpop.f32.mrb[0].mxu0
  %v462 = vadd.f32 %v346, %v461
  %v463 = vpop.f32.mrb[0].mxu0
  %464 = vmatprep.mubr.bf16.mxu0 0
  %465 = vmatmul.mubr.bf16.gmra.mrb[0].mxu0 %v379
  %v466 = vpop.f32.mrb[0].mxu0
  %v467 = vadd.f32 %v346, %v466
  %v468 = vpop.f32.mrb[0].mxu0
  %v469 = vpop.f32.mrb[0].mxu0
  %v470 = vadd.f32 %v346, %v469
  %v471 = vpop.f32.mrb[0].mxu0
  %472 = vmatprep.mubr.bf16.mxu0 0
  %473 = vmatmul.mubr.bf16.gmra.mrb[0].mxu0 %v382
  %v474 = vpop.f32.mrb[0].mxu0
  %v475 = vadd.f32 %v346, %v474
  %v476 = vpop.f32.mrb[0].mxu0
  %v477 = vpop.f32.mrb[0].mxu0
  %v478 = vadd.f32 %v346, %v477
  %v479 = vpop.f32.mrb[0].mxu0
  %480 = vdwg.mxu0
  %497 = vrot.lane.b32.xlu0 %v419, 120
  %v498 = vpop.permute.xlu0 %497
  %499 = vrot.lane.b32.xlu0 %v422, 120
  %v500 = vpop.permute.xlu0 %499
  %501 = vrot.lane.b32.xlu0 %v427, 120
  %v502 = vpop.permute.xlu0 %501
  %503 = vrot.lane.b32.xlu0 %v430, 120
  %v504 = vpop.permute.xlu0 %503
  %505 = vrot.lane.b32.xlu0 %v435, 120
  %v506 = vpop.permute.xlu0 %505
  %507 = vrot.lane.b32.xlu0 %v438, 120
  %v508 = vpop.permute.xlu0 %507
  %509 = vrot.lane.b32.xlu0 %v443, 120
  %v510 = vpop.permute.xlu0 %509
  %511 = vrot.lane.b32.xlu0 %v446, 120
  %v512 = vpop.permute.xlu0 %511
  %513 = vrot.lane.b32.xlu0 %v451, 120
  %v514 = vpop.permute.xlu0 %513
  %515 = vrot.lane.b32.xlu0 %v454, 120
  %v516 = vpop.permute.xlu0 %515
  %517 = vrot.lane.b32.xlu0 %v459, 120
  %v518 = vpop.permute.xlu0 %517
  %519 = vrot.lane.b32.xlu0 %v462, 120
  %v520 = vpop.permute.xlu0 %519
  %521 = vrot.lane.b32.xlu0 %v467, 120
  %v522 = vpop.permute.xlu0 %521
  %523 = vrot.lane.b32.xlu0 %v470, 120
  %v524 = vpop.permute.xlu0 %523
  %525 = vrot.lane.b32.xlu0 %v475, 120
  %v526 = vpop.permute.xlu0 %525
  %527 = vrot.lane.b32.xlu0 %v478, 120
  %v528 = vpop.permute.xlu0 %527
  %545 = vrot.lane.b32.xlu0 %v419, 112
  %v546 = vpop.permute.xlu0 %545
  %547 = vrot.lane.b32.xlu0 %v422, 112
  %v548 = vpop.permute.xlu0 %547
  %549 = vrot.lane.b32.xlu0 %v427, 112
  %v550 = vpop.permute.xlu0 %549
  %551 = vrot.lane.b32.xlu0 %v430, 112
  %v552 = vpop.permute.xlu0 %551
  %553 = vrot.lane.b32.xlu0 %v435, 112
  %v554 = vpop.permute.xlu0 %553
  %555 = vrot.lane.b32.xlu0 %v438, 112
  %v556 = vpop.permute.xlu0 %555
  %557 = vrot.lane.b32.xlu0 %v443, 112
  %v558 = vpop.permute.xlu0 %557
  %559 = vrot.lane.b32.xlu0 %v446, 112
  %v560 = vpop.permute.xlu0 %559
  %561 = vrot.lane.b32.xlu0 %v451, 112
  %v562 = vpop.permute.xlu0 %561
  %563 = vrot.lane.b32.xlu0 %v454, 112
  %v564 = vpop.permute.xlu0 %563
  %565 = vrot.lane.b32.xlu0 %v459, 112
  %v566 = vpop.permute.xlu0 %565
  %567 = vrot.lane.b32.xlu0 %v462, 112
  %v568 = vpop.permute.xlu0 %567
  %569 = vrot.lane.b32.xlu0 %v467, 112
  %v570 = vpop.permute.xlu0 %569
  %571 = vrot.lane.b32.xlu0 %v470, 112
  %v572 = vpop.permute.xlu0 %571
  %573 = vrot.lane.b32.xlu0 %v475, 112
  %v574 = vpop.permute.xlu0 %573
  %575 = vrot.lane.b32.xlu0 %v478, 112
  %v576 = vpop.permute.xlu0 %575
  %593 = vrot.lane.b32.xlu0 %v419, 104
  %v594 = vpop.permute.xlu0 %593
  %595 = vrot.lane.b32.xlu0 %v422, 104
  %v596 = vpop.permute.xlu0 %595
  %597 = vrot.lane.b32.xlu0 %v427, 104
  %v598 = vpop.permute.xlu0 %597
  %599 = vrot.lane.b32.xlu0 %v430, 104
  %v600 = vpop.permute.xlu0 %599
  %601 = vrot.lane.b32.xlu0 %v435, 104
  %v602 = vpop.permute.xlu0 %601
  %603 = vrot.lane.b32.xlu0 %v438, 104
  %v604 = vpop.permute.xlu0 %603
  %605 = vrot.lane.b32.xlu0 %v443, 104
  %v606 = vpop.permute.xlu0 %605
  %607 = vrot.lane.b32.xlu0 %v446, 104
  %v608 = vpop.permute.xlu0 %607
  %609 = vrot.lane.b32.xlu0 %v451, 104
  %v610 = vpop.permute.xlu0 %609
  %611 = vrot.lane.b32.xlu0 %v454, 104
  %v612 = vpop.permute.xlu0 %611
  %613 = vrot.lane.b32.xlu0 %v459, 104
  %v614 = vpop.permute.xlu0 %613
  %615 = vrot.lane.b32.xlu0 %v462, 104
  %v616 = vpop.permute.xlu0 %615
  %617 = vrot.lane.b32.xlu0 %v467, 104
  %v618 = vpop.permute.xlu0 %617
  %619 = vrot.lane.b32.xlu0 %v470, 104
  %v620 = vpop.permute.xlu0 %619
  %621 = vrot.lane.b32.xlu0 %v475, 104
  %v622 = vpop.permute.xlu0 %621
  %623 = vrot.lane.b32.xlu0 %v478, 104
  %v624 = vpop.permute.xlu0 %623
  %v641 = vpack.c.bf16 %v422, %v419
  %v642 = vpack.c.bf16 %v430, %v427
  %v643 = vpack.c.bf16 %v438, %v435
  %v644 = vpack.c.bf16 %v446, %v443
  %v645 = vpack.c.bf16 %v454, %v451
  %v646 = vpack.c.bf16 %v462, %v459
  %v647 = vpack.c.bf16 %v470, %v467
  %v648 = vpack.c.bf16 %v478, %v475
  %v649 = vpack.c.bf16 %v500, %v498
  %v650 = vpack.c.bf16 %v504, %v502
  %v651 = vpack.c.bf16 %v508, %v506
  %v652 = vpack.c.bf16 %v512, %v510
  %v653 = vpack.c.bf16 %v516, %v514
  %v654 = vpack.c.bf16 %v520, %v518
  %v655 = vpack.c.bf16 %v524, %v522
  %v656 = vpack.c.bf16 %v528, %v526
  %v657 = vpack.c.bf16 %v548, %v546
  %v658 = vpack.c.bf16 %v552, %v550
  %v659 = vpack.c.bf16 %v556, %v554
  %v660 = vpack.c.bf16 %v560, %v558
  %v661 = vpack.c.bf16 %v564, %v562
  %v662 = vpack.c.bf16 %v568, %v566
  %v663 = vpack.c.bf16 %v572, %v570
  %v664 = vpack.c.bf16 %v576, %v574
  %v665 = vpack.c.bf16 %v596, %v594
  %v666 = vpack.c.bf16 %v600, %v598
  %v667 = vpack.c.bf16 %v604, %v602
  %v668 = vpack.c.bf16 %v608, %v606
  %v669 = vpack.c.bf16 %v612, %v610
  %v670 = vpack.c.bf16 %v616, %v614
  %v671 = vpack.c.bf16 %v620, %v618
  %v672 = vpack.c.bf16 %v624, %v622
  %674 = vrot.lane.b32.xlu0 %v641, 96
  %v675 = vpop.permute.xlu0 %674
  %vm676 = vcmask 64512
  %v678 = vsel %vm676, %v641, 0
  %v681 = vsel %vm676, %v675, 0
  %683 = vmatprep.subr.bf16.mxu0 0
  %684 = vmatpush1.bf16.xpose.msra.mxu0 %v681
  %685 = vmatprep.subr.bf16.mxu0 0
  %686 = vmatpush1.bf16.xpose.msra.mxu0 0
  %687 = vmatprep.subr.bf16.mxu0 0
  %688 = vmatpush1.bf16.xpose.msra.mxu0 0
  %689 = vmatprep.subr.bf16.mxu0 0
  %690 = vmatpush1.bf16.xpose.msra.mxu0 0
  %691 = vmatprep.subr.bf16.mxu0 0
  %692 = vmatpush1.bf16.xpose.msra.mxu0 0
  %693 = vmatprep.subr.bf16.mxu0 0
  %694 = vmatpush1.bf16.xpose.msra.mxu0 0
  %695 = vmatprep.subr.bf16.mxu0 0
  %696 = vmatpush1.bf16.xpose.msra.mxu0 0
  %697 = vmatprep.subr.bf16.mxu0 0
  %698 = vmatpush1.bf16.xpose.msra.mxu0 0
  %699 = vmatprep.subr.bf16.mxu0 0
  %700 = vmatpush1.bf16.xpose.msra.mxu0 0
  %701 = vmatprep.subr.bf16.mxu0 0
  %702 = vmatpush1.bf16.xpose.msra.mxu0 0
  %703 = vmatprep.subr.bf16.mxu0 0
  %704 = vmatpush1.bf16.xpose.msra.mxu0 0
  %705 = vmatprep.subr.bf16.mxu0 0
  %706 = vmatpush1.bf16.xpose.msra.mxu0 0
  %707 = vmatprep.subr.bf16.mxu0 0
  %708 = vmatpush1.bf16.xpose.msra.mxu0 0
  %709 = vmatprep.subr.bf16.mxu0 0
  %710 = vmatpush1.bf16.xpose.msra.mxu0 0
  %711 = vmatprep.subr.bf16.mxu0 0
  %712 = vmatpush1.bf16.xpose.msra.mxu0 0
  %713 = vmatprep.subr.bf16.mxu0 0
  %714 = vmatpush1.bf16.xpose.msra.mxu0 0
  %715 = vmatprep.mubr.bf16.mxu0 0
  %716 = vmatmul.mubr.bf16.gmra.mrb[0].mxu0 %v678
  %v717 = vpop.f32.mrb[0].mxu0
  %v718 = vadd.f32 0.0, %v717
  %v719 = vpop.f32.mrb[0].mxu0
  %v720 = vpop.f32.mrb[0].mxu0
  %v721 = vadd.f32 0.0, %v720
  %v722 = vpop.f32.mrb[0].mxu0
  %723 = vdwg.mxu0
  %725 = vrot.lane.b32.xlu0 %v642, 96
  %v726 = vpop.permute.xlu0 %725
  %v728 = vsel %vm676, %v642, 0
  %v731 = vsel %vm676, %v726, 0
  %733 = vmatprep.subr.bf16.mxu0 0
  %734 = vmatpush1.bf16.xpose.msra.mxu0 %v731
  %735 = vmatprep.subr.bf16.mxu0 0
  %736 = vmatpush1.bf16.xpose.msra.mxu0 0
  %737 = vmatprep.subr.bf16.mxu0 0
  %738 = vmatpush1.bf16.xpose.msra.mxu0 0
  %739 = vmatprep.subr.bf16.mxu0 0
  %740 = vmatpush1.bf16.xpose.msra.mxu0 0
  %741 = vmatprep.subr.bf16.mxu0 0
  %742 = vmatpush1.bf16.xpose.msra.mxu0 0
  %743 = vmatprep.subr.bf16.mxu0 0
  %744 = vmatpush1.bf16.xpose.msra.mxu0 0
  %745 = vmatprep.subr.bf16.mxu0 0
  %746 = vmatpush1.bf16.xpose.msra.mxu0 0
  %747 = vmatprep.subr.bf16.mxu0 0
  %748 = vmatpush1.bf16.xpose.msra.mxu0 0
  %749 = vmatprep.subr.bf16.mxu0 0
  %750 = vmatpush1.bf16.xpose.msra.mxu0 0
  %751 = vmatprep.subr.bf16.mxu0 0
  %752 = vmatpush1.bf16.xpose.msra.mxu0 0
  %753 = vmatprep.subr.bf16.mxu0 0
  %754 = vmatpush1.bf16.xpose.msra.mxu0 0
  %755 = vmatprep.subr.bf16.mxu0 0
  %756 = vmatpush1.bf16.xpose.msra.mxu0 0
  %757 = vmatprep.subr.bf16.mxu0 0
  %758 = vmatpush1.bf16.xpose.msra.mxu0 0
  %759 = vmatprep.subr.bf16.mxu0 0
  %760 = vmatpush1.bf16.xpose.msra.mxu0 0
  %761 = vmatprep.subr.bf16.mxu0 0
  %762 = vmatpush1.bf16.xpose.msra.mxu0 0
  %763 = vmatprep.subr.bf16.mxu0 0
  %764 = vmatpush1.bf16.xpose.msra.mxu0 0
  %765 = vmatprep.mubr.bf16.mxu0 0
  %766 = vmatmul.mubr.bf16.gmra.mrb[0].mxu0 %v728
  %v767 = vpop.f32.mrb[0].mxu0
  %v768 = vadd.f32 0.0, %v767
  %v769 = vpop.f32.mrb[0].mxu0
  %v770 = vpop.f32.mrb[0].mxu0
  %v771 = vadd.f32 0.0, %v770
  %v772 = vpop.f32.mrb[0].mxu0
  %773 = vdwg.mxu0
  %775 = vrot.lane.b32.xlu0 %v643, 96
  %v776 = vpop.permute.xlu0 %775
  %v778 = vsel %vm676, %v643, 0
  %v781 = vsel %vm676, %v776, 0
  %783 = vmatprep.subr.bf16.mxu0 0
  %784 = vmatpush1.bf16.xpose.msra.mxu0 %v781
  %785 = vmatprep.subr.bf16.mxu0 0
  %786 = vmatpush1.bf16.xpose.msra.mxu0 0
  %787 = vmatprep.subr.bf16.mxu0 0
  %788 = vmatpush1.bf16.xpose.msra.mxu0 0
  %789 = vmatprep.subr.bf16.mxu0 0
  %790 = vmatpush1.bf16.xpose.msra.mxu0 0
  %791 = vmatprep.subr.bf16.mxu0 0
  %792 = vmatpush1.bf16.xpose.msra.mxu0 0
  %793 = vmatprep.subr.bf16.mxu0 0
  %794 = vmatpush1.bf16.xpose.msra.mxu0 0
  %795 = vmatprep.subr.bf16.mxu0 0
  %796 = vmatpush1.bf16.xpose.msra.mxu0 0
  %797 = vmatprep.subr.bf16.mxu0 0
  %798 = vmatpush1.bf16.xpose.msra.mxu0 0
  %799 = vmatprep.subr.bf16.mxu0 0
  %800 = vmatpush1.bf16.xpose.msra.mxu0 0
  %801 = vmatprep.subr.bf16.mxu0 0
  %802 = vmatpush1.bf16.xpose.msra.mxu0 0
  %803 = vmatprep.subr.bf16.mxu0 0
  %804 = vmatpush1.bf16.xpose.msra.mxu0 0
  %805 = vmatprep.subr.bf16.mxu0 0
  %806 = vmatpush1.bf16.xpose.msra.mxu0 0
  %807 = vmatprep.subr.bf16.mxu0 0
  %808 = vmatpush1.bf16.xpose.msra.mxu0 0
  %809 = vmatprep.subr.bf16.mxu0 0
  %810 = vmatpush1.bf16.xpose.msra.mxu0 0
  %811 = vmatprep.subr.bf16.mxu0 0
  %812 = vmatpush1.bf16.xpose.msra.mxu0 0
  %813 = vmatprep.subr.bf16.mxu0 0
  %814 = vmatpush1.bf16.xpose.msra.mxu0 0
  %815 = vmatprep.mubr.bf16.mxu0 0
  %816 = vmatmul.mubr.bf16.gmra.mrb[0].mxu0 %v778
  %v817 = vpop.f32.mrb[0].mxu0
  %v818 = vadd.f32 0.0, %v817
  %v819 = vpop.f32.mrb[0].mxu0
  %v820 = vpop.f32.mrb[0].mxu0
  %v821 = vadd.f32 0.0, %v820
  %v822 = vpop.f32.mrb[0].mxu0
  %823 = vdwg.mxu0
  %825 = vrot.lane.b32.xlu0 %v644, 96
  %v826 = vpop.permute.xlu0 %825
  %v828 = vsel %vm676, %v644, 0
  %v831 = vsel %vm676, %v826, 0
  %833 = vmatprep.subr.bf16.mxu0 0
  %834 = vmatpush1.bf16.xpose.msra.mxu0 %v831
  %835 = vmatprep.subr.bf16.mxu0 0
  %836 = vmatpush1.bf16.xpose.msra.mxu0 0
  %837 = vmatprep.subr.bf16.mxu0 0
  %838 = vmatpush1.bf16.xpose.msra.mxu0 0
  %839 = vmatprep.subr.bf16.mxu0 0
  %840 = vmatpush1.bf16.xpose.msra.mxu0 0
  %841 = vmatprep.subr.bf16.mxu0 0
  %842 = vmatpush1.bf16.xpose.msra.mxu0 0
  %843 = vmatprep.subr.bf16.mxu0 0
  %844 = vmatpush1.bf16.xpose.msra.mxu0 0
  %845 = vmatprep.subr.bf16.mxu0 0
  %846 = vmatpush1.bf16.xpose.msra.mxu0 0
  %847 = vmatprep.subr.bf16.mxu0 0
  %848 = vmatpush1.bf16.xpose.msra.mxu0 0
  %849 = vmatprep.subr.bf16.mxu0 0
  %850 = vmatpush1.bf16.xpose.msra.mxu0 0
  %851 = vmatprep.subr.bf16.mxu0 0
  %852 = vmatpush1.bf16.xpose.msra.mxu0 0
  %853 = vmatprep.subr.bf16.mxu0 0
  %854 = vmatpush1.bf16.xpose.msra.mxu0 0
  %855 = vmatprep.subr.bf16.mxu0 0
  %856 = vmatpush1.bf16.xpose.msra.mxu0 0
  %857 = vmatprep.subr.bf16.mxu0 0
  %858 = vmatpush1.bf16.xpose.msra.mxu0 0
  %859 = vmatprep.subr.bf16.mxu0 0
  %860 = vmatpush1.bf16.xpose.msra.mxu0 0
  %861 = vmatprep.subr.bf16.mxu0 0
  %862 = vmatpush1.bf16.xpose.msra.mxu0 0
  %863 = vmatprep.subr.bf16.mxu0 0
  %864 = vmatpush1.bf16.xpose.msra.mxu0 0
  %865 = vmatprep.mubr.bf16.mxu0 0
  %866 = vmatmul.mubr.bf16.gmra.mrb[0].mxu0 %v828
  %v867 = vpop.f32.mrb[0].mxu0
  %v868 = vadd.f32 0.0, %v867
  %v869 = vpop.f32.mrb[0].mxu0
  %v870 = vpop.f32.mrb[0].mxu0
  %v871 = vadd.f32 0.0, %v870
  %v872 = vpop.f32.mrb[0].mxu0
  %873 = vdwg.mxu0
  %875 = vrot.lane.b32.xlu0 %v645, 96
  %v876 = vpop.permute.xlu0 %875
  %v878 = vsel %vm676, %v645, 0
  %v881 = vsel %vm676, %v876, 0
  %883 = vmatprep.subr.bf16.mxu0 0
  %884 = vmatpush1.bf16.xpose.msra.mxu0 %v881
  %885 = vmatprep.subr.bf16.mxu0 0
  %886 = vmatpush1.bf16.xpose.msra.mxu0 0
  %887 = vmatprep.subr.bf16.mxu0 0
  %888 = vmatpush1.bf16.xpose.msra.mxu0 0
  %889 = vmatprep.subr.bf16.mxu0 0
  %890 = vmatpush1.bf16.xpose.msra.mxu0 0
  %891 = vmatprep.subr.bf16.mxu0 0
  %892 = vmatpush1.bf16.xpose.msra.mxu0 0
  %893 = vmatprep.subr.bf16.mxu0 0
  %894 = vmatpush1.bf16.xpose.msra.mxu0 0
  %895 = vmatprep.subr.bf16.mxu0 0
  %896 = vmatpush1.bf16.xpose.msra.mxu0 0
  %897 = vmatprep.subr.bf16.mxu0 0
  %898 = vmatpush1.bf16.xpose.msra.mxu0 0
  %899 = vmatprep.subr.bf16.mxu0 0
  %900 = vmatpush1.bf16.xpose.msra.mxu0 0
  %901 = vmatprep.subr.bf16.mxu0 0
  %902 = vmatpush1.bf16.xpose.msra.mxu0 0
  %903 = vmatprep.subr.bf16.mxu0 0
  %904 = vmatpush1.bf16.xpose.msra.mxu0 0
  %905 = vmatprep.subr.bf16.mxu0 0
  %906 = vmatpush1.bf16.xpose.msra.mxu0 0
  %907 = vmatprep.subr.bf16.mxu0 0
  %908 = vmatpush1.bf16.xpose.msra.mxu0 0
  %909 = vmatprep.subr.bf16.mxu0 0
  %910 = vmatpush1.bf16.xpose.msra.mxu0 0
  %911 = vmatprep.subr.bf16.mxu0 0
  %912 = vmatpush1.bf16.xpose.msra.mxu0 0
  %913 = vmatprep.subr.bf16.mxu0 0
  %914 = vmatpush1.bf16.xpose.msra.mxu0 0
  %915 = vmatprep.mubr.bf16.mxu0 0
  %916 = vmatmul.mubr.bf16.gmra.mrb[0].mxu0 %v878
  %v917 = vpop.f32.mrb[0].mxu0
  %v918 = vadd.f32 0.0, %v917
  %v919 = vpop.f32.mrb[0].mxu0
  %v920 = vpop.f32.mrb[0].mxu0
  %v921 = vadd.f32 0.0, %v920
  %v922 = vpop.f32.mrb[0].mxu0
  %923 = vdwg.mxu0
  %925 = vrot.lane.b32.xlu0 %v646, 96
  %v926 = vpop.permute.xlu0 %925
  %v928 = vsel %vm676, %v646, 0
  %v931 = vsel %vm676, %v926, 0
  %933 = vmatprep.subr.bf16.mxu0 0
  %934 = vmatpush1.bf16.xpose.msra.mxu0 %v931
  %935 = vmatprep.subr.bf16.mxu0 0
  %936 = vmatpush1.bf16.xpose.msra.mxu0 0
  %937 = vmatprep.subr.bf16.mxu0 0
  %938 = vmatpush1.bf16.xpose.msra.mxu0 0
  %939 = vmatprep.subr.bf16.mxu0 0
  %940 = vmatpush1.bf16.xpose.msra.mxu0 0
  %941 = vmatprep.subr.bf16.mxu0 0
  %942 = vmatpush1.bf16.xpose.msra.mxu0 0
  %943 = vmatprep.subr.bf16.mxu0 0
  %944 = vmatpush1.bf16.xpose.msra.mxu0 0
  %945 = vmatprep.subr.bf16.mxu0 0
  %946 = vmatpush1.bf16.xpose.msra.mxu0 0
  %947 = vmatprep.subr.bf16.mxu0 0
  %948 = vmatpush1.bf16.xpose.msra.mxu0 0
  %949 = vmatprep.subr.bf16.mxu0 0
  %950 = vmatpush1.bf16.xpose.msra.mxu0 0
  %951 = vmatprep.subr.bf16.mxu0 0
  %952 = vmatpush1.bf16.xpose.msra.mxu0 0
  %953 = vmatprep.subr.bf16.mxu0 0
  %954 = vmatpush1.bf16.xpose.msra.mxu0 0
  %955 = vmatprep.subr.bf16.mxu0 0
  %956 = vmatpush1.bf16.xpose.msra.mxu0 0
  %957 = vmatprep.subr.bf16.mxu0 0
  %958 = vmatpush1.bf16.xpose.msra.mxu0 0
  %959 = vmatprep.subr.bf16.mxu0 0
  %960 = vmatpush1.bf16.xpose.msra.mxu0 0
  %961 = vmatprep.subr.bf16.mxu0 0
  %962 = vmatpush1.bf16.xpose.msra.mxu0 0
  %963 = vmatprep.subr.bf16.mxu0 0
  %964 = vmatpush1.bf16.xpose.msra.mxu0 0
  %965 = vmatprep.mubr.bf16.mxu0 0
  %966 = vmatmul.mubr.bf16.gmra.mrb[0].mxu0 %v928
  %v967 = vpop.f32.mrb[0].mxu0
  %v968 = vadd.f32 0.0, %v967
  %v969 = vpop.f32.mrb[0].mxu0
  %v970 = vpop.f32.mrb[0].mxu0
  %v971 = vadd.f32 0.0, %v970
  %v972 = vpop.f32.mrb[0].mxu0
  %973 = vdwg.mxu0
  %975 = vrot.lane.b32.xlu0 %v647, 96
  %v976 = vpop.permute.xlu0 %975
  %v978 = vsel %vm676, %v647, 0
  %v981 = vsel %vm676, %v976, 0
  %983 = vmatprep.subr.bf16.mxu0 0
  %984 = vmatpush1.bf16.xpose.msra.mxu0 %v981
  %985 = vmatprep.subr.bf16.mxu0 0
  %986 = vmatpush1.bf16.xpose.msra.mxu0 0
  %987 = vmatprep.subr.bf16.mxu0 0
  %988 = vmatpush1.bf16.xpose.msra.mxu0 0
  %989 = vmatprep.subr.bf16.mxu0 0
  %990 = vmatpush1.bf16.xpose.msra.mxu0 0
  %991 = vmatprep.subr.bf16.mxu0 0
  %992 = vmatpush1.bf16.xpose.msra.mxu0 0
  %993 = vmatprep.subr.bf16.mxu0 0
  %994 = vmatpush1.bf16.xpose.msra.mxu0 0
  %995 = vmatprep.subr.bf16.mxu0 0
  %996 = vmatpush1.bf16.xpose.msra.mxu0 0
  %997 = vmatprep.subr.bf16.mxu0 0
  %998 = vmatpush1.bf16.xpose.msra.mxu0 0
  %999 = vmatprep.subr.bf16.mxu0 0
  %1000 = vmatpush1.bf16.xpose.msra.mxu0 0
  %1001 = vmatprep.subr.bf16.mxu0 0
  %1002 = vmatpush1.bf16.xpose.msra.mxu0 0
  %1003 = vmatprep.subr.bf16.mxu0 0
  %1004 = vmatpush1.bf16.xpose.msra.mxu0 0
  %1005 = vmatprep.subr.bf16.mxu0 0
  %1006 = vmatpush1.bf16.xpose.msra.mxu0 0
  %1007 = vmatprep.subr.bf16.mxu0 0
  %1008 = vmatpush1.bf16.xpose.msra.mxu0 0
  %1009 = vmatprep.subr.bf16.mxu0 0
  %1010 = vmatpush1.bf16.xpose.msra.mxu0 0
  %1011 = vmatprep.subr.bf16.mxu0 0
  %1012 = vmatpush1.bf16.xpose.msra.mxu0 0
  %1013 = vmatprep.subr.bf16.mxu0 0
  %1014 = vmatpush1.bf16.xpose.msra.mxu0 0
  %1015 = vmatprep.mubr.bf16.mxu0 0
  %1016 = vmatmul.mubr.bf16.gmra.mrb[0].mxu0 %v978
  %v1017 = vpop.f32.mrb[0].mxu0
  %v1018 = vadd.f32 0.0, %v1017
  %v1019 = vpop.f32.mrb[0].mxu0
  %v1020 = vpop.f32.mrb[0].mxu0
  %v1021 = vadd.f32 0.0, %v1020
  %v1022 = vpop.f32.mrb[0].mxu0
  %1023 = vdwg.mxu0
  %1025 = vrot.lane.b32.xlu0 %v648, 96
  %v1026 = vpop.permute.xlu0 %1025
  %v1028 = vsel %vm676, %v648, 0
  %v1031 = vsel %vm676, %v1026, 0
  %1033 = vmatprep.subr.bf16.mxu0 0
  %1034 = vmatpush1.bf16.xpose.msra.mxu0 %v1031
  %1035 = vmatprep.subr.bf16.mxu0 0
  %1036 = vmatpush1.bf16.xpose.msra.mxu0 0
  %1037 = vmatprep.subr.bf16.mxu0 0
  %1038 = vmatpush1.bf16.xpose.msra.mxu0 0
  %1039 = vmatprep.subr.bf16.mxu0 0
  %1040 = vmatpush1.bf16.xpose.msra.mxu0 0
  %1041 = vmatprep.subr.bf16.mxu0 0
  %1042 = vmatpush1.bf16.xpose.msra.mxu0 0
  %1043 = vmatprep.subr.bf16.mxu0 0
  %1044 = vmatpush1.bf16.xpose.msra.mxu0 0
  %1045 = vmatprep.subr.bf16.mxu0 0
  %1046 = vmatpush1.bf16.xpose.msra.mxu0 0
  %1047 = vmatprep.subr.bf16.mxu0 0
  %1048 = vmatpush1.bf16.xpose.msra.mxu0 0
  %1049 = vmatprep.subr.bf16.mxu0 0
  %1050 = vmatpush1.bf16.xpose.msra.mxu0 0
  %1051 = vmatprep.subr.bf16.mxu0 0
  %1052 = vmatpush1.bf16.xpose.msra.mxu0 0
  %1053 = vmatprep.subr.bf16.mxu0 0
  %1054 = vmatpush1.bf16.xpose.msra.mxu0 0
  %1055 = vmatprep.subr.bf16.mxu0 0
  %1056 = vmatpush1.bf16.xpose.msra.mxu0 0
  %1057 = vmatprep.subr.bf16.mxu0 0
  %1058 = vmatpush1.bf16.xpose.msra.mxu0 0
  %1059 = vmatprep.subr.bf16.mxu0 0
  %1060 = vmatpush1.bf16.xpose.msra.mxu0 0
  %1061 = vmatprep.subr.bf16.mxu0 0
  %1062 = vmatpush1.bf16.xpose.msra.mxu0 0
  %1063 = vmatprep.subr.bf16.mxu0 0
  %1064 = vmatpush1.bf16.xpose.msra.mxu0 0
  %1065 = vmatprep.mubr.bf16.mxu0 0
  %1066 = vmatmul.mubr.bf16.gmra.mrb[0].mxu0 %v1028
  %v1067 = vpop.f32.mrb[0].mxu0
  %v1068 = vadd.f32 0.0, %v1067
  %v1069 = vpop.f32.mrb[0].mxu0
  %v1070 = vpop.f32.mrb[0].mxu0
  %v1071 = vadd.f32 0.0, %v1070
  %v1072 = vpop.f32.mrb[0].mxu0
  %1073 = vdwg.mxu0
  %1075 = vrot.lane.b32.xlu0 %v649, 96
  %v1076 = vpop.permute.xlu0 %1075
  %v1078 = vsel %vm676, %v649, 0
  %v1081 = vsel %vm676, %v1076, 0
  %1083 = vmatprep.subr.bf16.mxu0 0
  %1084 = vmatpush1.bf16.xpose.msra.mxu0 %v1081
  %1085 = vmatprep.subr.bf16.mxu0 0
  %1086 = vmatpush1.bf16.xpose.msra.mxu0 0
  %1087 = vmatprep.subr.bf16.mxu0 0
  %1088 = vmatpush1.bf16.xpose.msra.mxu0 0
  %1089 = vmatprep.subr.bf16.mxu0 0
  %1090 = vmatpush1.bf16.xpose.msra.mxu0 0
  %1091 = vmatprep.subr.bf16.mxu0 0
  %1092 = vmatpush1.bf16.xpose.msra.mxu0 0
  %1093 = vmatprep.subr.bf16.mxu0 0
  %1094 = vmatpush1.bf16.xpose.msra.mxu0 0
  %1095 = vmatprep.subr.bf16.mxu0 0
  %1096 = vmatpush1.bf16.xpose.msra.mxu0 0
  %1097 = vmatprep.subr.bf16.mxu0 0
  %1098 = vmatpush1.bf16.xpose.msra.mxu0 0
  %1099 = vmatprep.subr.bf16.mxu0 0
  %1100 = vmatpush1.bf16.xpose.msra.mxu0 0
  %1101 = vmatprep.subr.bf16.mxu0 0
  %1102 = vmatpush1.bf16.xpose.msra.mxu0 0
  %1103 = vmatprep.subr.bf16.mxu0 0
  %1104 = vmatpush1.bf16.xpose.msra.mxu0 0
  %1105 = vmatprep.subr.bf16.mxu0 0
  %1106 = vmatpush1.bf16.xpose.msra.mxu0 0
  %1107 = vmatprep.subr.bf16.mxu0 0
  %1108 = vmatpush1.bf16.xpose.msra.mxu0 0
  %1109 = vmatprep.subr.bf16.mxu0 0
  %1110 = vmatpush1.bf16.xpose.msra.mxu0 0
  %1111 = vmatprep.subr.bf16.mxu0 0
  %1112 = vmatpush1.bf16.xpose.msra.mxu0 0
  %1113 = vmatprep.subr.bf16.mxu0 0
  %1114 = vmatpush1.bf16.xpose.msra.mxu0 0
  %1115 = vmatprep.mubr.bf16.mxu0 0
  %1116 = vmatmul.mubr.bf16.gmra.mrb[0].mxu0 %v1078
  %v1117 = vpop.f32.mrb[0].mxu0
  %v1118 = vadd.f32 0.0, %v1117
  %v1119 = vpop.f32.mrb[0].mxu0
  %v1120 = vpop.f32.mrb[0].mxu0
  %v1121 = vadd.f32 0.0, %v1120
  %v1122 = vpop.f32.mrb[0].mxu0
  %1123 = vdwg.mxu0
  %1125 = vrot.lane.b32.xlu0 %v650, 96
  %v1126 = vpop.permute.xlu0 %1125
  %v1128 = vsel %vm676, %v650, 0
  %v1131 = vsel %vm676, %v1126, 0
  %1133 = vmatprep.subr.bf16.mxu0 0
  %1134 = vmatpush1.bf16.xpose.msra.mxu0 %v1131
  %1135 = vmatprep.subr.bf16.mxu0 0
  %1136 = vmatpush1.bf16.xpose.msra.mxu0 0
  %1137 = vmatprep.subr.bf16.mxu0 0
  %1138 = vmatpush1.bf16.xpose.msra.mxu0 0
  %1139 = vmatprep.subr.bf16.mxu0 0
  %1140 = vmatpush1.bf16.xpose.msra.mxu0 0
  %1141 = vmatprep.subr.bf16.mxu0 0
  %1142 = vmatpush1.bf16.xpose.msra.mxu0 0
  %1143 = vmatprep.subr.bf16.mxu0 0
  %1144 = vmatpush1.bf16.xpose.msra.mxu0 0
  %1145 = vmatprep.subr.bf16.mxu0 0
  %1146 = vmatpush1.bf16.xpose.msra.mxu0 0
  %1147 = vmatprep.subr.bf16.mxu0 0
  %1148 = vmatpush1.bf16.xpose.msra.mxu0 0
  %1149 = vmatprep.subr.bf16.mxu0 0
  %1150 = vmatpush1.bf16.xpose.msra.mxu0 0
  %1151 = vmatprep.subr.bf16.mxu0 0
  %1152 = vmatpush1.bf16.xpose.msra.mxu0 0
  %1153 = vmatprep.subr.bf16.mxu0 0
  %1154 = vmatpush1.bf16.xpose.msra.mxu0 0
  %1155 = vmatprep.subr.bf16.mxu0 0
  %1156 = vmatpush1.bf16.xpose.msra.mxu0 0
  %1157 = vmatprep.subr.bf16.mxu0 0
  %1158 = vmatpush1.bf16.xpose.msra.mxu0 0
  %1159 = vmatprep.subr.bf16.mxu0 0
  %1160 = vmatpush1.bf16.xpose.msra.mxu0 0
  %1161 = vmatprep.subr.bf16.mxu0 0
  %1162 = vmatpush1.bf16.xpose.msra.mxu0 0
  %1163 = vmatprep.subr.bf16.mxu0 0
  %1164 = vmatpush1.bf16.xpose.msra.mxu0 0
  %1165 = vmatprep.mubr.bf16.mxu0 0
  %1166 = vmatmul.mubr.bf16.gmra.mrb[0].mxu0 %v1128
  %v1167 = vpop.f32.mrb[0].mxu0
  %v1168 = vadd.f32 0.0, %v1167
  %v1169 = vpop.f32.mrb[0].mxu0
  %v1170 = vpop.f32.mrb[0].mxu0
  %v1171 = vadd.f32 0.0, %v1170
  %v1172 = vpop.f32.mrb[0].mxu0
  %1173 = vdwg.mxu0
  %1175 = vrot.lane.b32.xlu0 %v651, 96
  %v1176 = vpop.permute.xlu0 %1175
  %v1178 = vsel %vm676, %v651, 0
  %v1181 = vsel %vm676, %v1176, 0
  %1183 = vmatprep.subr.bf16.mxu0 0
  %1184 = vmatpush1.bf16.xpose.msra.mxu0 %v1181
  %1185 = vmatprep.subr.bf16.mxu0 0
  %1186 = vmatpush1.bf16.xpose.msra.mxu0 0
  %1187 = vmatprep.subr.bf16.mxu0 0
  %1188 = vmatpush1.bf16.xpose.msra.mxu0 0
  %1189 = vmatprep.subr.bf16.mxu0 0
  %1190 = vmatpush1.bf16.xpose.msra.mxu0 0
  %1191 = vmatprep.subr.bf16.mxu0 0
  %1192 = vmatpush1.bf16.xpose.msra.mxu0 0
  %1193 = vmatprep.subr.bf16.mxu0 0
  %1194 = vmatpush1.bf16.xpose.msra.mxu0 0
  %1195 = vmatprep.subr.bf16.mxu0 0
  %1196 = vmatpush1.bf16.xpose.msra.mxu0 0
  %1197 = vmatprep.subr.bf16.mxu0 0
  %1198 = vmatpush1.bf16.xpose.msra.mxu0 0
  %1199 = vmatprep.subr.bf16.mxu0 0
  %1200 = vmatpush1.bf16.xpose.msra.mxu0 0
  %1201 = vmatprep.subr.bf16.mxu0 0
  %1202 = vmatpush1.bf16.xpose.msra.mxu0 0
  %1203 = vmatprep.subr.bf16.mxu0 0
  %1204 = vmatpush1.bf16.xpose.msra.mxu0 0
  %1205 = vmatprep.subr.bf16.mxu0 0
  %1206 = vmatpush1.bf16.xpose.msra.mxu0 0
  %1207 = vmatprep.subr.bf16.mxu0 0
  %1208 = vmatpush1.bf16.xpose.msra.mxu0 0
  %1209 = vmatprep.subr.bf16.mxu0 0
  %1210 = vmatpush1.bf16.xpose.msra.mxu0 0
  %1211 = vmatprep.subr.bf16.mxu0 0
  %1212 = vmatpush1.bf16.xpose.msra.mxu0 0
  %1213 = vmatprep.subr.bf16.mxu0 0
  %1214 = vmatpush1.bf16.xpose.msra.mxu0 0
  %1215 = vmatprep.mubr.bf16.mxu0 0
  %1216 = vmatmul.mubr.bf16.gmra.mrb[0].mxu0 %v1178
  %v1217 = vpop.f32.mrb[0].mxu0
  %v1218 = vadd.f32 0.0, %v1217
  %v1219 = vpop.f32.mrb[0].mxu0
  %v1220 = vpop.f32.mrb[0].mxu0
  %v1221 = vadd.f32 0.0, %v1220
  %v1222 = vpop.f32.mrb[0].mxu0
  %1223 = vdwg.mxu0
  %1225 = vrot.lane.b32.xlu0 %v652, 96
  %v1226 = vpop.permute.xlu0 %1225
  %v1228 = vsel %vm676, %v652, 0
  %v1231 = vsel %vm676, %v1226, 0
  %1233 = vmatprep.subr.bf16.mxu0 0
  %1234 = vmatpush1.bf16.xpose.msra.mxu0 %v1231
  %1235 = vmatprep.subr.bf16.mxu0 0
  %1236 = vmatpush1.bf16.xpose.msra.mxu0 0
  %1237 = vmatprep.subr.bf16.mxu0 0
  %1238 = vmatpush1.bf16.xpose.msra.mxu0 0
  %1239 = vmatprep.subr.bf16.mxu0 0
  %1240 = vmatpush1.bf16.xpose.msra.mxu0 0
  %1241 = vmatprep.subr.bf16.mxu0 0
  %1242 = vmatpush1.bf16.xpose.msra.mxu0 0
  %1243 = vmatprep.subr.bf16.mxu0 0
  %1244 = vmatpush1.bf16.xpose.msra.mxu0 0
  %1245 = vmatprep.subr.bf16.mxu0 0
  %1246 = vmatpush1.bf16.xpose.msra.mxu0 0
  %1247 = vmatprep.subr.bf16.mxu0 0
  %1248 = vmatpush1.bf16.xpose.msra.mxu0 0
  %1249 = vmatprep.subr.bf16.mxu0 0
  %1250 = vmatpush1.bf16.xpose.msra.mxu0 0
  %1251 = vmatprep.subr.bf16.mxu0 0
  %1252 = vmatpush1.bf16.xpose.msra.mxu0 0
  %1253 = vmatprep.subr.bf16.mxu0 0
  %1254 = vmatpush1.bf16.xpose.msra.mxu0 0
  %1255 = vmatprep.subr.bf16.mxu0 0
  %1256 = vmatpush1.bf16.xpose.msra.mxu0 0
  %1257 = vmatprep.subr.bf16.mxu0 0
  %1258 = vmatpush1.bf16.xpose.msra.mxu0 0
  %1259 = vmatprep.subr.bf16.mxu0 0
  %1260 = vmatpush1.bf16.xpose.msra.mxu0 0
  %1261 = vmatprep.subr.bf16.mxu0 0
  %1262 = vmatpush1.bf16.xpose.msra.mxu0 0
  %1263 = vmatprep.subr.bf16.mxu0 0
  %1264 = vmatpush1.bf16.xpose.msra.mxu0 0
  %1265 = vmatprep.mubr.bf16.mxu0 0
  %1266 = vmatmul.mubr.bf16.gmra.mrb[0].mxu0 %v1228
  %v1267 = vpop.f32.mrb[0].mxu0
  %v1268 = vadd.f32 0.0, %v1267
  %v1269 = vpop.f32.mrb[0].mxu0
  %v1270 = vpop.f32.mrb[0].mxu0
  %v1271 = vadd.f32 0.0, %v1270
  %v1272 = vpop.f32.mrb[0].mxu0
  %1273 = vdwg.mxu0
  %1275 = vrot.lane.b32.xlu0 %v653, 96
  %v1276 = vpop.permute.xlu0 %1275
  %v1278 = vsel %vm676, %v653, 0
  %v1281 = vsel %vm676, %v1276, 0
  %1283 = vmatprep.subr.bf16.mxu0 0
  %1284 = vmatpush1.bf16.xpose.msra.mxu0 %v1281
  %1285 = vmatprep.subr.bf16.mxu0 0
  %1286 = vmatpush1.bf16.xpose.msra.mxu0 0
  %1287 = vmatprep.subr.bf16.mxu0 0
  %1288 = vmatpush1.bf16.xpose.msra.mxu0 0
  %1289 = vmatprep.subr.bf16.mxu0 0
  %1290 = vmatpush1.bf16.xpose.msra.mxu0 0
  %1291 = vmatprep.subr.bf16.mxu0 0
  %1292 = vmatpush1.bf16.xpose.msra.mxu0 0
  %1293 = vmatprep.subr.bf16.mxu0 0
  %1294 = vmatpush1.bf16.xpose.msra.mxu0 0
  %1295 = vmatprep.subr.bf16.mxu0 0
  %1296 = vmatpush1.bf16.xpose.msra.mxu0 0
  %1297 = vmatprep.subr.bf16.mxu0 0
  %1298 = vmatpush1.bf16.xpose.msra.mxu0 0
  %1299 = vmatprep.subr.bf16.mxu0 0
  %1300 = vmatpush1.bf16.xpose.msra.mxu0 0
  %1301 = vmatprep.subr.bf16.mxu0 0
  %1302 = vmatpush1.bf16.xpose.msra.mxu0 0
  %1303 = vmatprep.subr.bf16.mxu0 0
  %1304 = vmatpush1.bf16.xpose.msra.mxu0 0
  %1305 = vmatprep.subr.bf16.mxu0 0
  %1306 = vmatpush1.bf16.xpose.msra.mxu0 0
  %1307 = vmatprep.subr.bf16.mxu0 0
  %1308 = vmatpush1.bf16.xpose.msra.mxu0 0
  %1309 = vmatprep.subr.bf16.mxu0 0
  %1310 = vmatpush1.bf16.xpose.msra.mxu0 0
  %1311 = vmatprep.subr.bf16.mxu0 0
  %1312 = vmatpush1.bf16.xpose.msra.mxu0 0
  %1313 = vmatprep.subr.bf16.mxu0 0
  %1314 = vmatpush1.bf16.xpose.msra.mxu0 0
  %1315 = vmatprep.mubr.bf16.mxu0 0
  %1316 = vmatmul.mubr.bf16.gmra.mrb[0].mxu0 %v1278
  %v1317 = vpop.f32.mrb[0].mxu0
  %v1318 = vadd.f32 0.0, %v1317
  %v1319 = vpop.f32.mrb[0].mxu0
  %v1320 = vpop.f32.mrb[0].mxu0
  %v1321 = vadd.f32 0.0, %v1320
  %v1322 = vpop.f32.mrb[0].mxu0
  %1323 = vdwg.mxu0
  %1325 = vrot.lane.b32.xlu0 %v654, 96
  %v1326 = vpop.permute.xlu0 %1325
  %v1328 = vsel %vm676, %v654, 0
  %v1331 = vsel %vm676, %v1326, 0
  %1333 = vmatprep.subr.bf16.mxu0 0
  %1334 = vmatpush1.bf16.xpose.msra.mxu0 %v1331
  %1335 = vmatprep.subr.bf16.mxu0 0
  %1336 = vmatpush1.bf16.xpose.msra.mxu0 0
  %1337 = vmatprep.subr.bf16.mxu0 0
  %1338 = vmatpush1.bf16.xpose.msra.mxu0 0
  %1339 = vmatprep.subr.bf16.mxu0 0
  %1340 = vmatpush1.bf16.xpose.msra.mxu0 0
  %1341 = vmatprep.subr.bf16.mxu0 0
  %1342 = vmatpush1.bf16.xpose.msra.mxu0 0
  %1343 = vmatprep.subr.bf16.mxu0 0
  %1344 = vmatpush1.bf16.xpose.msra.mxu0 0
  %1345 = vmatprep.subr.bf16.mxu0 0
  %1346 = vmatpush1.bf16.xpose.msra.mxu0 0
  %1347 = vmatprep.subr.bf16.mxu0 0
  %1348 = vmatpush1.bf16.xpose.msra.mxu0 0
  %1349 = vmatprep.subr.bf16.mxu0 0
  %1350 = vmatpush1.bf16.xpose.msra.mxu0 0
  %1351 = vmatprep.subr.bf16.mxu0 0
  %1352 = vmatpush1.bf16.xpose.msra.mxu0 0
  %1353 = vmatprep.subr.bf16.mxu0 0
  %1354 = vmatpush1.bf16.xpose.msra.mxu0 0
  %1355 = vmatprep.subr.bf16.mxu0 0
  %1356 = vmatpush1.bf16.xpose.msra.mxu0 0
  %1357 = vmatprep.subr.bf16.mxu0 0
  %1358 = vmatpush1.bf16.xpose.msra.mxu0 0
  %1359 = vmatprep.subr.bf16.mxu0 0
  %1360 = vmatpush1.bf16.xpose.msra.mxu0 0
  %1361 = vmatprep.subr.bf16.mxu0 0
  %1362 = vmatpush1.bf16.xpose.msra.mxu0 0
  %1363 = vmatprep.subr.bf16.mxu0 0
  %1364 = vmatpush1.bf16.xpose.msra.mxu0 0
  %1365 = vmatprep.mubr.bf16.mxu0 0
  %1366 = vmatmul.mubr.bf16.gmra.mrb[0].mxu0 %v1328
  %v1367 = vpop.f32.mrb[0].mxu0
  %v1368 = vadd.f32 0.0, %v1367
  %v1369 = vpop.f32.mrb[0].mxu0
  %v1370 = vpop.f32.mrb[0].mxu0
  %v1371 = vadd.f32 0.0, %v1370
  %v1372 = vpop.f32.mrb[0].mxu0
  %1373 = vdwg.mxu0
  %1375 = vrot.lane.b32.xlu0 %v655, 96
  %v1376 = vpop.permute.xlu0 %1375
  %v1378 = vsel %vm676, %v655, 0
  %v1381 = vsel %vm676, %v1376, 0
  %1383 = vmatprep.subr.bf16.mxu0 0
  %1384 = vmatpush1.bf16.xpose.msra.mxu0 %v1381
  %1385 = vmatprep.subr.bf16.mxu0 0
  %1386 = vmatpush1.bf16.xpose.msra.mxu0 0
  %1387 = vmatprep.subr.bf16.mxu0 0
  %1388 = vmatpush1.bf16.xpose.msra.mxu0 0
  %1389 = vmatprep.subr.bf16.mxu0 0
  %1390 = vmatpush1.bf16.xpose.msra.mxu0 0
  %1391 = vmatprep.subr.bf16.mxu0 0
  %1392 = vmatpush1.bf16.xpose.msra.mxu0 0
  %1393 = vmatprep.subr.bf16.mxu0 0
  %1394 = vmatpush1.bf16.xpose.msra.mxu0 0
  %1395 = vmatprep.subr.bf16.mxu0 0
  %1396 = vmatpush1.bf16.xpose.msra.mxu0 0
  %1397 = vmatprep.subr.bf16.mxu0 0
  %1398 = vmatpush1.bf16.xpose.msra.mxu0 0
  %1399 = vmatprep.subr.bf16.mxu0 0
  %1400 = vmatpush1.bf16.xpose.msra.mxu0 0
  %1401 = vmatprep.subr.bf16.mxu0 0
  %1402 = vmatpush1.bf16.xpose.msra.mxu0 0
  %1403 = vmatprep.subr.bf16.mxu0 0
  %1404 = vmatpush1.bf16.xpose.msra.mxu0 0
  %1405 = vmatprep.subr.bf16.mxu0 0
  %1406 = vmatpush1.bf16.xpose.msra.mxu0 0
  %1407 = vmatprep.subr.bf16.mxu0 0
  %1408 = vmatpush1.bf16.xpose.msra.mxu0 0
  %1409 = vmatprep.subr.bf16.mxu0 0
  %1410 = vmatpush1.bf16.xpose.msra.mxu0 0
  %1411 = vmatprep.subr.bf16.mxu0 0
  %1412 = vmatpush1.bf16.xpose.msra.mxu0 0
  %1413 = vmatprep.subr.bf16.mxu0 0
  %1414 = vmatpush1.bf16.xpose.msra.mxu0 0
  %1415 = vmatprep.mubr.bf16.mxu0 0
  %1416 = vmatmul.mubr.bf16.gmra.mrb[0].mxu0 %v1378
  %v1417 = vpop.f32.mrb[0].mxu0
  %v1418 = vadd.f32 0.0, %v1417
  %v1419 = vpop.f32.mrb[0].mxu0
  %v1420 = vpop.f32.mrb[0].mxu0
  %v1421 = vadd.f32 0.0, %v1420
  %v1422 = vpop.f32.mrb[0].mxu0
  %1423 = vdwg.mxu0
  %1425 = vrot.lane.b32.xlu0 %v656, 96
  %v1426 = vpop.permute.xlu0 %1425
  %v1428 = vsel %vm676, %v656, 0
  %v1431 = vsel %vm676, %v1426, 0
  %1433 = vmatprep.subr.bf16.mxu0 0
  %1434 = vmatpush1.bf16.xpose.msra.mxu0 %v1431
  %1435 = vmatprep.subr.bf16.mxu0 0
  %1436 = vmatpush1.bf16.xpose.msra.mxu0 0
  %1437 = vmatprep.subr.bf16.mxu0 0
  %1438 = vmatpush1.bf16.xpose.msra.mxu0 0
  %1439 = vmatprep.subr.bf16.mxu0 0
  %1440 = vmatpush1.bf16.xpose.msra.mxu0 0
  %1441 = vmatprep.subr.bf16.mxu0 0
  %1442 = vmatpush1.bf16.xpose.msra.mxu0 0
  %1443 = vmatprep.subr.bf16.mxu0 0
  %1444 = vmatpush1.bf16.xpose.msra.mxu0 0
  %1445 = vmatprep.subr.bf16.mxu0 0
  %1446 = vmatpush1.bf16.xpose.msra.mxu0 0
  %1447 = vmatprep.subr.bf16.mxu0 0
  %1448 = vmatpush1.bf16.xpose.msra.mxu0 0
  %1449 = vmatprep.subr.bf16.mxu0 0
  %1450 = vmatpush1.bf16.xpose.msra.mxu0 0
  %1451 = vmatprep.subr.bf16.mxu0 0
  %1452 = vmatpush1.bf16.xpose.msra.mxu0 0
  %1453 = vmatprep.subr.bf16.mxu0 0
  %1454 = vmatpush1.bf16.xpose.msra.mxu0 0
  %1455 = vmatprep.subr.bf16.mxu0 0
  %1456 = vmatpush1.bf16.xpose.msra.mxu0 0
  %1457 = vmatprep.subr.bf16.mxu0 0
  %1458 = vmatpush1.bf16.xpose.msra.mxu0 0
  %1459 = vmatprep.subr.bf16.mxu0 0
  %1460 = vmatpush1.bf16.xpose.msra.mxu0 0
  %1461 = vmatprep.subr.bf16.mxu0 0
  %1462 = vmatpush1.bf16.xpose.msra.mxu0 0
  %1463 = vmatprep.subr.bf16.mxu0 0
  %1464 = vmatpush1.bf16.xpose.msra.mxu0 0
  %1465 = vmatprep.mubr.bf16.mxu0 0
  %1466 = vmatmul.mubr.bf16.gmra.mrb[0].mxu0 %v1428
  %v1467 = vpop.f32.mrb[0].mxu0
  %v1468 = vadd.f32 0.0, %v1467
  %v1469 = vpop.f32.mrb[0].mxu0
  %v1470 = vpop.f32.mrb[0].mxu0
  %v1471 = vadd.f32 0.0, %v1470
  %v1472 = vpop.f32.mrb[0].mxu0
  %1473 = vdwg.mxu0
  %1475 = vrot.lane.b32.xlu0 %v657, 96
  %v1476 = vpop.permute.xlu0 %1475
  %v1478 = vsel %vm676, %v657, 0
  %v1481 = vsel %vm676, %v1476, 0
  %1483 = vmatprep.subr.bf16.mxu0 0
  %1484 = vmatpush1.bf16.xpose.msra.mxu0 %v1481
  %1485 = vmatprep.subr.bf16.mxu0 0
  %1486 = vmatpush1.bf16.xpose.msra.mxu0 0
  %1487 = vmatprep.subr.bf16.mxu0 0
  %1488 = vmatpush1.bf16.xpose.msra.mxu0 0
  %1489 = vmatprep.subr.bf16.mxu0 0
  %1490 = vmatpush1.bf16.xpose.msra.mxu0 0
  %1491 = vmatprep.subr.bf16.mxu0 0
  %1492 = vmatpush1.bf16.xpose.msra.mxu0 0
  %1493 = vmatprep.subr.bf16.mxu0 0
  %1494 = vmatpush1.bf16.xpose.msra.mxu0 0
  %1495 = vmatprep.subr.bf16.mxu0 0
  %1496 = vmatpush1.bf16.xpose.msra.mxu0 0
  %1497 = vmatprep.subr.bf16.mxu0 0
  %1498 = vmatpush1.bf16.xpose.msra.mxu0 0
  %1499 = vmatprep.subr.bf16.mxu0 0
  %1500 = vmatpush1.bf16.xpose.msra.mxu0 0
  %1501 = vmatprep.subr.bf16.mxu0 0
  %1502 = vmatpush1.bf16.xpose.msra.mxu0 0
  %1503 = vmatprep.subr.bf16.mxu0 0
  %1504 = vmatpush1.bf16.xpose.msra.mxu0 0
  %1505 = vmatprep.subr.bf16.mxu0 0
  %1506 = vmatpush1.bf16.xpose.msra.mxu0 0
  %1507 = vmatprep.subr.bf16.mxu0 0
  %1508 = vmatpush1.bf16.xpose.msra.mxu0 0
  %1509 = vmatprep.subr.bf16.mxu0 0
  %1510 = vmatpush1.bf16.xpose.msra.mxu0 0
  %1511 = vmatprep.subr.bf16.mxu0 0
  %1512 = vmatpush1.bf16.xpose.msra.mxu0 0
  %1513 = vmatprep.subr.bf16.mxu0 0
  %1514 = vmatpush1.bf16.xpose.msra.mxu0 0
  %1515 = vmatprep.mubr.bf16.mxu0 0
  %1516 = vmatmul.mubr.bf16.gmra.mrb[0].mxu0 %v1478
  %v1517 = vpop.f32.mrb[0].mxu0
  %v1518 = vadd.f32 0.0, %v1517
  %v1519 = vpop.f32.mrb[0].mxu0
  %v1520 = vpop.f32.mrb[0].mxu0
  %v1521 = vadd.f32 0.0, %v1520
  %v1522 = vpop.f32.mrb[0].mxu0
  %1523 = vdwg.mxu0
  %1525 = vrot.lane.b32.xlu0 %v658, 96
  %v1526 = vpop.permute.xlu0 %1525
  %v1528 = vsel %vm676, %v658, 0
  %v1531 = vsel %vm676, %v1526, 0
  %1533 = vmatprep.subr.bf16.mxu0 0
  %1534 = vmatpush1.bf16.xpose.msra.mxu0 %v1531
  %1535 = vmatprep.subr.bf16.mxu0 0
  %1536 = vmatpush1.bf16.xpose.msra.mxu0 0
  %1537 = vmatprep.subr.bf16.mxu0 0
  %1538 = vmatpush1.bf16.xpose.msra.mxu0 0
  %1539 = vmatprep.subr.bf16.mxu0 0
  %1540 = vmatpush1.bf16.xpose.msra.mxu0 0
  %1541 = vmatprep.subr.bf16.mxu0 0
  %1542 = vmatpush1.bf16.xpose.msra.mxu0 0
  %1543 = vmatprep.subr.bf16.mxu0 0
  %1544 = vmatpush1.bf16.xpose.msra.mxu0 0
  %1545 = vmatprep.subr.bf16.mxu0 0
  %1546 = vmatpush1.bf16.xpose.msra.mxu0 0
  %1547 = vmatprep.subr.bf16.mxu0 0
  %1548 = vmatpush1.bf16.xpose.msra.mxu0 0
  %1549 = vmatprep.subr.bf16.mxu0 0
  %1550 = vmatpush1.bf16.xpose.msra.mxu0 0
  %1551 = vmatprep.subr.bf16.mxu0 0
  %1552 = vmatpush1.bf16.xpose.msra.mxu0 0
  %1553 = vmatprep.subr.bf16.mxu0 0
  %1554 = vmatpush1.bf16.xpose.msra.mxu0 0
  %1555 = vmatprep.subr.bf16.mxu0 0
  %1556 = vmatpush1.bf16.xpose.msra.mxu0 0
  %1557 = vmatprep.subr.bf16.mxu0 0
  %1558 = vmatpush1.bf16.xpose.msra.mxu0 0
  %1559 = vmatprep.subr.bf16.mxu0 0
  %1560 = vmatpush1.bf16.xpose.msra.mxu0 0
  %1561 = vmatprep.subr.bf16.mxu0 0
  %1562 = vmatpush1.bf16.xpose.msra.mxu0 0
  %1563 = vmatprep.subr.bf16.mxu0 0
  %1564 = vmatpush1.bf16.xpose.msra.mxu0 0
  %1565 = vmatprep.mubr.bf16.mxu0 0
  %1566 = vmatmul.mubr.bf16.gmra.mrb[0].mxu0 %v1528
  %v1567 = vpop.f32.mrb[0].mxu0
  %v1568 = vadd.f32 0.0, %v1567
  %v1569 = vpop.f32.mrb[0].mxu0
  %v1570 = vpop.f32.mrb[0].mxu0
  %v1571 = vadd.f32 0.0, %v1570
  %v1572 = vpop.f32.mrb[0].mxu0
  %1573 = vdwg.mxu0
  %1575 = vrot.lane.b32.xlu0 %v659, 96
  %v1576 = vpop.permute.xlu0 %1575
  %v1578 = vsel %vm676, %v659, 0
  %v1581 = vsel %vm676, %v1576, 0
  %1583 = vmatprep.subr.bf16.mxu0 0
  %1584 = vmatpush1.bf16.xpose.msra.mxu0 %v1581
  %1585 = vmatprep.subr.bf16.mxu0 0
  %1586 = vmatpush1.bf16.xpose.msra.mxu0 0
  %1587 = vmatprep.subr.bf16.mxu0 0
  %1588 = vmatpush1.bf16.xpose.msra.mxu0 0
  %1589 = vmatprep.subr.bf16.mxu0 0
  %1590 = vmatpush1.bf16.xpose.msra.mxu0 0
  %1591 = vmatprep.subr.bf16.mxu0 0
  %1592 = vmatpush1.bf16.xpose.msra.mxu0 0
  %1593 = vmatprep.subr.bf16.mxu0 0
  %1594 = vmatpush1.bf16.xpose.msra.mxu0 0
  %1595 = vmatprep.subr.bf16.mxu0 0
  %1596 = vmatpush1.bf16.xpose.msra.mxu0 0
  %1597 = vmatprep.subr.bf16.mxu0 0
  %1598 = vmatpush1.bf16.xpose.msra.mxu0 0
  %1599 = vmatprep.subr.bf16.mxu0 0
  %1600 = vmatpush1.bf16.xpose.msra.mxu0 0
  %1601 = vmatprep.subr.bf16.mxu0 0
  %1602 = vmatpush1.bf16.xpose.msra.mxu0 0
  %1603 = vmatprep.subr.bf16.mxu0 0
  %1604 = vmatpush1.bf16.xpose.msra.mxu0 0
  %1605 = vmatprep.subr.bf16.mxu0 0
  %1606 = vmatpush1.bf16.xpose.msra.mxu0 0
  %1607 = vmatprep.subr.bf16.mxu0 0
  %1608 = vmatpush1.bf16.xpose.msra.mxu0 0
  %1609 = vmatprep.subr.bf16.mxu0 0
  %1610 = vmatpush1.bf16.xpose.msra.mxu0 0
  %1611 = vmatprep.subr.bf16.mxu0 0
  %1612 = vmatpush1.bf16.xpose.msra.mxu0 0
  %1613 = vmatprep.subr.bf16.mxu0 0
  %1614 = vmatpush1.bf16.xpose.msra.mxu0 0
  %1615 = vmatprep.mubr.bf16.mxu0 0
  %1616 = vmatmul.mubr.bf16.gmra.mrb[0].mxu0 %v1578
  %v1617 = vpop.f32.mrb[0].mxu0
  %v1618 = vadd.f32 0.0, %v1617
  %v1619 = vpop.f32.mrb[0].mxu0
  %v1620 = vpop.f32.mrb[0].mxu0
  %v1621 = vadd.f32 0.0, %v1620
  %v1622 = vpop.f32.mrb[0].mxu0
  %1623 = vdwg.mxu0
  %1625 = vrot.lane.b32.xlu0 %v660, 96
  %v1626 = vpop.permute.xlu0 %1625
  %v1628 = vsel %vm676, %v660, 0
  %v1631 = vsel %vm676, %v1626, 0
  %1633 = vmatprep.subr.bf16.mxu0 0
  %1634 = vmatpush1.bf16.xpose.msra.mxu0 %v1631
  %1635 = vmatprep.subr.bf16.mxu0 0
  %1636 = vmatpush1.bf16.xpose.msra.mxu0 0
  %1637 = vmatprep.subr.bf16.mxu0 0
  %1638 = vmatpush1.bf16.xpose.msra.mxu0 0
  %1639 = vmatprep.subr.bf16.mxu0 0
  %1640 = vmatpush1.bf16.xpose.msra.mxu0 0
  %1641 = vmatprep.subr.bf16.mxu0 0
  %1642 = vmatpush1.bf16.xpose.msra.mxu0 0
  %1643 = vmatprep.subr.bf16.mxu0 0
  %1644 = vmatpush1.bf16.xpose.msra.mxu0 0
  %1645 = vmatprep.subr.bf16.mxu0 0
  %1646 = vmatpush1.bf16.xpose.msra.mxu0 0
  %1647 = vmatprep.subr.bf16.mxu0 0
  %1648 = vmatpush1.bf16.xpose.msra.mxu0 0
  %1649 = vmatprep.subr.bf16.mxu0 0
  %1650 = vmatpush1.bf16.xpose.msra.mxu0 0
  %1651 = vmatprep.subr.bf16.mxu0 0
  %1652 = vmatpush1.bf16.xpose.msra.mxu0 0
  %1653 = vmatprep.subr.bf16.mxu0 0
  %1654 = vmatpush1.bf16.xpose.msra.mxu0 0
  %1655 = vmatprep.subr.bf16.mxu0 0
  %1656 = vmatpush1.bf16.xpose.msra.mxu0 0
  %1657 = vmatprep.subr.bf16.mxu0 0
  %1658 = vmatpush1.bf16.xpose.msra.mxu0 0
  %1659 = vmatprep.subr.bf16.mxu0 0
  %1660 = vmatpush1.bf16.xpose.msra.mxu0 0
  %1661 = vmatprep.subr.bf16.mxu0 0
  %1662 = vmatpush1.bf16.xpose.msra.mxu0 0
  %1663 = vmatprep.subr.bf16.mxu0 0
  %1664 = vmatpush1.bf16.xpose.msra.mxu0 0
  %1665 = vmatprep.mubr.bf16.mxu0 0
  %1666 = vmatmul.mubr.bf16.gmra.mrb[0].mxu0 %v1628
  %v1667 = vpop.f32.mrb[0].mxu0
  %v1668 = vadd.f32 0.0, %v1667
  %v1669 = vpop.f32.mrb[0].mxu0
  %v1670 = vpop.f32.mrb[0].mxu0
  %v1671 = vadd.f32 0.0, %v1670
  %v1672 = vpop.f32.mrb[0].mxu0
  %1673 = vdwg.mxu0
  %1675 = vrot.lane.b32.xlu0 %v661, 96
  %v1676 = vpop.permute.xlu0 %1675
  %v1678 = vsel %vm676, %v661, 0
  %v1681 = vsel %vm676, %v1676, 0
  %1683 = vmatprep.subr.bf16.mxu0 0
  %1684 = vmatpush1.bf16.xpose.msra.mxu0 %v1681
  %1685 = vmatprep.subr.bf16.mxu0 0
  %1686 = vmatpush1.bf16.xpose.msra.mxu0 0
  %1687 = vmatprep.subr.bf16.mxu0 0
  %1688 = vmatpush1.bf16.xpose.msra.mxu0 0
  %1689 = vmatprep.subr.bf16.mxu0 0
  %1690 = vmatpush1.bf16.xpose.msra.mxu0 0
  %1691 = vmatprep.subr.bf16.mxu0 0
  %1692 = vmatpush1.bf16.xpose.msra.mxu0 0
  %1693 = vmatprep.subr.bf16.mxu0 0
  %1694 = vmatpush1.bf16.xpose.msra.mxu0 0
  %1695 = vmatprep.subr.bf16.mxu0 0
  %1696 = vmatpush1.bf16.xpose.msra.mxu0 0
  %1697 = vmatprep.subr.bf16.mxu0 0
  %1698 = vmatpush1.bf16.xpose.msra.mxu0 0
  %1699 = vmatprep.subr.bf16.mxu0 0
  %1700 = vmatpush1.bf16.xpose.msra.mxu0 0
  %1701 = vmatprep.subr.bf16.mxu0 0
  %1702 = vmatpush1.bf16.xpose.msra.mxu0 0
  %1703 = vmatprep.subr.bf16.mxu0 0
  %1704 = vmatpush1.bf16.xpose.msra.mxu0 0
  %1705 = vmatprep.subr.bf16.mxu0 0
  %1706 = vmatpush1.bf16.xpose.msra.mxu0 0
  %1707 = vmatprep.subr.bf16.mxu0 0
  %1708 = vmatpush1.bf16.xpose.msra.mxu0 0
  %1709 = vmatprep.subr.bf16.mxu0 0
  %1710 = vmatpush1.bf16.xpose.msra.mxu0 0
  %1711 = vmatprep.subr.bf16.mxu0 0
  %1712 = vmatpush1.bf16.xpose.msra.mxu0 0
  %1713 = vmatprep.subr.bf16.mxu0 0
  %1714 = vmatpush1.bf16.xpose.msra.mxu0 0
  %1715 = vmatprep.mubr.bf16.mxu0 0
  %1716 = vmatmul.mubr.bf16.gmra.mrb[0].mxu0 %v1678
  %v1717 = vpop.f32.mrb[0].mxu0
  %v1718 = vadd.f32 0.0, %v1717
  %v1719 = vpop.f32.mrb[0].mxu0
  %v1720 = vpop.f32.mrb[0].mxu0
  %v1721 = vadd.f32 0.0, %v1720
  %v1722 = vpop.f32.mrb[0].mxu0
  %1723 = vdwg.mxu0
  %1725 = vrot.lane.b32.xlu0 %v662, 96
  %v1726 = vpop.permute.xlu0 %1725
  %v1728 = vsel %vm676, %v662, 0
  %v1731 = vsel %vm676, %v1726, 0
  %1733 = vmatprep.subr.bf16.mxu0 0
  %1734 = vmatpush1.bf16.xpose.msra.mxu0 %v1731
  %1735 = vmatprep.subr.bf16.mxu0 0
  %1736 = vmatpush1.bf16.xpose.msra.mxu0 0
  %1737 = vmatprep.subr.bf16.mxu0 0
  %1738 = vmatpush1.bf16.xpose.msra.mxu0 0
  %1739 = vmatprep.subr.bf16.mxu0 0
  %1740 = vmatpush1.bf16.xpose.msra.mxu0 0
  %1741 = vmatprep.subr.bf16.mxu0 0
  %1742 = vmatpush1.bf16.xpose.msra.mxu0 0
  %1743 = vmatprep.subr.bf16.mxu0 0
  %1744 = vmatpush1.bf16.xpose.msra.mxu0 0
  %1745 = vmatprep.subr.bf16.mxu0 0
  %1746 = vmatpush1.bf16.xpose.msra.mxu0 0
  %1747 = vmatprep.subr.bf16.mxu0 0
  %1748 = vmatpush1.bf16.xpose.msra.mxu0 0
  %1749 = vmatprep.subr.bf16.mxu0 0
  %1750 = vmatpush1.bf16.xpose.msra.mxu0 0
  %1751 = vmatprep.subr.bf16.mxu0 0
  %1752 = vmatpush1.bf16.xpose.msra.mxu0 0
  %1753 = vmatprep.subr.bf16.mxu0 0
  %1754 = vmatpush1.bf16.xpose.msra.mxu0 0
  %1755 = vmatprep.subr.bf16.mxu0 0
  %1756 = vmatpush1.bf16.xpose.msra.mxu0 0
  %1757 = vmatprep.subr.bf16.mxu0 0
  %1758 = vmatpush1.bf16.xpose.msra.mxu0 0
  %1759 = vmatprep.subr.bf16.mxu0 0
  %1760 = vmatpush1.bf16.xpose.msra.mxu0 0
  %1761 = vmatprep.subr.bf16.mxu0 0
  %1762 = vmatpush1.bf16.xpose.msra.mxu0 0
  %1763 = vmatprep.subr.bf16.mxu0 0
  %1764 = vmatpush1.bf16.xpose.msra.mxu0 0
  %1765 = vmatprep.mubr.bf16.mxu0 0
  %1766 = vmatmul.mubr.bf16.gmra.mrb[0].mxu0 %v1728
  %v1767 = vpop.f32.mrb[0].mxu0
  %v1768 = vadd.f32 0.0, %v1767
  %v1769 = vpop.f32.mrb[0].mxu0
  %v1770 = vpop.f32.mrb[0].mxu0
  %v1771 = vadd.f32 0.0, %v1770
  %v1772 = vpop.f32.mrb[0].mxu0
  %1773 = vdwg.mxu0
  %1775 = vrot.lane.b32.xlu0 %v663, 96
  %v1776 = vpop.permute.xlu0 %1775
  %v1778 = vsel %vm676, %v663, 0
  %v1781 = vsel %vm676, %v1776, 0
  %1783 = vmatprep.subr.bf16.mxu0 0
  %1784 = vmatpush1.bf16.xpose.msra.mxu0 %v1781
  %1785 = vmatprep.subr.bf16.mxu0 0
  %1786 = vmatpush1.bf16.xpose.msra.mxu0 0
  %1787 = vmatprep.subr.bf16.mxu0 0
  %1788 = vmatpush1.bf16.xpose.msra.mxu0 0
  %1789 = vmatprep.subr.bf16.mxu0 0
  %1790 = vmatpush1.bf16.xpose.msra.mxu0 0
  %1791 = vmatprep.subr.bf16.mxu0 0
  %1792 = vmatpush1.bf16.xpose.msra.mxu0 0
  %1793 = vmatprep.subr.bf16.mxu0 0
  %1794 = vmatpush1.bf16.xpose.msra.mxu0 0
  %1795 = vmatprep.subr.bf16.mxu0 0
  %1796 = vmatpush1.bf16.xpose.msra.mxu0 0
  %1797 = vmatprep.subr.bf16.mxu0 0
  %1798 = vmatpush1.bf16.xpose.msra.mxu0 0
  %1799 = vmatprep.subr.bf16.mxu0 0
  %1800 = vmatpush1.bf16.xpose.msra.mxu0 0
  %1801 = vmatprep.subr.bf16.mxu0 0
  %1802 = vmatpush1.bf16.xpose.msra.mxu0 0
  %1803 = vmatprep.subr.bf16.mxu0 0
  %1804 = vmatpush1.bf16.xpose.msra.mxu0 0
  %1805 = vmatprep.subr.bf16.mxu0 0
  %1806 = vmatpush1.bf16.xpose.msra.mxu0 0
  %1807 = vmatprep.subr.bf16.mxu0 0
  %1808 = vmatpush1.bf16.xpose.msra.mxu0 0
  %1809 = vmatprep.subr.bf16.mxu0 0
  %1810 = vmatpush1.bf16.xpose.msra.mxu0 0
  %1811 = vmatprep.subr.bf16.mxu0 0
  %1812 = vmatpush1.bf16.xpose.msra.mxu0 0
  %1813 = vmatprep.subr.bf16.mxu0 0
  %1814 = vmatpush1.bf16.xpose.msra.mxu0 0
  %1815 = vmatprep.mubr.bf16.mxu0 0
  %1816 = vmatmul.mubr.bf16.gmra.mrb[0].mxu0 %v1778
  %v1817 = vpop.f32.mrb[0].mxu0
  %v1818 = vadd.f32 0.0, %v1817
  %v1819 = vpop.f32.mrb[0].mxu0
  %v1820 = vpop.f32.mrb[0].mxu0
  %v1821 = vadd.f32 0.0, %v1820
  %v1822 = vpop.f32.mrb[0].mxu0
  %1823 = vdwg.mxu0
  %1825 = vrot.lane.b32.xlu0 %v664, 96
  %v1826 = vpop.permute.xlu0 %1825
  %v1828 = vsel %vm676, %v664, 0
  %v1831 = vsel %vm676, %v1826, 0
  %1833 = vmatprep.subr.bf16.mxu0 0
  %1834 = vmatpush1.bf16.xpose.msra.mxu0 %v1831
  %1835 = vmatprep.subr.bf16.mxu0 0
  %1836 = vmatpush1.bf16.xpose.msra.mxu0 0
  %1837 = vmatprep.subr.bf16.mxu0 0
  %1838 = vmatpush1.bf16.xpose.msra.mxu0 0
  %1839 = vmatprep.subr.bf16.mxu0 0
  %1840 = vmatpush1.bf16.xpose.msra.mxu0 0
  %1841 = vmatprep.subr.bf16.mxu0 0
  %1842 = vmatpush1.bf16.xpose.msra.mxu0 0
  %1843 = vmatprep.subr.bf16.mxu0 0
  %1844 = vmatpush1.bf16.xpose.msra.mxu0 0
  %1845 = vmatprep.subr.bf16.mxu0 0
  %1846 = vmatpush1.bf16.xpose.msra.mxu0 0
  %1847 = vmatprep.subr.bf16.mxu0 0
  %1848 = vmatpush1.bf16.xpose.msra.mxu0 0
  %1849 = vmatprep.subr.bf16.mxu0 0
  %1850 = vmatpush1.bf16.xpose.msra.mxu0 0
  %1851 = vmatprep.subr.bf16.mxu0 0
  %1852 = vmatpush1.bf16.xpose.msra.mxu0 0
  %1853 = vmatprep.subr.bf16.mxu0 0
  %1854 = vmatpush1.bf16.xpose.msra.mxu0 0
  %1855 = vmatprep.subr.bf16.mxu0 0
  %1856 = vmatpush1.bf16.xpose.msra.mxu0 0
  %1857 = vmatprep.subr.bf16.mxu0 0
  %1858 = vmatpush1.bf16.xpose.msra.mxu0 0
  %1859 = vmatprep.subr.bf16.mxu0 0
  %1860 = vmatpush1.bf16.xpose.msra.mxu0 0
  %1861 = vmatprep.subr.bf16.mxu0 0
  %1862 = vmatpush1.bf16.xpose.msra.mxu0 0
  %1863 = vmatprep.subr.bf16.mxu0 0
  %1864 = vmatpush1.bf16.xpose.msra.mxu0 0
  %1865 = vmatprep.mubr.bf16.mxu0 0
  %1866 = vmatmul.mubr.bf16.gmra.mrb[0].mxu0 %v1828
  %v1867 = vpop.f32.mrb[0].mxu0
  %v1868 = vadd.f32 0.0, %v1867
  %v1869 = vpop.f32.mrb[0].mxu0
  %v1870 = vpop.f32.mrb[0].mxu0
  %v1871 = vadd.f32 0.0, %v1870
  %v1872 = vpop.f32.mrb[0].mxu0
  %1873 = vdwg.mxu0
  %1875 = vrot.lane.b32.xlu0 %v665, 96
  %v1876 = vpop.permute.xlu0 %1875
  %v1878 = vsel %vm676, %v665, 0
  %v1881 = vsel %vm676, %v1876, 0
  %1883 = vmatprep.subr.bf16.mxu0 0
  %1884 = vmatpush1.bf16.xpose.msra.mxu0 %v1881
  %1885 = vmatprep.subr.bf16.mxu0 0
  %1886 = vmatpush1.bf16.xpose.msra.mxu0 0
  %1887 = vmatprep.subr.bf16.mxu0 0
  %1888 = vmatpush1.bf16.xpose.msra.mxu0 0
  %1889 = vmatprep.subr.bf16.mxu0 0
  %1890 = vmatpush1.bf16.xpose.msra.mxu0 0
  %1891 = vmatprep.subr.bf16.mxu0 0
  %1892 = vmatpush1.bf16.xpose.msra.mxu0 0
  %1893 = vmatprep.subr.bf16.mxu0 0
  %1894 = vmatpush1.bf16.xpose.msra.mxu0 0
  %1895 = vmatprep.subr.bf16.mxu0 0
  %1896 = vmatpush1.bf16.xpose.msra.mxu0 0
  %1897 = vmatprep.subr.bf16.mxu0 0
  %1898 = vmatpush1.bf16.xpose.msra.mxu0 0
  %1899 = vmatprep.subr.bf16.mxu0 0
  %1900 = vmatpush1.bf16.xpose.msra.mxu0 0
  %1901 = vmatprep.subr.bf16.mxu0 0
  %1902 = vmatpush1.bf16.xpose.msra.mxu0 0
  %1903 = vmatprep.subr.bf16.mxu0 0
  %1904 = vmatpush1.bf16.xpose.msra.mxu0 0
  %1905 = vmatprep.subr.bf16.mxu0 0
  %1906 = vmatpush1.bf16.xpose.msra.mxu0 0
  %1907 = vmatprep.subr.bf16.mxu0 0
  %1908 = vmatpush1.bf16.xpose.msra.mxu0 0
  %1909 = vmatprep.subr.bf16.mxu0 0
  %1910 = vmatpush1.bf16.xpose.msra.mxu0 0
  %1911 = vmatprep.subr.bf16.mxu0 0
  %1912 = vmatpush1.bf16.xpose.msra.mxu0 0
  %1913 = vmatprep.subr.bf16.mxu0 0
  %1914 = vmatpush1.bf16.xpose.msra.mxu0 0
  %1915 = vmatprep.mubr.bf16.mxu0 0
  %1916 = vmatmul.mubr.bf16.gmra.mrb[0].mxu0 %v1878
  %v1917 = vpop.f32.mrb[0].mxu0
  %v1918 = vadd.f32 0.0, %v1917
  %v1919 = vpop.f32.mrb[0].mxu0
  %v1920 = vpop.f32.mrb[0].mxu0
  %v1921 = vadd.f32 0.0, %v1920
  %v1922 = vpop.f32.mrb[0].mxu0
  %1923 = vdwg.mxu0
  %1925 = vrot.lane.b32.xlu0 %v666, 96
  %v1926 = vpop.permute.xlu0 %1925
  %v1928 = vsel %vm676, %v666, 0
  %v1931 = vsel %vm676, %v1926, 0
  %1933 = vmatprep.subr.bf16.mxu0 0
  %1934 = vmatpush1.bf16.xpose.msra.mxu0 %v1931
  %1935 = vmatprep.subr.bf16.mxu0 0
  %1936 = vmatpush1.bf16.xpose.msra.mxu0 0
  %1937 = vmatprep.subr.bf16.mxu0 0
  %1938 = vmatpush1.bf16.xpose.msra.mxu0 0
  %1939 = vmatprep.subr.bf16.mxu0 0
  %1940 = vmatpush1.bf16.xpose.msra.mxu0 0
  %1941 = vmatprep.subr.bf16.mxu0 0
  %1942 = vmatpush1.bf16.xpose.msra.mxu0 0
  %1943 = vmatprep.subr.bf16.mxu0 0
  %1944 = vmatpush1.bf16.xpose.msra.mxu0 0
  %1945 = vmatprep.subr.bf16.mxu0 0
  %1946 = vmatpush1.bf16.xpose.msra.mxu0 0
  %1947 = vmatprep.subr.bf16.mxu0 0
  %1948 = vmatpush1.bf16.xpose.msra.mxu0 0
  %1949 = vmatprep.subr.bf16.mxu0 0
  %1950 = vmatpush1.bf16.xpose.msra.mxu0 0
  %1951 = vmatprep.subr.bf16.mxu0 0
  %1952 = vmatpush1.bf16.xpose.msra.mxu0 0
  %1953 = vmatprep.subr.bf16.mxu0 0
  %1954 = vmatpush1.bf16.xpose.msra.mxu0 0
  %1955 = vmatprep.subr.bf16.mxu0 0
  %1956 = vmatpush1.bf16.xpose.msra.mxu0 0
  %1957 = vmatprep.subr.bf16.mxu0 0
  %1958 = vmatpush1.bf16.xpose.msra.mxu0 0
  %1959 = vmatprep.subr.bf16.mxu0 0
  %1960 = vmatpush1.bf16.xpose.msra.mxu0 0
  %1961 = vmatprep.subr.bf16.mxu0 0
  %1962 = vmatpush1.bf16.xpose.msra.mxu0 0
  %1963 = vmatprep.subr.bf16.mxu0 0
  %1964 = vmatpush1.bf16.xpose.msra.mxu0 0
  %1965 = vmatprep.mubr.bf16.mxu0 0
  %1966 = vmatmul.mubr.bf16.gmra.mrb[0].mxu0 %v1928
  %v1967 = vpop.f32.mrb[0].mxu0
  %v1968 = vadd.f32 0.0, %v1967
  %v1969 = vpop.f32.mrb[0].mxu0
  %v1970 = vpop.f32.mrb[0].mxu0
  %v1971 = vadd.f32 0.0, %v1970
  %v1972 = vpop.f32.mrb[0].mxu0
  %1973 = vdwg.mxu0
  %1975 = vrot.lane.b32.xlu0 %v667, 96
  %v1976 = vpop.permute.xlu0 %1975
  %v1978 = vsel %vm676, %v667, 0
  %v1981 = vsel %vm676, %v1976, 0
  %1983 = vmatprep.subr.bf16.mxu0 0
  %1984 = vmatpush1.bf16.xpose.msra.mxu0 %v1981
  %1985 = vmatprep.subr.bf16.mxu0 0
  %1986 = vmatpush1.bf16.xpose.msra.mxu0 0
  %1987 = vmatprep.subr.bf16.mxu0 0
  %1988 = vmatpush1.bf16.xpose.msra.mxu0 0
  %1989 = vmatprep.subr.bf16.mxu0 0
  %1990 = vmatpush1.bf16.xpose.msra.mxu0 0
  %1991 = vmatprep.subr.bf16.mxu0 0
  %1992 = vmatpush1.bf16.xpose.msra.mxu0 0
  %1993 = vmatprep.subr.bf16.mxu0 0
  %1994 = vmatpush1.bf16.xpose.msra.mxu0 0
  %1995 = vmatprep.subr.bf16.mxu0 0
  %1996 = vmatpush1.bf16.xpose.msra.mxu0 0
  %1997 = vmatprep.subr.bf16.mxu0 0
  %1998 = vmatpush1.bf16.xpose.msra.mxu0 0
  %1999 = vmatprep.subr.bf16.mxu0 0
  %2000 = vmatpush1.bf16.xpose.msra.mxu0 0
  %2001 = vmatprep.subr.bf16.mxu0 0
  %2002 = vmatpush1.bf16.xpose.msra.mxu0 0
  %2003 = vmatprep.subr.bf16.mxu0 0
  %2004 = vmatpush1.bf16.xpose.msra.mxu0 0
  %2005 = vmatprep.subr.bf16.mxu0 0
  %2006 = vmatpush1.bf16.xpose.msra.mxu0 0
  %2007 = vmatprep.subr.bf16.mxu0 0
  %2008 = vmatpush1.bf16.xpose.msra.mxu0 0
  %2009 = vmatprep.subr.bf16.mxu0 0
  %2010 = vmatpush1.bf16.xpose.msra.mxu0 0
  %2011 = vmatprep.subr.bf16.mxu0 0
  %2012 = vmatpush1.bf16.xpose.msra.mxu0 0
  %2013 = vmatprep.subr.bf16.mxu0 0
  %2014 = vmatpush1.bf16.xpose.msra.mxu0 0
  %2015 = vmatprep.mubr.bf16.mxu0 0
  %2016 = vmatmul.mubr.bf16.gmra.mrb[0].mxu0 %v1978
  %v2017 = vpop.f32.mrb[0].mxu0
  %v2018 = vadd.f32 0.0, %v2017
  %v2019 = vpop.f32.mrb[0].mxu0
  %v2020 = vpop.f32.mrb[0].mxu0
  %v2021 = vadd.f32 0.0, %v2020
  %v2022 = vpop.f32.mrb[0].mxu0
  %2023 = vdwg.mxu0
  %2025 = vrot.lane.b32.xlu0 %v668, 96
  %v2026 = vpop.permute.xlu0 %2025
  %v2028 = vsel %vm676, %v668, 0
  %v2031 = vsel %vm676, %v2026, 0
  %2033 = vmatprep.subr.bf16.mxu0 0
  %2034 = vmatpush1.bf16.xpose.msra.mxu0 %v2031
  %2035 = vmatprep.subr.bf16.mxu0 0
  %2036 = vmatpush1.bf16.xpose.msra.mxu0 0
  %2037 = vmatprep.subr.bf16.mxu0 0
  %2038 = vmatpush1.bf16.xpose.msra.mxu0 0
  %2039 = vmatprep.subr.bf16.mxu0 0
  %2040 = vmatpush1.bf16.xpose.msra.mxu0 0
  %2041 = vmatprep.subr.bf16.mxu0 0
  %2042 = vmatpush1.bf16.xpose.msra.mxu0 0
  %2043 = vmatprep.subr.bf16.mxu0 0
  %2044 = vmatpush1.bf16.xpose.msra.mxu0 0
  %2045 = vmatprep.subr.bf16.mxu0 0
  %2046 = vmatpush1.bf16.xpose.msra.mxu0 0
  %2047 = vmatprep.subr.bf16.mxu0 0
  %2048 = vmatpush1.bf16.xpose.msra.mxu0 0
  %2049 = vmatprep.subr.bf16.mxu0 0
  %2050 = vmatpush1.bf16.xpose.msra.mxu0 0
  %2051 = vmatprep.subr.bf16.mxu0 0
  %2052 = vmatpush1.bf16.xpose.msra.mxu0 0
  %2053 = vmatprep.subr.bf16.mxu0 0
  %2054 = vmatpush1.bf16.xpose.msra.mxu0 0
  %2055 = vmatprep.subr.bf16.mxu0 0
  %2056 = vmatpush1.bf16.xpose.msra.mxu0 0
  %2057 = vmatprep.subr.bf16.mxu0 0
  %2058 = vmatpush1.bf16.xpose.msra.mxu0 0
  %2059 = vmatprep.subr.bf16.mxu0 0
  %2060 = vmatpush1.bf16.xpose.msra.mxu0 0
  %2061 = vmatprep.subr.bf16.mxu0 0
  %2062 = vmatpush1.bf16.xpose.msra.mxu0 0
  %2063 = vmatprep.subr.bf16.mxu0 0
  %2064 = vmatpush1.bf16.xpose.msra.mxu0 0
  %2065 = vmatprep.mubr.bf16.mxu0 0
  %2066 = vmatmul.mubr.bf16.gmra.mrb[0].mxu0 %v2028
  %v2067 = vpop.f32.mrb[0].mxu0
  %v2068 = vadd.f32 0.0, %v2067
  %v2069 = vpop.f32.mrb[0].mxu0
  %v2070 = vpop.f32.mrb[0].mxu0
  %v2071 = vadd.f32 0.0, %v2070
  %v2072 = vpop.f32.mrb[0].mxu0
  %2073 = vdwg.mxu0
  %2075 = vrot.lane.b32.xlu0 %v669, 96
  %v2076 = vpop.permute.xlu0 %2075
  %v2078 = vsel %vm676, %v669, 0
  %v2081 = vsel %vm676, %v2076, 0
  %2083 = vmatprep.subr.bf16.mxu0 0
  %2084 = vmatpush1.bf16.xpose.msra.mxu0 %v2081
  %2085 = vmatprep.subr.bf16.mxu0 0
  %2086 = vmatpush1.bf16.xpose.msra.mxu0 0
  %2087 = vmatprep.subr.bf16.mxu0 0
  %2088 = vmatpush1.bf16.xpose.msra.mxu0 0
  %2089 = vmatprep.subr.bf16.mxu0 0
  %2090 = vmatpush1.bf16.xpose.msra.mxu0 0
  %2091 = vmatprep.subr.bf16.mxu0 0
  %2092 = vmatpush1.bf16.xpose.msra.mxu0 0
  %2093 = vmatprep.subr.bf16.mxu0 0
  %2094 = vmatpush1.bf16.xpose.msra.mxu0 0
  %2095 = vmatprep.subr.bf16.mxu0 0
  %2096 = vmatpush1.bf16.xpose.msra.mxu0 0
  %2097 = vmatprep.subr.bf16.mxu0 0
  %2098 = vmatpush1.bf16.xpose.msra.mxu0 0
  %2099 = vmatprep.subr.bf16.mxu0 0
  %2100 = vmatpush1.bf16.xpose.msra.mxu0 0
  %2101 = vmatprep.subr.bf16.mxu0 0
  %2102 = vmatpush1.bf16.xpose.msra.mxu0 0
  %2103 = vmatprep.subr.bf16.mxu0 0
  %2104 = vmatpush1.bf16.xpose.msra.mxu0 0
  %2105 = vmatprep.subr.bf16.mxu0 0
  %2106 = vmatpush1.bf16.xpose.msra.mxu0 0
  %2107 = vmatprep.subr.bf16.mxu0 0
  %2108 = vmatpush1.bf16.xpose.msra.mxu0 0
  %2109 = vmatprep.subr.bf16.mxu0 0
  %2110 = vmatpush1.bf16.xpose.msra.mxu0 0
  %2111 = vmatprep.subr.bf16.mxu0 0
  %2112 = vmatpush1.bf16.xpose.msra.mxu0 0
  %2113 = vmatprep.subr.bf16.mxu0 0
  %2114 = vmatpush1.bf16.xpose.msra.mxu0 0
  %2115 = vmatprep.mubr.bf16.mxu0 0
  %2116 = vmatmul.mubr.bf16.gmra.mrb[0].mxu0 %v2078
  %v2117 = vpop.f32.mrb[0].mxu0
  %v2118 = vadd.f32 0.0, %v2117
  %v2119 = vpop.f32.mrb[0].mxu0
  %v2120 = vpop.f32.mrb[0].mxu0
  %v2121 = vadd.f32 0.0, %v2120
  %v2122 = vpop.f32.mrb[0].mxu0
  %2123 = vdwg.mxu0
  %2125 = vrot.lane.b32.xlu0 %v670, 96
  %v2126 = vpop.permute.xlu0 %2125
  %v2128 = vsel %vm676, %v670, 0
  %v2131 = vsel %vm676, %v2126, 0
  %2133 = vmatprep.subr.bf16.mxu0 0
  %2134 = vmatpush1.bf16.xpose.msra.mxu0 %v2131
  %2135 = vmatprep.subr.bf16.mxu0 0
  %2136 = vmatpush1.bf16.xpose.msra.mxu0 0
  %2137 = vmatprep.subr.bf16.mxu0 0
  %2138 = vmatpush1.bf16.xpose.msra.mxu0 0
  %2139 = vmatprep.subr.bf16.mxu0 0
  %2140 = vmatpush1.bf16.xpose.msra.mxu0 0
  %2141 = vmatprep.subr.bf16.mxu0 0
  %2142 = vmatpush1.bf16.xpose.msra.mxu0 0
  %2143 = vmatprep.subr.bf16.mxu0 0
  %2144 = vmatpush1.bf16.xpose.msra.mxu0 0
  %2145 = vmatprep.subr.bf16.mxu0 0
  %2146 = vmatpush1.bf16.xpose.msra.mxu0 0
  %2147 = vmatprep.subr.bf16.mxu0 0
  %2148 = vmatpush1.bf16.xpose.msra.mxu0 0
  %2149 = vmatprep.subr.bf16.mxu0 0
  %2150 = vmatpush1.bf16.xpose.msra.mxu0 0
  %2151 = vmatprep.subr.bf16.mxu0 0
  %2152 = vmatpush1.bf16.xpose.msra.mxu0 0
  %2153 = vmatprep.subr.bf16.mxu0 0
  %2154 = vmatpush1.bf16.xpose.msra.mxu0 0
  %2155 = vmatprep.subr.bf16.mxu0 0
  %2156 = vmatpush1.bf16.xpose.msra.mxu0 0
  %2157 = vmatprep.subr.bf16.mxu0 0
  %2158 = vmatpush1.bf16.xpose.msra.mxu0 0
  %2159 = vmatprep.subr.bf16.mxu0 0
  %2160 = vmatpush1.bf16.xpose.msra.mxu0 0
  %2161 = vmatprep.subr.bf16.mxu0 0
  %2162 = vmatpush1.bf16.xpose.msra.mxu0 0
  %2163 = vmatprep.subr.bf16.mxu0 0
  %2164 = vmatpush1.bf16.xpose.msra.mxu0 0
  %2165 = vmatprep.mubr.bf16.mxu0 0
  %2166 = vmatmul.mubr.bf16.gmra.mrb[0].mxu0 %v2128
  %v2167 = vpop.f32.mrb[0].mxu0
  %v2168 = vadd.f32 0.0, %v2167
  %v2169 = vpop.f32.mrb[0].mxu0
  %v2170 = vpop.f32.mrb[0].mxu0
  %v2171 = vadd.f32 0.0, %v2170
  %v2172 = vpop.f32.mrb[0].mxu0
  %2173 = vdwg.mxu0
  %2175 = vrot.lane.b32.xlu0 %v671, 96
  %v2176 = vpop.permute.xlu0 %2175
  %v2178 = vsel %vm676, %v671, 0
  %v2181 = vsel %vm676, %v2176, 0
  %2183 = vmatprep.subr.bf16.mxu0 0
  %2184 = vmatpush1.bf16.xpose.msra.mxu0 %v2181
  %2185 = vmatprep.subr.bf16.mxu0 0
  %2186 = vmatpush1.bf16.xpose.msra.mxu0 0
  %2187 = vmatprep.subr.bf16.mxu0 0
  %2188 = vmatpush1.bf16.xpose.msra.mxu0 0
  %2189 = vmatprep.subr.bf16.mxu0 0
  %2190 = vmatpush1.bf16.xpose.msra.mxu0 0
  %2191 = vmatprep.subr.bf16.mxu0 0
  %2192 = vmatpush1.bf16.xpose.msra.mxu0 0
  %2193 = vmatprep.subr.bf16.mxu0 0
  %2194 = vmatpush1.bf16.xpose.msra.mxu0 0
  %2195 = vmatprep.subr.bf16.mxu0 0
  %2196 = vmatpush1.bf16.xpose.msra.mxu0 0
  %2197 = vmatprep.subr.bf16.mxu0 0
  %2198 = vmatpush1.bf16.xpose.msra.mxu0 0
  %2199 = vmatprep.subr.bf16.mxu0 0
  %2200 = vmatpush1.bf16.xpose.msra.mxu0 0
  %2201 = vmatprep.subr.bf16.mxu0 0
  %2202 = vmatpush1.bf16.xpose.msra.mxu0 0
  %2203 = vmatprep.subr.bf16.mxu0 0
  %2204 = vmatpush1.bf16.xpose.msra.mxu0 0
  %2205 = vmatprep.subr.bf16.mxu0 0
  %2206 = vmatpush1.bf16.xpose.msra.mxu0 0
  %2207 = vmatprep.subr.bf16.mxu0 0
  %2208 = vmatpush1.bf16.xpose.msra.mxu0 0
  %2209 = vmatprep.subr.bf16.mxu0 0
  %2210 = vmatpush1.bf16.xpose.msra.mxu0 0
  %2211 = vmatprep.subr.bf16.mxu0 0
  %2212 = vmatpush1.bf16.xpose.msra.mxu0 0
  %2213 = vmatprep.subr.bf16.mxu0 0
  %2214 = vmatpush1.bf16.xpose.msra.mxu0 0
  %2215 = vmatprep.mubr.bf16.mxu0 0
  %2216 = vmatmul.mubr.bf16.gmra.mrb[0].mxu0 %v2178
  %v2217 = vpop.f32.mrb[0].mxu0
  %v2218 = vadd.f32 0.0, %v2217
  %v2219 = vpop.f32.mrb[0].mxu0
  %v2220 = vpop.f32.mrb[0].mxu0
  %v2221 = vadd.f32 0.0, %v2220
  %v2222 = vpop.f32.mrb[0].mxu0
  %2223 = vdwg.mxu0
  %2225 = vrot.lane.b32.xlu0 %v672, 96
  %v2226 = vpop.permute.xlu0 %2225
  %v2228 = vsel %vm676, %v672, 0
  %v2231 = vsel %vm676, %v2226, 0
  %2233 = vmatprep.subr.bf16.mxu0 0
  %2234 = vmatpush1.bf16.xpose.msra.mxu0 %v2231
  %2235 = vmatprep.subr.bf16.mxu0 0
  %2236 = vmatpush1.bf16.xpose.msra.mxu0 0
  %2237 = vmatprep.subr.bf16.mxu0 0
  %2238 = vmatpush1.bf16.xpose.msra.mxu0 0
  %2239 = vmatprep.subr.bf16.mxu0 0
  %2240 = vmatpush1.bf16.xpose.msra.mxu0 0
  %2241 = vmatprep.subr.bf16.mxu0 0
  %2242 = vmatpush1.bf16.xpose.msra.mxu0 0
  %2243 = vmatprep.subr.bf16.mxu0 0
  %2244 = vmatpush1.bf16.xpose.msra.mxu0 0
  %2245 = vmatprep.subr.bf16.mxu0 0
  %2246 = vmatpush1.bf16.xpose.msra.mxu0 0
  %2247 = vmatprep.subr.bf16.mxu0 0
  %2248 = vmatpush1.bf16.xpose.msra.mxu0 0
  %2249 = vmatprep.subr.bf16.mxu0 0
  %2250 = vmatpush1.bf16.xpose.msra.mxu0 0
  %2251 = vmatprep.subr.bf16.mxu0 0
  %2252 = vmatpush1.bf16.xpose.msra.mxu0 0
  %2253 = vmatprep.subr.bf16.mxu0 0
  %2254 = vmatpush1.bf16.xpose.msra.mxu0 0
  %2255 = vmatprep.subr.bf16.mxu0 0
  %2256 = vmatpush1.bf16.xpose.msra.mxu0 0
  %2257 = vmatprep.subr.bf16.mxu0 0
  %2258 = vmatpush1.bf16.xpose.msra.mxu0 0
  %2259 = vmatprep.subr.bf16.mxu0 0
  %2260 = vmatpush1.bf16.xpose.msra.mxu0 0
  %2261 = vmatprep.subr.bf16.mxu0 0
  %2262 = vmatpush1.bf16.xpose.msra.mxu0 0
  %2263 = vmatprep.subr.bf16.mxu0 0
  %2264 = vmatpush1.bf16.xpose.msra.mxu0 0
  %2265 = vmatprep.mubr.bf16.mxu0 0
  %2266 = vmatmul.mubr.bf16.gmra.mrb[0].mxu0 %v2228
  %v2267 = vpop.f32.mrb[0].mxu0
  %v2268 = vadd.f32 0.0, %v2267
  %v2269 = vpop.f32.mrb[0].mxu0
  %v2270 = vpop.f32.mrb[0].mxu0
  %v2271 = vadd.f32 0.0, %v2270
  %v2272 = vpop.f32.mrb[0].mxu0
  %2273 = vdwg.mxu0
  %v2274 = vld [vmem:[%s1] sm:$0xff]
  %v2275 = vld [vmem:[%s1 + $0x8] sm:$0xff]
  %v2276 = vld [vmem:[%s1 + $0x10] sm:$0xff]
  %v2277 = vld [vmem:[%s1 + $0x18] sm:$0xff]
  %v2278 = vld [vmem:[%s1 + $0x20] sm:$0xff]
  %v2279 = vld [vmem:[%s1 + $0x28] sm:$0xff]
  %v2280 = vld [vmem:[%s1 + $0x30] sm:$0xff]
  %v2281 = vld [vmem:[%s1 + $0x38] sm:$0xff]
  %v2282 = vadd.f32 %v718, %v2274
  %v2283 = vadd.f32 %v721, %v2275
  %v2284 = vadd.f32 %v768, %v2274
  %v2285 = vadd.f32 %v771, %v2275
  %v2286 = vadd.f32 %v818, %v2274
  %v2287 = vadd.f32 %v821, %v2275
  %v2288 = vadd.f32 %v868, %v2274
  %v2289 = vadd.f32 %v871, %v2275
  %v2290 = vadd.f32 %v918, %v2274
  %v2291 = vadd.f32 %v921, %v2275
  %v2292 = vadd.f32 %v968, %v2274
  %v2293 = vadd.f32 %v971, %v2275
  %v2294 = vadd.f32 %v1018, %v2274
  %v2295 = vadd.f32 %v1021, %v2275
  %v2296 = vadd.f32 %v1068, %v2274
  %v2297 = vadd.f32 %v1071, %v2275
  %v2298 = vadd.f32 %v1118, %v2276
  %v2299 = vadd.f32 %v1121, %v2277
  %v2300 = vadd.f32 %v1168, %v2276
  %v2301 = vadd.f32 %v1171, %v2277
  %v2302 = vadd.f32 %v1218, %v2276
  %v2303 = vadd.f32 %v1221, %v2277
  %v2304 = vadd.f32 %v1268, %v2276
  %v2305 = vadd.f32 %v1271, %v2277
  %v2306 = vadd.f32 %v1318, %v2276
  %v2307 = vadd.f32 %v1321, %v2277
  %v2308 = vadd.f32 %v1368, %v2276
  %v2309 = vadd.f32 %v1371, %v2277
  %v2310 = vadd.f32 %v1418, %v2276
  %v2311 = vadd.f32 %v1421, %v2277
  %v2312 = vadd.f32 %v1468, %v2276
  %v2313 = vadd.f32 %v1471, %v2277
  %v2314 = vadd.f32 %v1518, %v2278
  %v2315 = vadd.f32 %v1521, %v2279
  %v2316 = vadd.f32 %v1568, %v2278
  %v2317 = vadd.f32 %v1571, %v2279
  %v2318 = vadd.f32 %v1618, %v2278
  %v2319 = vadd.f32 %v1621, %v2279
  %v2320 = vadd.f32 %v1668, %v2278
  %v2321 = vadd.f32 %v1671, %v2279
  %v2322 = vadd.f32 %v1718, %v2278
  %v2323 = vadd.f32 %v1721, %v2279
  %v2324 = vadd.f32 %v1768, %v2278
  %v2325 = vadd.f32 %v1771, %v2279
  %v2326 = vadd.f32 %v1818, %v2278
  %v2327 = vadd.f32 %v1821, %v2279
  %v2328 = vadd.f32 %v1868, %v2278
  %v2329 = vadd.f32 %v1871, %v2279
  %v2330 = vadd.f32 %v1918, %v2280
  %v2331 = vadd.f32 %v1921, %v2281
  %v2332 = vadd.f32 %v1968, %v2280
  %v2333 = vadd.f32 %v1971, %v2281
  %v2334 = vadd.f32 %v2018, %v2280
  %v2335 = vadd.f32 %v2021, %v2281
  %v2336 = vadd.f32 %v2068, %v2280
  %v2337 = vadd.f32 %v2071, %v2281
  %v2338 = vadd.f32 %v2118, %v2280
  %v2339 = vadd.f32 %v2121, %v2281
  %v2340 = vadd.f32 %v2168, %v2280
  %v2341 = vadd.f32 %v2171, %v2281
  %v2342 = vadd.f32 %v2218, %v2280
  %v2343 = vadd.f32 %v2221, %v2281
  %v2344 = vadd.f32 %v2268, %v2280
  %v2345 = vadd.f32 %v2271, %v2281
  %v2346 = vld [vmem:[%s2] sm:$0xff]
  %v2347 = vld [vmem:[%s2 + $0x8] sm:$0xff]
  %v2348 = vld [vmem:[%s2 + $0x10] sm:$0xff]
  %v2349 = vld [vmem:[%s2 + $0x18] sm:$0xff]
  %v2350 = vld [vmem:[%s2 + $0x20] sm:$0xff]
  %v2351 = vld [vmem:[%s2 + $0x28] sm:$0xff]
  %v2352 = vld [vmem:[%s2 + $0x30] sm:$0xff]
  %v2353 = vld [vmem:[%s2 + $0x38] sm:$0xff]
  %v2354 = vadd.f32 %v2282, %v2346
  %v2355 = vadd.f32 %v2283, %v2347
  %v2356 = vadd.f32 %v2284, %v2348
  %v2357 = vadd.f32 %v2285, %v2349
  %v2358 = vadd.f32 %v2286, %v2350
  %v2359 = vadd.f32 %v2287, %v2351
  %v2360 = vadd.f32 %v2288, %v2352
  %v2361 = vadd.f32 %v2289, %v2353
  %v2362 = vadd.f32 %v2290, %v2346
  %v2363 = vadd.f32 %v2291, %v2347
  %v2364 = vadd.f32 %v2292, %v2348
  %v2365 = vadd.f32 %v2293, %v2349
  %v2366 = vadd.f32 %v2294, %v2350
  %v2367 = vadd.f32 %v2295, %v2351
  %v2368 = vadd.f32 %v2296, %v2352
  %v2369 = vadd.f32 %v2297, %v2353
  %v2370 = vadd.f32 %v2298, %v2346
  %v2371 = vadd.f32 %v2299, %v2347
  %v2372 = vadd.f32 %v2300, %v2348
  %v2373 = vadd.f32 %v2301, %v2349
  %v2374 = vadd.f32 %v2302, %v2350
  %v2375 = vadd.f32 %v2303, %v2351
  %v2376 = vadd.f32 %v2304, %v2352
  %v2377 = vadd.f32 %v2305, %v2353
  %v2378 = vadd.f32 %v2306, %v2346
  %v2379 = vadd.f32 %v2307, %v2347
  %v2380 = vadd.f32 %v2308, %v2348
  %v2381 = vadd.f32 %v2309, %v2349
  %v2382 = vadd.f32 %v2310, %v2350
  %v2383 = vadd.f32 %v2311, %v2351
  %v2384 = vadd.f32 %v2312, %v2352
  %v2385 = vadd.f32 %v2313, %v2353
  %v2386 = vadd.f32 %v2314, %v2346
  %v2387 = vadd.f32 %v2315, %v2347
  %v2388 = vadd.f32 %v2316, %v2348
  %v2389 = vadd.f32 %v2317, %v2349
  %v2390 = vadd.f32 %v2318, %v2350
  %v2391 = vadd.f32 %v2319, %v2351
  %v2392 = vadd.f32 %v2320, %v2352
  %v2393 = vadd.f32 %v2321, %v2353
  %v2394 = vadd.f32 %v2322, %v2346
  %v2395 = vadd.f32 %v2323, %v2347
  %v2396 = vadd.f32 %v2324, %v2348
  %v2397 = vadd.f32 %v2325, %v2349
  %v2398 = vadd.f32 %v2326, %v2350
  %v2399 = vadd.f32 %v2327, %v2351
  %v2400 = vadd.f32 %v2328, %v2352
  %v2401 = vadd.f32 %v2329, %v2353
  %v2402 = vadd.f32 %v2330, %v2346
  %v2403 = vadd.f32 %v2331, %v2347
  %v2404 = vadd.f32 %v2332, %v2348
  %v2405 = vadd.f32 %v2333, %v2349
  %v2406 = vadd.f32 %v2334, %v2350
  %v2407 = vadd.f32 %v2335, %v2351
  %v2408 = vadd.f32 %v2336, %v2352
  %v2409 = vadd.f32 %v2337, %v2353
  %v2410 = vadd.f32 %v2338, %v2346
  %v2411 = vadd.f32 %v2339, %v2347
  %v2412 = vadd.f32 %v2340, %v2348
  %v2413 = vadd.f32 %v2341, %v2349
  %v2414 = vadd.f32 %v2342, %v2350
  %v2415 = vadd.f32 %v2343, %v2351
  %v2416 = vadd.f32 %v2344, %v2352
  %v2417 = vadd.f32 %v2345, %v2353
  %vm2418 = vcmask 130048
  %v2419 = vsel %vm2418, %v2354, -inf
  %2420 = vmax.xlane.f32.xlu0 %v2419
  %v2421 = vpop.xlane.xlu0 %2420
  %v2422 = vsel %vm2418, %v2355, -inf
  %2423 = vmax.xlane.f32.xlu0 %v2422
  %v2424 = vpop.xlane.xlu0 %2423
  %v2425 = vsel %vm2418, %v2356, -inf
  %2426 = vmax.xlane.f32.xlu0 %v2425
  %v2427 = vpop.xlane.xlu0 %2426
  %v2428 = vsel %vm2418, %v2357, -inf
  %2429 = vmax.xlane.f32.xlu0 %v2428
  %v2430 = vpop.xlane.xlu0 %2429
  %v2431 = vsel %vm2418, %v2358, -inf
  %2432 = vmax.xlane.f32.xlu0 %v2431
  %v2433 = vpop.xlane.xlu0 %2432
  %v2434 = vsel %vm2418, %v2359, -inf
  %2435 = vmax.xlane.f32.xlu0 %v2434
  %v2436 = vpop.xlane.xlu0 %2435
  %v2437 = vsel %vm2418, %v2360, -inf
  %2438 = vmax.xlane.f32.xlu0 %v2437
  %v2439 = vpop.xlane.xlu0 %2438
  %v2440 = vsel %vm2418, %v2361, -inf
  %2441 = vmax.xlane.f32.xlu0 %v2440
  %v2442 = vpop.xlane.xlu0 %2441
  %v2443 = vsel %vm2418, %v2362, -inf
  %2444 = vmax.xlane.f32.xlu0 %v2443
  %v2445 = vpop.xlane.xlu0 %2444
  %v2446 = vsel %vm2418, %v2363, -inf
  %2447 = vmax.xlane.f32.xlu0 %v2446
  %v2448 = vpop.xlane.xlu0 %2447
  %v2449 = vsel %vm2418, %v2364, -inf
  %2450 = vmax.xlane.f32.xlu0 %v2449
  %v2451 = vpop.xlane.xlu0 %2450
  %v2452 = vsel %vm2418, %v2365, -inf
  %2453 = vmax.xlane.f32.xlu0 %v2452
  %v2454 = vpop.xlane.xlu0 %2453
  %v2455 = vsel %vm2418, %v2366, -inf
  %2456 = vmax.xlane.f32.xlu0 %v2455
  %v2457 = vpop.xlane.xlu0 %2456
  %v2458 = vsel %vm2418, %v2367, -inf
  %2459 = vmax.xlane.f32.xlu0 %v2458
  %v2460 = vpop.xlane.xlu0 %2459
  %v2461 = vsel %vm2418, %v2368, -inf
  %2462 = vmax.xlane.f32.xlu0 %v2461
  %v2463 = vpop.xlane.xlu0 %2462
  %v2464 = vsel %vm2418, %v2369, -inf
  %2465 = vmax.xlane.f32.xlu0 %v2464
  %v2466 = vpop.xlane.xlu0 %2465
  %v2467 = vsel %vm2418, %v2370, -inf
  %2468 = vmax.xlane.f32.xlu0 %v2467
  %v2469 = vpop.xlane.xlu0 %2468
  %v2470 = vsel %vm2418, %v2371, -inf
  %2471 = vmax.xlane.f32.xlu0 %v2470
  %v2472 = vpop.xlane.xlu0 %2471
  %v2473 = vsel %vm2418, %v2372, -inf
  %2474 = vmax.xlane.f32.xlu0 %v2473
  %v2475 = vpop.xlane.xlu0 %2474
  %v2476 = vsel %vm2418, %v2373, -inf
  %2477 = vmax.xlane.f32.xlu0 %v2476
  %v2478 = vpop.xlane.xlu0 %2477
  %v2479 = vsel %vm2418, %v2374, -inf
  %2480 = vmax.xlane.f32.xlu0 %v2479
  %v2481 = vpop.xlane.xlu0 %2480
  %v2482 = vsel %vm2418, %v2375, -inf
  %2483 = vmax.xlane.f32.xlu0 %v2482
  %v2484 = vpop.xlane.xlu0 %2483
  %v2485 = vsel %vm2418, %v2376, -inf
  %2486 = vmax.xlane.f32.xlu0 %v2485
  %v2487 = vpop.xlane.xlu0 %2486
  %v2488 = vsel %vm2418, %v2377, -inf
  %2489 = vmax.xlane.f32.xlu0 %v2488
  %v2490 = vpop.xlane.xlu0 %2489
  %v2491 = vsel %vm2418, %v2378, -inf
  %2492 = vmax.xlane.f32.xlu0 %v2491
  %v2493 = vpop.xlane.xlu0 %2492
  %v2494 = vsel %vm2418, %v2379, -inf
  %2495 = vmax.xlane.f32.xlu0 %v2494
  %v2496 = vpop.xlane.xlu0 %2495
  %v2497 = vsel %vm2418, %v2380, -inf
  %2498 = vmax.xlane.f32.xlu0 %v2497
  %v2499 = vpop.xlane.xlu0 %2498
  %v2500 = vsel %vm2418, %v2381, -inf
  %2501 = vmax.xlane.f32.xlu0 %v2500
  %v2502 = vpop.xlane.xlu0 %2501
  %v2503 = vsel %vm2418, %v2382, -inf
  %2504 = vmax.xlane.f32.xlu0 %v2503
  %v2505 = vpop.xlane.xlu0 %2504
  %v2506 = vsel %vm2418, %v2383, -inf
  %2507 = vmax.xlane.f32.xlu0 %v2506
  %v2508 = vpop.xlane.xlu0 %2507
  %v2509 = vsel %vm2418, %v2384, -inf
  %2510 = vmax.xlane.f32.xlu0 %v2509
  %v2511 = vpop.xlane.xlu0 %2510
  %v2512 = vsel %vm2418, %v2385, -inf
  %2513 = vmax.xlane.f32.xlu0 %v2512
  %v2514 = vpop.xlane.xlu0 %2513
  %v2515 = vsel %vm2418, %v2386, -inf
  %2516 = vmax.xlane.f32.xlu0 %v2515
  %v2517 = vpop.xlane.xlu0 %2516
  %v2518 = vsel %vm2418, %v2387, -inf
  %2519 = vmax.xlane.f32.xlu0 %v2518
  %v2520 = vpop.xlane.xlu0 %2519
  %v2521 = vsel %vm2418, %v2388, -inf
  %2522 = vmax.xlane.f32.xlu0 %v2521
  %v2523 = vpop.xlane.xlu0 %2522
  %v2524 = vsel %vm2418, %v2389, -inf
  %2525 = vmax.xlane.f32.xlu0 %v2524
  %v2526 = vpop.xlane.xlu0 %2525
  %v2527 = vsel %vm2418, %v2390, -inf
  %2528 = vmax.xlane.f32.xlu0 %v2527
  %v2529 = vpop.xlane.xlu0 %2528
  %v2530 = vsel %vm2418, %v2391, -inf
  %2531 = vmax.xlane.f32.xlu0 %v2530
  %v2532 = vpop.xlane.xlu0 %2531
  %v2533 = vsel %vm2418, %v2392, -inf
  %2534 = vmax.xlane.f32.xlu0 %v2533
  %v2535 = vpop.xlane.xlu0 %2534
  %v2536 = vsel %vm2418, %v2393, -inf
  %2537 = vmax.xlane.f32.xlu0 %v2536
  %v2538 = vpop.xlane.xlu0 %2537
  %v2539 = vsel %vm2418, %v2394, -inf
  %2540 = vmax.xlane.f32.xlu0 %v2539
  %v2541 = vpop.xlane.xlu0 %2540
  %v2542 = vsel %vm2418, %v2395, -inf
  %2543 = vmax.xlane.f32.xlu0 %v2542
  %v2544 = vpop.xlane.xlu0 %2543
  %v2545 = vsel %vm2418, %v2396, -inf
  %2546 = vmax.xlane.f32.xlu0 %v2545
  %v2547 = vpop.xlane.xlu0 %2546
  %v2548 = vsel %vm2418, %v2397, -inf
  %2549 = vmax.xlane.f32.xlu0 %v2548
  %v2550 = vpop.xlane.xlu0 %2549
  %v2551 = vsel %vm2418, %v2398, -inf
  %2552 = vmax.xlane.f32.xlu0 %v2551
  %v2553 = vpop.xlane.xlu0 %2552
  %v2554 = vsel %vm2418, %v2399, -inf
  %2555 = vmax.xlane.f32.xlu0 %v2554
  %v2556 = vpop.xlane.xlu0 %2555
  %v2557 = vsel %vm2418, %v2400, -inf
  %2558 = vmax.xlane.f32.xlu0 %v2557
  %v2559 = vpop.xlane.xlu0 %2558
  %v2560 = vsel %vm2418, %v2401, -inf
  %2561 = vmax.xlane.f32.xlu0 %v2560
  %v2562 = vpop.xlane.xlu0 %2561
  %v2563 = vsel %vm2418, %v2402, -inf
  %2564 = vmax.xlane.f32.xlu0 %v2563
  %v2565 = vpop.xlane.xlu0 %2564
  %v2566 = vsel %vm2418, %v2403, -inf
  %2567 = vmax.xlane.f32.xlu0 %v2566
  %v2568 = vpop.xlane.xlu0 %2567
  %v2569 = vsel %vm2418, %v2404, -inf
  %2570 = vmax.xlane.f32.xlu0 %v2569
  %v2571 = vpop.xlane.xlu0 %2570
  %v2572 = vsel %vm2418, %v2405, -inf
  %2573 = vmax.xlane.f32.xlu0 %v2572
  %v2574 = vpop.xlane.xlu0 %2573
  %v2575 = vsel %vm2418, %v2406, -inf
  %2576 = vmax.xlane.f32.xlu0 %v2575
  %v2577 = vpop.xlane.xlu0 %2576
  %v2578 = vsel %vm2418, %v2407, -inf
  %2579 = vmax.xlane.f32.xlu0 %v2578
  %v2580 = vpop.xlane.xlu0 %2579
  %v2581 = vsel %vm2418, %v2408, -inf
  %2582 = vmax.xlane.f32.xlu0 %v2581
  %v2583 = vpop.xlane.xlu0 %2582
  %v2584 = vsel %vm2418, %v2409, -inf
  %2585 = vmax.xlane.f32.xlu0 %v2584
  %v2586 = vpop.xlane.xlu0 %2585
  %v2587 = vsel %vm2418, %v2410, -inf
  %2588 = vmax.xlane.f32.xlu0 %v2587
  %v2589 = vpop.xlane.xlu0 %2588
  %v2590 = vsel %vm2418, %v2411, -inf
  %2591 = vmax.xlane.f32.xlu0 %v2590
  %v2592 = vpop.xlane.xlu0 %2591
  %v2593 = vsel %vm2418, %v2412, -inf
  %2594 = vmax.xlane.f32.xlu0 %v2593
  %v2595 = vpop.xlane.xlu0 %2594
  %v2596 = vsel %vm2418, %v2413, -inf
  %2597 = vmax.xlane.f32.xlu0 %v2596
  %v2598 = vpop.xlane.xlu0 %2597
  %v2599 = vsel %vm2418, %v2414, -inf
  %2600 = vmax.xlane.f32.xlu0 %v2599
  %v2601 = vpop.xlane.xlu0 %2600
  %v2602 = vsel %vm2418, %v2415, -inf
  %2603 = vmax.xlane.f32.xlu0 %v2602
  %v2604 = vpop.xlane.xlu0 %2603
  %v2605 = vsel %vm2418, %v2416, -inf
  %2606 = vmax.xlane.f32.xlu0 %v2605
  %v2607 = vpop.xlane.xlu0 %2606
  %v2608 = vsel %vm2418, %v2417, -inf
  %2609 = vmax.xlane.f32.xlu0 %v2608
  %v2610 = vpop.xlane.xlu0 %2609
  %v2611 = vsub.f32 %v2354, %v2421
  %v2612 = vsub.f32 %v2355, %v2424
  %v2613 = vsub.f32 %v2356, %v2427
  %v2614 = vsub.f32 %v2357, %v2430
  %v2615 = vsub.f32 %v2358, %v2433
  %v2616 = vsub.f32 %v2359, %v2436
  %v2617 = vsub.f32 %v2360, %v2439
  %v2618 = vsub.f32 %v2361, %v2442
  %v2619 = vsub.f32 %v2362, %v2445
  %v2620 = vsub.f32 %v2363, %v2448
  %v2621 = vsub.f32 %v2364, %v2451
  %v2622 = vsub.f32 %v2365, %v2454
  %v2623 = vsub.f32 %v2366, %v2457
  %v2624 = vsub.f32 %v2367, %v2460
  %v2625 = vsub.f32 %v2368, %v2463
  %v2626 = vsub.f32 %v2369, %v2466
  %v2627 = vsub.f32 %v2370, %v2469
  %v2628 = vsub.f32 %v2371, %v2472
  %v2629 = vsub.f32 %v2372, %v2475
  %v2630 = vsub.f32 %v2373, %v2478
  %v2631 = vsub.f32 %v2374, %v2481
  %v2632 = vsub.f32 %v2375, %v2484
  %v2633 = vsub.f32 %v2376, %v2487
  %v2634 = vsub.f32 %v2377, %v2490
  %v2635 = vsub.f32 %v2378, %v2493
  %v2636 = vsub.f32 %v2379, %v2496
  %v2637 = vsub.f32 %v2380, %v2499
  %v2638 = vsub.f32 %v2381, %v2502
  %v2639 = vsub.f32 %v2382, %v2505
  %v2640 = vsub.f32 %v2383, %v2508
  %v2641 = vsub.f32 %v2384, %v2511
  %v2642 = vsub.f32 %v2385, %v2514
  %v2643 = vsub.f32 %v2386, %v2517
  %v2644 = vsub.f32 %v2387, %v2520
  %v2645 = vsub.f32 %v2388, %v2523
  %v2646 = vsub.f32 %v2389, %v2526
  %v2647 = vsub.f32 %v2390, %v2529
  %v2648 = vsub.f32 %v2391, %v2532
  %v2649 = vsub.f32 %v2392, %v2535
  %v2650 = vsub.f32 %v2393, %v2538
  %v2651 = vsub.f32 %v2394, %v2541
  %v2652 = vsub.f32 %v2395, %v2544
  %v2653 = vsub.f32 %v2396, %v2547
  %v2654 = vsub.f32 %v2397, %v2550
  %v2655 = vsub.f32 %v2398, %v2553
  %v2656 = vsub.f32 %v2399, %v2556
  %v2657 = vsub.f32 %v2400, %v2559
  %v2658 = vsub.f32 %v2401, %v2562
  %v2659 = vsub.f32 %v2402, %v2565
  %v2660 = vsub.f32 %v2403, %v2568
  %v2661 = vsub.f32 %v2404, %v2571
  %v2662 = vsub.f32 %v2405, %v2574
  %v2663 = vsub.f32 %v2406, %v2577
  %v2664 = vsub.f32 %v2407, %v2580
  %v2665 = vsub.f32 %v2408, %v2583
  %v2666 = vsub.f32 %v2409, %v2586
  %v2667 = vsub.f32 %v2410, %v2589
  %v2668 = vsub.f32 %v2411, %v2592
  %v2669 = vsub.f32 %v2412, %v2595
  %v2670 = vsub.f32 %v2413, %v2598
  %v2671 = vsub.f32 %v2414, %v2601
  %v2672 = vsub.f32 %v2415, %v2604
  %v2673 = vsub.f32 %v2416, %v2607
  %v2674 = vsub.f32 %v2417, %v2610
  %v2675 = vmul.f32 %v2611, 1.442695
  %v2676 = vpow.pop %v2675
  %v2677 = vmul.f32 %v2612, 1.442695
  %v2678 = vpow.pop %v2677
  %v2679 = vmul.f32 %v2613, 1.442695
  %v2680 = vpow.pop %v2679
  %v2681 = vmul.f32 %v2614, 1.442695
  %v2682 = vpow.pop %v2681
  %v2683 = vmul.f32 %v2615, 1.442695
  %v2684 = vpow.pop %v2683
  %v2685 = vmul.f32 %v2616, 1.442695
  %v2686 = vpow.pop %v2685
  %v2687 = vmul.f32 %v2617, 1.442695
  %v2688 = vpow.pop %v2687
  %v2689 = vmul.f32 %v2618, 1.442695
  %v2690 = vpow.pop %v2689
  %v2691 = vmul.f32 %v2619, 1.442695
  %v2692 = vpow.pop %v2691
  %v2693 = vmul.f32 %v2620, 1.442695
  %v2694 = vpow.pop %v2693
  %v2695 = vmul.f32 %v2621, 1.442695
  %v2696 = vpow.pop %v2695
  %v2697 = vmul.f32 %v2622, 1.442695
  %v2698 = vpow.pop %v2697
  %v2699 = vmul.f32 %v2623, 1.442695
  %v2700 = vpow.pop %v2699
  %v2701 = vmul.f32 %v2624, 1.442695
  %v2702 = vpow.pop %v2701
  %v2703 = vmul.f32 %v2625, 1.442695
  %v2704 = vpow.pop %v2703
  %v2705 = vmul.f32 %v2626, 1.442695
  %v2706 = vpow.pop %v2705
  %v2707 = vmul.f32 %v2627, 1.442695
  %v2708 = vpow.pop %v2707
  %v2709 = vmul.f32 %v2628, 1.442695
  %v2710 = vpow.pop %v2709
  %v2711 = vmul.f32 %v2629, 1.442695
  %v2712 = vpow.pop %v2711
  %v2713 = vmul.f32 %v2630, 1.442695
  %v2714 = vpow.pop %v2713
  %v2715 = vmul.f32 %v2631, 1.442695
  %v2716 = vpow.pop %v2715
  %v2717 = vmul.f32 %v2632, 1.442695
  %v2718 = vpow.pop %v2717
  %v2719 = vmul.f32 %v2633, 1.442695
  %v2720 = vpow.pop %v2719
  %v2721 = vmul.f32 %v2634, 1.442695
  %v2722 = vpow.pop %v2721
  %v2723 = vmul.f32 %v2635, 1.442695
  %v2724 = vpow.pop %v2723
  %v2725 = vmul.f32 %v2636, 1.442695
  %v2726 = vpow.pop %v2725
  %v2727 = vmul.f32 %v2637, 1.442695
  %v2728 = vpow.pop %v2727
  %v2729 = vmul.f32 %v2638, 1.442695
  %v2730 = vpow.pop %v2729
  %v2731 = vmul.f32 %v2639, 1.442695
  %v2732 = vpow.pop %v2731
  %v2733 = vmul.f32 %v2640, 1.442695
  %v2734 = vpow.pop %v2733
  %v2735 = vmul.f32 %v2641, 1.442695
  %v2736 = vpow.pop %v2735
  %v2737 = vmul.f32 %v2642, 1.442695
  %v2738 = vpow.pop %v2737
  %v2739 = vmul.f32 %v2643, 1.442695
  %v2740 = vpow.pop %v2739
  %v2741 = vmul.f32 %v2644, 1.442695
  %v2742 = vpow.pop %v2741
  %v2743 = vmul.f32 %v2645, 1.442695
  %v2744 = vpow.pop %v2743
  %v2745 = vmul.f32 %v2646, 1.442695
  %v2746 = vpow.pop %v2745
  %v2747 = vmul.f32 %v2647, 1.442695
  %v2748 = vpow.pop %v2747
  %v2749 = vmul.f32 %v2648, 1.442695
  %v2750 = vpow.pop %v2749
  %v2751 = vmul.f32 %v2649, 1.442695
  %v2752 = vpow.pop %v2751
  %v2753 = vmul.f32 %v2650, 1.442695
  %v2754 = vpow.pop %v2753
  %v2755 = vmul.f32 %v2651, 1.442695
  %v2756 = vpow.pop %v2755
  %v2757 = vmul.f32 %v2652, 1.442695
  %v2758 = vpow.pop %v2757
  %v2759 = vmul.f32 %v2653, 1.442695
  %v2760 = vpow.pop %v2759
  %v2761 = vmul.f32 %v2654, 1.442695
  %v2762 = vpow.pop %v2761
  %v2763 = vmul.f32 %v2655, 1.442695
  %v2764 = vpow.pop %v2763
  %v2765 = vmul.f32 %v2656, 1.442695
  %v2766 = vpow.pop %v2765
  %v2767 = vmul.f32 %v2657, 1.442695
  %v2768 = vpow.pop %v2767
  %v2769 = vmul.f32 %v2658, 1.442695
  %v2770 = vpow.pop %v2769
  %v2771 = vmul.f32 %v2659, 1.442695
  %v2772 = vpow.pop %v2771
  %v2773 = vmul.f32 %v2660, 1.442695
  %v2774 = vpow.pop %v2773
  %v2775 = vmul.f32 %v2661, 1.442695
  %v2776 = vpow.pop %v2775
  %v2777 = vmul.f32 %v2662, 1.442695
  %v2778 = vpow.pop %v2777
  %v2779 = vmul.f32 %v2663, 1.442695
  %v2780 = vpow.pop %v2779
  %v2781 = vmul.f32 %v2664, 1.442695
  %v2782 = vpow.pop %v2781
  %v2783 = vmul.f32 %v2665, 1.442695
  %v2784 = vpow.pop %v2783
  %v2785 = vmul.f32 %v2666, 1.442695
  %v2786 = vpow.pop %v2785
  %v2787 = vmul.f32 %v2667, 1.442695
  %v2788 = vpow.pop %v2787
  %v2789 = vmul.f32 %v2668, 1.442695
  %v2790 = vpow.pop %v2789
  %v2791 = vmul.f32 %v2669, 1.442695
  %v2792 = vpow.pop %v2791
  %v2793 = vmul.f32 %v2670, 1.442695
  %v2794 = vpow.pop %v2793
  %v2795 = vmul.f32 %v2671, 1.442695
  %v2796 = vpow.pop %v2795
  %v2797 = vmul.f32 %v2672, 1.442695
  %v2798 = vpow.pop %v2797
  %v2799 = vmul.f32 %v2673, 1.442695
  %v2800 = vpow.pop %v2799
  %v2801 = vmul.f32 %v2674, 1.442695
  %v2802 = vpow.pop %v2801
  %v2803 = vsel %vm2418, %v2676, 0.0
  %2804 = vadd.xlane.f32.xlu0 %v2803
  %v2805 = vpop.xlane.xlu0 %2804
  %v2806 = vsel %vm2418, %v2678, 0.0
  %2807 = vadd.xlane.f32.xlu0 %v2806
  %v2808 = vpop.xlane.xlu0 %2807
  %v2809 = vsel %vm2418, %v2680, 0.0
  %2810 = vadd.xlane.f32.xlu0 %v2809
  %v2811 = vpop.xlane.xlu0 %2810
  %v2812 = vsel %vm2418, %v2682, 0.0
  %2813 = vadd.xlane.f32.xlu0 %v2812
  %v2814 = vpop.xlane.xlu0 %2813
  %v2815 = vsel %vm2418, %v2684, 0.0
  %2816 = vadd.xlane.f32.xlu0 %v2815
  %v2817 = vpop.xlane.xlu0 %2816
  %v2818 = vsel %vm2418, %v2686, 0.0
  %2819 = vadd.xlane.f32.xlu0 %v2818
  %v2820 = vpop.xlane.xlu0 %2819
  %v2821 = vsel %vm2418, %v2688, 0.0
  %2822 = vadd.xlane.f32.xlu0 %v2821
  %v2823 = vpop.xlane.xlu0 %2822
  %v2824 = vsel %vm2418, %v2690, 0.0
  %2825 = vadd.xlane.f32.xlu0 %v2824
  %v2826 = vpop.xlane.xlu0 %2825
  %v2827 = vsel %vm2418, %v2692, 0.0
  %2828 = vadd.xlane.f32.xlu0 %v2827
  %v2829 = vpop.xlane.xlu0 %2828
  %v2830 = vsel %vm2418, %v2694, 0.0
  %2831 = vadd.xlane.f32.xlu0 %v2830
  %v2832 = vpop.xlane.xlu0 %2831
  %v2833 = vsel %vm2418, %v2696, 0.0
  %2834 = vadd.xlane.f32.xlu0 %v2833
  %v2835 = vpop.xlane.xlu0 %2834
  %v2836 = vsel %vm2418, %v2698, 0.0
  %2837 = vadd.xlane.f32.xlu0 %v2836
  %v2838 = vpop.xlane.xlu0 %2837
  %v2839 = vsel %vm2418, %v2700, 0.0
  %2840 = vadd.xlane.f32.xlu0 %v2839
  %v2841 = vpop.xlane.xlu0 %2840
  %v2842 = vsel %vm2418, %v2702, 0.0
  %2843 = vadd.xlane.f32.xlu0 %v2842
  %v2844 = vpop.xlane.xlu0 %2843
  %v2845 = vsel %vm2418, %v2704, 0.0
  %2846 = vadd.xlane.f32.xlu0 %v2845
  %v2847 = vpop.xlane.xlu0 %2846
  %v2848 = vsel %vm2418, %v2706, 0.0
  %2849 = vadd.xlane.f32.xlu0 %v2848
  %v2850 = vpop.xlane.xlu0 %2849
  %v2851 = vsel %vm2418, %v2708, 0.0
  %2852 = vadd.xlane.f32.xlu0 %v2851
  %v2853 = vpop.xlane.xlu0 %2852
  %v2854 = vsel %vm2418, %v2710, 0.0
  %2855 = vadd.xlane.f32.xlu0 %v2854
  %v2856 = vpop.xlane.xlu0 %2855
  %v2857 = vsel %vm2418, %v2712, 0.0
  %2858 = vadd.xlane.f32.xlu0 %v2857
  %v2859 = vpop.xlane.xlu0 %2858
  %v2860 = vsel %vm2418, %v2714, 0.0
  %2861 = vadd.xlane.f32.xlu0 %v2860
  %v2862 = vpop.xlane.xlu0 %2861
  %v2863 = vsel %vm2418, %v2716, 0.0
  %2864 = vadd.xlane.f32.xlu0 %v2863
  %v2865 = vpop.xlane.xlu0 %2864
  %v2866 = vsel %vm2418, %v2718, 0.0
  %2867 = vadd.xlane.f32.xlu0 %v2866
  %v2868 = vpop.xlane.xlu0 %2867
  %v2869 = vsel %vm2418, %v2720, 0.0
  %2870 = vadd.xlane.f32.xlu0 %v2869
  %v2871 = vpop.xlane.xlu0 %2870
  %v2872 = vsel %vm2418, %v2722, 0.0
  %2873 = vadd.xlane.f32.xlu0 %v2872
  %v2874 = vpop.xlane.xlu0 %2873
  %v2875 = vsel %vm2418, %v2724, 0.0
  %2876 = vadd.xlane.f32.xlu0 %v2875
  %v2877 = vpop.xlane.xlu0 %2876
  %v2878 = vsel %vm2418, %v2726, 0.0
  %2879 = vadd.xlane.f32.xlu0 %v2878
  %v2880 = vpop.xlane.xlu0 %2879
  %v2881 = vsel %vm2418, %v2728, 0.0
  %2882 = vadd.xlane.f32.xlu0 %v2881
  %v2883 = vpop.xlane.xlu0 %2882
  %v2884 = vsel %vm2418, %v2730, 0.0
  %2885 = vadd.xlane.f32.xlu0 %v2884
  %v2886 = vpop.xlane.xlu0 %2885
  %v2887 = vsel %vm2418, %v2732, 0.0
  %2888 = vadd.xlane.f32.xlu0 %v2887
  %v2889 = vpop.xlane.xlu0 %2888
  %v2890 = vsel %vm2418, %v2734, 0.0
  %2891 = vadd.xlane.f32.xlu0 %v2890
  %v2892 = vpop.xlane.xlu0 %2891
  %v2893 = vsel %vm2418, %v2736, 0.0
  %2894 = vadd.xlane.f32.xlu0 %v2893
  %v2895 = vpop.xlane.xlu0 %2894
  %v2896 = vsel %vm2418, %v2738, 0.0
  %2897 = vadd.xlane.f32.xlu0 %v2896
  %v2898 = vpop.xlane.xlu0 %2897
  %v2899 = vsel %vm2418, %v2740, 0.0
  %2900 = vadd.xlane.f32.xlu0 %v2899
  %v2901 = vpop.xlane.xlu0 %2900
  %v2902 = vsel %vm2418, %v2742, 0.0
  %2903 = vadd.xlane.f32.xlu0 %v2902
  %v2904 = vpop.xlane.xlu0 %2903
  %v2905 = vsel %vm2418, %v2744, 0.0
  %2906 = vadd.xlane.f32.xlu0 %v2905
  %v2907 = vpop.xlane.xlu0 %2906
  %v2908 = vsel %vm2418, %v2746, 0.0
  %2909 = vadd.xlane.f32.xlu0 %v2908
  %v2910 = vpop.xlane.xlu0 %2909
  %v2911 = vsel %vm2418, %v2748, 0.0
  %2912 = vadd.xlane.f32.xlu0 %v2911
  %v2913 = vpop.xlane.xlu0 %2912
  %v2914 = vsel %vm2418, %v2750, 0.0
  %2915 = vadd.xlane.f32.xlu0 %v2914
  %v2916 = vpop.xlane.xlu0 %2915
  %v2917 = vsel %vm2418, %v2752, 0.0
  %2918 = vadd.xlane.f32.xlu0 %v2917
  %v2919 = vpop.xlane.xlu0 %2918
  %v2920 = vsel %vm2418, %v2754, 0.0
  %2921 = vadd.xlane.f32.xlu0 %v2920
  %v2922 = vpop.xlane.xlu0 %2921
  %v2923 = vsel %vm2418, %v2756, 0.0
  %2924 = vadd.xlane.f32.xlu0 %v2923
  %v2925 = vpop.xlane.xlu0 %2924
  %v2926 = vsel %vm2418, %v2758, 0.0
  %2927 = vadd.xlane.f32.xlu0 %v2926
  %v2928 = vpop.xlane.xlu0 %2927
  %v2929 = vsel %vm2418, %v2760, 0.0
  %2930 = vadd.xlane.f32.xlu0 %v2929
  %v2931 = vpop.xlane.xlu0 %2930
  %v2932 = vsel %vm2418, %v2762, 0.0
  %2933 = vadd.xlane.f32.xlu0 %v2932
  %v2934 = vpop.xlane.xlu0 %2933
  %v2935 = vsel %vm2418, %v2764, 0.0
  %2936 = vadd.xlane.f32.xlu0 %v2935
  %v2937 = vpop.xlane.xlu0 %2936
  %v2938 = vsel %vm2418, %v2766, 0.0
  %2939 = vadd.xlane.f32.xlu0 %v2938
  %v2940 = vpop.xlane.xlu0 %2939
  %v2941 = vsel %vm2418, %v2768, 0.0
  %2942 = vadd.xlane.f32.xlu0 %v2941
  %v2943 = vpop.xlane.xlu0 %2942
  %v2944 = vsel %vm2418, %v2770, 0.0
  %2945 = vadd.xlane.f32.xlu0 %v2944
  %v2946 = vpop.xlane.xlu0 %2945
  %v2947 = vsel %vm2418, %v2772, 0.0
  %2948 = vadd.xlane.f32.xlu0 %v2947
  %v2949 = vpop.xlane.xlu0 %2948
  %v2950 = vsel %vm2418, %v2774, 0.0
  %2951 = vadd.xlane.f32.xlu0 %v2950
  %v2952 = vpop.xlane.xlu0 %2951
  %v2953 = vsel %vm2418, %v2776, 0.0
  %2954 = vadd.xlane.f32.xlu0 %v2953
  %v2955 = vpop.xlane.xlu0 %2954
  %v2956 = vsel %vm2418, %v2778, 0.0
  %2957 = vadd.xlane.f32.xlu0 %v2956
  %v2958 = vpop.xlane.xlu0 %2957
  %v2959 = vsel %vm2418, %v2780, 0.0
  %2960 = vadd.xlane.f32.xlu0 %v2959
  %v2961 = vpop.xlane.xlu0 %2960
  %v2962 = vsel %vm2418, %v2782, 0.0
  %2963 = vadd.xlane.f32.xlu0 %v2962
  %v2964 = vpop.xlane.xlu0 %2963
  %v2965 = vsel %vm2418, %v2784, 0.0
  %2966 = vadd.xlane.f32.xlu0 %v2965
  %v2967 = vpop.xlane.xlu0 %2966
  %v2968 = vsel %vm2418, %v2786, 0.0
  %2969 = vadd.xlane.f32.xlu0 %v2968
  %v2970 = vpop.xlane.xlu0 %2969
  %v2971 = vsel %vm2418, %v2788, 0.0
  %2972 = vadd.xlane.f32.xlu0 %v2971
  %v2973 = vpop.xlane.xlu0 %2972
  %v2974 = vsel %vm2418, %v2790, 0.0
  %2975 = vadd.xlane.f32.xlu0 %v2974
  %v2976 = vpop.xlane.xlu0 %2975
  %v2977 = vsel %vm2418, %v2792, 0.0
  %2978 = vadd.xlane.f32.xlu0 %v2977
  %v2979 = vpop.xlane.xlu0 %2978
  %v2980 = vsel %vm2418, %v2794, 0.0
  %2981 = vadd.xlane.f32.xlu0 %v2980
  %v2982 = vpop.xlane.xlu0 %2981
  %v2983 = vsel %vm2418, %v2796, 0.0
  %2984 = vadd.xlane.f32.xlu0 %v2983
  %v2985 = vpop.xlane.xlu0 %2984
  %v2986 = vsel %vm2418, %v2798, 0.0
  %2987 = vadd.xlane.f32.xlu0 %v2986
  %v2988 = vpop.xlane.xlu0 %2987
  %v2989 = vsel %vm2418, %v2800, 0.0
  %2990 = vadd.xlane.f32.xlu0 %v2989
  %v2991 = vpop.xlane.xlu0 %2990
  %v2992 = vsel %vm2418, %v2802, 0.0
  %2993 = vadd.xlane.f32.xlu0 %v2992
  %v2994 = vpop.xlane.xlu0 %2993
  %v2995 = vrcp.pop %v2805
  %v2996 = vrcp.pop %v2808
  %v2997 = vrcp.pop %v2811
  %v2998 = vrcp.pop %v2814
  %v2999 = vrcp.pop %v2817
  %v3000 = vrcp.pop %v2820
  %v3001 = vrcp.pop %v2823
  %v3002 = vrcp.pop %v2826
  %v3003 = vrcp.pop %v2829
  %v3004 = vrcp.pop %v2832
  %v3005 = vrcp.pop %v2835
  %v3006 = vrcp.pop %v2838
  %v3007 = vrcp.pop %v2841
  %v3008 = vrcp.pop %v2844
  %v3009 = vrcp.pop %v2847
  %v3010 = vrcp.pop %v2850
  %v3011 = vrcp.pop %v2853
  %v3012 = vrcp.pop %v2856
  %v3013 = vrcp.pop %v2859
  %v3014 = vrcp.pop %v2862
  %v3015 = vrcp.pop %v2865
  %v3016 = vrcp.pop %v2868
  %v3017 = vrcp.pop %v2871
  %v3018 = vrcp.pop %v2874
  %v3019 = vrcp.pop %v2877
  %v3020 = vrcp.pop %v2880
  %v3021 = vrcp.pop %v2883
  %v3022 = vrcp.pop %v2886
  %v3023 = vrcp.pop %v2889
  %v3024 = vrcp.pop %v2892
  %v3025 = vrcp.pop %v2895
  %v3026 = vrcp.pop %v2898
  %v3027 = vrcp.pop %v2901
  %v3028 = vrcp.pop %v2904
  %v3029 = vrcp.pop %v2907
  %v3030 = vrcp.pop %v2910
  %v3031 = vrcp.pop %v2913
  %v3032 = vrcp.pop %v2916
  %v3033 = vrcp.pop %v2919
  %v3034 = vrcp.pop %v2922
  %v3035 = vrcp.pop %v2925
  %v3036 = vrcp.pop %v2928
  %v3037 = vrcp.pop %v2931
  %v3038 = vrcp.pop %v2934
  %v3039 = vrcp.pop %v2937
  %v3040 = vrcp.pop %v2940
  %v3041 = vrcp.pop %v2943
  %v3042 = vrcp.pop %v2946
  %v3043 = vrcp.pop %v2949
  %v3044 = vrcp.pop %v2952
  %v3045 = vrcp.pop %v2955
  %v3046 = vrcp.pop %v2958
  %v3047 = vrcp.pop %v2961
  %v3048 = vrcp.pop %v2964
  %v3049 = vrcp.pop %v2967
  %v3050 = vrcp.pop %v2970
  %v3051 = vrcp.pop %v2973
  %v3052 = vrcp.pop %v2976
  %v3053 = vrcp.pop %v2979
  %v3054 = vrcp.pop %v2982
  %v3055 = vrcp.pop %v2985
  %v3056 = vrcp.pop %v2988
  %v3057 = vrcp.pop %v2991
  %v3058 = vrcp.pop %v2994
  %v3059 = vmul.f32 %v2676, %v2995
  %v3060 = vmul.f32 %v2678, %v2996
  %v3061 = vmul.f32 %v2680, %v2997
  %v3062 = vmul.f32 %v2682, %v2998
  %v3063 = vmul.f32 %v2684, %v2999
  %v3064 = vmul.f32 %v2686, %v3000
  %v3065 = vmul.f32 %v2688, %v3001
  %v3066 = vmul.f32 %v2690, %v3002
  %v3067 = vmul.f32 %v2692, %v3003
  %v3068 = vmul.f32 %v2694, %v3004
  %v3069 = vmul.f32 %v2696, %v3005
  %v3070 = vmul.f32 %v2698, %v3006
  %v3071 = vmul.f32 %v2700, %v3007
  %v3072 = vmul.f32 %v2702, %v3008
  %v3073 = vmul.f32 %v2704, %v3009
  %v3074 = vmul.f32 %v2706, %v3010
  %v3075 = vmul.f32 %v2708, %v3011
  %v3076 = vmul.f32 %v2710, %v3012
  %v3077 = vmul.f32 %v2712, %v3013
  %v3078 = vmul.f32 %v2714, %v3014
  %v3079 = vmul.f32 %v2716, %v3015
  %v3080 = vmul.f32 %v2718, %v3016
  %v3081 = vmul.f32 %v2720, %v3017
  %v3082 = vmul.f32 %v2722, %v3018
  %v3083 = vmul.f32 %v2724, %v3019
  %v3084 = vmul.f32 %v2726, %v3020
  %v3085 = vmul.f32 %v2728, %v3021
  %v3086 = vmul.f32 %v2730, %v3022
  %v3087 = vmul.f32 %v2732, %v3023
  %v3088 = vmul.f32 %v2734, %v3024
  %v3089 = vmul.f32 %v2736, %v3025
  %v3090 = vmul.f32 %v2738, %v3026
  %v3091 = vmul.f32 %v2740, %v3027
  %v3092 = vmul.f32 %v2742, %v3028
  %v3093 = vmul.f32 %v2744, %v3029
  %v3094 = vmul.f32 %v2746, %v3030
  %v3095 = vmul.f32 %v2748, %v3031
  %v3096 = vmul.f32 %v2750, %v3032
  %v3097 = vmul.f32 %v2752, %v3033
  %v3098 = vmul.f32 %v2754, %v3034
  %v3099 = vmul.f32 %v2756, %v3035
  %v3100 = vmul.f32 %v2758, %v3036
  %v3101 = vmul.f32 %v2760, %v3037
  %v3102 = vmul.f32 %v2762, %v3038
  %v3103 = vmul.f32 %v2764, %v3039
  %v3104 = vmul.f32 %v2766, %v3040
  %v3105 = vmul.f32 %v2768, %v3041
  %v3106 = vmul.f32 %v2770, %v3042
  %v3107 = vmul.f32 %v2772, %v3043
  %v3108 = vmul.f32 %v2774, %v3044
  %v3109 = vmul.f32 %v2776, %v3045
  %v3110 = vmul.f32 %v2778, %v3046
  %v3111 = vmul.f32 %v2780, %v3047
  %v3112 = vmul.f32 %v2782, %v3048
  %v3113 = vmul.f32 %v2784, %v3049
  %v3114 = vmul.f32 %v2786, %v3050
  %v3115 = vmul.f32 %v2788, %v3051
  %v3116 = vmul.f32 %v2790, %v3052
  %v3117 = vmul.f32 %v2792, %v3053
  %v3118 = vmul.f32 %v2794, %v3054
  %v3119 = vmul.f32 %v2796, %v3055
  %v3120 = vmul.f32 %v2798, %v3056
  %v3121 = vmul.f32 %v2800, %v3057
  %v3122 = vmul.f32 %v2802, %v3058
  %v3123 = vpack.c.bf16 %v3060, %v3059
  %v3124 = vpack.c.bf16 %v3062, %v3061
  %v3125 = vpack.c.bf16 %v3064, %v3063
  %v3126 = vpack.c.bf16 %v3066, %v3065
  %v3127 = vpack.c.bf16 %v3068, %v3067
  %v3128 = vpack.c.bf16 %v3070, %v3069
  %v3129 = vpack.c.bf16 %v3072, %v3071
  %v3130 = vpack.c.bf16 %v3074, %v3073
  %v3131 = vpack.c.bf16 %v3076, %v3075
  %v3132 = vpack.c.bf16 %v3078, %v3077
  %v3133 = vpack.c.bf16 %v3080, %v3079
  %v3134 = vpack.c.bf16 %v3082, %v3081
  %v3135 = vpack.c.bf16 %v3084, %v3083
  %v3136 = vpack.c.bf16 %v3086, %v3085
  %v3137 = vpack.c.bf16 %v3088, %v3087
  %v3138 = vpack.c.bf16 %v3090, %v3089
  %v3139 = vpack.c.bf16 %v3092, %v3091
  %v3140 = vpack.c.bf16 %v3094, %v3093
  %v3141 = vpack.c.bf16 %v3096, %v3095
  %v3142 = vpack.c.bf16 %v3098, %v3097
  %v3143 = vpack.c.bf16 %v3100, %v3099
  %v3144 = vpack.c.bf16 %v3102, %v3101
  %v3145 = vpack.c.bf16 %v3104, %v3103
  %v3146 = vpack.c.bf16 %v3106, %v3105
  %v3147 = vpack.c.bf16 %v3108, %v3107
  %v3148 = vpack.c.bf16 %v3110, %v3109
  %v3149 = vpack.c.bf16 %v3112, %v3111
  %v3150 = vpack.c.bf16 %v3114, %v3113
  %v3151 = vpack.c.bf16 %v3116, %v3115
  %v3152 = vpack.c.bf16 %v3118, %v3117
  %v3153 = vpack.c.bf16 %v3120, %v3119
  %v3154 = vpack.c.bf16 %v3122, %v3121
  %3155 = vrot.lane.b32.xlu0 %v641, 64
  %v3156 = vpop.permute.xlu0 %3155
  %v3159 = vsel %vm2418, %v3123, 0
  %3161 = vmatprep.subr.bf16.mxu0 0
  %3162 = vmatpush1.bf16.msra.mxu0 %v3156
  %3163 = vmatprep.subr.bf16.mxu0 0
  %3164 = vmatpush1.bf16.msra.mxu0 0
  %3165 = vmatprep.subr.bf16.mxu0 0
  %3166 = vmatpush1.bf16.msra.mxu0 0
  %3167 = vmatprep.subr.bf16.mxu0 0
  %3168 = vmatpush1.bf16.msra.mxu0 0
  %3169 = vmatprep.subr.bf16.mxu0 0
  %3170 = vmatpush1.bf16.msra.mxu0 0
  %3171 = vmatprep.subr.bf16.mxu0 0
  %3172 = vmatpush1.bf16.msra.mxu0 0
  %3173 = vmatprep.subr.bf16.mxu0 0
  %3174 = vmatpush1.bf16.msra.mxu0 0
  %3175 = vmatprep.subr.bf16.mxu0 0
  %3176 = vmatpush1.bf16.msra.mxu0 0
  %3177 = vmatprep.subr.bf16.mxu0 0
  %3178 = vmatpush1.bf16.msra.mxu0 0
  %3179 = vmatprep.subr.bf16.mxu0 0
  %3180 = vmatpush1.bf16.msra.mxu0 0
  %3181 = vmatprep.subr.bf16.mxu0 0
  %3182 = vmatpush1.bf16.msra.mxu0 0
  %3183 = vmatprep.subr.bf16.mxu0 0
  %3184 = vmatpush1.bf16.msra.mxu0 0
  %3185 = vmatprep.subr.bf16.mxu0 0
  %3186 = vmatpush1.bf16.msra.mxu0 0
  %3187 = vmatprep.subr.bf16.mxu0 0
  %3188 = vmatpush1.bf16.msra.mxu0 0
  %3189 = vmatprep.subr.bf16.mxu0 0
  %3190 = vmatpush1.bf16.msra.mxu0 0
  %3191 = vmatprep.subr.bf16.mxu0 0
  %3192 = vmatpush1.bf16.msra.mxu0 0
  %3193 = vmatprep.mubr.bf16.mxu0 0
  %3194 = vmatmul.mubr.bf16.gmra.mrb[0].mxu0 %v3159
  %v3195 = vpop.f32.mrb[0].mxu0
  %v3196 = vadd.f32 0.0, %v3195
  %v3197 = vpop.f32.mrb[0].mxu0
  %v3198 = vpop.f32.mrb[0].mxu0
  %v3199 = vadd.f32 0.0, %v3198
  %v3200 = vpop.f32.mrb[0].mxu0
  %3201 = vdwg.mxu0
  %3202 = vrot.lane.b32.xlu0 %v642, 64
  %v3203 = vpop.permute.xlu0 %3202
  %v3206 = vsel %vm2418, %v3124, 0
  %3208 = vmatprep.subr.bf16.mxu0 0
  %3209 = vmatpush1.bf16.msra.mxu0 %v3203
  %3210 = vmatprep.subr.bf16.mxu0 0
  %3211 = vmatpush1.bf16.msra.mxu0 0
  %3212 = vmatprep.subr.bf16.mxu0 0
  %3213 = vmatpush1.bf16.msra.mxu0 0
  %3214 = vmatprep.subr.bf16.mxu0 0
  %3215 = vmatpush1.bf16.msra.mxu0 0
  %3216 = vmatprep.subr.bf16.mxu0 0
  %3217 = vmatpush1.bf16.msra.mxu0 0
  %3218 = vmatprep.subr.bf16.mxu0 0
  %3219 = vmatpush1.bf16.msra.mxu0 0
  %3220 = vmatprep.subr.bf16.mxu0 0
  %3221 = vmatpush1.bf16.msra.mxu0 0
  %3222 = vmatprep.subr.bf16.mxu0 0
  %3223 = vmatpush1.bf16.msra.mxu0 0
  %3224 = vmatprep.subr.bf16.mxu0 0
  %3225 = vmatpush1.bf16.msra.mxu0 0
  %3226 = vmatprep.subr.bf16.mxu0 0
  %3227 = vmatpush1.bf16.msra.mxu0 0
  %3228 = vmatprep.subr.bf16.mxu0 0
  %3229 = vmatpush1.bf16.msra.mxu0 0
  %3230 = vmatprep.subr.bf16.mxu0 0
  %3231 = vmatpush1.bf16.msra.mxu0 0
  %3232 = vmatprep.subr.bf16.mxu0 0
  %3233 = vmatpush1.bf16.msra.mxu0 0
  %3234 = vmatprep.subr.bf16.mxu0 0
  %3235 = vmatpush1.bf16.msra.mxu0 0
  %3236 = vmatprep.subr.bf16.mxu0 0
  %3237 = vmatpush1.bf16.msra.mxu0 0
  %3238 = vmatprep.subr.bf16.mxu0 0
  %3239 = vmatpush1.bf16.msra.mxu0 0
  %3240 = vmatprep.mubr.bf16.mxu0 0
  %3241 = vmatmul.mubr.bf16.gmra.mrb[0].mxu0 %v3206
  %v3242 = vpop.f32.mrb[0].mxu0
  %v3243 = vadd.f32 0.0, %v3242
  %v3244 = vpop.f32.mrb[0].mxu0
  %v3245 = vpop.f32.mrb[0].mxu0
  %v3246 = vadd.f32 0.0, %v3245
  %v3247 = vpop.f32.mrb[0].mxu0
  %3248 = vdwg.mxu0
  %3249 = vrot.lane.b32.xlu0 %v643, 64
  %v3250 = vpop.permute.xlu0 %3249
  %v3253 = vsel %vm2418, %v3125, 0
  %3255 = vmatprep.subr.bf16.mxu0 0
  %3256 = vmatpush1.bf16.msra.mxu0 %v3250
  %3257 = vmatprep.subr.bf16.mxu0 0
  %3258 = vmatpush1.bf16.msra.mxu0 0
  %3259 = vmatprep.subr.bf16.mxu0 0
  %3260 = vmatpush1.bf16.msra.mxu0 0
  %3261 = vmatprep.subr.bf16.mxu0 0
  %3262 = vmatpush1.bf16.msra.mxu0 0
  %3263 = vmatprep.subr.bf16.mxu0 0
  %3264 = vmatpush1.bf16.msra.mxu0 0
  %3265 = vmatprep.subr.bf16.mxu0 0
  %3266 = vmatpush1.bf16.msra.mxu0 0
  %3267 = vmatprep.subr.bf16.mxu0 0
  %3268 = vmatpush1.bf16.msra.mxu0 0
  %3269 = vmatprep.subr.bf16.mxu0 0
  %3270 = vmatpush1.bf16.msra.mxu0 0
  %3271 = vmatprep.subr.bf16.mxu0 0
  %3272 = vmatpush1.bf16.msra.mxu0 0
  %3273 = vmatprep.subr.bf16.mxu0 0
  %3274 = vmatpush1.bf16.msra.mxu0 0
  %3275 = vmatprep.subr.bf16.mxu0 0
  %3276 = vmatpush1.bf16.msra.mxu0 0
  %3277 = vmatprep.subr.bf16.mxu0 0
  %3278 = vmatpush1.bf16.msra.mxu0 0
  %3279 = vmatprep.subr.bf16.mxu0 0
  %3280 = vmatpush1.bf16.msra.mxu0 0
  %3281 = vmatprep.subr.bf16.mxu0 0
  %3282 = vmatpush1.bf16.msra.mxu0 0
  %3283 = vmatprep.subr.bf16.mxu0 0
  %3284 = vmatpush1.bf16.msra.mxu0 0
  %3285 = vmatprep.subr.bf16.mxu0 0
  %3286 = vmatpush1.bf16.msra.mxu0 0
  %3287 = vmatprep.mubr.bf16.mxu0 0
  %3288 = vmatmul.mubr.bf16.gmra.mrb[0].mxu0 %v3253
  %v3289 = vpop.f32.mrb[0].mxu0
  %v3290 = vadd.f32 0.0, %v3289
  %v3291 = vpop.f32.mrb[0].mxu0
  %v3292 = vpop.f32.mrb[0].mxu0
  %v3293 = vadd.f32 0.0, %v3292
  %v3294 = vpop.f32.mrb[0].mxu0
  %3295 = vdwg.mxu0
  %3296 = vrot.lane.b32.xlu0 %v644, 64
  %v3297 = vpop.permute.xlu0 %3296
  %v3300 = vsel %vm2418, %v3126, 0
  %3302 = vmatprep.subr.bf16.mxu0 0
  %3303 = vmatpush1.bf16.msra.mxu0 %v3297
  %3304 = vmatprep.subr.bf16.mxu0 0
  %3305 = vmatpush1.bf16.msra.mxu0 0
  %3306 = vmatprep.subr.bf16.mxu0 0
  %3307 = vmatpush1.bf16.msra.mxu0 0
  %3308 = vmatprep.subr.bf16.mxu0 0
  %3309 = vmatpush1.bf16.msra.mxu0 0
  %3310 = vmatprep.subr.bf16.mxu0 0
  %3311 = vmatpush1.bf16.msra.mxu0 0
  %3312 = vmatprep.subr.bf16.mxu0 0
  %3313 = vmatpush1.bf16.msra.mxu0 0
  %3314 = vmatprep.subr.bf16.mxu0 0
  %3315 = vmatpush1.bf16.msra.mxu0 0
  %3316 = vmatprep.subr.bf16.mxu0 0
  %3317 = vmatpush1.bf16.msra.mxu0 0
  %3318 = vmatprep.subr.bf16.mxu0 0
  %3319 = vmatpush1.bf16.msra.mxu0 0
  %3320 = vmatprep.subr.bf16.mxu0 0
  %3321 = vmatpush1.bf16.msra.mxu0 0
  %3322 = vmatprep.subr.bf16.mxu0 0
  %3323 = vmatpush1.bf16.msra.mxu0 0
  %3324 = vmatprep.subr.bf16.mxu0 0
  %3325 = vmatpush1.bf16.msra.mxu0 0
  %3326 = vmatprep.subr.bf16.mxu0 0
  %3327 = vmatpush1.bf16.msra.mxu0 0
  %3328 = vmatprep.subr.bf16.mxu0 0
  %3329 = vmatpush1.bf16.msra.mxu0 0
  %3330 = vmatprep.subr.bf16.mxu0 0
  %3331 = vmatpush1.bf16.msra.mxu0 0
  %3332 = vmatprep.subr.bf16.mxu0 0
  %3333 = vmatpush1.bf16.msra.mxu0 0
  %3334 = vmatprep.mubr.bf16.mxu0 0
  %3335 = vmatmul.mubr.bf16.gmra.mrb[0].mxu0 %v3300
  %v3336 = vpop.f32.mrb[0].mxu0
  %v3337 = vadd.f32 0.0, %v3336
  %v3338 = vpop.f32.mrb[0].mxu0
  %v3339 = vpop.f32.mrb[0].mxu0
  %v3340 = vadd.f32 0.0, %v3339
  %v3341 = vpop.f32.mrb[0].mxu0
  %3342 = vdwg.mxu0
  %3343 = vrot.lane.b32.xlu0 %v645, 64
  %v3344 = vpop.permute.xlu0 %3343
  %v3347 = vsel %vm2418, %v3127, 0
  %3349 = vmatprep.subr.bf16.mxu0 0
  %3350 = vmatpush1.bf16.msra.mxu0 %v3344
  %3351 = vmatprep.subr.bf16.mxu0 0
  %3352 = vmatpush1.bf16.msra.mxu0 0
  %3353 = vmatprep.subr.bf16.mxu0 0
  %3354 = vmatpush1.bf16.msra.mxu0 0
  %3355 = vmatprep.subr.bf16.mxu0 0
  %3356 = vmatpush1.bf16.msra.mxu0 0
  %3357 = vmatprep.subr.bf16.mxu0 0
  %3358 = vmatpush1.bf16.msra.mxu0 0
  %3359 = vmatprep.subr.bf16.mxu0 0
  %3360 = vmatpush1.bf16.msra.mxu0 0
  %3361 = vmatprep.subr.bf16.mxu0 0
  %3362 = vmatpush1.bf16.msra.mxu0 0
  %3363 = vmatprep.subr.bf16.mxu0 0
  %3364 = vmatpush1.bf16.msra.mxu0 0
  %3365 = vmatprep.subr.bf16.mxu0 0
  %3366 = vmatpush1.bf16.msra.mxu0 0
  %3367 = vmatprep.subr.bf16.mxu0 0
  %3368 = vmatpush1.bf16.msra.mxu0 0
  %3369 = vmatprep.subr.bf16.mxu0 0
  %3370 = vmatpush1.bf16.msra.mxu0 0
  %3371 = vmatprep.subr.bf16.mxu0 0
  %3372 = vmatpush1.bf16.msra.mxu0 0
  %3373 = vmatprep.subr.bf16.mxu0 0
  %3374 = vmatpush1.bf16.msra.mxu0 0
  %3375 = vmatprep.subr.bf16.mxu0 0
  %3376 = vmatpush1.bf16.msra.mxu0 0
  %3377 = vmatprep.subr.bf16.mxu0 0
  %3378 = vmatpush1.bf16.msra.mxu0 0
  %3379 = vmatprep.subr.bf16.mxu0 0
  %3380 = vmatpush1.bf16.msra.mxu0 0
  %3381 = vmatprep.mubr.bf16.mxu0 0
  %3382 = vmatmul.mubr.bf16.gmra.mrb[0].mxu0 %v3347
  %v3383 = vpop.f32.mrb[0].mxu0
  %v3384 = vadd.f32 0.0, %v3383
  %v3385 = vpop.f32.mrb[0].mxu0
  %v3386 = vpop.f32.mrb[0].mxu0
  %v3387 = vadd.f32 0.0, %v3386
  %v3388 = vpop.f32.mrb[0].mxu0
  %3389 = vdwg.mxu0
  %3390 = vrot.lane.b32.xlu0 %v646, 64
  %v3391 = vpop.permute.xlu0 %3390
  %v3394 = vsel %vm2418, %v3128, 0
  %3396 = vmatprep.subr.bf16.mxu0 0
  %3397 = vmatpush1.bf16.msra.mxu0 %v3391
  %3398 = vmatprep.subr.bf16.mxu0 0
  %3399 = vmatpush1.bf16.msra.mxu0 0
  %3400 = vmatprep.subr.bf16.mxu0 0
  %3401 = vmatpush1.bf16.msra.mxu0 0
  %3402 = vmatprep.subr.bf16.mxu0 0
  %3403 = vmatpush1.bf16.msra.mxu0 0
  %3404 = vmatprep.subr.bf16.mxu0 0
  %3405 = vmatpush1.bf16.msra.mxu0 0
  %3406 = vmatprep.subr.bf16.mxu0 0
  %3407 = vmatpush1.bf16.msra.mxu0 0
  %3408 = vmatprep.subr.bf16.mxu0 0
  %3409 = vmatpush1.bf16.msra.mxu0 0
  %3410 = vmatprep.subr.bf16.mxu0 0
  %3411 = vmatpush1.bf16.msra.mxu0 0
  %3412 = vmatprep.subr.bf16.mxu0 0
  %3413 = vmatpush1.bf16.msra.mxu0 0
  %3414 = vmatprep.subr.bf16.mxu0 0
  %3415 = vmatpush1.bf16.msra.mxu0 0
  %3416 = vmatprep.subr.bf16.mxu0 0
  %3417 = vmatpush1.bf16.msra.mxu0 0
  %3418 = vmatprep.subr.bf16.mxu0 0
  %3419 = vmatpush1.bf16.msra.mxu0 0
  %3420 = vmatprep.subr.bf16.mxu0 0
  %3421 = vmatpush1.bf16.msra.mxu0 0
  %3422 = vmatprep.subr.bf16.mxu0 0
  %3423 = vmatpush1.bf16.msra.mxu0 0
  %3424 = vmatprep.subr.bf16.mxu0 0
  %3425 = vmatpush1.bf16.msra.mxu0 0
  %3426 = vmatprep.subr.bf16.mxu0 0
  %3427 = vmatpush1.bf16.msra.mxu0 0
  %3428 = vmatprep.mubr.bf16.mxu0 0
  %3429 = vmatmul.mubr.bf16.gmra.mrb[0].mxu0 %v3394
  %v3430 = vpop.f32.mrb[0].mxu0
  %v3431 = vadd.f32 0.0, %v3430
  %v3432 = vpop.f32.mrb[0].mxu0
  %v3433 = vpop.f32.mrb[0].mxu0
  %v3434 = vadd.f32 0.0, %v3433
  %v3435 = vpop.f32.mrb[0].mxu0
  %3436 = vdwg.mxu0
  %3437 = vrot.lane.b32.xlu0 %v647, 64
  %v3438 = vpop.permute.xlu0 %3437
  %v3441 = vsel %vm2418, %v3129, 0
  %3443 = vmatprep.subr.bf16.mxu0 0
  %3444 = vmatpush1.bf16.msra.mxu0 %v3438
  %3445 = vmatprep.subr.bf16.mxu0 0
  %3446 = vmatpush1.bf16.msra.mxu0 0
  %3447 = vmatprep.subr.bf16.mxu0 0
  %3448 = vmatpush1.bf16.msra.mxu0 0
  %3449 = vmatprep.subr.bf16.mxu0 0
  %3450 = vmatpush1.bf16.msra.mxu0 0
  %3451 = vmatprep.subr.bf16.mxu0 0
  %3452 = vmatpush1.bf16.msra.mxu0 0
  %3453 = vmatprep.subr.bf16.mxu0 0
  %3454 = vmatpush1.bf16.msra.mxu0 0
  %3455 = vmatprep.subr.bf16.mxu0 0
  %3456 = vmatpush1.bf16.msra.mxu0 0
  %3457 = vmatprep.subr.bf16.mxu0 0
  %3458 = vmatpush1.bf16.msra.mxu0 0
  %3459 = vmatprep.subr.bf16.mxu0 0
  %3460 = vmatpush1.bf16.msra.mxu0 0
  %3461 = vmatprep.subr.bf16.mxu0 0
  %3462 = vmatpush1.bf16.msra.mxu0 0
  %3463 = vmatprep.subr.bf16.mxu0 0
  %3464 = vmatpush1.bf16.msra.mxu0 0
  %3465 = vmatprep.subr.bf16.mxu0 0
  %3466 = vmatpush1.bf16.msra.mxu0 0
  %3467 = vmatprep.subr.bf16.mxu0 0
  %3468 = vmatpush1.bf16.msra.mxu0 0
  %3469 = vmatprep.subr.bf16.mxu0 0
  %3470 = vmatpush1.bf16.msra.mxu0 0
  %3471 = vmatprep.subr.bf16.mxu0 0
  %3472 = vmatpush1.bf16.msra.mxu0 0
  %3473 = vmatprep.subr.bf16.mxu0 0
  %3474 = vmatpush1.bf16.msra.mxu0 0
  %3475 = vmatprep.mubr.bf16.mxu0 0
  %3476 = vmatmul.mubr.bf16.gmra.mrb[0].mxu0 %v3441
  %v3477 = vpop.f32.mrb[0].mxu0
  %v3478 = vadd.f32 0.0, %v3477
  %v3479 = vpop.f32.mrb[0].mxu0
  %v3480 = vpop.f32.mrb[0].mxu0
  %v3481 = vadd.f32 0.0, %v3480
  %v3482 = vpop.f32.mrb[0].mxu0
  %3483 = vdwg.mxu0
  %3484 = vrot.lane.b32.xlu0 %v648, 64
  %v3485 = vpop.permute.xlu0 %3484
  %v3488 = vsel %vm2418, %v3130, 0
  %3490 = vmatprep.subr.bf16.mxu0 0
  %3491 = vmatpush1.bf16.msra.mxu0 %v3485
  %3492 = vmatprep.subr.bf16.mxu0 0
  %3493 = vmatpush1.bf16.msra.mxu0 0
  %3494 = vmatprep.subr.bf16.mxu0 0
  %3495 = vmatpush1.bf16.msra.mxu0 0
  %3496 = vmatprep.subr.bf16.mxu0 0
  %3497 = vmatpush1.bf16.msra.mxu0 0
  %3498 = vmatprep.subr.bf16.mxu0 0
  %3499 = vmatpush1.bf16.msra.mxu0 0
  %3500 = vmatprep.subr.bf16.mxu0 0
  %3501 = vmatpush1.bf16.msra.mxu0 0
  %3502 = vmatprep.subr.bf16.mxu0 0
  %3503 = vmatpush1.bf16.msra.mxu0 0
  %3504 = vmatprep.subr.bf16.mxu0 0
  %3505 = vmatpush1.bf16.msra.mxu0 0
  %3506 = vmatprep.subr.bf16.mxu0 0
  %3507 = vmatpush1.bf16.msra.mxu0 0
  %3508 = vmatprep.subr.bf16.mxu0 0
  %3509 = vmatpush1.bf16.msra.mxu0 0
  %3510 = vmatprep.subr.bf16.mxu0 0
  %3511 = vmatpush1.bf16.msra.mxu0 0
  %3512 = vmatprep.subr.bf16.mxu0 0
  %3513 = vmatpush1.bf16.msra.mxu0 0
  %3514 = vmatprep.subr.bf16.mxu0 0
  %3515 = vmatpush1.bf16.msra.mxu0 0
  %3516 = vmatprep.subr.bf16.mxu0 0
  %3517 = vmatpush1.bf16.msra.mxu0 0
  %3518 = vmatprep.subr.bf16.mxu0 0
  %3519 = vmatpush1.bf16.msra.mxu0 0
  %3520 = vmatprep.subr.bf16.mxu0 0
  %3521 = vmatpush1.bf16.msra.mxu0 0
  %3522 = vmatprep.mubr.bf16.mxu0 0
  %3523 = vmatmul.mubr.bf16.gmra.mrb[0].mxu0 %v3488
  %v3524 = vpop.f32.mrb[0].mxu0
  %v3525 = vadd.f32 0.0, %v3524
  %v3526 = vpop.f32.mrb[0].mxu0
  %v3527 = vpop.f32.mrb[0].mxu0
  %v3528 = vadd.f32 0.0, %v3527
  %v3529 = vpop.f32.mrb[0].mxu0
  %3530 = vdwg.mxu0
  %3531 = vrot.lane.b32.xlu0 %v649, 64
  %v3532 = vpop.permute.xlu0 %3531
  %v3535 = vsel %vm2418, %v3131, 0
  %3537 = vmatprep.subr.bf16.mxu0 0
  %3538 = vmatpush1.bf16.msra.mxu0 %v3532
  %3539 = vmatprep.subr.bf16.mxu0 0
  %3540 = vmatpush1.bf16.msra.mxu0 0
  %3541 = vmatprep.subr.bf16.mxu0 0
  %3542 = vmatpush1.bf16.msra.mxu0 0
  %3543 = vmatprep.subr.bf16.mxu0 0
  %3544 = vmatpush1.bf16.msra.mxu0 0
  %3545 = vmatprep.subr.bf16.mxu0 0
  %3546 = vmatpush1.bf16.msra.mxu0 0
  %3547 = vmatprep.subr.bf16.mxu0 0
  %3548 = vmatpush1.bf16.msra.mxu0 0
  %3549 = vmatprep.subr.bf16.mxu0 0
  %3550 = vmatpush1.bf16.msra.mxu0 0
  %3551 = vmatprep.subr.bf16.mxu0 0
  %3552 = vmatpush1.bf16.msra.mxu0 0
  %3553 = vmatprep.subr.bf16.mxu0 0
  %3554 = vmatpush1.bf16.msra.mxu0 0
  %3555 = vmatprep.subr.bf16.mxu0 0
  %3556 = vmatpush1.bf16.msra.mxu0 0
  %3557 = vmatprep.subr.bf16.mxu0 0
  %3558 = vmatpush1.bf16.msra.mxu0 0
  %3559 = vmatprep.subr.bf16.mxu0 0
  %3560 = vmatpush1.bf16.msra.mxu0 0
  %3561 = vmatprep.subr.bf16.mxu0 0
  %3562 = vmatpush1.bf16.msra.mxu0 0
  %3563 = vmatprep.subr.bf16.mxu0 0
  %3564 = vmatpush1.bf16.msra.mxu0 0
  %3565 = vmatprep.subr.bf16.mxu0 0
  %3566 = vmatpush1.bf16.msra.mxu0 0
  %3567 = vmatprep.subr.bf16.mxu0 0
  %3568 = vmatpush1.bf16.msra.mxu0 0
  %3569 = vmatprep.mubr.bf16.mxu0 0
  %3570 = vmatmul.mubr.bf16.gmra.mrb[0].mxu0 %v3535
  %v3571 = vpop.f32.mrb[0].mxu0
  %v3572 = vadd.f32 0.0, %v3571
  %v3573 = vpop.f32.mrb[0].mxu0
  %v3574 = vpop.f32.mrb[0].mxu0
  %v3575 = vadd.f32 0.0, %v3574
  %v3576 = vpop.f32.mrb[0].mxu0
  %3577 = vdwg.mxu0
  %3578 = vrot.lane.b32.xlu0 %v650, 64
  %v3579 = vpop.permute.xlu0 %3578
  %v3582 = vsel %vm2418, %v3132, 0
  %3584 = vmatprep.subr.bf16.mxu0 0
  %3585 = vmatpush1.bf16.msra.mxu0 %v3579
  %3586 = vmatprep.subr.bf16.mxu0 0
  %3587 = vmatpush1.bf16.msra.mxu0 0
  %3588 = vmatprep.subr.bf16.mxu0 0
  %3589 = vmatpush1.bf16.msra.mxu0 0
  %3590 = vmatprep.subr.bf16.mxu0 0
  %3591 = vmatpush1.bf16.msra.mxu0 0
  %3592 = vmatprep.subr.bf16.mxu0 0
  %3593 = vmatpush1.bf16.msra.mxu0 0
  %3594 = vmatprep.subr.bf16.mxu0 0
  %3595 = vmatpush1.bf16.msra.mxu0 0
  %3596 = vmatprep.subr.bf16.mxu0 0
  %3597 = vmatpush1.bf16.msra.mxu0 0
  %3598 = vmatprep.subr.bf16.mxu0 0
  %3599 = vmatpush1.bf16.msra.mxu0 0
  %3600 = vmatprep.subr.bf16.mxu0 0
  %3601 = vmatpush1.bf16.msra.mxu0 0
  %3602 = vmatprep.subr.bf16.mxu0 0
  %3603 = vmatpush1.bf16.msra.mxu0 0
  %3604 = vmatprep.subr.bf16.mxu0 0
  %3605 = vmatpush1.bf16.msra.mxu0 0
  %3606 = vmatprep.subr.bf16.mxu0 0
  %3607 = vmatpush1.bf16.msra.mxu0 0
  %3608 = vmatprep.subr.bf16.mxu0 0
  %3609 = vmatpush1.bf16.msra.mxu0 0
  %3610 = vmatprep.subr.bf16.mxu0 0
  %3611 = vmatpush1.bf16.msra.mxu0 0
  %3612 = vmatprep.subr.bf16.mxu0 0
  %3613 = vmatpush1.bf16.msra.mxu0 0
  %3614 = vmatprep.subr.bf16.mxu0 0
  %3615 = vmatpush1.bf16.msra.mxu0 0
  %3616 = vmatprep.mubr.bf16.mxu0 0
  %3617 = vmatmul.mubr.bf16.gmra.mrb[0].mxu0 %v3582
  %v3618 = vpop.f32.mrb[0].mxu0
  %v3619 = vadd.f32 0.0, %v3618
  %v3620 = vpop.f32.mrb[0].mxu0
  %v3621 = vpop.f32.mrb[0].mxu0
  %v3622 = vadd.f32 0.0, %v3621
  %v3623 = vpop.f32.mrb[0].mxu0
  %3624 = vdwg.mxu0
  %3625 = vrot.lane.b32.xlu0 %v651, 64
  %v3626 = vpop.permute.xlu0 %3625
  %v3629 = vsel %vm2418, %v3133, 0
  %3631 = vmatprep.subr.bf16.mxu0 0
  %3632 = vmatpush1.bf16.msra.mxu0 %v3626
  %3633 = vmatprep.subr.bf16.mxu0 0
  %3634 = vmatpush1.bf16.msra.mxu0 0
  %3635 = vmatprep.subr.bf16.mxu0 0
  %3636 = vmatpush1.bf16.msra.mxu0 0
  %3637 = vmatprep.subr.bf16.mxu0 0
  %3638 = vmatpush1.bf16.msra.mxu0 0
  %3639 = vmatprep.subr.bf16.mxu0 0
  %3640 = vmatpush1.bf16.msra.mxu0 0
  %3641 = vmatprep.subr.bf16.mxu0 0
  %3642 = vmatpush1.bf16.msra.mxu0 0
  %3643 = vmatprep.subr.bf16.mxu0 0
  %3644 = vmatpush1.bf16.msra.mxu0 0
  %3645 = vmatprep.subr.bf16.mxu0 0
  %3646 = vmatpush1.bf16.msra.mxu0 0
  %3647 = vmatprep.subr.bf16.mxu0 0
  %3648 = vmatpush1.bf16.msra.mxu0 0
  %3649 = vmatprep.subr.bf16.mxu0 0
  %3650 = vmatpush1.bf16.msra.mxu0 0
  %3651 = vmatprep.subr.bf16.mxu0 0
  %3652 = vmatpush1.bf16.msra.mxu0 0
  %3653 = vmatprep.subr.bf16.mxu0 0
  %3654 = vmatpush1.bf16.msra.mxu0 0
  %3655 = vmatprep.subr.bf16.mxu0 0
  %3656 = vmatpush1.bf16.msra.mxu0 0
  %3657 = vmatprep.subr.bf16.mxu0 0
  %3658 = vmatpush1.bf16.msra.mxu0 0
  %3659 = vmatprep.subr.bf16.mxu0 0
  %3660 = vmatpush1.bf16.msra.mxu0 0
  %3661 = vmatprep.subr.bf16.mxu0 0
  %3662 = vmatpush1.bf16.msra.mxu0 0
  %3663 = vmatprep.mubr.bf16.mxu0 0
  %3664 = vmatmul.mubr.bf16.gmra.mrb[0].mxu0 %v3629
  %v3665 = vpop.f32.mrb[0].mxu0
  %v3666 = vadd.f32 0.0, %v3665
  %v3667 = vpop.f32.mrb[0].mxu0
  %v3668 = vpop.f32.mrb[0].mxu0
  %v3669 = vadd.f32 0.0, %v3668
  %v3670 = vpop.f32.mrb[0].mxu0
  %3671 = vdwg.mxu0
  %3672 = vrot.lane.b32.xlu0 %v652, 64
  %v3673 = vpop.permute.xlu0 %3672
  %v3676 = vsel %vm2418, %v3134, 0
  %3678 = vmatprep.subr.bf16.mxu0 0
  %3679 = vmatpush1.bf16.msra.mxu0 %v3673
  %3680 = vmatprep.subr.bf16.mxu0 0
  %3681 = vmatpush1.bf16.msra.mxu0 0
  %3682 = vmatprep.subr.bf16.mxu0 0
  %3683 = vmatpush1.bf16.msra.mxu0 0
  %3684 = vmatprep.subr.bf16.mxu0 0
  %3685 = vmatpush1.bf16.msra.mxu0 0
  %3686 = vmatprep.subr.bf16.mxu0 0
  %3687 = vmatpush1.bf16.msra.mxu0 0
  %3688 = vmatprep.subr.bf16.mxu0 0
  %3689 = vmatpush1.bf16.msra.mxu0 0
  %3690 = vmatprep.subr.bf16.mxu0 0
  %3691 = vmatpush1.bf16.msra.mxu0 0
  %3692 = vmatprep.subr.bf16.mxu0 0
  %3693 = vmatpush1.bf16.msra.mxu0 0
  %3694 = vmatprep.subr.bf16.mxu0 0
  %3695 = vmatpush1.bf16.msra.mxu0 0
  %3696 = vmatprep.subr.bf16.mxu0 0
  %3697 = vmatpush1.bf16.msra.mxu0 0
  %3698 = vmatprep.subr.bf16.mxu0 0
  %3699 = vmatpush1.bf16.msra.mxu0 0
  %3700 = vmatprep.subr.bf16.mxu0 0
  %3701 = vmatpush1.bf16.msra.mxu0 0
  %3702 = vmatprep.subr.bf16.mxu0 0
  %3703 = vmatpush1.bf16.msra.mxu0 0
  %3704 = vmatprep.subr.bf16.mxu0 0
  %3705 = vmatpush1.bf16.msra.mxu0 0
  %3706 = vmatprep.subr.bf16.mxu0 0
  %3707 = vmatpush1.bf16.msra.mxu0 0
  %3708 = vmatprep.subr.bf16.mxu0 0
  %3709 = vmatpush1.bf16.msra.mxu0 0
  %3710 = vmatprep.mubr.bf16.mxu0 0
  %3711 = vmatmul.mubr.bf16.gmra.mrb[0].mxu0 %v3676
  %v3712 = vpop.f32.mrb[0].mxu0
  %v3713 = vadd.f32 0.0, %v3712
  %v3714 = vpop.f32.mrb[0].mxu0
  %v3715 = vpop.f32.mrb[0].mxu0
  %v3716 = vadd.f32 0.0, %v3715
  %v3717 = vpop.f32.mrb[0].mxu0
  %3718 = vdwg.mxu0
  %3719 = vrot.lane.b32.xlu0 %v653, 64
  %v3720 = vpop.permute.xlu0 %3719
  %v3723 = vsel %vm2418, %v3135, 0
  %3725 = vmatprep.subr.bf16.mxu0 0
  %3726 = vmatpush1.bf16.msra.mxu0 %v3720
  %3727 = vmatprep.subr.bf16.mxu0 0
  %3728 = vmatpush1.bf16.msra.mxu0 0
  %3729 = vmatprep.subr.bf16.mxu0 0
  %3730 = vmatpush1.bf16.msra.mxu0 0
  %3731 = vmatprep.subr.bf16.mxu0 0
  %3732 = vmatpush1.bf16.msra.mxu0 0
  %3733 = vmatprep.subr.bf16.mxu0 0
  %3734 = vmatpush1.bf16.msra.mxu0 0
  %3735 = vmatprep.subr.bf16.mxu0 0
  %3736 = vmatpush1.bf16.msra.mxu0 0
  %3737 = vmatprep.subr.bf16.mxu0 0
  %3738 = vmatpush1.bf16.msra.mxu0 0
  %3739 = vmatprep.subr.bf16.mxu0 0
  %3740 = vmatpush1.bf16.msra.mxu0 0
  %3741 = vmatprep.subr.bf16.mxu0 0
  %3742 = vmatpush1.bf16.msra.mxu0 0
  %3743 = vmatprep.subr.bf16.mxu0 0
  %3744 = vmatpush1.bf16.msra.mxu0 0
  %3745 = vmatprep.subr.bf16.mxu0 0
  %3746 = vmatpush1.bf16.msra.mxu0 0
  %3747 = vmatprep.subr.bf16.mxu0 0
  %3748 = vmatpush1.bf16.msra.mxu0 0
  %3749 = vmatprep.subr.bf16.mxu0 0
  %3750 = vmatpush1.bf16.msra.mxu0 0
  %3751 = vmatprep.subr.bf16.mxu0 0
  %3752 = vmatpush1.bf16.msra.mxu0 0
  %3753 = vmatprep.subr.bf16.mxu0 0
  %3754 = vmatpush1.bf16.msra.mxu0 0
  %3755 = vmatprep.subr.bf16.mxu0 0
  %3756 = vmatpush1.bf16.msra.mxu0 0
  %3757 = vmatprep.mubr.bf16.mxu0 0
  %3758 = vmatmul.mubr.bf16.gmra.mrb[0].mxu0 %v3723
  %v3759 = vpop.f32.mrb[0].mxu0
  %v3760 = vadd.f32 0.0, %v3759
  %v3761 = vpop.f32.mrb[0].mxu0
  %v3762 = vpop.f32.mrb[0].mxu0
  %v3763 = vadd.f32 0.0, %v3762
  %v3764 = vpop.f32.mrb[0].mxu0
  %3765 = vdwg.mxu0
  %3766 = vrot.lane.b32.xlu0 %v654, 64
  %v3767 = vpop.permute.xlu0 %3766
  %v3770 = vsel %vm2418, %v3136, 0
  %3772 = vmatprep.subr.bf16.mxu0 0
  %3773 = vmatpush1.bf16.msra.mxu0 %v3767
  %3774 = vmatprep.subr.bf16.mxu0 0
  %3775 = vmatpush1.bf16.msra.mxu0 0
  %3776 = vmatprep.subr.bf16.mxu0 0
  %3777 = vmatpush1.bf16.msra.mxu0 0
  %3778 = vmatprep.subr.bf16.mxu0 0
  %3779 = vmatpush1.bf16.msra.mxu0 0
  %3780 = vmatprep.subr.bf16.mxu0 0
  %3781 = vmatpush1.bf16.msra.mxu0 0
  %3782 = vmatprep.subr.bf16.mxu0 0
  %3783 = vmatpush1.bf16.msra.mxu0 0
  %3784 = vmatprep.subr.bf16.mxu0 0
  %3785 = vmatpush1.bf16.msra.mxu0 0
  %3786 = vmatprep.subr.bf16.mxu0 0
  %3787 = vmatpush1.bf16.msra.mxu0 0
  %3788 = vmatprep.subr.bf16.mxu0 0
  %3789 = vmatpush1.bf16.msra.mxu0 0
  %3790 = vmatprep.subr.bf16.mxu0 0
  %3791 = vmatpush1.bf16.msra.mxu0 0
  %3792 = vmatprep.subr.bf16.mxu0 0
  %3793 = vmatpush1.bf16.msra.mxu0 0
  %3794 = vmatprep.subr.bf16.mxu0 0
  %3795 = vmatpush1.bf16.msra.mxu0 0
  %3796 = vmatprep.subr.bf16.mxu0 0
  %3797 = vmatpush1.bf16.msra.mxu0 0
  %3798 = vmatprep.subr.bf16.mxu0 0
  %3799 = vmatpush1.bf16.msra.mxu0 0
  %3800 = vmatprep.subr.bf16.mxu0 0
  %3801 = vmatpush1.bf16.msra.mxu0 0
  %3802 = vmatprep.subr.bf16.mxu0 0
  %3803 = vmatpush1.bf16.msra.mxu0 0
  %3804 = vmatprep.mubr.bf16.mxu0 0
  %3805 = vmatmul.mubr.bf16.gmra.mrb[0].mxu0 %v3770
  %v3806 = vpop.f32.mrb[0].mxu0
  %v3807 = vadd.f32 0.0, %v3806
  %v3808 = vpop.f32.mrb[0].mxu0
  %v3809 = vpop.f32.mrb[0].mxu0
  %v3810 = vadd.f32 0.0, %v3809
  %v3811 = vpop.f32.mrb[0].mxu0
  %3812 = vdwg.mxu0
  %3813 = vrot.lane.b32.xlu0 %v655, 64
  %v3814 = vpop.permute.xlu0 %3813
  %v3817 = vsel %vm2418, %v3137, 0
  %3819 = vmatprep.subr.bf16.mxu0 0
  %3820 = vmatpush1.bf16.msra.mxu0 %v3814
  %3821 = vmatprep.subr.bf16.mxu0 0
  %3822 = vmatpush1.bf16.msra.mxu0 0
  %3823 = vmatprep.subr.bf16.mxu0 0
  %3824 = vmatpush1.bf16.msra.mxu0 0
  %3825 = vmatprep.subr.bf16.mxu0 0
  %3826 = vmatpush1.bf16.msra.mxu0 0
  %3827 = vmatprep.subr.bf16.mxu0 0
  %3828 = vmatpush1.bf16.msra.mxu0 0
  %3829 = vmatprep.subr.bf16.mxu0 0
  %3830 = vmatpush1.bf16.msra.mxu0 0
  %3831 = vmatprep.subr.bf16.mxu0 0
  %3832 = vmatpush1.bf16.msra.mxu0 0
  %3833 = vmatprep.subr.bf16.mxu0 0
  %3834 = vmatpush1.bf16.msra.mxu0 0
  %3835 = vmatprep.subr.bf16.mxu0 0
  %3836 = vmatpush1.bf16.msra.mxu0 0
  %3837 = vmatprep.subr.bf16.mxu0 0
  %3838 = vmatpush1.bf16.msra.mxu0 0
  %3839 = vmatprep.subr.bf16.mxu0 0
  %3840 = vmatpush1.bf16.msra.mxu0 0
  %3841 = vmatprep.subr.bf16.mxu0 0
  %3842 = vmatpush1.bf16.msra.mxu0 0
  %3843 = vmatprep.subr.bf16.mxu0 0
  %3844 = vmatpush1.bf16.msra.mxu0 0
  %3845 = vmatprep.subr.bf16.mxu0 0
  %3846 = vmatpush1.bf16.msra.mxu0 0
  %3847 = vmatprep.subr.bf16.mxu0 0
  %3848 = vmatpush1.bf16.msra.mxu0 0
  %3849 = vmatprep.subr.bf16.mxu0 0
  %3850 = vmatpush1.bf16.msra.mxu0 0
  %3851 = vmatprep.mubr.bf16.mxu0 0
  %3852 = vmatmul.mubr.bf16.gmra.mrb[0].mxu0 %v3817
  %v3853 = vpop.f32.mrb[0].mxu0
  %v3854 = vadd.f32 0.0, %v3853
  %v3855 = vpop.f32.mrb[0].mxu0
  %v3856 = vpop.f32.mrb[0].mxu0
  %v3857 = vadd.f32 0.0, %v3856
  %v3858 = vpop.f32.mrb[0].mxu0
  %3859 = vdwg.mxu0
  %3860 = vrot.lane.b32.xlu0 %v656, 64
  %v3861 = vpop.permute.xlu0 %3860
  %v3864 = vsel %vm2418, %v3138, 0
  %3866 = vmatprep.subr.bf16.mxu0 0
  %3867 = vmatpush1.bf16.msra.mxu0 %v3861
  %3868 = vmatprep.subr.bf16.mxu0 0
  %3869 = vmatpush1.bf16.msra.mxu0 0
  %3870 = vmatprep.subr.bf16.mxu0 0
  %3871 = vmatpush1.bf16.msra.mxu0 0
  %3872 = vmatprep.subr.bf16.mxu0 0
  %3873 = vmatpush1.bf16.msra.mxu0 0
  %3874 = vmatprep.subr.bf16.mxu0 0
  %3875 = vmatpush1.bf16.msra.mxu0 0
  %3876 = vmatprep.subr.bf16.mxu0 0
  %3877 = vmatpush1.bf16.msra.mxu0 0
  %3878 = vmatprep.subr.bf16.mxu0 0
  %3879 = vmatpush1.bf16.msra.mxu0 0
  %3880 = vmatprep.subr.bf16.mxu0 0
  %3881 = vmatpush1.bf16.msra.mxu0 0
  %3882 = vmatprep.subr.bf16.mxu0 0
  %3883 = vmatpush1.bf16.msra.mxu0 0
  %3884 = vmatprep.subr.bf16.mxu0 0
  %3885 = vmatpush1.bf16.msra.mxu0 0
  %3886 = vmatprep.subr.bf16.mxu0 0
  %3887 = vmatpush1.bf16.msra.mxu0 0
  %3888 = vmatprep.subr.bf16.mxu0 0
  %3889 = vmatpush1.bf16.msra.mxu0 0
  %3890 = vmatprep.subr.bf16.mxu0 0
  %3891 = vmatpush1.bf16.msra.mxu0 0
  %3892 = vmatprep.subr.bf16.mxu0 0
  %3893 = vmatpush1.bf16.msra.mxu0 0
  %3894 = vmatprep.subr.bf16.mxu0 0
  %3895 = vmatpush1.bf16.msra.mxu0 0
  %3896 = vmatprep.subr.bf16.mxu0 0
  %3897 = vmatpush1.bf16.msra.mxu0 0
  %3898 = vmatprep.mubr.bf16.mxu0 0
  %3899 = vmatmul.mubr.bf16.gmra.mrb[0].mxu0 %v3864
  %v3900 = vpop.f32.mrb[0].mxu0
  %v3901 = vadd.f32 0.0, %v3900
  %v3902 = vpop.f32.mrb[0].mxu0
  %v3903 = vpop.f32.mrb[0].mxu0
  %v3904 = vadd.f32 0.0, %v3903
  %v3905 = vpop.f32.mrb[0].mxu0
  %3906 = vdwg.mxu0
  %3907 = vrot.lane.b32.xlu0 %v657, 64
  %v3908 = vpop.permute.xlu0 %3907
  %v3911 = vsel %vm2418, %v3139, 0
  %3913 = vmatprep.subr.bf16.mxu0 0
  %3914 = vmatpush1.bf16.msra.mxu0 %v3908
  %3915 = vmatprep.subr.bf16.mxu0 0
  %3916 = vmatpush1.bf16.msra.mxu0 0
  %3917 = vmatprep.subr.bf16.mxu0 0
  %3918 = vmatpush1.bf16.msra.mxu0 0
  %3919 = vmatprep.subr.bf16.mxu0 0
  %3920 = vmatpush1.bf16.msra.mxu0 0
  %3921 = vmatprep.subr.bf16.mxu0 0
  %3922 = vmatpush1.bf16.msra.mxu0 0
  %3923 = vmatprep.subr.bf16.mxu0 0
  %3924 = vmatpush1.bf16.msra.mxu0 0
  %3925 = vmatprep.subr.bf16.mxu0 0
  %3926 = vmatpush1.bf16.msra.mxu0 0
  %3927 = vmatprep.subr.bf16.mxu0 0
  %3928 = vmatpush1.bf16.msra.mxu0 0
  %3929 = vmatprep.subr.bf16.mxu0 0
  %3930 = vmatpush1.bf16.msra.mxu0 0
  %3931 = vmatprep.subr.bf16.mxu0 0
  %3932 = vmatpush1.bf16.msra.mxu0 0
  %3933 = vmatprep.subr.bf16.mxu0 0
  %3934 = vmatpush1.bf16.msra.mxu0 0
  %3935 = vmatprep.subr.bf16.mxu0 0
  %3936 = vmatpush1.bf16.msra.mxu0 0
  %3937 = vmatprep.subr.bf16.mxu0 0
  %3938 = vmatpush1.bf16.msra.mxu0 0
  %3939 = vmatprep.subr.bf16.mxu0 0
  %3940 = vmatpush1.bf16.msra.mxu0 0
  %3941 = vmatprep.subr.bf16.mxu0 0
  %3942 = vmatpush1.bf16.msra.mxu0 0
  %3943 = vmatprep.subr.bf16.mxu0 0
  %3944 = vmatpush1.bf16.msra.mxu0 0
  %3945 = vmatprep.mubr.bf16.mxu0 0
  %3946 = vmatmul.mubr.bf16.gmra.mrb[0].mxu0 %v3911
  %v3947 = vpop.f32.mrb[0].mxu0
  %v3948 = vadd.f32 0.0, %v3947
  %v3949 = vpop.f32.mrb[0].mxu0
  %v3950 = vpop.f32.mrb[0].mxu0
  %v3951 = vadd.f32 0.0, %v3950
  %v3952 = vpop.f32.mrb[0].mxu0
  %3953 = vdwg.mxu0
  %3954 = vrot.lane.b32.xlu0 %v658, 64
  %v3955 = vpop.permute.xlu0 %3954
  %v3958 = vsel %vm2418, %v3140, 0
  %3960 = vmatprep.subr.bf16.mxu0 0
  %3961 = vmatpush1.bf16.msra.mxu0 %v3955
  %3962 = vmatprep.subr.bf16.mxu0 0
  %3963 = vmatpush1.bf16.msra.mxu0 0
  %3964 = vmatprep.subr.bf16.mxu0 0
  %3965 = vmatpush1.bf16.msra.mxu0 0
  %3966 = vmatprep.subr.bf16.mxu0 0
  %3967 = vmatpush1.bf16.msra.mxu0 0
  %3968 = vmatprep.subr.bf16.mxu0 0
  %3969 = vmatpush1.bf16.msra.mxu0 0
  %3970 = vmatprep.subr.bf16.mxu0 0
  %3971 = vmatpush1.bf16.msra.mxu0 0
  %3972 = vmatprep.subr.bf16.mxu0 0
  %3973 = vmatpush1.bf16.msra.mxu0 0
  %3974 = vmatprep.subr.bf16.mxu0 0
  %3975 = vmatpush1.bf16.msra.mxu0 0
  %3976 = vmatprep.subr.bf16.mxu0 0
  %3977 = vmatpush1.bf16.msra.mxu0 0
  %3978 = vmatprep.subr.bf16.mxu0 0
  %3979 = vmatpush1.bf16.msra.mxu0 0
  %3980 = vmatprep.subr.bf16.mxu0 0
  %3981 = vmatpush1.bf16.msra.mxu0 0
  %3982 = vmatprep.subr.bf16.mxu0 0
  %3983 = vmatpush1.bf16.msra.mxu0 0
  %3984 = vmatprep.subr.bf16.mxu0 0
  %3985 = vmatpush1.bf16.msra.mxu0 0
  %3986 = vmatprep.subr.bf16.mxu0 0
  %3987 = vmatpush1.bf16.msra.mxu0 0
  %3988 = vmatprep.subr.bf16.mxu0 0
  %3989 = vmatpush1.bf16.msra.mxu0 0
  %3990 = vmatprep.subr.bf16.mxu0 0
  %3991 = vmatpush1.bf16.msra.mxu0 0
  %3992 = vmatprep.mubr.bf16.mxu0 0
  %3993 = vmatmul.mubr.bf16.gmra.mrb[0].mxu0 %v3958
  %v3994 = vpop.f32.mrb[0].mxu0
  %v3995 = vadd.f32 0.0, %v3994
  %v3996 = vpop.f32.mrb[0].mxu0
  %v3997 = vpop.f32.mrb[0].mxu0
  %v3998 = vadd.f32 0.0, %v3997
  %v3999 = vpop.f32.mrb[0].mxu0
  %4000 = vdwg.mxu0
  %4001 = vrot.lane.b32.xlu0 %v659, 64
  %v4002 = vpop.permute.xlu0 %4001
  %v4005 = vsel %vm2418, %v3141, 0
  %4007 = vmatprep.subr.bf16.mxu0 0
  %4008 = vmatpush1.bf16.msra.mxu0 %v4002
  %4009 = vmatprep.subr.bf16.mxu0 0
  %4010 = vmatpush1.bf16.msra.mxu0 0
  %4011 = vmatprep.subr.bf16.mxu0 0
  %4012 = vmatpush1.bf16.msra.mxu0 0
  %4013 = vmatprep.subr.bf16.mxu0 0
  %4014 = vmatpush1.bf16.msra.mxu0 0
  %4015 = vmatprep.subr.bf16.mxu0 0
  %4016 = vmatpush1.bf16.msra.mxu0 0
  %4017 = vmatprep.subr.bf16.mxu0 0
  %4018 = vmatpush1.bf16.msra.mxu0 0
  %4019 = vmatprep.subr.bf16.mxu0 0
  %4020 = vmatpush1.bf16.msra.mxu0 0
  %4021 = vmatprep.subr.bf16.mxu0 0
  %4022 = vmatpush1.bf16.msra.mxu0 0
  %4023 = vmatprep.subr.bf16.mxu0 0
  %4024 = vmatpush1.bf16.msra.mxu0 0
  %4025 = vmatprep.subr.bf16.mxu0 0
  %4026 = vmatpush1.bf16.msra.mxu0 0
  %4027 = vmatprep.subr.bf16.mxu0 0
  %4028 = vmatpush1.bf16.msra.mxu0 0
  %4029 = vmatprep.subr.bf16.mxu0 0
  %4030 = vmatpush1.bf16.msra.mxu0 0
  %4031 = vmatprep.subr.bf16.mxu0 0
  %4032 = vmatpush1.bf16.msra.mxu0 0
  %4033 = vmatprep.subr.bf16.mxu0 0
  %4034 = vmatpush1.bf16.msra.mxu0 0
  %4035 = vmatprep.subr.bf16.mxu0 0
  %4036 = vmatpush1.bf16.msra.mxu0 0
  %4037 = vmatprep.subr.bf16.mxu0 0
  %4038 = vmatpush1.bf16.msra.mxu0 0
  %4039 = vmatprep.mubr.bf16.mxu0 0
  %4040 = vmatmul.mubr.bf16.gmra.mrb[0].mxu0 %v4005
  %v4041 = vpop.f32.mrb[0].mxu0
  %v4042 = vadd.f32 0.0, %v4041
  %v4043 = vpop.f32.mrb[0].mxu0
  %v4044 = vpop.f32.mrb[0].mxu0
  %v4045 = vadd.f32 0.0, %v4044
  %v4046 = vpop.f32.mrb[0].mxu0
  %4047 = vdwg.mxu0
  %4048 = vrot.lane.b32.xlu0 %v660, 64
  %v4049 = vpop.permute.xlu0 %4048
  %v4052 = vsel %vm2418, %v3142, 0
  %4054 = vmatprep.subr.bf16.mxu0 0
  %4055 = vmatpush1.bf16.msra.mxu0 %v4049
  %4056 = vmatprep.subr.bf16.mxu0 0
  %4057 = vmatpush1.bf16.msra.mxu0 0
  %4058 = vmatprep.subr.bf16.mxu0 0
  %4059 = vmatpush1.bf16.msra.mxu0 0
  %4060 = vmatprep.subr.bf16.mxu0 0
  %4061 = vmatpush1.bf16.msra.mxu0 0
  %4062 = vmatprep.subr.bf16.mxu0 0
  %4063 = vmatpush1.bf16.msra.mxu0 0
  %4064 = vmatprep.subr.bf16.mxu0 0
  %4065 = vmatpush1.bf16.msra.mxu0 0
  %4066 = vmatprep.subr.bf16.mxu0 0
  %4067 = vmatpush1.bf16.msra.mxu0 0
  %4068 = vmatprep.subr.bf16.mxu0 0
  %4069 = vmatpush1.bf16.msra.mxu0 0
  %4070 = vmatprep.subr.bf16.mxu0 0
  %4071 = vmatpush1.bf16.msra.mxu0 0
  %4072 = vmatprep.subr.bf16.mxu0 0
  %4073 = vmatpush1.bf16.msra.mxu0 0
  %4074 = vmatprep.subr.bf16.mxu0 0
  %4075 = vmatpush1.bf16.msra.mxu0 0
  %4076 = vmatprep.subr.bf16.mxu0 0
  %4077 = vmatpush1.bf16.msra.mxu0 0
  %4078 = vmatprep.subr.bf16.mxu0 0
  %4079 = vmatpush1.bf16.msra.mxu0 0
  %4080 = vmatprep.subr.bf16.mxu0 0
  %4081 = vmatpush1.bf16.msra.mxu0 0
  %4082 = vmatprep.subr.bf16.mxu0 0
  %4083 = vmatpush1.bf16.msra.mxu0 0
  %4084 = vmatprep.subr.bf16.mxu0 0
  %4085 = vmatpush1.bf16.msra.mxu0 0
  %4086 = vmatprep.mubr.bf16.mxu0 0
  %4087 = vmatmul.mubr.bf16.gmra.mrb[0].mxu0 %v4052
  %v4088 = vpop.f32.mrb[0].mxu0
  %v4089 = vadd.f32 0.0, %v4088
  %v4090 = vpop.f32.mrb[0].mxu0
  %v4091 = vpop.f32.mrb[0].mxu0
  %v4092 = vadd.f32 0.0, %v4091
  %v4093 = vpop.f32.mrb[0].mxu0
  %4094 = vdwg.mxu0
  %4095 = vrot.lane.b32.xlu0 %v661, 64
  %v4096 = vpop.permute.xlu0 %4095
  %v4099 = vsel %vm2418, %v3143, 0
  %4101 = vmatprep.subr.bf16.mxu0 0
  %4102 = vmatpush1.bf16.msra.mxu0 %v4096
  %4103 = vmatprep.subr.bf16.mxu0 0
  %4104 = vmatpush1.bf16.msra.mxu0 0
  %4105 = vmatprep.subr.bf16.mxu0 0
  %4106 = vmatpush1.bf16.msra.mxu0 0
  %4107 = vmatprep.subr.bf16.mxu0 0
  %4108 = vmatpush1.bf16.msra.mxu0 0
  %4109 = vmatprep.subr.bf16.mxu0 0
  %4110 = vmatpush1.bf16.msra.mxu0 0
  %4111 = vmatprep.subr.bf16.mxu0 0
  %4112 = vmatpush1.bf16.msra.mxu0 0
  %4113 = vmatprep.subr.bf16.mxu0 0
  %4114 = vmatpush1.bf16.msra.mxu0 0
  %4115 = vmatprep.subr.bf16.mxu0 0
  %4116 = vmatpush1.bf16.msra.mxu0 0
  %4117 = vmatprep.subr.bf16.mxu0 0
  %4118 = vmatpush1.bf16.msra.mxu0 0
  %4119 = vmatprep.subr.bf16.mxu0 0
  %4120 = vmatpush1.bf16.msra.mxu0 0
  %4121 = vmatprep.subr.bf16.mxu0 0
  %4122 = vmatpush1.bf16.msra.mxu0 0
  %4123 = vmatprep.subr.bf16.mxu0 0
  %4124 = vmatpush1.bf16.msra.mxu0 0
  %4125 = vmatprep.subr.bf16.mxu0 0
  %4126 = vmatpush1.bf16.msra.mxu0 0
  %4127 = vmatprep.subr.bf16.mxu0 0
  %4128 = vmatpush1.bf16.msra.mxu0 0
  %4129 = vmatprep.subr.bf16.mxu0 0
  %4130 = vmatpush1.bf16.msra.mxu0 0
  %4131 = vmatprep.subr.bf16.mxu0 0
  %4132 = vmatpush1.bf16.msra.mxu0 0
  %4133 = vmatprep.mubr.bf16.mxu0 0
  %4134 = vmatmul.mubr.bf16.gmra.mrb[0].mxu0 %v4099
  %v4135 = vpop.f32.mrb[0].mxu0
  %v4136 = vadd.f32 0.0, %v4135
  %v4137 = vpop.f32.mrb[0].mxu0
  %v4138 = vpop.f32.mrb[0].mxu0
  %v4139 = vadd.f32 0.0, %v4138
  %v4140 = vpop.f32.mrb[0].mxu0
  %4141 = vdwg.mxu0
  %4142 = vrot.lane.b32.xlu0 %v662, 64
  %v4143 = vpop.permute.xlu0 %4142
  %v4146 = vsel %vm2418, %v3144, 0
  %4148 = vmatprep.subr.bf16.mxu0 0
  %4149 = vmatpush1.bf16.msra.mxu0 %v4143
  %4150 = vmatprep.subr.bf16.mxu0 0
  %4151 = vmatpush1.bf16.msra.mxu0 0
  %4152 = vmatprep.subr.bf16.mxu0 0
  %4153 = vmatpush1.bf16.msra.mxu0 0
  %4154 = vmatprep.subr.bf16.mxu0 0
  %4155 = vmatpush1.bf16.msra.mxu0 0
  %4156 = vmatprep.subr.bf16.mxu0 0
  %4157 = vmatpush1.bf16.msra.mxu0 0
  %4158 = vmatprep.subr.bf16.mxu0 0
  %4159 = vmatpush1.bf16.msra.mxu0 0
  %4160 = vmatprep.subr.bf16.mxu0 0
  %4161 = vmatpush1.bf16.msra.mxu0 0
  %4162 = vmatprep.subr.bf16.mxu0 0
  %4163 = vmatpush1.bf16.msra.mxu0 0
  %4164 = vmatprep.subr.bf16.mxu0 0
  %4165 = vmatpush1.bf16.msra.mxu0 0
  %4166 = vmatprep.subr.bf16.mxu0 0
  %4167 = vmatpush1.bf16.msra.mxu0 0
  %4168 = vmatprep.subr.bf16.mxu0 0
  %4169 = vmatpush1.bf16.msra.mxu0 0
  %4170 = vmatprep.subr.bf16.mxu0 0
  %4171 = vmatpush1.bf16.msra.mxu0 0
  %4172 = vmatprep.subr.bf16.mxu0 0
  %4173 = vmatpush1.bf16.msra.mxu0 0
  %4174 = vmatprep.subr.bf16.mxu0 0
  %4175 = vmatpush1.bf16.msra.mxu0 0
  %4176 = vmatprep.subr.bf16.mxu0 0
  %4177 = vmatpush1.bf16.msra.mxu0 0
  %4178 = vmatprep.subr.bf16.mxu0 0
  %4179 = vmatpush1.bf16.msra.mxu0 0
  %4180 = vmatprep.mubr.bf16.mxu0 0
  %4181 = vmatmul.mubr.bf16.gmra.mrb[0].mxu0 %v4146
  %v4182 = vpop.f32.mrb[0].mxu0
  %v4183 = vadd.f32 0.0, %v4182
  %v4184 = vpop.f32.mrb[0].mxu0
  %v4185 = vpop.f32.mrb[0].mxu0
  %v4186 = vadd.f32 0.0, %v4185
  %v4187 = vpop.f32.mrb[0].mxu0
  %4188 = vdwg.mxu0
  %4189 = vrot.lane.b32.xlu0 %v663, 64
  %v4190 = vpop.permute.xlu0 %4189
  %v4193 = vsel %vm2418, %v3145, 0
  %4195 = vmatprep.subr.bf16.mxu0 0
  %4196 = vmatpush1.bf16.msra.mxu0 %v4190
  %4197 = vmatprep.subr.bf16.mxu0 0
  %4198 = vmatpush1.bf16.msra.mxu0 0
  %4199 = vmatprep.subr.bf16.mxu0 0
  %4200 = vmatpush1.bf16.msra.mxu0 0
  %4201 = vmatprep.subr.bf16.mxu0 0
  %4202 = vmatpush1.bf16.msra.mxu0 0
  %4203 = vmatprep.subr.bf16.mxu0 0
  %4204 = vmatpush1.bf16.msra.mxu0 0
  %4205 = vmatprep.subr.bf16.mxu0 0
  %4206 = vmatpush1.bf16.msra.mxu0 0
  %4207 = vmatprep.subr.bf16.mxu0 0
  %4208 = vmatpush1.bf16.msra.mxu0 0
  %4209 = vmatprep.subr.bf16.mxu0 0
  %4210 = vmatpush1.bf16.msra.mxu0 0
  %4211 = vmatprep.subr.bf16.mxu0 0
  %4212 = vmatpush1.bf16.msra.mxu0 0
  %4213 = vmatprep.subr.bf16.mxu0 0
  %4214 = vmatpush1.bf16.msra.mxu0 0
  %4215 = vmatprep.subr.bf16.mxu0 0
  %4216 = vmatpush1.bf16.msra.mxu0 0
  %4217 = vmatprep.subr.bf16.mxu0 0
  %4218 = vmatpush1.bf16.msra.mxu0 0
  %4219 = vmatprep.subr.bf16.mxu0 0
  %4220 = vmatpush1.bf16.msra.mxu0 0
  %4221 = vmatprep.subr.bf16.mxu0 0
  %4222 = vmatpush1.bf16.msra.mxu0 0
  %4223 = vmatprep.subr.bf16.mxu0 0
  %4224 = vmatpush1.bf16.msra.mxu0 0
  %4225 = vmatprep.subr.bf16.mxu0 0
  %4226 = vmatpush1.bf16.msra.mxu0 0
  %4227 = vmatprep.mubr.bf16.mxu0 0
  %4228 = vmatmul.mubr.bf16.gmra.mrb[0].mxu0 %v4193
  %v4229 = vpop.f32.mrb[0].mxu0
  %v4230 = vadd.f32 0.0, %v4229
  %v4231 = vpop.f32.mrb[0].mxu0
  %v4232 = vpop.f32.mrb[0].mxu0
  %v4233 = vadd.f32 0.0, %v4232
  %v4234 = vpop.f32.mrb[0].mxu0
  %4235 = vdwg.mxu0
  %4236 = vrot.lane.b32.xlu0 %v664, 64
  %v4237 = vpop.permute.xlu0 %4236
  %v4240 = vsel %vm2418, %v3146, 0
  %4242 = vmatprep.subr.bf16.mxu0 0
  %4243 = vmatpush1.bf16.msra.mxu0 %v4237
  %4244 = vmatprep.subr.bf16.mxu0 0
  %4245 = vmatpush1.bf16.msra.mxu0 0
  %4246 = vmatprep.subr.bf16.mxu0 0
  %4247 = vmatpush1.bf16.msra.mxu0 0
  %4248 = vmatprep.subr.bf16.mxu0 0
  %4249 = vmatpush1.bf16.msra.mxu0 0
  %4250 = vmatprep.subr.bf16.mxu0 0
  %4251 = vmatpush1.bf16.msra.mxu0 0
  %4252 = vmatprep.subr.bf16.mxu0 0
  %4253 = vmatpush1.bf16.msra.mxu0 0
  %4254 = vmatprep.subr.bf16.mxu0 0
  %4255 = vmatpush1.bf16.msra.mxu0 0
  %4256 = vmatprep.subr.bf16.mxu0 0
  %4257 = vmatpush1.bf16.msra.mxu0 0
  %4258 = vmatprep.subr.bf16.mxu0 0
  %4259 = vmatpush1.bf16.msra.mxu0 0
  %4260 = vmatprep.subr.bf16.mxu0 0
  %4261 = vmatpush1.bf16.msra.mxu0 0
  %4262 = vmatprep.subr.bf16.mxu0 0
  %4263 = vmatpush1.bf16.msra.mxu0 0
  %4264 = vmatprep.subr.bf16.mxu0 0
  %4265 = vmatpush1.bf16.msra.mxu0 0
  %4266 = vmatprep.subr.bf16.mxu0 0
  %4267 = vmatpush1.bf16.msra.mxu0 0
  %4268 = vmatprep.subr.bf16.mxu0 0
  %4269 = vmatpush1.bf16.msra.mxu0 0
  %4270 = vmatprep.subr.bf16.mxu0 0
  %4271 = vmatpush1.bf16.msra.mxu0 0
  %4272 = vmatprep.subr.bf16.mxu0 0
  %4273 = vmatpush1.bf16.msra.mxu0 0
  %4274 = vmatprep.mubr.bf16.mxu0 0
  %4275 = vmatmul.mubr.bf16.gmra.mrb[0].mxu0 %v4240
  %v4276 = vpop.f32.mrb[0].mxu0
  %v4277 = vadd.f32 0.0, %v4276
  %v4278 = vpop.f32.mrb[0].mxu0
  %v4279 = vpop.f32.mrb[0].mxu0
  %v4280 = vadd.f32 0.0, %v4279
  %v4281 = vpop.f32.mrb[0].mxu0
  %4282 = vdwg.mxu0
  %4283 = vrot.lane.b32.xlu0 %v665, 64
  %v4284 = vpop.permute.xlu0 %4283
  %v4287 = vsel %vm2418, %v3147, 0
  %4289 = vmatprep.subr.bf16.mxu0 0
  %4290 = vmatpush1.bf16.msra.mxu0 %v4284
  %4291 = vmatprep.subr.bf16.mxu0 0
  %4292 = vmatpush1.bf16.msra.mxu0 0
  %4293 = vmatprep.subr.bf16.mxu0 0
  %4294 = vmatpush1.bf16.msra.mxu0 0
  %4295 = vmatprep.subr.bf16.mxu0 0
  %4296 = vmatpush1.bf16.msra.mxu0 0
  %4297 = vmatprep.subr.bf16.mxu0 0
  %4298 = vmatpush1.bf16.msra.mxu0 0
  %4299 = vmatprep.subr.bf16.mxu0 0
  %4300 = vmatpush1.bf16.msra.mxu0 0
  %4301 = vmatprep.subr.bf16.mxu0 0
  %4302 = vmatpush1.bf16.msra.mxu0 0
  %4303 = vmatprep.subr.bf16.mxu0 0
  %4304 = vmatpush1.bf16.msra.mxu0 0
  %4305 = vmatprep.subr.bf16.mxu0 0
  %4306 = vmatpush1.bf16.msra.mxu0 0
  %4307 = vmatprep.subr.bf16.mxu0 0
  %4308 = vmatpush1.bf16.msra.mxu0 0
  %4309 = vmatprep.subr.bf16.mxu0 0
  %4310 = vmatpush1.bf16.msra.mxu0 0
  %4311 = vmatprep.subr.bf16.mxu0 0
  %4312 = vmatpush1.bf16.msra.mxu0 0
  %4313 = vmatprep.subr.bf16.mxu0 0
  %4314 = vmatpush1.bf16.msra.mxu0 0
  %4315 = vmatprep.subr.bf16.mxu0 0
  %4316 = vmatpush1.bf16.msra.mxu0 0
  %4317 = vmatprep.subr.bf16.mxu0 0
  %4318 = vmatpush1.bf16.msra.mxu0 0
  %4319 = vmatprep.subr.bf16.mxu0 0
  %4320 = vmatpush1.bf16.msra.mxu0 0
  %4321 = vmatprep.mubr.bf16.mxu0 0
  %4322 = vmatmul.mubr.bf16.gmra.mrb[0].mxu0 %v4287
  %v4323 = vpop.f32.mrb[0].mxu0
  %v4324 = vadd.f32 0.0, %v4323
  %v4325 = vpop.f32.mrb[0].mxu0
  %v4326 = vpop.f32.mrb[0].mxu0
  %v4327 = vadd.f32 0.0, %v4326
  %v4328 = vpop.f32.mrb[0].mxu0
  %4329 = vdwg.mxu0
  %4330 = vrot.lane.b32.xlu0 %v666, 64
  %v4331 = vpop.permute.xlu0 %4330
  %v4334 = vsel %vm2418, %v3148, 0
  %4336 = vmatprep.subr.bf16.mxu0 0
  %4337 = vmatpush1.bf16.msra.mxu0 %v4331
  %4338 = vmatprep.subr.bf16.mxu0 0
  %4339 = vmatpush1.bf16.msra.mxu0 0
  %4340 = vmatprep.subr.bf16.mxu0 0
  %4341 = vmatpush1.bf16.msra.mxu0 0
  %4342 = vmatprep.subr.bf16.mxu0 0
  %4343 = vmatpush1.bf16.msra.mxu0 0
  %4344 = vmatprep.subr.bf16.mxu0 0
  %4345 = vmatpush1.bf16.msra.mxu0 0
  %4346 = vmatprep.subr.bf16.mxu0 0
  %4347 = vmatpush1.bf16.msra.mxu0 0
  %4348 = vmatprep.subr.bf16.mxu0 0
  %4349 = vmatpush1.bf16.msra.mxu0 0
  %4350 = vmatprep.subr.bf16.mxu0 0
  %4351 = vmatpush1.bf16.msra.mxu0 0
  %4352 = vmatprep.subr.bf16.mxu0 0
  %4353 = vmatpush1.bf16.msra.mxu0 0
  %4354 = vmatprep.subr.bf16.mxu0 0
  %4355 = vmatpush1.bf16.msra.mxu0 0
  %4356 = vmatprep.subr.bf16.mxu0 0
  %4357 = vmatpush1.bf16.msra.mxu0 0
  %4358 = vmatprep.subr.bf16.mxu0 0
  %4359 = vmatpush1.bf16.msra.mxu0 0
  %4360 = vmatprep.subr.bf16.mxu0 0
  %4361 = vmatpush1.bf16.msra.mxu0 0
  %4362 = vmatprep.subr.bf16.mxu0 0
  %4363 = vmatpush1.bf16.msra.mxu0 0
  %4364 = vmatprep.subr.bf16.mxu0 0
  %4365 = vmatpush1.bf16.msra.mxu0 0
  %4366 = vmatprep.subr.bf16.mxu0 0
  %4367 = vmatpush1.bf16.msra.mxu0 0
  %4368 = vmatprep.mubr.bf16.mxu0 0
  %4369 = vmatmul.mubr.bf16.gmra.mrb[0].mxu0 %v4334
  %v4370 = vpop.f32.mrb[0].mxu0
  %v4371 = vadd.f32 0.0, %v4370
  %v4372 = vpop.f32.mrb[0].mxu0
  %v4373 = vpop.f32.mrb[0].mxu0
  %v4374 = vadd.f32 0.0, %v4373
  %v4375 = vpop.f32.mrb[0].mxu0
  %4376 = vdwg.mxu0
  %4377 = vrot.lane.b32.xlu0 %v667, 64
  %v4378 = vpop.permute.xlu0 %4377
  %v4381 = vsel %vm2418, %v3149, 0
  %4383 = vmatprep.subr.bf16.mxu0 0
  %4384 = vmatpush1.bf16.msra.mxu0 %v4378
  %4385 = vmatprep.subr.bf16.mxu0 0
  %4386 = vmatpush1.bf16.msra.mxu0 0
  %4387 = vmatprep.subr.bf16.mxu0 0
  %4388 = vmatpush1.bf16.msra.mxu0 0
  %4389 = vmatprep.subr.bf16.mxu0 0
  %4390 = vmatpush1.bf16.msra.mxu0 0
  %4391 = vmatprep.subr.bf16.mxu0 0
  %4392 = vmatpush1.bf16.msra.mxu0 0
  %4393 = vmatprep.subr.bf16.mxu0 0
  %4394 = vmatpush1.bf16.msra.mxu0 0
  %4395 = vmatprep.subr.bf16.mxu0 0
  %4396 = vmatpush1.bf16.msra.mxu0 0
  %4397 = vmatprep.subr.bf16.mxu0 0
  %4398 = vmatpush1.bf16.msra.mxu0 0
  %4399 = vmatprep.subr.bf16.mxu0 0
  %4400 = vmatpush1.bf16.msra.mxu0 0
  %4401 = vmatprep.subr.bf16.mxu0 0
  %4402 = vmatpush1.bf16.msra.mxu0 0
  %4403 = vmatprep.subr.bf16.mxu0 0
  %4404 = vmatpush1.bf16.msra.mxu0 0
  %4405 = vmatprep.subr.bf16.mxu0 0
  %4406 = vmatpush1.bf16.msra.mxu0 0
  %4407 = vmatprep.subr.bf16.mxu0 0
  %4408 = vmatpush1.bf16.msra.mxu0 0
  %4409 = vmatprep.subr.bf16.mxu0 0
  %4410 = vmatpush1.bf16.msra.mxu0 0
  %4411 = vmatprep.subr.bf16.mxu0 0
  %4412 = vmatpush1.bf16.msra.mxu0 0
  %4413 = vmatprep.subr.bf16.mxu0 0
  %4414 = vmatpush1.bf16.msra.mxu0 0
  %4415 = vmatprep.mubr.bf16.mxu0 0
  %4416 = vmatmul.mubr.bf16.gmra.mrb[0].mxu0 %v4381
  %v4417 = vpop.f32.mrb[0].mxu0
  %v4418 = vadd.f32 0.0, %v4417
  %v4419 = vpop.f32.mrb[0].mxu0
  %v4420 = vpop.f32.mrb[0].mxu0
  %v4421 = vadd.f32 0.0, %v4420
  %v4422 = vpop.f32.mrb[0].mxu0
  %4423 = vdwg.mxu0
  %4424 = vrot.lane.b32.xlu0 %v668, 64
  %v4425 = vpop.permute.xlu0 %4424
  %v4428 = vsel %vm2418, %v3150, 0
  %4430 = vmatprep.subr.bf16.mxu0 0
  %4431 = vmatpush1.bf16.msra.mxu0 %v4425
  %4432 = vmatprep.subr.bf16.mxu0 0
  %4433 = vmatpush1.bf16.msra.mxu0 0
  %4434 = vmatprep.subr.bf16.mxu0 0
  %4435 = vmatpush1.bf16.msra.mxu0 0
  %4436 = vmatprep.subr.bf16.mxu0 0
  %4437 = vmatpush1.bf16.msra.mxu0 0
  %4438 = vmatprep.subr.bf16.mxu0 0
  %4439 = vmatpush1.bf16.msra.mxu0 0
  %4440 = vmatprep.subr.bf16.mxu0 0
  %4441 = vmatpush1.bf16.msra.mxu0 0
  %4442 = vmatprep.subr.bf16.mxu0 0
  %4443 = vmatpush1.bf16.msra.mxu0 0
  %4444 = vmatprep.subr.bf16.mxu0 0
  %4445 = vmatpush1.bf16.msra.mxu0 0
  %4446 = vmatprep.subr.bf16.mxu0 0
  %4447 = vmatpush1.bf16.msra.mxu0 0
  %4448 = vmatprep.subr.bf16.mxu0 0
  %4449 = vmatpush1.bf16.msra.mxu0 0
  %4450 = vmatprep.subr.bf16.mxu0 0
  %4451 = vmatpush1.bf16.msra.mxu0 0
  %4452 = vmatprep.subr.bf16.mxu0 0
  %4453 = vmatpush1.bf16.msra.mxu0 0
  %4454 = vmatprep.subr.bf16.mxu0 0
  %4455 = vmatpush1.bf16.msra.mxu0 0
  %4456 = vmatprep.subr.bf16.mxu0 0
  %4457 = vmatpush1.bf16.msra.mxu0 0
  %4458 = vmatprep.subr.bf16.mxu0 0
  %4459 = vmatpush1.bf16.msra.mxu0 0
  %4460 = vmatprep.subr.bf16.mxu0 0
  %4461 = vmatpush1.bf16.msra.mxu0 0
  %4462 = vmatprep.mubr.bf16.mxu0 0
  %4463 = vmatmul.mubr.bf16.gmra.mrb[0].mxu0 %v4428
  %v4464 = vpop.f32.mrb[0].mxu0
  %v4465 = vadd.f32 0.0, %v4464
  %v4466 = vpop.f32.mrb[0].mxu0
  %v4467 = vpop.f32.mrb[0].mxu0
  %v4468 = vadd.f32 0.0, %v4467
  %v4469 = vpop.f32.mrb[0].mxu0
  %4470 = vdwg.mxu0
  %4471 = vrot.lane.b32.xlu0 %v669, 64
  %v4472 = vpop.permute.xlu0 %4471
  %v4475 = vsel %vm2418, %v3151, 0
  %4477 = vmatprep.subr.bf16.mxu0 0
  %4478 = vmatpush1.bf16.msra.mxu0 %v4472
  %4479 = vmatprep.subr.bf16.mxu0 0
  %4480 = vmatpush1.bf16.msra.mxu0 0
  %4481 = vmatprep.subr.bf16.mxu0 0
  %4482 = vmatpush1.bf16.msra.mxu0 0
  %4483 = vmatprep.subr.bf16.mxu0 0
  %4484 = vmatpush1.bf16.msra.mxu0 0
  %4485 = vmatprep.subr.bf16.mxu0 0
  %4486 = vmatpush1.bf16.msra.mxu0 0
  %4487 = vmatprep.subr.bf16.mxu0 0
  %4488 = vmatpush1.bf16.msra.mxu0 0
  %4489 = vmatprep.subr.bf16.mxu0 0
  %4490 = vmatpush1.bf16.msra.mxu0 0
  %4491 = vmatprep.subr.bf16.mxu0 0
  %4492 = vmatpush1.bf16.msra.mxu0 0
  %4493 = vmatprep.subr.bf16.mxu0 0
  %4494 = vmatpush1.bf16.msra.mxu0 0
  %4495 = vmatprep.subr.bf16.mxu0 0
  %4496 = vmatpush1.bf16.msra.mxu0 0
  %4497 = vmatprep.subr.bf16.mxu0 0
  %4498 = vmatpush1.bf16.msra.mxu0 0
  %4499 = vmatprep.subr.bf16.mxu0 0
  %4500 = vmatpush1.bf16.msra.mxu0 0
  %4501 = vmatprep.subr.bf16.mxu0 0
  %4502 = vmatpush1.bf16.msra.mxu0 0
  %4503 = vmatprep.subr.bf16.mxu0 0
  %4504 = vmatpush1.bf16.msra.mxu0 0
  %4505 = vmatprep.subr.bf16.mxu0 0
  %4506 = vmatpush1.bf16.msra.mxu0 0
  %4507 = vmatprep.subr.bf16.mxu0 0
  %4508 = vmatpush1.bf16.msra.mxu0 0
  %4509 = vmatprep.mubr.bf16.mxu0 0
  %4510 = vmatmul.mubr.bf16.gmra.mrb[0].mxu0 %v4475
  %v4511 = vpop.f32.mrb[0].mxu0
  %v4512 = vadd.f32 0.0, %v4511
  %v4513 = vpop.f32.mrb[0].mxu0
  %v4514 = vpop.f32.mrb[0].mxu0
  %v4515 = vadd.f32 0.0, %v4514
  %v4516 = vpop.f32.mrb[0].mxu0
  %4517 = vdwg.mxu0
  %4518 = vrot.lane.b32.xlu0 %v670, 64
  %v4519 = vpop.permute.xlu0 %4518
  %v4522 = vsel %vm2418, %v3152, 0
  %4524 = vmatprep.subr.bf16.mxu0 0
  %4525 = vmatpush1.bf16.msra.mxu0 %v4519
  %4526 = vmatprep.subr.bf16.mxu0 0
  %4527 = vmatpush1.bf16.msra.mxu0 0
  %4528 = vmatprep.subr.bf16.mxu0 0
  %4529 = vmatpush1.bf16.msra.mxu0 0
  %4530 = vmatprep.subr.bf16.mxu0 0
  %4531 = vmatpush1.bf16.msra.mxu0 0
  %4532 = vmatprep.subr.bf16.mxu0 0
  %4533 = vmatpush1.bf16.msra.mxu0 0
  %4534 = vmatprep.subr.bf16.mxu0 0
  %4535 = vmatpush1.bf16.msra.mxu0 0
  %4536 = vmatprep.subr.bf16.mxu0 0
  %4537 = vmatpush1.bf16.msra.mxu0 0
  %4538 = vmatprep.subr.bf16.mxu0 0
  %4539 = vmatpush1.bf16.msra.mxu0 0
  %4540 = vmatprep.subr.bf16.mxu0 0
  %4541 = vmatpush1.bf16.msra.mxu0 0
  %4542 = vmatprep.subr.bf16.mxu0 0
  %4543 = vmatpush1.bf16.msra.mxu0 0
  %4544 = vmatprep.subr.bf16.mxu0 0
  %4545 = vmatpush1.bf16.msra.mxu0 0
  %4546 = vmatprep.subr.bf16.mxu0 0
  %4547 = vmatpush1.bf16.msra.mxu0 0
  %4548 = vmatprep.subr.bf16.mxu0 0
  %4549 = vmatpush1.bf16.msra.mxu0 0
  %4550 = vmatprep.subr.bf16.mxu0 0
  %4551 = vmatpush1.bf16.msra.mxu0 0
  %4552 = vmatprep.subr.bf16.mxu0 0
  %4553 = vmatpush1.bf16.msra.mxu0 0
  %4554 = vmatprep.subr.bf16.mxu0 0
  %4555 = vmatpush1.bf16.msra.mxu0 0
  %4556 = vmatprep.mubr.bf16.mxu0 0
  %4557 = vmatmul.mubr.bf16.gmra.mrb[0].mxu0 %v4522
  %v4558 = vpop.f32.mrb[0].mxu0
  %v4559 = vadd.f32 0.0, %v4558
  %v4560 = vpop.f32.mrb[0].mxu0
  %v4561 = vpop.f32.mrb[0].mxu0
  %v4562 = vadd.f32 0.0, %v4561
  %v4563 = vpop.f32.mrb[0].mxu0
  %4564 = vdwg.mxu0
  %4565 = vrot.lane.b32.xlu0 %v671, 64
  %v4566 = vpop.permute.xlu0 %4565
  %v4569 = vsel %vm2418, %v3153, 0
  %4571 = vmatprep.subr.bf16.mxu0 0
  %4572 = vmatpush1.bf16.msra.mxu0 %v4566
  %4573 = vmatprep.subr.bf16.mxu0 0
  %4574 = vmatpush1.bf16.msra.mxu0 0
  %4575 = vmatprep.subr.bf16.mxu0 0
  %4576 = vmatpush1.bf16.msra.mxu0 0
  %4577 = vmatprep.subr.bf16.mxu0 0
  %4578 = vmatpush1.bf16.msra.mxu0 0
  %4579 = vmatprep.subr.bf16.mxu0 0
  %4580 = vmatpush1.bf16.msra.mxu0 0
  %4581 = vmatprep.subr.bf16.mxu0 0
  %4582 = vmatpush1.bf16.msra.mxu0 0
  %4583 = vmatprep.subr.bf16.mxu0 0
  %4584 = vmatpush1.bf16.msra.mxu0 0
  %4585 = vmatprep.subr.bf16.mxu0 0
  %4586 = vmatpush1.bf16.msra.mxu0 0
  %4587 = vmatprep.subr.bf16.mxu0 0
  %4588 = vmatpush1.bf16.msra.mxu0 0
  %4589 = vmatprep.subr.bf16.mxu0 0
  %4590 = vmatpush1.bf16.msra.mxu0 0
  %4591 = vmatprep.subr.bf16.mxu0 0
  %4592 = vmatpush1.bf16.msra.mxu0 0
  %4593 = vmatprep.subr.bf16.mxu0 0
  %4594 = vmatpush1.bf16.msra.mxu0 0
  %4595 = vmatprep.subr.bf16.mxu0 0
  %4596 = vmatpush1.bf16.msra.mxu0 0
  %4597 = vmatprep.subr.bf16.mxu0 0
  %4598 = vmatpush1.bf16.msra.mxu0 0
  %4599 = vmatprep.subr.bf16.mxu0 0
  %4600 = vmatpush1.bf16.msra.mxu0 0
  %4601 = vmatprep.subr.bf16.mxu0 0
  %4602 = vmatpush1.bf16.msra.mxu0 0
  %4603 = vmatprep.mubr.bf16.mxu0 0
  %4604 = vmatmul.mubr.bf16.gmra.mrb[0].mxu0 %v4569
  %v4605 = vpop.f32.mrb[0].mxu0
  %v4606 = vadd.f32 0.0, %v4605
  %v4607 = vpop.f32.mrb[0].mxu0
  %v4608 = vpop.f32.mrb[0].mxu0
  %v4609 = vadd.f32 0.0, %v4608
  %v4610 = vpop.f32.mrb[0].mxu0
  %4611 = vdwg.mxu0
  %4612 = vrot.lane.b32.xlu0 %v672, 64
  %v4613 = vpop.permute.xlu0 %4612
  %v4616 = vsel %vm2418, %v3154, 0
  %4618 = vmatprep.subr.bf16.mxu0 0
  %4619 = vmatpush1.bf16.msra.mxu0 %v4613
  %4620 = vmatprep.subr.bf16.mxu0 0
  %4621 = vmatpush1.bf16.msra.mxu0 0
  %4622 = vmatprep.subr.bf16.mxu0 0
  %4623 = vmatpush1.bf16.msra.mxu0 0
  %4624 = vmatprep.subr.bf16.mxu0 0
  %4625 = vmatpush1.bf16.msra.mxu0 0
  %4626 = vmatprep.subr.bf16.mxu0 0
  %4627 = vmatpush1.bf16.msra.mxu0 0
  %4628 = vmatprep.subr.bf16.mxu0 0
  %4629 = vmatpush1.bf16.msra.mxu0 0
  %4630 = vmatprep.subr.bf16.mxu0 0
  %4631 = vmatpush1.bf16.msra.mxu0 0
  %4632 = vmatprep.subr.bf16.mxu0 0
  %4633 = vmatpush1.bf16.msra.mxu0 0
  %4634 = vmatprep.subr.bf16.mxu0 0
  %4635 = vmatpush1.bf16.msra.mxu0 0
  %4636 = vmatprep.subr.bf16.mxu0 0
  %4637 = vmatpush1.bf16.msra.mxu0 0
  %4638 = vmatprep.subr.bf16.mxu0 0
  %4639 = vmatpush1.bf16.msra.mxu0 0
  %4640 = vmatprep.subr.bf16.mxu0 0
  %4641 = vmatpush1.bf16.msra.mxu0 0
  %4642 = vmatprep.subr.bf16.mxu0 0
  %4643 = vmatpush1.bf16.msra.mxu0 0
  %4644 = vmatprep.subr.bf16.mxu0 0
  %4645 = vmatpush1.bf16.msra.mxu0 0
  %4646 = vmatprep.subr.bf16.mxu0 0
  %4647 = vmatpush1.bf16.msra.mxu0 0
  %4648 = vmatprep.subr.bf16.mxu0 0
  %4649 = vmatpush1.bf16.msra.mxu0 0
  %4650 = vmatprep.mubr.bf16.mxu0 0
  %4651 = vmatmul.mubr.bf16.gmra.mrb[0].mxu0 %v4616
  %v4652 = vpop.f32.mrb[0].mxu0
  %v4653 = vadd.f32 0.0, %v4652
  %v4654 = vpop.f32.mrb[0].mxu0
  %v4655 = vpop.f32.mrb[0].mxu0
  %v4656 = vadd.f32 0.0, %v4655
  %v4657 = vpop.f32.mrb[0].mxu0
  %4658 = vdwg.mxu0
  %4675 = vrot.lane.b32.xlu0 %v3572, 8
  %v4676 = vpop.permute.xlu0 %4675
  %4677 = vrot.lane.b32.xlu0 %v3575, 8
  %v4678 = vpop.permute.xlu0 %4677
  %4679 = vrot.lane.b32.xlu0 %v3619, 8
  %v4680 = vpop.permute.xlu0 %4679
  %4681 = vrot.lane.b32.xlu0 %v3622, 8
  %v4682 = vpop.permute.xlu0 %4681
  %4683 = vrot.lane.b32.xlu0 %v3666, 8
  %v4684 = vpop.permute.xlu0 %4683
  %4685 = vrot.lane.b32.xlu0 %v3669, 8
  %v4686 = vpop.permute.xlu0 %4685
  %4687 = vrot.lane.b32.xlu0 %v3713, 8
  %v4688 = vpop.permute.xlu0 %4687
  %4689 = vrot.lane.b32.xlu0 %v3716, 8
  %v4690 = vpop.permute.xlu0 %4689
  %4691 = vrot.lane.b32.xlu0 %v3760, 8
  %v4692 = vpop.permute.xlu0 %4691
  %4693 = vrot.lane.b32.xlu0 %v3763, 8
  %v4694 = vpop.permute.xlu0 %4693
  %4695 = vrot.lane.b32.xlu0 %v3807, 8
  %v4696 = vpop.permute.xlu0 %4695
  %4697 = vrot.lane.b32.xlu0 %v3810, 8
  %v4698 = vpop.permute.xlu0 %4697
  %4699 = vrot.lane.b32.xlu0 %v3854, 8
  %v4700 = vpop.permute.xlu0 %4699
  %4701 = vrot.lane.b32.xlu0 %v3857, 8
  %v4702 = vpop.permute.xlu0 %4701
  %4703 = vrot.lane.b32.xlu0 %v3901, 8
  %v4704 = vpop.permute.xlu0 %4703
  %4705 = vrot.lane.b32.xlu0 %v3904, 8
  %v4706 = vpop.permute.xlu0 %4705
  %4739 = vrot.lane.b32.xlu0 %v3948, 16
  %v4740 = vpop.permute.xlu0 %4739
  %4741 = vrot.lane.b32.xlu0 %v3951, 16
  %v4742 = vpop.permute.xlu0 %4741
  %4743 = vrot.lane.b32.xlu0 %v3995, 16
  %v4744 = vpop.permute.xlu0 %4743
  %4745 = vrot.lane.b32.xlu0 %v3998, 16
  %v4746 = vpop.permute.xlu0 %4745
  %4747 = vrot.lane.b32.xlu0 %v4042, 16
  %v4748 = vpop.permute.xlu0 %4747
  %4749 = vrot.lane.b32.xlu0 %v4045, 16
  %v4750 = vpop.permute.xlu0 %4749
  %4751 = vrot.lane.b32.xlu0 %v4089, 16
  %v4752 = vpop.permute.xlu0 %4751
  %4753 = vrot.lane.b32.xlu0 %v4092, 16
  %v4754 = vpop.permute.xlu0 %4753
  %4755 = vrot.lane.b32.xlu0 %v4136, 16
  %v4756 = vpop.permute.xlu0 %4755
  %4757 = vrot.lane.b32.xlu0 %v4139, 16
  %v4758 = vpop.permute.xlu0 %4757
  %4759 = vrot.lane.b32.xlu0 %v4183, 16
  %v4760 = vpop.permute.xlu0 %4759
  %4761 = vrot.lane.b32.xlu0 %v4186, 16
  %v4762 = vpop.permute.xlu0 %4761
  %4763 = vrot.lane.b32.xlu0 %v4230, 16
  %v4764 = vpop.permute.xlu0 %4763
  %4765 = vrot.lane.b32.xlu0 %v4233, 16
  %v4766 = vpop.permute.xlu0 %4765
  %4767 = vrot.lane.b32.xlu0 %v4277, 16
  %v4768 = vpop.permute.xlu0 %4767
  %4769 = vrot.lane.b32.xlu0 %v4280, 16
  %v4770 = vpop.permute.xlu0 %4769
  %4803 = vrot.lane.b32.xlu0 %v4324, 24
  %v4804 = vpop.permute.xlu0 %4803
  %4805 = vrot.lane.b32.xlu0 %v4327, 24
  %v4806 = vpop.permute.xlu0 %4805
  %4807 = vrot.lane.b32.xlu0 %v4371, 24
  %v4808 = vpop.permute.xlu0 %4807
  %4809 = vrot.lane.b32.xlu0 %v4374, 24
  %v4810 = vpop.permute.xlu0 %4809
  %4811 = vrot.lane.b32.xlu0 %v4418, 24
  %v4812 = vpop.permute.xlu0 %4811
  %4813 = vrot.lane.b32.xlu0 %v4421, 24
  %v4814 = vpop.permute.xlu0 %4813
  %4815 = vrot.lane.b32.xlu0 %v4465, 24
  %v4816 = vpop.permute.xlu0 %4815
  %4817 = vrot.lane.b32.xlu0 %v4468, 24
  %v4818 = vpop.permute.xlu0 %4817
  %4819 = vrot.lane.b32.xlu0 %v4512, 24
  %v4820 = vpop.permute.xlu0 %4819
  %4821 = vrot.lane.b32.xlu0 %v4515, 24
  %v4822 = vpop.permute.xlu0 %4821
  %4823 = vrot.lane.b32.xlu0 %v4559, 24
  %v4824 = vpop.permute.xlu0 %4823
  %4825 = vrot.lane.b32.xlu0 %v4562, 24
  %v4826 = vpop.permute.xlu0 %4825
  %4827 = vrot.lane.b32.xlu0 %v4606, 24
  %v4828 = vpop.permute.xlu0 %4827
  %4829 = vrot.lane.b32.xlu0 %v4609, 24
  %v4830 = vpop.permute.xlu0 %4829
  %4831 = vrot.lane.b32.xlu0 %v4653, 24
  %v4832 = vpop.permute.xlu0 %4831
  %4833 = vrot.lane.b32.xlu0 %v4656, 24
  %v4834 = vpop.permute.xlu0 %4833
  %v4851 = vsel %vm676, %v3196, %v4676
  %v4852 = vsel %vm676, %v3199, %v4678
  %v4853 = vsel %vm676, %v3243, %v4680
  %v4854 = vsel %vm676, %v3246, %v4682
  %v4855 = vsel %vm676, %v3290, %v4684
  %v4856 = vsel %vm676, %v3293, %v4686
  %v4857 = vsel %vm676, %v3337, %v4688
  %v4858 = vsel %vm676, %v3340, %v4690
  %v4859 = vsel %vm676, %v3384, %v4692
  %v4860 = vsel %vm676, %v3387, %v4694
  %v4861 = vsel %vm676, %v3431, %v4696
  %v4862 = vsel %vm676, %v3434, %v4698
  %v4863 = vsel %vm676, %v3478, %v4700
  %v4864 = vsel %vm676, %v3481, %v4702
  %v4865 = vsel %vm676, %v3525, %v4704
  %v4866 = vsel %vm676, %v3528, %v4706
  %v4867 = vsel %vm2418, %v4851, %v4740
  %v4868 = vsel %vm2418, %v4852, %v4742
  %v4869 = vsel %vm2418, %v4853, %v4744
  %v4870 = vsel %vm2418, %v4854, %v4746
  %v4871 = vsel %vm2418, %v4855, %v4748
  %v4872 = vsel %vm2418, %v4856, %v4750
  %v4873 = vsel %vm2418, %v4857, %v4752
  %v4874 = vsel %vm2418, %v4858, %v4754
  %v4875 = vsel %vm2418, %v4859, %v4756
  %v4876 = vsel %vm2418, %v4860, %v4758
  %v4877 = vsel %vm2418, %v4861, %v4760
  %v4878 = vsel %vm2418, %v4862, %v4762
  %v4879 = vsel %vm2418, %v4863, %v4764
  %v4880 = vsel %vm2418, %v4864, %v4766
  %v4881 = vsel %vm2418, %v4865, %v4768
  %v4882 = vsel %vm2418, %v4866, %v4770
  %vm4883 = vcmask 195584
  %v4884 = vsel %vm4883, %v4867, %v4804
  %v4885 = vsel %vm4883, %v4868, %v4806
  %v4886 = vsel %vm4883, %v4869, %v4808
  %v4887 = vsel %vm4883, %v4870, %v4810
  %v4888 = vsel %vm4883, %v4871, %v4812
  %v4889 = vsel %vm4883, %v4872, %v4814
  %v4890 = vsel %vm4883, %v4873, %v4816
  %v4891 = vsel %vm4883, %v4874, %v4818
  %v4892 = vsel %vm4883, %v4875, %v4820
  %v4893 = vsel %vm4883, %v4876, %v4822
  %v4894 = vsel %vm4883, %v4877, %v4824
  %v4895 = vsel %vm4883, %v4878, %v4826
  %v4896 = vsel %vm4883, %v4879, %v4828
  %v4897 = vsel %vm4883, %v4880, %v4830
  %v4898 = vsel %vm4883, %v4881, %v4832
  %v4899 = vsel %vm4883, %v4882, %v4834
  %v4900 = vpack.c.bf16 %v4885, %v4884
  %v4901 = vpack.c.bf16 %v4887, %v4886
  %v4902 = vpack.c.bf16 %v4889, %v4888
  %v4903 = vpack.c.bf16 %v4891, %v4890
  %v4904 = vpack.c.bf16 %v4893, %v4892
  %v4905 = vpack.c.bf16 %v4895, %v4894
  %v4906 = vpack.c.bf16 %v4897, %v4896
  %v4907 = vpack.c.bf16 %v4899, %v4898
  %v4908 = vld [vmem:[%s7] sm:$0xf]
  %v4909 = vld [vmem:[%s7 + $0x4] sm:$0xf]
  %v4910 = vld [vmem:[%s7 + $0x8] sm:$0xf]
  %v4911 = vld [vmem:[%s7 + $0xc] sm:$0xf]
  %v4912 = vld [vmem:[%s8] sm:$0x1]
  %v4914 = vlaneseq
  %v4915 = vshrl.u32 %v4914, 7
  %v4916 = vsub.s32 0, %v4915
  %v4917 = vrot.slane %v4912, %v4916
  %v4923 = vunpack.c.l.b16 %v4908
  %v4924 = vunpack.c.l.b16 %v4909
  %v4925 = vunpack.c.l.b16 %v4910
  %v4926 = vunpack.c.l.b16 %v4911
  %v4927 = vpack.c.b16 %v4924, %v4923
  %v4928 = vpack.c.b16 %v4926, %v4925
  %v4932 = vsel %vm73, %v4900, 0
  %v4935 = vsel %vm73, %v4901, 0
  %v4938 = vsel %vm73, %v4902, 0
  %v4941 = vsel %vm73, %v4903, 0
  %v4944 = vsel %vm73, %v4904, 0
  %v4947 = vsel %vm73, %v4905, 0
  %v4950 = vsel %vm73, %v4906, 0
  %v4953 = vsel %vm73, %v4907, 0
  %4955 = vmatprep.subr.bf16.mxu0 0
  %4956 = vmatpush1.bf16.msra.mxu0 %v4927
  %4957 = vmatprep.subr.bf16.mxu0 0
  %4958 = vmatpush1.bf16.msra.mxu0 %v4928
  %4959 = vmatprep.subr.bf16.mxu0 0
  %4960 = vmatpush1.bf16.msra.mxu0 0
  %4961 = vmatprep.subr.bf16.mxu0 0
  %4962 = vmatpush1.bf16.msra.mxu0 0
  %4963 = vmatprep.subr.bf16.mxu0 0
  %4964 = vmatpush1.bf16.msra.mxu0 0
  %4965 = vmatprep.subr.bf16.mxu0 0
  %4966 = vmatpush1.bf16.msra.mxu0 0
  %4967 = vmatprep.subr.bf16.mxu0 0
  %4968 = vmatpush1.bf16.msra.mxu0 0
  %4969 = vmatprep.subr.bf16.mxu0 0
  %4970 = vmatpush1.bf16.msra.mxu0 0
  %4971 = vmatprep.subr.bf16.mxu0 0
  %4972 = vmatpush1.bf16.msra.mxu0 0
  %4973 = vmatprep.subr.bf16.mxu0 0
  %4974 = vmatpush1.bf16.msra.mxu0 0
  %4975 = vmatprep.subr.bf16.mxu0 0
  %4976 = vmatpush1.bf16.msra.mxu0 0
  %4977 = vmatprep.subr.bf16.mxu0 0
  %4978 = vmatpush1.bf16.msra.mxu0 0
  %4979 = vmatprep.subr.bf16.mxu0 0
  %4980 = vmatpush1.bf16.msra.mxu0 0
  %4981 = vmatprep.subr.bf16.mxu0 0
  %4982 = vmatpush1.bf16.msra.mxu0 0
  %4983 = vmatprep.subr.bf16.mxu0 0
  %4984 = vmatpush1.bf16.msra.mxu0 0
  %4985 = vmatprep.subr.bf16.mxu0 0
  %4986 = vmatpush1.bf16.msra.mxu0 0
  %4987 = vmatprep.mubr.bf16.mxu0 0
  %4988 = vmatmul.mubr.bf16.gmra.mrb[0].mxu0 %v4932
  %v4989 = vpop.f32.mrb[0].mxu0
  %v4990 = vadd.f32 %v4917, %v4989
  %v4991 = vpop.f32.mrb[0].mxu0
  %v4992 = vpop.f32.mrb[0].mxu0
  %v4993 = vadd.f32 %v4917, %v4992
  %v4994 = vpop.f32.mrb[0].mxu0
  %4995 = vmatprep.mubr.bf16.mxu0 0
  %4996 = vmatmul.mubr.bf16.gmra.mrb[0].mxu0 %v4935
  %v4997 = vpop.f32.mrb[0].mxu0
  %v4998 = vadd.f32 %v4917, %v4997
  %v4999 = vpop.f32.mrb[0].mxu0
  %v5000 = vpop.f32.mrb[0].mxu0
  %v5001 = vadd.f32 %v4917, %v5000
  %v5002 = vpop.f32.mrb[0].mxu0
  %5003 = vmatprep.mubr.bf16.mxu0 0
  %5004 = vmatmul.mubr.bf16.gmra.mrb[0].mxu0 %v4938
  %v5005 = vpop.f32.mrb[0].mxu0
  %v5006 = vadd.f32 %v4917, %v5005
  %v5007 = vpop.f32.mrb[0].mxu0
  %v5008 = vpop.f32.mrb[0].mxu0
  %v5009 = vadd.f32 %v4917, %v5008
  %v5010 = vpop.f32.mrb[0].mxu0
  %5011 = vmatprep.mubr.bf16.mxu0 0
  %5012 = vmatmul.mubr.bf16.gmra.mrb[0].mxu0 %v4941
  %v5013 = vpop.f32.mrb[0].mxu0
  %v5014 = vadd.f32 %v4917, %v5013
  %v5015 = vpop.f32.mrb[0].mxu0
  %v5016 = vpop.f32.mrb[0].mxu0
  %v5017 = vadd.f32 %v4917, %v5016
  %v5018 = vpop.f32.mrb[0].mxu0
  %5019 = vmatprep.mubr.bf16.mxu0 0
  %5020 = vmatmul.mubr.bf16.gmra.mrb[0].mxu0 %v4944
  %v5021 = vpop.f32.mrb[0].mxu0
  %v5022 = vadd.f32 %v4917, %v5021
  %v5023 = vpop.f32.mrb[0].mxu0
  %v5024 = vpop.f32.mrb[0].mxu0
  %v5025 = vadd.f32 %v4917, %v5024
  %v5026 = vpop.f32.mrb[0].mxu0
  %5027 = vmatprep.mubr.bf16.mxu0 0
  %5028 = vmatmul.mubr.bf16.gmra.mrb[0].mxu0 %v4947
  %v5029 = vpop.f32.mrb[0].mxu0
  %v5030 = vadd.f32 %v4917, %v5029
  %v5031 = vpop.f32.mrb[0].mxu0
  %v5032 = vpop.f32.mrb[0].mxu0
  %v5033 = vadd.f32 %v4917, %v5032
  %v5034 = vpop.f32.mrb[0].mxu0
  %5035 = vmatprep.mubr.bf16.mxu0 0
  %5036 = vmatmul.mubr.bf16.gmra.mrb[0].mxu0 %v4950
  %v5037 = vpop.f32.mrb[0].mxu0
  %v5038 = vadd.f32 %v4917, %v5037
  %v5039 = vpop.f32.mrb[0].mxu0
  %v5040 = vpop.f32.mrb[0].mxu0
  %v5041 = vadd.f32 %v4917, %v5040
  %v5042 = vpop.f32.mrb[0].mxu0
  %5043 = vmatprep.mubr.bf16.mxu0 0
  %5044 = vmatmul.mubr.bf16.gmra.mrb[0].mxu0 %v4953
  %v5045 = vpop.f32.mrb[0].mxu0
  %v5046 = vadd.f32 %v4917, %v5045
  %v5047 = vpop.f32.mrb[0].mxu0
  %v5048 = vpop.f32.mrb[0].mxu0
  %v5049 = vadd.f32 %v4917, %v5048
  %v5050 = vpop.f32.mrb[0].mxu0
  %5051 = vdwg.mxu0
  %v5052 = vadd.f32 %v57, %v4990
  %v5053 = vadd.f32 %v58, %v4993
  %v5054 = vadd.f32 %v59, %v4998
  %v5055 = vadd.f32 %v60, %v5001
  %v5056 = vadd.f32 %v61, %v5006
  %v5057 = vadd.f32 %v62, %v5009
  %v5058 = vadd.f32 %v63, %v5014
  %v5059 = vadd.f32 %v64, %v5017
  %v5060 = vadd.f32 %v65, %v5022
  %v5061 = vadd.f32 %v66, %v5025
  %v5062 = vadd.f32 %v67, %v5030
  %v5063 = vadd.f32 %v68, %v5033
  %v5064 = vadd.f32 %v69, %v5038
  %v5065 = vadd.f32 %v70, %v5041
  %v5066 = vadd.f32 %v71, %v5046
  %v5067 = vadd.f32 %v72, %v5049
  %v5068 = vsel %vm73, %v5052, 0.0
  %5069 = vadd.xlane.f32.xlu0 %v5068
  %v5070 = vpop.xlane.xlu0 %5069
  %v5071 = vsel %vm73, %v5053, 0.0
  %5072 = vadd.xlane.f32.xlu0 %v5071
  %v5073 = vpop.xlane.xlu0 %5072
  %v5074 = vsel %vm73, %v5054, 0.0
  %5075 = vadd.xlane.f32.xlu0 %v5074
  %v5076 = vpop.xlane.xlu0 %5075
  %v5077 = vsel %vm73, %v5055, 0.0
  %5078 = vadd.xlane.f32.xlu0 %v5077
  %v5079 = vpop.xlane.xlu0 %5078
  %v5080 = vsel %vm73, %v5056, 0.0
  %5081 = vadd.xlane.f32.xlu0 %v5080
  %v5082 = vpop.xlane.xlu0 %5081
  %v5083 = vsel %vm73, %v5057, 0.0
  %5084 = vadd.xlane.f32.xlu0 %v5083
  %v5085 = vpop.xlane.xlu0 %5084
  %v5086 = vsel %vm73, %v5058, 0.0
  %5087 = vadd.xlane.f32.xlu0 %v5086
  %v5088 = vpop.xlane.xlu0 %5087
  %v5089 = vsel %vm73, %v5059, 0.0
  %5090 = vadd.xlane.f32.xlu0 %v5089
  %v5091 = vpop.xlane.xlu0 %5090
  %v5092 = vsel %vm73, %v5060, 0.0
  %5093 = vadd.xlane.f32.xlu0 %v5092
  %v5094 = vpop.xlane.xlu0 %5093
  %v5095 = vsel %vm73, %v5061, 0.0
  %5096 = vadd.xlane.f32.xlu0 %v5095
  %v5097 = vpop.xlane.xlu0 %5096
  %v5098 = vsel %vm73, %v5062, 0.0
  %5099 = vadd.xlane.f32.xlu0 %v5098
  %v5100 = vpop.xlane.xlu0 %5099
  %v5101 = vsel %vm73, %v5063, 0.0
  %5102 = vadd.xlane.f32.xlu0 %v5101
  %v5103 = vpop.xlane.xlu0 %5102
  %v5104 = vsel %vm73, %v5064, 0.0
  %5105 = vadd.xlane.f32.xlu0 %v5104
  %v5106 = vpop.xlane.xlu0 %5105
  %v5107 = vsel %vm73, %v5065, 0.0
  %5108 = vadd.xlane.f32.xlu0 %v5107
  %v5109 = vpop.xlane.xlu0 %5108
  %v5110 = vsel %vm73, %v5066, 0.0
  %5111 = vadd.xlane.f32.xlu0 %v5110
  %v5112 = vpop.xlane.xlu0 %5111
  %v5113 = vsel %vm73, %v5067, 0.0
  %5114 = vadd.xlane.f32.xlu0 %v5113
  %v5115 = vpop.xlane.xlu0 %5114
  %v5116 = vmul.f32 %v5070, %v122
  %v5117 = vmul.f32 %v5073, %v122
  %v5118 = vmul.f32 %v5076, %v122
  %v5119 = vmul.f32 %v5079, %v122
  %v5120 = vmul.f32 %v5082, %v122
  %v5121 = vmul.f32 %v5085, %v122
  %v5122 = vmul.f32 %v5088, %v122
  %v5123 = vmul.f32 %v5091, %v122
  %v5124 = vmul.f32 %v5094, %v122
  %v5125 = vmul.f32 %v5097, %v122
  %v5126 = vmul.f32 %v5100, %v122
  %v5127 = vmul.f32 %v5103, %v122
  %v5128 = vmul.f32 %v5106, %v122
  %v5129 = vmul.f32 %v5109, %v122
  %v5130 = vmul.f32 %v5112, %v122
  %v5131 = vmul.f32 %v5115, %v122
  %v5132 = vsub.f32 %v5052, %v5116
  %v5133 = vsub.f32 %v5053, %v5117
  %v5134 = vsub.f32 %v5054, %v5118
  %v5135 = vsub.f32 %v5055, %v5119
  %v5136 = vsub.f32 %v5056, %v5120
  %v5137 = vsub.f32 %v5057, %v5121
  %v5138 = vsub.f32 %v5058, %v5122
  %v5139 = vsub.f32 %v5059, %v5123
  %v5140 = vsub.f32 %v5060, %v5124
  %v5141 = vsub.f32 %v5061, %v5125
  %v5142 = vsub.f32 %v5062, %v5126
  %v5143 = vsub.f32 %v5063, %v5127
  %v5144 = vsub.f32 %v5064, %v5128
  %v5145 = vsub.f32 %v5065, %v5129
  %v5146 = vsub.f32 %v5066, %v5130
  %v5147 = vsub.f32 %v5067, %v5131
  %v5148 = vmul.f32 %v5132, %v5132
  %v5149 = vmul.f32 %v5133, %v5133
  %v5150 = vmul.f32 %v5134, %v5134
  %v5151 = vmul.f32 %v5135, %v5135
  %v5152 = vmul.f32 %v5136, %v5136
  %v5153 = vmul.f32 %v5137, %v5137
  %v5154 = vmul.f32 %v5138, %v5138
  %v5155 = vmul.f32 %v5139, %v5139
  %v5156 = vmul.f32 %v5140, %v5140
  %v5157 = vmul.f32 %v5141, %v5141
  %v5158 = vmul.f32 %v5142, %v5142
  %v5159 = vmul.f32 %v5143, %v5143
  %v5160 = vmul.f32 %v5144, %v5144
  %v5161 = vmul.f32 %v5145, %v5145
  %v5162 = vmul.f32 %v5146, %v5146
  %v5163 = vmul.f32 %v5147, %v5147
  %v5164 = vsel %vm73, %v5148, 0.0
  %5165 = vadd.xlane.f32.xlu0 %v5164
  %v5166 = vpop.xlane.xlu0 %5165
  %v5167 = vsel %vm73, %v5149, 0.0
  %5168 = vadd.xlane.f32.xlu0 %v5167
  %v5169 = vpop.xlane.xlu0 %5168
  %v5170 = vsel %vm73, %v5150, 0.0
  %5171 = vadd.xlane.f32.xlu0 %v5170
  %v5172 = vpop.xlane.xlu0 %5171
  %v5173 = vsel %vm73, %v5151, 0.0
  %5174 = vadd.xlane.f32.xlu0 %v5173
  %v5175 = vpop.xlane.xlu0 %5174
  %v5176 = vsel %vm73, %v5152, 0.0
  %5177 = vadd.xlane.f32.xlu0 %v5176
  %v5178 = vpop.xlane.xlu0 %5177
  %v5179 = vsel %vm73, %v5153, 0.0
  %5180 = vadd.xlane.f32.xlu0 %v5179
  %v5181 = vpop.xlane.xlu0 %5180
  %v5182 = vsel %vm73, %v5154, 0.0
  %5183 = vadd.xlane.f32.xlu0 %v5182
  %v5184 = vpop.xlane.xlu0 %5183
  %v5185 = vsel %vm73, %v5155, 0.0
  %5186 = vadd.xlane.f32.xlu0 %v5185
  %v5187 = vpop.xlane.xlu0 %5186
  %v5188 = vsel %vm73, %v5156, 0.0
  %5189 = vadd.xlane.f32.xlu0 %v5188
  %v5190 = vpop.xlane.xlu0 %5189
  %v5191 = vsel %vm73, %v5157, 0.0
  %5192 = vadd.xlane.f32.xlu0 %v5191
  %v5193 = vpop.xlane.xlu0 %5192
  %v5194 = vsel %vm73, %v5158, 0.0
  %5195 = vadd.xlane.f32.xlu0 %v5194
  %v5196 = vpop.xlane.xlu0 %5195
  %v5197 = vsel %vm73, %v5159, 0.0
  %5198 = vadd.xlane.f32.xlu0 %v5197
  %v5199 = vpop.xlane.xlu0 %5198
  %v5200 = vsel %vm73, %v5160, 0.0
  %5201 = vadd.xlane.f32.xlu0 %v5200
  %v5202 = vpop.xlane.xlu0 %5201
  %v5203 = vsel %vm73, %v5161, 0.0
  %5204 = vadd.xlane.f32.xlu0 %v5203
  %v5205 = vpop.xlane.xlu0 %5204
  %v5206 = vsel %vm73, %v5162, 0.0
  %5207 = vadd.xlane.f32.xlu0 %v5206
  %v5208 = vpop.xlane.xlu0 %5207
  %v5209 = vsel %vm73, %v5163, 0.0
  %5210 = vadd.xlane.f32.xlu0 %v5209
  %v5211 = vpop.xlane.xlu0 %5210
  %v5212 = vmul.f32 %v5166, %v122
  %v5213 = vmul.f32 %v5169, %v122
  %v5214 = vmul.f32 %v5172, %v122
  %v5215 = vmul.f32 %v5175, %v122
  %v5216 = vmul.f32 %v5178, %v122
  %v5217 = vmul.f32 %v5181, %v122
  %v5218 = vmul.f32 %v5184, %v122
  %v5219 = vmul.f32 %v5187, %v122
  %v5220 = vmul.f32 %v5190, %v122
  %v5221 = vmul.f32 %v5193, %v122
  %v5222 = vmul.f32 %v5196, %v122
  %v5223 = vmul.f32 %v5199, %v122
  %v5224 = vmul.f32 %v5202, %v122
  %v5225 = vmul.f32 %v5205, %v122
  %v5226 = vmul.f32 %v5208, %v122
  %v5227 = vmul.f32 %v5211, %v122
  %v5228 = vadd.f32 %v5212, 1e-05
  %v5229 = vadd.f32 %v5213, 1e-05
  %v5230 = vadd.f32 %v5214, 1e-05
  %v5231 = vadd.f32 %v5215, 1e-05
  %v5232 = vadd.f32 %v5216, 1e-05
  %v5233 = vadd.f32 %v5217, 1e-05
  %v5234 = vadd.f32 %v5218, 1e-05
  %v5235 = vadd.f32 %v5219, 1e-05
  %v5236 = vadd.f32 %v5220, 1e-05
  %v5237 = vadd.f32 %v5221, 1e-05
  %v5238 = vadd.f32 %v5222, 1e-05
  %v5239 = vadd.f32 %v5223, 1e-05
  %v5240 = vadd.f32 %v5224, 1e-05
  %v5241 = vadd.f32 %v5225, 1e-05
  %v5242 = vadd.f32 %v5226, 1e-05
  %v5243 = vadd.f32 %v5227, 1e-05
  %v5244 = vrsqrt.pop %v5228
  %v5245 = vrsqrt.pop %v5229
  %v5246 = vrsqrt.pop %v5230
  %v5247 = vrsqrt.pop %v5231
  %v5248 = vrsqrt.pop %v5232
  %v5249 = vrsqrt.pop %v5233
  %v5250 = vrsqrt.pop %v5234
  %v5251 = vrsqrt.pop %v5235
  %v5252 = vrsqrt.pop %v5236
  %v5253 = vrsqrt.pop %v5237
  %v5254 = vrsqrt.pop %v5238
  %v5255 = vrsqrt.pop %v5239
  %v5256 = vrsqrt.pop %v5240
  %v5257 = vrsqrt.pop %v5241
  %v5258 = vrsqrt.pop %v5242
  %v5259 = vrsqrt.pop %v5243
  %v5260 = vmul.f32 %v5132, %v5244
  %v5261 = vmul.f32 %v5133, %v5245
  %v5262 = vmul.f32 %v5134, %v5246
  %v5263 = vmul.f32 %v5135, %v5247
  %v5264 = vmul.f32 %v5136, %v5248
  %v5265 = vmul.f32 %v5137, %v5249
  %v5266 = vmul.f32 %v5138, %v5250
  %v5267 = vmul.f32 %v5139, %v5251
  %v5268 = vmul.f32 %v5140, %v5252
  %v5269 = vmul.f32 %v5141, %v5253
  %v5270 = vmul.f32 %v5142, %v5254
  %v5271 = vmul.f32 %v5143, %v5255
  %v5272 = vmul.f32 %v5144, %v5256
  %v5273 = vmul.f32 %v5145, %v5257
  %v5274 = vmul.f32 %v5146, %v5258
  %v5275 = vmul.f32 %v5147, %v5259
  %v5276 = vld [vmem:[%s9] sm:$0x1]
  %v5278 = vlaneseq
  %v5279 = vshrl.u32 %v5278, 7
  %v5280 = vsub.s32 0, %v5279
  %v5281 = vrot.slane %v5276, %v5280
  %v5283 = vmul.f32 %v5260, %v5281
  %v5284 = vmul.f32 %v5261, %v5281
  %v5285 = vmul.f32 %v5262, %v5281
  %v5286 = vmul.f32 %v5263, %v5281
  %v5287 = vmul.f32 %v5264, %v5281
  %v5288 = vmul.f32 %v5265, %v5281
  %v5289 = vmul.f32 %v5266, %v5281
  %v5290 = vmul.f32 %v5267, %v5281
  %v5291 = vmul.f32 %v5268, %v5281
  %v5292 = vmul.f32 %v5269, %v5281
  %v5293 = vmul.f32 %v5270, %v5281
  %v5294 = vmul.f32 %v5271, %v5281
  %v5295 = vmul.f32 %v5272, %v5281
  %v5296 = vmul.f32 %v5273, %v5281
  %v5297 = vmul.f32 %v5274, %v5281
  %v5298 = vmul.f32 %v5275, %v5281
  %v5299 = vld [vmem:[%s10] sm:$0x1]
  %v5301 = vlaneseq
  %v5302 = vshrl.u32 %v5301, 7
  %v5303 = vsub.s32 0, %v5302
  %v5304 = vrot.slane %v5299, %v5303
  %v5306 = vadd.f32 %v5283, %v5304
  %v5307 = vadd.f32 %v5284, %v5304
  %v5308 = vadd.f32 %v5285, %v5304
  %v5309 = vadd.f32 %v5286, %v5304
  %v5310 = vadd.f32 %v5287, %v5304
  %v5311 = vadd.f32 %v5288, %v5304
  %v5312 = vadd.f32 %v5289, %v5304
  %v5313 = vadd.f32 %v5290, %v5304
  %v5314 = vadd.f32 %v5291, %v5304
  %v5315 = vadd.f32 %v5292, %v5304
  %v5316 = vadd.f32 %v5293, %v5304
  %v5317 = vadd.f32 %v5294, %v5304
  %v5318 = vadd.f32 %v5295, %v5304
  %v5319 = vadd.f32 %v5296, %v5304
  %v5320 = vadd.f32 %v5297, %v5304
  %v5321 = vadd.f32 %v5298, %v5304
  %v5322 = vpack.c.bf16 %v5307, %v5306
  %v5323 = vpack.c.bf16 %v5309, %v5308
  %v5324 = vpack.c.bf16 %v5311, %v5310
  %v5325 = vpack.c.bf16 %v5313, %v5312
  %v5326 = vpack.c.bf16 %v5315, %v5314
  %v5327 = vpack.c.bf16 %v5317, %v5316
  %v5328 = vpack.c.bf16 %v5319, %v5318
  %v5329 = vpack.c.bf16 %v5321, %v5320
  %v5330 = vld [vmem:[%s11] sm:$0xf]
  %v5331 = vld [vmem:[%s11 + $0x4] sm:$0xf]
  %v5332 = vld [vmem:[%s11 + $0x8] sm:$0xf]
  %v5333 = vld [vmem:[%s11 + $0xc] sm:$0xf]
  %v5334 = vld [vmem:[%s12] sm:$0x1]
  %v5336 = vlaneseq
  %v5337 = vshrl.u32 %v5336, 7
  %v5338 = vsub.s32 0, %v5337
  %v5339 = vrot.slane %v5334, %v5338
  %v5345 = vunpack.c.l.b16 %v5330
  %v5346 = vunpack.c.l.b16 %v5331
  %v5347 = vunpack.c.l.b16 %v5332
  %v5348 = vunpack.c.l.b16 %v5333
  %v5349 = vpack.c.b16 %v5346, %v5345
  %v5350 = vpack.c.b16 %v5348, %v5347
  %v5354 = vsel %vm73, %v5322, 0
  %v5357 = vsel %vm73, %v5323, 0
  %v5360 = vsel %vm73, %v5324, 0
  %v5363 = vsel %vm73, %v5325, 0
  %v5366 = vsel %vm73, %v5326, 0
  %v5369 = vsel %vm73, %v5327, 0
  %v5372 = vsel %vm73, %v5328, 0
  %v5375 = vsel %vm73, %v5329, 0
  %5377 = vmatprep.subr.bf16.mxu0 0
  %5378 = vmatpush1.bf16.msra.mxu0 %v5349
  %5379 = vmatprep.subr.bf16.mxu0 0
  %5380 = vmatpush1.bf16.msra.mxu0 %v5350
  %5381 = vmatprep.subr.bf16.mxu0 0
  %5382 = vmatpush1.bf16.msra.mxu0 0
  %5383 = vmatprep.subr.bf16.mxu0 0
  %5384 = vmatpush1.bf16.msra.mxu0 0
  %5385 = vmatprep.subr.bf16.mxu0 0
  %5386 = vmatpush1.bf16.msra.mxu0 0
  %5387 = vmatprep.subr.bf16.mxu0 0
  %5388 = vmatpush1.bf16.msra.mxu0 0
  %5389 = vmatprep.subr.bf16.mxu0 0
  %5390 = vmatpush1.bf16.msra.mxu0 0
  %5391 = vmatprep.subr.bf16.mxu0 0
  %5392 = vmatpush1.bf16.msra.mxu0 0
  %5393 = vmatprep.subr.bf16.mxu0 0
  %5394 = vmatpush1.bf16.msra.mxu0 0
  %5395 = vmatprep.subr.bf16.mxu0 0
  %5396 = vmatpush1.bf16.msra.mxu0 0
  %5397 = vmatprep.subr.bf16.mxu0 0
  %5398 = vmatpush1.bf16.msra.mxu0 0
  %5399 = vmatprep.subr.bf16.mxu0 0
  %5400 = vmatpush1.bf16.msra.mxu0 0
  %5401 = vmatprep.subr.bf16.mxu0 0
  %5402 = vmatpush1.bf16.msra.mxu0 0
  %5403 = vmatprep.subr.bf16.mxu0 0
  %5404 = vmatpush1.bf16.msra.mxu0 0
  %5405 = vmatprep.subr.bf16.mxu0 0
  %5406 = vmatpush1.bf16.msra.mxu0 0
  %5407 = vmatprep.subr.bf16.mxu0 0
  %5408 = vmatpush1.bf16.msra.mxu0 0
  %5409 = vmatprep.mubr.bf16.mxu0 0
  %5410 = vmatmul.mubr.bf16.gmra.mrb[0].mxu0 %v5354
  %v5411 = vpop.f32.mrb[0].mxu0
  %v5412 = vadd.f32 %v5339, %v5411
  %v5413 = vpop.f32.mrb[0].mxu0
  %v5414 = vpop.f32.mrb[0].mxu0
  %v5415 = vadd.f32 %v5339, %v5414
  %v5416 = vpop.f32.mrb[0].mxu0
  %5417 = vmatprep.mubr.bf16.mxu0 0
  %5418 = vmatmul.mubr.bf16.gmra.mrb[0].mxu0 %v5357
  %v5419 = vpop.f32.mrb[0].mxu0
  %v5420 = vadd.f32 %v5339, %v5419
  %v5421 = vpop.f32.mrb[0].mxu0
  %v5422 = vpop.f32.mrb[0].mxu0
  %v5423 = vadd.f32 %v5339, %v5422
  %v5424 = vpop.f32.mrb[0].mxu0
  %5425 = vmatprep.mubr.bf16.mxu0 0
  %5426 = vmatmul.mubr.bf16.gmra.mrb[0].mxu0 %v5360
  %v5427 = vpop.f32.mrb[0].mxu0
  %v5428 = vadd.f32 %v5339, %v5427
  %v5429 = vpop.f32.mrb[0].mxu0
  %v5430 = vpop.f32.mrb[0].mxu0
  %v5431 = vadd.f32 %v5339, %v5430
  %v5432 = vpop.f32.mrb[0].mxu0
  %5433 = vmatprep.mubr.bf16.mxu0 0
  %5434 = vmatmul.mubr.bf16.gmra.mrb[0].mxu0 %v5363
  %v5435 = vpop.f32.mrb[0].mxu0
  %v5436 = vadd.f32 %v5339, %v5435
  %v5437 = vpop.f32.mrb[0].mxu0
  %v5438 = vpop.f32.mrb[0].mxu0
  %v5439 = vadd.f32 %v5339, %v5438
  %v5440 = vpop.f32.mrb[0].mxu0
  %5441 = vmatprep.mubr.bf16.mxu0 0
  %5442 = vmatmul.mubr.bf16.gmra.mrb[0].mxu0 %v5366
  %v5443 = vpop.f32.mrb[0].mxu0
  %v5444 = vadd.f32 %v5339, %v5443
  %v5445 = vpop.f32.mrb[0].mxu0
  %v5446 = vpop.f32.mrb[0].mxu0
  %v5447 = vadd.f32 %v5339, %v5446
  %v5448 = vpop.f32.mrb[0].mxu0
  %5449 = vmatprep.mubr.bf16.mxu0 0
  %5450 = vmatmul.mubr.bf16.gmra.mrb[0].mxu0 %v5369
  %v5451 = vpop.f32.mrb[0].mxu0
  %v5452 = vadd.f32 %v5339, %v5451
  %v5453 = vpop.f32.mrb[0].mxu0
  %v5454 = vpop.f32.mrb[0].mxu0
  %v5455 = vadd.f32 %v5339, %v5454
  %v5456 = vpop.f32.mrb[0].mxu0
  %5457 = vmatprep.mubr.bf16.mxu0 0
  %5458 = vmatmul.mubr.bf16.gmra.mrb[0].mxu0 %v5372
  %v5459 = vpop.f32.mrb[0].mxu0
  %v5460 = vadd.f32 %v5339, %v5459
  %v5461 = vpop.f32.mrb[0].mxu0
  %v5462 = vpop.f32.mrb[0].mxu0
  %v5463 = vadd.f32 %v5339, %v5462
  %v5464 = vpop.f32.mrb[0].mxu0
  %5465 = vmatprep.mubr.bf16.mxu0 0
  %5466 = vmatmul.mubr.bf16.gmra.mrb[0].mxu0 %v5375
  %v5467 = vpop.f32.mrb[0].mxu0
  %v5468 = vadd.f32 %v5339, %v5467
  %v5469 = vpop.f32.mrb[0].mxu0
  %v5470 = vpop.f32.mrb[0].mxu0
  %v5471 = vadd.f32 %v5339, %v5470
  %v5472 = vpop.f32.mrb[0].mxu0
  %5473 = vdwg.mxu0
  %v5474 = vmul.f32 %v5412, 0.5
  %v5475 = vmul.f32 %v5415, 0.5
  %v5476 = vmul.f32 %v5420, 0.5
  %v5477 = vmul.f32 %v5423, 0.5
  %v5478 = vmul.f32 %v5428, 0.5
  %v5479 = vmul.f32 %v5431, 0.5
  %v5480 = vmul.f32 %v5436, 0.5
  %v5481 = vmul.f32 %v5439, 0.5
  %v5482 = vmul.f32 %v5444, 0.5
  %v5483 = vmul.f32 %v5447, 0.5
  %v5484 = vmul.f32 %v5452, 0.5
  %v5485 = vmul.f32 %v5455, 0.5
  %v5486 = vmul.f32 %v5460, 0.5
  %v5487 = vmul.f32 %v5463, 0.5
  %v5488 = vmul.f32 %v5468, 0.5
  %v5489 = vmul.f32 %v5471, 0.5
  %v5490 = vmul.f32 %v5412, 0.70710677
  %v5491 = vmul.f32 %v5415, 0.70710677
  %v5492 = vmul.f32 %v5420, 0.70710677
  %v5493 = vmul.f32 %v5423, 0.70710677
  %v5494 = vmul.f32 %v5428, 0.70710677
  %v5495 = vmul.f32 %v5431, 0.70710677
  %v5496 = vmul.f32 %v5436, 0.70710677
  %v5497 = vmul.f32 %v5439, 0.70710677
  %v5498 = vmul.f32 %v5444, 0.70710677
  %v5499 = vmul.f32 %v5447, 0.70710677
  %v5500 = vmul.f32 %v5452, 0.70710677
  %v5501 = vmul.f32 %v5455, 0.70710677
  %v5502 = vmul.f32 %v5460, 0.70710677
  %v5503 = vmul.f32 %v5463, 0.70710677
  %v5504 = vmul.f32 %v5468, 0.70710677
  %v5505 = vmul.f32 %v5471, 0.70710677
  %v5506 = verf.f32.pop %v5490
  %v5507 = verf.f32.pop %v5491
  %v5508 = verf.f32.pop %v5492
  %v5509 = verf.f32.pop %v5493
  %v5510 = verf.f32.pop %v5494
  %v5511 = verf.f32.pop %v5495
  %v5512 = verf.f32.pop %v5496
  %v5513 = verf.f32.pop %v5497
  %v5514 = verf.f32.pop %v5498
  %v5515 = verf.f32.pop %v5499
  %v5516 = verf.f32.pop %v5500
  %v5517 = verf.f32.pop %v5501
  %v5518 = verf.f32.pop %v5502
  %v5519 = verf.f32.pop %v5503
  %v5520 = verf.f32.pop %v5504
  %v5521 = verf.f32.pop %v5505
  %v5522 = vadd.f32 %v5506, 1.0
  %v5523 = vadd.f32 %v5507, 1.0
  %v5524 = vadd.f32 %v5508, 1.0
  %v5525 = vadd.f32 %v5509, 1.0
  %v5526 = vadd.f32 %v5510, 1.0
  %v5527 = vadd.f32 %v5511, 1.0
  %v5528 = vadd.f32 %v5512, 1.0
  %v5529 = vadd.f32 %v5513, 1.0
  %v5530 = vadd.f32 %v5514, 1.0
  %v5531 = vadd.f32 %v5515, 1.0
  %v5532 = vadd.f32 %v5516, 1.0
  %v5533 = vadd.f32 %v5517, 1.0
  %v5534 = vadd.f32 %v5518, 1.0
  %v5535 = vadd.f32 %v5519, 1.0
  %v5536 = vadd.f32 %v5520, 1.0
  %v5537 = vadd.f32 %v5521, 1.0
  %v5538 = vmul.f32 %v5474, %v5522
  %v5539 = vmul.f32 %v5475, %v5523
  %v5540 = vmul.f32 %v5476, %v5524
  %v5541 = vmul.f32 %v5477, %v5525
  %v5542 = vmul.f32 %v5478, %v5526
  %v5543 = vmul.f32 %v5479, %v5527
  %v5544 = vmul.f32 %v5480, %v5528
  %v5545 = vmul.f32 %v5481, %v5529
  %v5546 = vmul.f32 %v5482, %v5530
  %v5547 = vmul.f32 %v5483, %v5531
  %v5548 = vmul.f32 %v5484, %v5532
  %v5549 = vmul.f32 %v5485, %v5533
  %v5550 = vmul.f32 %v5486, %v5534
  %v5551 = vmul.f32 %v5487, %v5535
  %v5552 = vmul.f32 %v5488, %v5536
  %v5553 = vmul.f32 %v5489, %v5537
  %v5554 = vpack.c.bf16 %v5539, %v5538
  %v5555 = vpack.c.bf16 %v5541, %v5540
  %v5556 = vpack.c.bf16 %v5543, %v5542
  %v5557 = vpack.c.bf16 %v5545, %v5544
  %v5558 = vpack.c.bf16 %v5547, %v5546
  %v5559 = vpack.c.bf16 %v5549, %v5548
  %v5560 = vpack.c.bf16 %v5551, %v5550
  %v5561 = vpack.c.bf16 %v5553, %v5552
  %v5562 = vld [vmem:[%s13] sm:$0xf]
  %v5563 = vld [vmem:[%s13 + $0x4] sm:$0xf]
  %v5564 = vld [vmem:[%s13 + $0x8] sm:$0xf]
  %v5565 = vld [vmem:[%s13 + $0xc] sm:$0xf]
  %v5566 = vld [vmem:[%s13 + $0x10] sm:$0xf]
  %v5567 = vld [vmem:[%s13 + $0x14] sm:$0xf]
  %v5568 = vld [vmem:[%s13 + $0x18] sm:$0xf]
  %v5569 = vld [vmem:[%s13 + $0x1c] sm:$0xf]
  %v5570 = vld [vmem:[%s13 + $0x20] sm:$0xf]
  %v5571 = vld [vmem:[%s13 + $0x24] sm:$0xf]
  %v5572 = vld [vmem:[%s13 + $0x28] sm:$0xf]
  %v5573 = vld [vmem:[%s13 + $0x2c] sm:$0xf]
  %v5574 = vld [vmem:[%s13 + $0x30] sm:$0xf]
  %v5575 = vld [vmem:[%s13 + $0x34] sm:$0xf]
  %v5576 = vld [vmem:[%s13 + $0x38] sm:$0xf]
  %v5577 = vld [vmem:[%s13 + $0x3c] sm:$0xf]
  %v5578 = vld [vmem:[%s14] sm:$0x1]
  %v5580 = vlaneseq
  %v5581 = vshrl.u32 %v5580, 7
  %v5582 = vsub.s32 0, %v5581
  %v5583 = vrot.slane %v5578, %v5582
  %v5601 = vunpack.c.l.b16 %v5562
  %v5602 = vunpack.c.l.b16 %v5563
  %v5603 = vunpack.c.l.b16 %v5564
  %v5604 = vunpack.c.l.b16 %v5565
  %v5605 = vunpack.c.l.b16 %v5566
  %v5606 = vunpack.c.l.b16 %v5567
  %v5607 = vunpack.c.l.b16 %v5568
  %v5608 = vunpack.c.l.b16 %v5569
  %v5609 = vunpack.c.l.b16 %v5570
  %v5610 = vunpack.c.l.b16 %v5571
  %v5611 = vunpack.c.l.b16 %v5572
  %v5612 = vunpack.c.l.b16 %v5573
  %v5613 = vunpack.c.l.b16 %v5574
  %v5614 = vunpack.c.l.b16 %v5575
  %v5615 = vunpack.c.l.b16 %v5576
  %v5616 = vunpack.c.l.b16 %v5577
  %v5617 = vpack.c.b16 %v5602, %v5601
  %v5618 = vpack.c.b16 %v5604, %v5603
  %v5619 = vpack.c.b16 %v5606, %v5605
  %v5620 = vpack.c.b16 %v5608, %v5607
  %v5621 = vpack.c.b16 %v5610, %v5609
  %v5622 = vpack.c.b16 %v5612, %v5611
  %v5623 = vpack.c.b16 %v5614, %v5613
  %v5624 = vpack.c.b16 %v5616, %v5615
  %5633 = vmatprep.subr.bf16.mxu0 0
  %5634 = vmatpush1.bf16.msra.mxu0 %v5617
  %5635 = vmatprep.subr.bf16.mxu0 0
  %5636 = vmatpush1.bf16.msra.mxu0 %v5618
  %5637 = vmatprep.subr.bf16.mxu0 0
  %5638 = vmatpush1.bf16.msra.mxu0 %v5619
  %5639 = vmatprep.subr.bf16.mxu0 0
  %5640 = vmatpush1.bf16.msra.mxu0 %v5620
  %5641 = vmatprep.subr.bf16.mxu0 0
  %5642 = vmatpush1.bf16.msra.mxu0 %v5621
  %5643 = vmatprep.subr.bf16.mxu0 0
  %5644 = vmatpush1.bf16.msra.mxu0 %v5622
  %5645 = vmatprep.subr.bf16.mxu0 0
  %5646 = vmatpush1.bf16.msra.mxu0 %v5623
  %5647 = vmatprep.subr.bf16.mxu0 0
  %5648 = vmatpush1.bf16.msra.mxu0 %v5624
  %5649 = vmatprep.subr.bf16.mxu0 0
  %5650 = vmatpush1.bf16.msra.mxu0 0
  %5651 = vmatprep.subr.bf16.mxu0 0
  %5652 = vmatpush1.bf16.msra.mxu0 0
  %5653 = vmatprep.subr.bf16.mxu0 0
  %5654 = vmatpush1.bf16.msra.mxu0 0
  %5655 = vmatprep.subr.bf16.mxu0 0
  %5656 = vmatpush1.bf16.msra.mxu0 0
  %5657 = vmatprep.subr.bf16.mxu0 0
  %5658 = vmatpush1.bf16.msra.mxu0 0
  %5659 = vmatprep.subr.bf16.mxu0 0
  %5660 = vmatpush1.bf16.msra.mxu0 0
  %5661 = vmatprep.subr.bf16.mxu0 0
  %5662 = vmatpush1.bf16.msra.mxu0 0
  %5663 = vmatprep.subr.bf16.mxu0 0
  %5664 = vmatpush1.bf16.msra.mxu0 0
  %5665 = vmatprep.mubr.bf16.mxu0 0
  %5666 = vmatmul.mubr.bf16.gmra.mrb[0].mxu0 %v5554
  %v5667 = vpop.f32.mrb[0].mxu0
  %v5668 = vadd.f32 %v5583, %v5667
  %v5669 = vpop.f32.mrb[0].mxu0
  %v5670 = vpop.f32.mrb[0].mxu0
  %v5671 = vadd.f32 %v5583, %v5670
  %v5672 = vpop.f32.mrb[0].mxu0
  %5673 = vmatprep.mubr.bf16.mxu0 0
  %5674 = vmatmul.mubr.bf16.gmra.mrb[0].mxu0 %v5555
  %v5675 = vpop.f32.mrb[0].mxu0
  %v5676 = vadd.f32 %v5583, %v5675
  %v5677 = vpop.f32.mrb[0].mxu0
  %v5678 = vpop.f32.mrb[0].mxu0
  %v5679 = vadd.f32 %v5583, %v5678
  %v5680 = vpop.f32.mrb[0].mxu0
  %5681 = vmatprep.mubr.bf16.mxu0 0
  %5682 = vmatmul.mubr.bf16.gmra.mrb[0].mxu0 %v5556
  %v5683 = vpop.f32.mrb[0].mxu0
  %v5684 = vadd.f32 %v5583, %v5683
  %v5685 = vpop.f32.mrb[0].mxu0
  %v5686 = vpop.f32.mrb[0].mxu0
  %v5687 = vadd.f32 %v5583, %v5686
  %v5688 = vpop.f32.mrb[0].mxu0
  %5689 = vmatprep.mubr.bf16.mxu0 0
  %5690 = vmatmul.mubr.bf16.gmra.mrb[0].mxu0 %v5557
  %v5691 = vpop.f32.mrb[0].mxu0
  %v5692 = vadd.f32 %v5583, %v5691
  %v5693 = vpop.f32.mrb[0].mxu0
  %v5694 = vpop.f32.mrb[0].mxu0
  %v5695 = vadd.f32 %v5583, %v5694
  %v5696 = vpop.f32.mrb[0].mxu0
  %5697 = vmatprep.mubr.bf16.mxu0 0
  %5698 = vmatmul.mubr.bf16.gmra.mrb[0].mxu0 %v5558
  %v5699 = vpop.f32.mrb[0].mxu0
  %v5700 = vadd.f32 %v5583, %v5699
  %v5701 = vpop.f32.mrb[0].mxu0
  %v5702 = vpop.f32.mrb[0].mxu0
  %v5703 = vadd.f32 %v5583, %v5702
  %v5704 = vpop.f32.mrb[0].mxu0
  %5705 = vmatprep.mubr.bf16.mxu0 0
  %5706 = vmatmul.mubr.bf16.gmra.mrb[0].mxu0 %v5559
  %v5707 = vpop.f32.mrb[0].mxu0
  %v5708 = vadd.f32 %v5583, %v5707
  %v5709 = vpop.f32.mrb[0].mxu0
  %v5710 = vpop.f32.mrb[0].mxu0
  %v5711 = vadd.f32 %v5583, %v5710
  %v5712 = vpop.f32.mrb[0].mxu0
  %5713 = vmatprep.mubr.bf16.mxu0 0
  %5714 = vmatmul.mubr.bf16.gmra.mrb[0].mxu0 %v5560
  %v5715 = vpop.f32.mrb[0].mxu0
  %v5716 = vadd.f32 %v5583, %v5715
  %v5717 = vpop.f32.mrb[0].mxu0
  %v5718 = vpop.f32.mrb[0].mxu0
  %v5719 = vadd.f32 %v5583, %v5718
  %v5720 = vpop.f32.mrb[0].mxu0
  %5721 = vmatprep.mubr.bf16.mxu0 0
  %5722 = vmatmul.mubr.bf16.gmra.mrb[0].mxu0 %v5561
  %v5723 = vpop.f32.mrb[0].mxu0
  %v5724 = vadd.f32 %v5583, %v5723
  %v5725 = vpop.f32.mrb[0].mxu0
  %v5726 = vpop.f32.mrb[0].mxu0
  %v5727 = vadd.f32 %v5583, %v5726
  %v5728 = vpop.f32.mrb[0].mxu0
  %5729 = vdwg.mxu0
  %v5730 = vadd.f32 %v5052, %v5668
  %v5731 = vadd.f32 %v5053, %v5671
  %v5732 = vadd.f32 %v5054, %v5676
  %v5733 = vadd.f32 %v5055, %v5679
  %v5734 = vadd.f32 %v5056, %v5684
  %v5735 = vadd.f32 %v5057, %v5687
  %v5736 = vadd.f32 %v5058, %v5692
  %v5737 = vadd.f32 %v5059, %v5695
  %v5738 = vadd.f32 %v5060, %v5700
  %v5739 = vadd.f32 %v5061, %v5703
  %v5740 = vadd.f32 %v5062, %v5708
  %v5741 = vadd.f32 %v5063, %v5711
  %v5742 = vadd.f32 %v5064, %v5716
  %v5743 = vadd.f32 %v5065, %v5719
  %v5744 = vadd.f32 %v5066, %v5724
  %v5745 = vadd.f32 %v5067, %v5727
  %v5746 = vsel %vm73, %v5730, 0.0
  %5747 = vadd.xlane.f32.xlu0 %v5746
  %v5748 = vpop.xlane.xlu0 %5747
  %v5749 = vsel %vm73, %v5731, 0.0
  %5750 = vadd.xlane.f32.xlu0 %v5749
  %v5751 = vpop.xlane.xlu0 %5750
  %v5752 = vsel %vm73, %v5732, 0.0
  %5753 = vadd.xlane.f32.xlu0 %v5752
  %v5754 = vpop.xlane.xlu0 %5753
  %v5755 = vsel %vm73, %v5733, 0.0
  %5756 = vadd.xlane.f32.xlu0 %v5755
  %v5757 = vpop.xlane.xlu0 %5756
  %v5758 = vsel %vm73, %v5734, 0.0
  %5759 = vadd.xlane.f32.xlu0 %v5758
  %v5760 = vpop.xlane.xlu0 %5759
  %v5761 = vsel %vm73, %v5735, 0.0
  %5762 = vadd.xlane.f32.xlu0 %v5761
  %v5763 = vpop.xlane.xlu0 %5762
  %v5764 = vsel %vm73, %v5736, 0.0
  %5765 = vadd.xlane.f32.xlu0 %v5764
  %v5766 = vpop.xlane.xlu0 %5765
  %v5767 = vsel %vm73, %v5737, 0.0
  %5768 = vadd.xlane.f32.xlu0 %v5767
  %v5769 = vpop.xlane.xlu0 %5768
  %v5770 = vsel %vm73, %v5738, 0.0
  %5771 = vadd.xlane.f32.xlu0 %v5770
  %v5772 = vpop.xlane.xlu0 %5771
  %v5773 = vsel %vm73, %v5739, 0.0
  %5774 = vadd.xlane.f32.xlu0 %v5773
  %v5775 = vpop.xlane.xlu0 %5774
  %v5776 = vsel %vm73, %v5740, 0.0
  %5777 = vadd.xlane.f32.xlu0 %v5776
  %v5778 = vpop.xlane.xlu0 %5777
  %v5779 = vsel %vm73, %v5741, 0.0
  %5780 = vadd.xlane.f32.xlu0 %v5779
  %v5781 = vpop.xlane.xlu0 %5780
  %v5782 = vsel %vm73, %v5742, 0.0
  %5783 = vadd.xlane.f32.xlu0 %v5782
  %v5784 = vpop.xlane.xlu0 %5783
  %v5785 = vsel %vm73, %v5743, 0.0
  %5786 = vadd.xlane.f32.xlu0 %v5785
  %v5787 = vpop.xlane.xlu0 %5786
  %v5788 = vsel %vm73, %v5744, 0.0
  %5789 = vadd.xlane.f32.xlu0 %v5788
  %v5790 = vpop.xlane.xlu0 %5789
  %v5791 = vsel %vm73, %v5745, 0.0
  %5792 = vadd.xlane.f32.xlu0 %v5791
  %v5793 = vpop.xlane.xlu0 %5792
  %v5794 = vmul.f32 %v5748, %v122
  %v5795 = vmul.f32 %v5751, %v122
  %v5796 = vmul.f32 %v5754, %v122
  %v5797 = vmul.f32 %v5757, %v122
  %v5798 = vmul.f32 %v5760, %v122
  %v5799 = vmul.f32 %v5763, %v122
  %v5800 = vmul.f32 %v5766, %v122
  %v5801 = vmul.f32 %v5769, %v122
  %v5802 = vmul.f32 %v5772, %v122
  %v5803 = vmul.f32 %v5775, %v122
  %v5804 = vmul.f32 %v5778, %v122
  %v5805 = vmul.f32 %v5781, %v122
  %v5806 = vmul.f32 %v5784, %v122
  %v5807 = vmul.f32 %v5787, %v122
  %v5808 = vmul.f32 %v5790, %v122
  %v5809 = vmul.f32 %v5793, %v122
  %v5810 = vsub.f32 %v5730, %v5794
  %v5811 = vsub.f32 %v5731, %v5795
  %v5812 = vsub.f32 %v5732, %v5796
  %v5813 = vsub.f32 %v5733, %v5797
  %v5814 = vsub.f32 %v5734, %v5798
  %v5815 = vsub.f32 %v5735, %v5799
  %v5816 = vsub.f32 %v5736, %v5800
  %v5817 = vsub.f32 %v5737, %v5801
  %v5818 = vsub.f32 %v5738, %v5802
  %v5819 = vsub.f32 %v5739, %v5803
  %v5820 = vsub.f32 %v5740, %v5804
  %v5821 = vsub.f32 %v5741, %v5805
  %v5822 = vsub.f32 %v5742, %v5806
  %v5823 = vsub.f32 %v5743, %v5807
  %v5824 = vsub.f32 %v5744, %v5808
  %v5825 = vsub.f32 %v5745, %v5809
  %v5826 = vmul.f32 %v5810, %v5810
  %v5827 = vmul.f32 %v5811, %v5811
  %v5828 = vmul.f32 %v5812, %v5812
  %v5829 = vmul.f32 %v5813, %v5813
  %v5830 = vmul.f32 %v5814, %v5814
  %v5831 = vmul.f32 %v5815, %v5815
  %v5832 = vmul.f32 %v5816, %v5816
  %v5833 = vmul.f32 %v5817, %v5817
  %v5834 = vmul.f32 %v5818, %v5818
  %v5835 = vmul.f32 %v5819, %v5819
  %v5836 = vmul.f32 %v5820, %v5820
  %v5837 = vmul.f32 %v5821, %v5821
  %v5838 = vmul.f32 %v5822, %v5822
  %v5839 = vmul.f32 %v5823, %v5823
  %v5840 = vmul.f32 %v5824, %v5824
  %v5841 = vmul.f32 %v5825, %v5825
  %v5842 = vsel %vm73, %v5826, 0.0
  %5843 = vadd.xlane.f32.xlu0 %v5842
  %v5844 = vpop.xlane.xlu0 %5843
  %v5845 = vsel %vm73, %v5827, 0.0
  %5846 = vadd.xlane.f32.xlu0 %v5845
  %v5847 = vpop.xlane.xlu0 %5846
  %v5848 = vsel %vm73, %v5828, 0.0
  %5849 = vadd.xlane.f32.xlu0 %v5848
  %v5850 = vpop.xlane.xlu0 %5849
  %v5851 = vsel %vm73, %v5829, 0.0
  %5852 = vadd.xlane.f32.xlu0 %v5851
  %v5853 = vpop.xlane.xlu0 %5852
  %v5854 = vsel %vm73, %v5830, 0.0
  %5855 = vadd.xlane.f32.xlu0 %v5854
  %v5856 = vpop.xlane.xlu0 %5855
  %v5857 = vsel %vm73, %v5831, 0.0
  %5858 = vadd.xlane.f32.xlu0 %v5857
  %v5859 = vpop.xlane.xlu0 %5858
  %v5860 = vsel %vm73, %v5832, 0.0
  %5861 = vadd.xlane.f32.xlu0 %v5860
  %v5862 = vpop.xlane.xlu0 %5861
  %v5863 = vsel %vm73, %v5833, 0.0
  %5864 = vadd.xlane.f32.xlu0 %v5863
  %v5865 = vpop.xlane.xlu0 %5864
  %v5866 = vsel %vm73, %v5834, 0.0
  %5867 = vadd.xlane.f32.xlu0 %v5866
  %v5868 = vpop.xlane.xlu0 %5867
  %v5869 = vsel %vm73, %v5835, 0.0
  %5870 = vadd.xlane.f32.xlu0 %v5869
  %v5871 = vpop.xlane.xlu0 %5870
  %v5872 = vsel %vm73, %v5836, 0.0
  %5873 = vadd.xlane.f32.xlu0 %v5872
  %v5874 = vpop.xlane.xlu0 %5873
  %v5875 = vsel %vm73, %v5837, 0.0
  %5876 = vadd.xlane.f32.xlu0 %v5875
  %v5877 = vpop.xlane.xlu0 %5876
  %v5878 = vsel %vm73, %v5838, 0.0
  %5879 = vadd.xlane.f32.xlu0 %v5878
  %v5880 = vpop.xlane.xlu0 %5879
  %v5881 = vsel %vm73, %v5839, 0.0
  %5882 = vadd.xlane.f32.xlu0 %v5881
  %v5883 = vpop.xlane.xlu0 %5882
  %v5884 = vsel %vm73, %v5840, 0.0
  %5885 = vadd.xlane.f32.xlu0 %v5884
  %v5886 = vpop.xlane.xlu0 %5885
  %v5887 = vsel %vm73, %v5841, 0.0
  %5888 = vadd.xlane.f32.xlu0 %v5887
  %v5889 = vpop.xlane.xlu0 %5888
  %v5890 = vmul.f32 %v5844, %v122
  %v5891 = vmul.f32 %v5847, %v122
  %v5892 = vmul.f32 %v5850, %v122
  %v5893 = vmul.f32 %v5853, %v122
  %v5894 = vmul.f32 %v5856, %v122
  %v5895 = vmul.f32 %v5859, %v122
  %v5896 = vmul.f32 %v5862, %v122
  %v5897 = vmul.f32 %v5865, %v122
  %v5898 = vmul.f32 %v5868, %v122
  %v5899 = vmul.f32 %v5871, %v122
  %v5900 = vmul.f32 %v5874, %v122
  %v5901 = vmul.f32 %v5877, %v122
  %v5902 = vmul.f32 %v5880, %v122
  %v5903 = vmul.f32 %v5883, %v122
  %v5904 = vmul.f32 %v5886, %v122
  %v5905 = vmul.f32 %v5889, %v122
  %v5906 = vadd.f32 %v5890, 1e-05
  %v5907 = vadd.f32 %v5891, 1e-05
  %v5908 = vadd.f32 %v5892, 1e-05
  %v5909 = vadd.f32 %v5893, 1e-05
  %v5910 = vadd.f32 %v5894, 1e-05
  %v5911 = vadd.f32 %v5895, 1e-05
  %v5912 = vadd.f32 %v5896, 1e-05
  %v5913 = vadd.f32 %v5897, 1e-05
  %v5914 = vadd.f32 %v5898, 1e-05
  %v5915 = vadd.f32 %v5899, 1e-05
  %v5916 = vadd.f32 %v5900, 1e-05
  %v5917 = vadd.f32 %v5901, 1e-05
  %v5918 = vadd.f32 %v5902, 1e-05
  %v5919 = vadd.f32 %v5903, 1e-05
  %v5920 = vadd.f32 %v5904, 1e-05
  %v5921 = vadd.f32 %v5905, 1e-05
  %v5922 = vrsqrt.pop %v5906
  %v5923 = vrsqrt.pop %v5907
  %v5924 = vrsqrt.pop %v5908
  %v5925 = vrsqrt.pop %v5909
  %v5926 = vrsqrt.pop %v5910
  %v5927 = vrsqrt.pop %v5911
  %v5928 = vrsqrt.pop %v5912
  %v5929 = vrsqrt.pop %v5913
  %v5930 = vrsqrt.pop %v5914
  %v5931 = vrsqrt.pop %v5915
  %v5932 = vrsqrt.pop %v5916
  %v5933 = vrsqrt.pop %v5917
  %v5934 = vrsqrt.pop %v5918
  %v5935 = vrsqrt.pop %v5919
  %v5936 = vrsqrt.pop %v5920
  %v5937 = vrsqrt.pop %v5921
  %v5938 = vmul.f32 %v5810, %v5922
  %v5939 = vmul.f32 %v5811, %v5923
  %v5940 = vmul.f32 %v5812, %v5924
  %v5941 = vmul.f32 %v5813, %v5925
  %v5942 = vmul.f32 %v5814, %v5926
  %v5943 = vmul.f32 %v5815, %v5927
  %v5944 = vmul.f32 %v5816, %v5928
  %v5945 = vmul.f32 %v5817, %v5929
  %v5946 = vmul.f32 %v5818, %v5930
  %v5947 = vmul.f32 %v5819, %v5931
  %v5948 = vmul.f32 %v5820, %v5932
  %v5949 = vmul.f32 %v5821, %v5933
  %v5950 = vmul.f32 %v5822, %v5934
  %v5951 = vmul.f32 %v5823, %v5935
  %v5952 = vmul.f32 %v5824, %v5936
  %v5953 = vmul.f32 %v5825, %v5937
  %v5954 = vld [vmem:[%s15] sm:$0x1]
  %v5956 = vlaneseq
  %v5957 = vshrl.u32 %v5956, 7
  %v5958 = vsub.s32 0, %v5957
  %v5959 = vrot.slane %v5954, %v5958
  %v5961 = vmul.f32 %v5938, %v5959
  %v5962 = vmul.f32 %v5939, %v5959
  %v5963 = vmul.f32 %v5940, %v5959
  %v5964 = vmul.f32 %v5941, %v5959
  %v5965 = vmul.f32 %v5942, %v5959
  %v5966 = vmul.f32 %v5943, %v5959
  %v5967 = vmul.f32 %v5944, %v5959
  %v5968 = vmul.f32 %v5945, %v5959
  %v5969 = vmul.f32 %v5946, %v5959
  %v5970 = vmul.f32 %v5947, %v5959
  %v5971 = vmul.f32 %v5948, %v5959
  %v5972 = vmul.f32 %v5949, %v5959
  %v5973 = vmul.f32 %v5950, %v5959
  %v5974 = vmul.f32 %v5951, %v5959
  %v5975 = vmul.f32 %v5952, %v5959
  %v5976 = vmul.f32 %v5953, %v5959
  %v5977 = vld [vmem:[%s16] sm:$0x1]
  %v5979 = vlaneseq
  %v5980 = vshrl.u32 %v5979, 7
  %v5981 = vsub.s32 0, %v5980
  %v5982 = vrot.slane %v5977, %v5981
  %v5984 = vadd.f32 %v5961, %v5982
  %v5985 = vadd.f32 %v5962, %v5982
  %v5986 = vadd.f32 %v5963, %v5982
  %v5987 = vadd.f32 %v5964, %v5982
  %v5988 = vadd.f32 %v5965, %v5982
  %v5989 = vadd.f32 %v5966, %v5982
  %v5990 = vadd.f32 %v5967, %v5982
  %v5991 = vadd.f32 %v5968, %v5982
  %v5992 = vadd.f32 %v5969, %v5982
  %v5993 = vadd.f32 %v5970, %v5982
  %v5994 = vadd.f32 %v5971, %v5982
  %v5995 = vadd.f32 %v5972, %v5982
  %v5996 = vadd.f32 %v5973, %v5982
  %v5997 = vadd.f32 %v5974, %v5982
  %v5998 = vadd.f32 %v5975, %v5982
  %v5999 = vadd.f32 %v5976, %v5982
  %6000 = vst.msk [vmem:[%s17] sm:$0xff] %vm73, %v5984
  %6001 = vst.msk [vmem:[%s17 + $0x8] sm:$0xff] %vm73, %v5985
  %6002 = vst.msk [vmem:[%s17 + $0x10] sm:$0xff] %vm73, %v5986
  %6003 = vst.msk [vmem:[%s17 + $0x18] sm:$0xff] %vm73, %v5987
  %6004 = vst.msk [vmem:[%s17 + $0x20] sm:$0xff] %vm73, %v5988
  %6005 = vst.msk [vmem:[%s17 + $0x28] sm:$0xff] %vm73, %v5989
  %6006 = vst.msk [vmem:[%s17 + $0x30] sm:$0xff] %vm73, %v5990
  %6007 = vst.msk [vmem:[%s17 + $0x38] sm:$0xff] %vm73, %v5991
  %6008 = vst.msk [vmem:[%s17 + $0x40] sm:$0xff] %vm73, %v5992
  %6009 = vst.msk [vmem:[%s17 + $0x48] sm:$0xff] %vm73, %v5993
  %6010 = vst.msk [vmem:[%s17 + $0x50] sm:$0xff] %vm73, %v5994
  %6011 = vst.msk [vmem:[%s17 + $0x58] sm:$0xff] %vm73, %v5995
  %6012 = vst.msk [vmem:[%s17 + $0x60] sm:$0xff] %vm73, %v5996
  %6013 = vst.msk [vmem:[%s17 + $0x68] sm:$0xff] %vm73, %v5997
  %6014 = vst.msk [vmem:[%s17 + $0x70] sm:$0xff] %vm73, %v5998
  %6015 = vst.msk [vmem:[%s17 + $0x78] sm:$0xff] %vm73, %v5999
  // Predicated region
  $region70: #{forward.5} parent=0 // pred_check
    _
  $region71: #{forward.5} parent=0 // pred_check_branch
    %6017 = sbr.rel (0) target = $region73
  $region72: #{forward.5} parent=0 // pred_region
    _
  $region73: #{forward.5} parent=0 // pred_fallthru
    _
  // Predicated region
  $region74: #{forward.5} parent=0 // pred_check
    _
  $region75: #{forward.5} parent=0 // pred_check_branch
    %6019 = sbr.rel (0) target = $region77
  $region76: #{forward.5} parent=0 // pred_region
    _
  $region77: #{forward.5} parent=0 // pred_fallthru
    _

</llo_original>
